<compile_context>
chip_gen: v7x
topology: tpu7x:2x2x1
jax: 0.10.0
libtpu: 0.0.40
codegen_flags: <defaults>
</compile_context>

<pallas_src>
import functools

import jax
import jax.numpy as jnp
from jax.experimental import pallas as pl
from jax.experimental.pallas import tpu as pltpu


# ----------------------------------------------------------------------------
# Pallas kernels
# ----------------------------------------------------------------------------
def _matmul_bias_kernel(x_ref, w_ref, b_ref, o_ref):
    """(TM, K)bf16 @ (K, N)bf16 -> f32 acc, + (1, N) bias.  GRU input proj."""
    acc = jnp.dot(x_ref[...], w_ref[...], preferred_element_type=jnp.float32)
    o_ref[...] = acc + b_ref[...]


def matmul_bias(x, w, b):
    M, K = x.shape
    _, N = w.shape
    tm = 128 if (M > 128 and M % 128 == 0) else M
    grid_m = M // tm
    flops = 2 * M * K * N
    bytes_accessed = (M * K * x.dtype.itemsize + K * N * w.dtype.itemsize
                      + N * 4 + M * N * 4)
    return pl.pallas_call(
        _matmul_bias_kernel,
        out_shape=jax.ShapeDtypeStruct((M, N), jnp.float32),
        grid=(grid_m,),
        in_specs=[
            pl.BlockSpec((tm, K), lambda i: (i, 0)),
            pl.BlockSpec((K, N), lambda i: (0, 0)),
            pl.BlockSpec((1, N), lambda i: (0, 0)),
        ],
        out_specs=pl.BlockSpec((tm, N), lambda i: (i, 0)),
        compiler_params=pltpu.CompilerParams(
            dimension_semantics=("parallel",)),
        cost_estimate=pl.CostEstimate(flops=flops, transcendentals=0,
                                      bytes_accessed=bytes_accessed),
    )(x, w, b)


def _sigmoid(v):
    return 1.0 / (1.0 + jnp.exp(-v))


def _gru_recurrence_kernel(xg_ref, whh_ref, bhh_ref, out_ref, *h_refs,
                           hidden, bidirectional):
    """Sequential GRU recurrence over time (fwd and optional bwd direction).

    xg_ref : (T, B, 3H) or (T, B, 6H) precomputed x@W_ih + b_ih (fwd | bwd)
    whh_ref: (H, 3H) or (H, 6H) bf16   hidden weights (fwd | bwd)
    bhh_ref: (1, 3H) or (1, 6H) f32    hidden biases  (fwd | bwd)
    out_ref: (T, B, H) or (T, B, 2H)   h sequence ([fwd | bwd] concat on lanes)
    h_refs : one (B, H) f32 VMEM scratch per direction.
    Gate order [r | z | n] matches torch.nn.GRU.
    """
    H = hidden
    T = xg_ref.shape[0]

    for h_ref in h_refs:
        h_ref[...] = jnp.zeros_like(h_ref)

    def cell(xg, hg, h_prev):
        r = _sigmoid(xg[:, :H] + hg[:, :H])
        u = _sigmoid(xg[:, H:2 * H] + hg[:, H:2 * H])
        n = jnp.tanh(xg[:, 2 * H:3 * H] + r * hg[:, 2 * H:3 * H])
        return (1.0 - u) * n + u * h_prev

    def step(t, carry):
        # ---- forward direction ----
        h_f = h_refs[0][...]
        hg_f = (jnp.dot(h_f.astype(whh_ref.dtype), whh_ref[:, :3 * H],
                        preferred_element_type=jnp.float32)
                + bhh_ref[:, :3 * H])
        h_f = cell(xg_ref[t, :, :3 * H], hg_f, h_f)
        h_refs[0][...] = h_f
        if bidirectional:
            out_ref[t, :, :H] = h_f
            # ---- backward direction (reversed time index) ----
            tb = T - 1 - t
            h_b = h_refs[1][...]
            hg_b = (jnp.dot(h_b.astype(whh_ref.dtype), whh_ref[:, 3 * H:],
                            preferred_element_type=jnp.float32)
                    + bhh_ref[:, 3 * H:])
            h_b = cell(xg_ref[tb, :, 3 * H:], hg_b, h_b)
            h_refs[1][...] = h_b
            out_ref[tb, :, H:] = h_b
        else:
            out_ref[t] = h_f
        return carry

    jax.lax.fori_loop(0, T, step, 0, unroll=T <= 16)


def _gru_recurrence(xg, whh, bhh, *, hidden, bidirectional):
    T, B, G = xg.shape
    n_dir = 2 if bidirectional else 1
    return pl.pallas_call(
        functools.partial(_gru_recurrence_kernel, hidden=hidden,
                          bidirectional=bidirectional),
        out_shape=jax.ShapeDtypeStruct((T, B, n_dir * hidden), jnp.float32),
        grid=(1,),
        in_specs=[
            pl.BlockSpec((T, B, G), lambda i: (0, 0, 0)),
            pl.BlockSpec((hidden, G), lambda i: (0, 0)),
            pl.BlockSpec((1, G), lambda i: (0, 0)),
        ],
        out_specs=pl.BlockSpec((T, B, n_dir * hidden), lambda i: (0, 0, 0)),
        scratch_shapes=[pltpu.VMEM((B, hidden), jnp.float32)] * n_dir,
    )(xg, whh, bhh)


def _mlp_head_kernel(x_ref, w1_ref, b1_ref, w2_ref, b2_ref, o_ref):
    """fc1 + ReLU + fc2 fused, bf16 MXU, f32 accumulate."""
    h = jnp.dot(x_ref[...], w1_ref[...], preferred_element_type=jnp.float32)
    h = jnp.maximum(h + b1_ref[...], 0.0)
    o = jnp.dot(h.astype(w2_ref.dtype), w2_ref[...],
                preferred_element_type=jnp.float32)
    o_ref[...] = o + b2_ref[...]


def mlp_head(x, w1, b1, w2, b2):
    M, K = x.shape
    Fc = w1.shape[1]
    Q = w2.shape[1]
    tm = 128 if (M > 128 and M % 128 == 0) else M
    grid_m = M // tm
    flops = 2 * M * K * Fc + 2 * M * Fc * Q
    bytes_accessed = M * K * 2 + K * Fc * 2 + Fc * Q * 2 + M * Q * 4
    return pl.pallas_call(
        _mlp_head_kernel,
        out_shape=jax.ShapeDtypeStruct((M, Q), jnp.float32),
        grid=(grid_m,),
        in_specs=[
            pl.BlockSpec((tm, K), lambda i: (i, 0)),
            pl.BlockSpec((K, Fc), lambda i: (0, 0)),
            pl.BlockSpec((1, Fc), lambda i: (0, 0)),
            pl.BlockSpec((Fc, Q), lambda i: (0, 0)),
            pl.BlockSpec((1, Q), lambda i: (0, 0)),
        ],
        out_specs=pl.BlockSpec((tm, Q), lambda i: (i, 0)),
        compiler_params=pltpu.CompilerParams(
            dimension_semantics=("parallel",)),
        cost_estimate=pl.CostEstimate(flops=flops, transcendentals=0,
                                      bytes_accessed=bytes_accessed),
    )(x, w1, b1, w2, b2)


# ----------------------------------------------------------------------------
# GRU layer wrappers (batched input projection + sequential recurrence)
# ----------------------------------------------------------------------------
def bigru_layer(x_tm, params, hidden):
    """One bidirectional GRU layer. x_tm: (T, B, I) -> (T, B, 2H)."""
    T, B, I = x_tm.shape
    xg = matmul_bias(x_tm.reshape(T * B, I).astype(jnp.bfloat16),
                     params["wih"], params["bih"])
    xg = xg.reshape(T, B, 6 * hidden)
    return _gru_recurrence(xg, params["whh"], params["bhh"],
                           hidden=hidden, bidirectional=True)


def gru_layer(x_tm, params, hidden):
    """One unidirectional GRU layer. x_tm: (T, B, I) -> (T, B, H)."""
    T, B, I = x_tm.shape
    xg = matmul_bias(x_tm.reshape(T * B, I).astype(jnp.bfloat16),
                     params["wih"], params["bih"])
    xg = xg.reshape(T, B, 3 * hidden)
    return _gru_recurrence(xg, params["whh"], params["bhh"],
                           hidden=hidden, bidirectional=False)


# ----------------------------------------------------------------------------
# Parameter construction (deterministic; torch.nn.GRU gate order [r|z|n])
# ----------------------------------------------------------------------------
def _gru_dir_params(key, in_dim, hidden):
    ks = jax.random.split(key, 4)
    s = 1.0 / (hidden ** 0.5)
    u = lambda k, shape: jax.random.uniform(k, shape, jnp.float32, -s, s)
    return (u(ks[0], (in_dim, 3 * hidden)),   # W_ih^T
            u(ks[1], (hidden, 3 * hidden)),   # W_hh^T
            u(ks[2], (1, 3 * hidden)),        # b_ih
            u(ks[3], (1, 3 * hidden)))        # b_hh


def _bigru_layer_params(key, in_dim, hidden):
    kf, kb = jax.random.split(key)
    wif, whf, bif, bhf = _gru_dir_params(kf, in_dim, hidden)
    wib, whb, bib, bhb = _gru_dir_params(kb, in_dim, hidden)
    return {
        "wih": jnp.concatenate([wif, wib], axis=1).astype(jnp.bfloat16),
        "whh": jnp.concatenate([whf, whb], axis=1).astype(jnp.bfloat16),
        "bih": jnp.concatenate([bif, bib], axis=1),
        "bhh": jnp.concatenate([bhf, bhb], axis=1),
    }


def _gru_layer_params(key, in_dim, hidden):
    wih, whh, bih, bhh = _gru_dir_params(key, in_dim, hidden)
    return {"wih": wih.astype(jnp.bfloat16), "whh": whh.astype(jnp.bfloat16),
            "bih": bih, "bhh": bhh}


# ----------------------------------------------------------------------------
# Model
# ----------------------------------------------------------------------------
class RnnDecoderPallas:
    def __init__(self, key, *, code_book_num, code_embedding_dim, n_speakers,
                 speaker_embedding_dim, rnn_layers_num, conditioning_channels,
                 mu_embedding_dim, rnn_channels, fc_channels, bits, hop_length):
        self.rnn_channels = rnn_channels
        self.quantization_channels = 2 ** bits
        self.hop_length = hop_length
        self.rnn_layers_num = rnn_layers_num
        self.conditioning_channels = conditioning_channels

        keys = iter(jax.random.split(key, 32 + 4 * rnn_layers_num))
        nk = lambda: next(keys)

        # embeddings (nn.Embedding default init ~ N(0, 1))
        self.code_emb_1 = jax.random.normal(
            nk(), (code_book_num, code_embedding_dim), jnp.float32)
        self.code_emb_2 = jax.random.normal(
            nk(), (code_book_num, code_embedding_dim), jnp.float32)
        self.speaker_emb = jax.random.normal(
            nk(), (n_speakers, speaker_embedding_dim), jnp.float32)
        self.mu_emb = jax.random.normal(
            nk(), (self.quantization_channels, mu_embedding_dim), jnp.float32)

        C = conditioning_channels
        in1 = 2 * code_embedding_dim + speaker_embedding_dim
        self.rnn1_params = [_bigru_layer_params(nk(), in1, C),
                            _bigru_layer_params(nk(), 2 * C, C)]
        in1a = 2 * code_embedding_dim + 2 * C
        self.rnn1A_params = [
            [_bigru_layer_params(nk(), in1a, C),
             _bigru_layer_params(nk(), 2 * C, C)]
            for _ in range(rnn_layers_num)
        ]
        in2 = mu_embedding_dim + 2 * C
        self.rnn2_params = _gru_layer_params(nk(), in2, rnn_channels)

        s1 = 1.0 / (rnn_channels ** 0.5)
        self.fc1_w = jax.random.uniform(
            nk(), (rnn_channels, fc_channels), jnp.float32, -s1, s1
        ).astype(jnp.bfloat16)
        self.fc1_b = jax.random.uniform(nk(), (1, fc_channels), jnp.float32, -s1, s1)
        s2 = 1.0 / (fc_channels ** 0.5)
        self.fc2_w = jax.random.uniform(
            nk(), (fc_channels, self.quantization_channels), jnp.float32, -s2, s2
        ).astype(jnp.bfloat16)
        self.fc2_b = jax.random.uniform(
            nk(), (1, self.quantization_channels), jnp.float32, -s2, s2)

    # --- forward (mirrors RnnDecoder.forward) ------------------------------
    def forward(self, x, idxs1, idxs2, speakers, *, audio_size):
        B, T = idxs1.shape
        C = self.conditioning_channels

        # embeddings (XLA gather glue, fused under jit)
        z1 = jnp.take(self.code_emb_1, idxs1, axis=0)            # (B, T, E)
        z2 = jnp.take(self.code_emb_2, idxs2, axis=0)            # (B, T, E)
        spk = jnp.take(self.speaker_emb, speakers, axis=0)       # (B, S)
        spk = jnp.broadcast_to(spk[:, None, :], (B, T, spk.shape[-1]))

        # time-major layout for the recurrence kernels
        z1_tm = jnp.transpose(z1, (1, 0, 2))
        z2_tm = jnp.transpose(z2, (1, 0, 2))
        spk_tm = jnp.transpose(spk, (1, 0, 2))
        z = jnp.concatenate([z1_tm, z2_tm, spk_tm], axis=-1)     # (T, B, 2E+S)

        # rnn1: 2-layer bidirectional GRU
        h = bigru_layer(z, self.rnn1_params[0], C)
        h = bigru_layer(h, self.rnn1_params[1], C)

        # rnn1A stack
        for layer_params in self.rnn1A_params:
            h_in = jnp.concatenate([h, z1_tm, z2_tm], axis=-1)   # (T, B, 2C+2E)
            h = bigru_layer(h_in, layer_params[0], C)
            h = bigru_layer(h, layer_params[1], C)

        # F.interpolate(mode='nearest') along time -> audio_size
        src = (jnp.arange(audio_size) * T) // audio_size
        z_up = jnp.take(h, src, axis=0)                          # (A, B, 2C)

        # mu-law embedding of x, then rnn2 (unidirectional)
        mu = jnp.take(self.mu_emb, x, axis=0)                    # (B, A, MU)
        mu_tm = jnp.transpose(mu, (1, 0, 2))                     # (A, B, MU)
        xin = jnp.concatenate([mu_tm, z_up], axis=-1)            # (A, B, MU+2C)
        hseq = gru_layer(xin, self.rnn2_params, self.rnn_channels)  # (A, B, R)

        # fc1 + ReLU + fc2, fused, batched over all timesteps
        logits = mlp_head(
            hseq.reshape(audio_size * B, self.rnn_channels).astype(jnp.bfloat16),
            self.fc1_w, self.fc1_b, self.fc2_w, self.fc2_b)      # (A*B, Q)
        logits = logits.reshape(audio_size, B, self.quantization_channels)
        return jnp.transpose(logits, (1, 0, 2))                  # (B, A, Q)

    # TODO(synk): generate() (sequential GRUCell sampling, Categorical draw,
    #             mulaw_decode) is a host-driven sampling loop; not implemented.


# ----------------------------------------------------------------------------
if __name__ == "__main__":
    key = jax.random.PRNGKey(0)
    model = RnnDecoderPallas(
        key,
        code_book_num=64, code_embedding_dim=64,
        n_speakers=4, speaker_embedding_dim=64,
        rnn_layers_num=1, conditioning_channels=128,
        mu_embedding_dim=128, rnn_channels=128, fc_channels=128,
        bits=8, hop_length=16)

    B, T = 2, 8
    audio_size = T * model.hop_length                            # 128

    dkeys = jax.random.split(jax.random.fold_in(key, 1234), 4)
    x = jax.random.randint(dkeys[0], (B, audio_size), 0,
                           model.quantization_channels, dtype=jnp.int32)
    idxs1 = jax.random.randint(dkeys[1], (B, T), 0, 64, dtype=jnp.int32)
    idxs2 = jax.random.randint(dkeys[2], (B, T), 0, 64, dtype=jnp.int32)
    speakers = jax.random.randint(dkeys[3], (B,), 0, 4, dtype=jnp.int32)

    fwd = jax.jit(model.forward, static_argnames=("audio_size",))
    out = jax.block_until_ready(
        fwd(x, idxs1, idxs2, speakers, audio_size=audio_size))

    assert out.shape == (B, audio_size, model.quantization_channels), out.shape
    assert bool(jnp.isfinite(out).all())

    print("KERNEL_OK")
</pallas_src>

<mosaic_0001>
module attributes {stable_mosaic.version = 11 : i64} {
  func.func @_matmul_bias_kernel(%arg0: i32, %arg1: memref<16x192xbf16, #tpu.memory_space<vmem>>, %arg2: memref<192x768xbf16, #tpu.memory_space<vmem>>, %arg3: memref<1x768xf32, #tpu.memory_space<vmem>>, %arg4: memref<16x768xf32, #tpu.memory_space<vmem>>) attributes {dimension_semantics = [#tpu.dimension_semantics<parallel>], iteration_bounds = array<i64: 1>, scalar_prefetch = 0 : i64, scratch_operands = 0 : i64, tpu.core_type = #tpu.core_type<tc>, window_params = [{transform_indices = @transform_0, window_bounds = array<i64: 16, 192>}, {pipeline_mode = #tpu.pipeline_mode<synchronous>, transform_indices = @transform_1, window_bounds = array<i64: 192, 768>}, {pipeline_mode = #tpu.pipeline_mode<synchronous>, transform_indices = @transform_2, window_bounds = array<i64: 1, 768>}, {transform_indices = @transform_3, window_bounds = array<i64: 16, 768>}]} {
    %c0 = arith.constant 0 : index
    %c0_0 = arith.constant 0 : index
    %0 = vector.load %arg1[%c0, %c0_0] : memref<16x192xbf16, #tpu.memory_space<vmem>>, vector<16x192xbf16>
    %c0_1 = arith.constant 0 : index
    %c0_2 = arith.constant 0 : index
    %1 = vector.load %arg2[%c0_1, %c0_2] : memref<192x768xbf16, #tpu.memory_space<vmem>>, vector<192x768xbf16>
    %cst = arith.constant dense<0.000000e+00> : vector<16x768xf32>
    %2 = tpu.matmul %0, %1, %cst {dimension_numbers = #tpu.dot_dimension_numbers<[1], [0], [0], [1], [0, 0, 1, 1], [], []>} : vector<16x192xbf16>, vector<192x768xbf16>, vector<16x768xf32> -> vector<16x768xf32>
    %c0_3 = arith.constant 0 : index
    %c0_4 = arith.constant 0 : index
    %3 = vector.load %arg3[%c0_3, %c0_4] : memref<1x768xf32, #tpu.memory_space<vmem>>, vector<1x768xf32>
    %4 = vector.broadcast %3 : vector<1x768xf32> to vector<16x768xf32>
    %5 = arith.addf %2, %4 : vector<16x768xf32>
    %c0_5 = arith.constant 0 : index
    %c0_6 = arith.constant 0 : index
    %6 = vector.load %arg4[%c0_5, %c0_6] : memref<16x768xf32, #tpu.memory_space<vmem>>, vector<16x768xf32>
    tpu.vector_store %arg4[%c0_5, %c0_6], %5 {strides = array<i32>} : memref<16x768xf32, #tpu.memory_space<vmem>>, vector<16x768xf32>,
    return
  }
  func.func @transform_0(%arg0: i32) -> (i32, i32) {
    %c0_i32 = arith.constant 0 : i32
    %c0_i32_0 = arith.constant 0 : i32
    return %arg0, %c0_i32 : i32, i32
  }
  func.func @transform_1(%arg0: i32) -> (i32, i32) {
    %c0_i32 = arith.constant 0 : i32
    %c0_i32_0 = arith.constant 0 : i32
    %c0_i32_1 = arith.constant 0 : i32
    return %c0_i32, %c0_i32_0 : i32, i32
  }
  func.func @transform_2(%arg0: i32) -> (i32, i32) {
    %c0_i32 = arith.constant 0 : i32
    %c0_i32_0 = arith.constant 0 : i32
    %c0_i32_1 = arith.constant 0 : i32
    return %c0_i32, %c0_i32_0 : i32, i32
  }
  func.func @transform_3(%arg0: i32) -> (i32, i32) {
    %c0_i32 = arith.constant 0 : i32
    %c0_i32_0 = arith.constant 0 : i32
    return %arg0, %c0_i32 : i32, i32
  }
}

module attributes {stable_mosaic.version = 11 : i64} {
  func.func @_matmul_bias_kernel(%arg0: i32, %arg1: memref<16x256xbf16, #tpu.memory_space<vmem>>, %arg2: memref<256x768xbf16, #tpu.memory_space<vmem>>, %arg3: memref<1x768xf32, #tpu.memory_space<vmem>>, %arg4: memref<16x768xf32, #tpu.memory_space<vmem>>) attributes {dimension_semantics = [#tpu.dimension_semantics<parallel>], iteration_bounds = array<i64: 1>, scalar_prefetch = 0 : i64, scratch_operands = 0 : i64, tpu.core_type = #tpu.core_type<tc>, window_params = [{transform_indices = @transform_0, window_bounds = array<i64: 16, 256>}, {pipeline_mode = #tpu.pipeline_mode<synchronous>, transform_indices = @transform_1, window_bounds = array<i64: 256, 768>}, {pipeline_mode = #tpu.pipeline_mode<synchronous>, transform_indices = @transform_2, window_bounds = array<i64: 1, 768>}, {transform_indices = @transform_3, window_bounds = array<i64: 16, 768>}]} {
    %c0 = arith.constant 0 : index
    %c0_0 = arith.constant 0 : index
    %0 = vector.load %arg1[%c0, %c0_0] : memref<16x256xbf16, #tpu.memory_space<vmem>>, vector<16x256xbf16>
    %c0_1 = arith.constant 0 : index
    %c0_2 = arith.constant 0 : index
    %1 = vector.load %arg2[%c0_1, %c0_2] : memref<256x768xbf16, #tpu.memory_space<vmem>>, vector<256x768xbf16>
    %cst = arith.constant dense<0.000000e+00> : vector<16x768xf32>
    %2 = tpu.matmul %0, %1, %cst {dimension_numbers = #tpu.dot_dimension_numbers<[1], [0], [0], [1], [0, 0, 1, 1], [], []>} : vector<16x256xbf16>, vector<256x768xbf16>, vector<16x768xf32> -> vector<16x768xf32>
    %c0_3 = arith.constant 0 : index
    %c0_4 = arith.constant 0 : index
    %3 = vector.load %arg3[%c0_3, %c0_4] : memref<1x768xf32, #tpu.memory_space<vmem>>, vector<1x768xf32>
    %4 = vector.broadcast %3 : vector<1x768xf32> to vector<16x768xf32>
    %5 = arith.addf %2, %4 : vector<16x768xf32>
    %c0_5 = arith.constant 0 : index
    %c0_6 = arith.constant 0 : index
    %6 = vector.load %arg4[%c0_5, %c0_6] : memref<16x768xf32, #tpu.memory_space<vmem>>, vector<16x768xf32>
    tpu.vector_store %arg4[%c0_5, %c0_6], %5 {strides = array<i32>} : memref<16x768xf32, #tpu.memory_space<vmem>>, vector<16x768xf32>,
    return
  }
  func.func @transform_0(%arg0: i32) -> (i32, i32) {
    %c0_i32 = arith.constant 0 : i32
    %c0_i32_0 = arith.constant 0 : i32
    return %arg0, %c0_i32 : i32, i32
  }
  func.func @transform_1(%arg0: i32) -> (i32, i32) {
    %c0_i32 = arith.constant 0 : i32
    %c0_i32_0 = arith.constant 0 : i32
    %c0_i32_1 = arith.constant 0 : i32
    return %c0_i32, %c0_i32_0 : i32, i32
  }
  func.func @transform_2(%arg0: i32) -> (i32, i32) {
    %c0_i32 = arith.constant 0 : i32
    %c0_i32_0 = arith.constant 0 : i32
    %c0_i32_1 = arith.constant 0 : i32
    return %c0_i32, %c0_i32_0 : i32, i32
  }
  func.func @transform_3(%arg0: i32) -> (i32, i32) {
    %c0_i32 = arith.constant 0 : i32
    %c0_i32_0 = arith.constant 0 : i32
    return %arg0, %c0_i32 : i32, i32
  }
}

module attributes {stable_mosaic.version = 11 : i64} {
  func.func @_gru_recurrence_kernel(%arg0: i32, %arg1: memref<8x2x768xf32, #tpu.memory_space<vmem>>, %arg2: memref<128x768xbf16, #tpu.memory_space<vmem>>, %arg3: memref<1x768xf32, #tpu.memory_space<vmem>>, %arg4: memref<8x2x256xf32, #tpu.memory_space<vmem>>, %arg5: memref<2x128xf32, #tpu.memory_space<vmem>>, %arg6: memref<2x128xf32, #tpu.memory_space<vmem>>) attributes {dimension_semantics = [#tpu.dimension_semantics<arbitrary>], iteration_bounds = array<i64: 1>, scalar_prefetch = 0 : i64, scratch_operands = 2 : i64, tpu.core_type = #tpu.core_type<tc>, window_params = [{pipeline_mode = #tpu.pipeline_mode<synchronous>, transform_indices = @transform_0, window_bounds = array<i64: 8, 2, 768>}, {pipeline_mode = #tpu.pipeline_mode<synchronous>, transform_indices = @transform_1, window_bounds = array<i64: 128, 768>}, {pipeline_mode = #tpu.pipeline_mode<synchronous>, transform_indices = @transform_2, window_bounds = array<i64: 1, 768>}, {pipeline_mode = #tpu.pipeline_mode<synchronous>, transform_indices = @transform_3, window_bounds = array<i64: 8, 2, 256>}]} {
    %cst = arith.constant 0.000000e+00 : f32
    %0 = vector.broadcast %cst : f32 to vector<2x128xf32>
    %c0 = arith.constant 0 : index
    %c0_0 = arith.constant 0 : index
    %1 = vector.load %arg5[%c0, %c0_0] : memref<2x128xf32, #tpu.memory_space<vmem>>, vector<2x128xf32>
    tpu.vector_store %arg5[%c0, %c0_0], %0 {strides = array<i32>} : memref<2x128xf32, #tpu.memory_space<vmem>>, vector<2x128xf32>,
    %cst_1 = arith.constant 0.000000e+00 : f32
    %2 = vector.broadcast %cst_1 : f32 to vector<2x128xf32>
    %c0_2 = arith.constant 0 : index
    %c0_3 = arith.constant 0 : index
    %3 = vector.load %arg6[%c0_2, %c0_3] : memref<2x128xf32, #tpu.memory_space<vmem>>, vector<2x128xf32>
    tpu.vector_store %arg6[%c0_2, %c0_3], %2 {strides = array<i32>} : memref<2x128xf32, #tpu.memory_space<vmem>>, vector<2x128xf32>,
    %c0_i32 = arith.constant 0 : i32
    %c0_4 = arith.constant 0 : index
    %c0_5 = arith.constant 0 : index
    %4 = vector.load %arg5[%c0_4, %c0_5] : memref<2x128xf32, #tpu.memory_space<vmem>>, vector<2x128xf32>
    %5 = arith.truncf %4 : vector<2x128xf32> to vector<2x128xbf16>
    %c0_6 = arith.constant 0 : index
    %c0_7 = arith.constant 0 : index
    %6 = vector.load %arg2[%c0_6, %c0_7] : memref<128x768xbf16, #tpu.memory_space<vmem>>, vector<128x384xbf16>
    %cst_8 = arith.constant dense<0.000000e+00> : vector<2x384xf32>
    %7 = tpu.matmul %5, %6, %cst_8 {dimension_numbers = #tpu.dot_dimension_numbers<[1], [0], [0], [1], [0, 0, 1, 1], [], []>} : vector<2x128xbf16>, vector<128x384xbf16>, vector<2x384xf32> -> vector<2x384xf32>
    %c0_9 = arith.constant 0 : index
    %c0_10 = arith.constant 0 : index
    %8 = vector.load %arg3[%c0_9, %c0_10] : memref<1x768xf32, #tpu.memory_space<vmem>>, vector<1x384xf32>
    %9 = vector.broadcast %8 : vector<1x384xf32> to vector<2x384xf32>
    %10 = arith.addf %7, %9 : vector<2x384xf32>
    %11 = arith.index_cast %c0_i32 : i32 to index
    %c0_11 = arith.constant 0 : index
    %c0_12 = arith.constant 0 : index
    %12 = vector.load %arg1[%11, %c0_11, %c0_12] : memref<8x2x768xf32, #tpu.memory_space<vmem>>, vector<1x2x384xf32>
    %13 = vector.shape_cast %12 : vector<1x2x384xf32> to vector<2x384xf32>
    %14 = vector.extract_strided_slice %13 {offsets = [0, 0], sizes = [2, 128], strides = [1, 1]} : vector<2x384xf32> to vector<2x128xf32>
    %15 = vector.extract_strided_slice %10 {offsets = [0, 0], sizes = [2, 128], strides = [1, 1]} : vector<2x384xf32> to vector<2x128xf32>
    %16 = arith.addf %14, %15 : vector<2x128xf32>
    %cst_13 = arith.constant 0.000000e+00 : f32
    %17 = vector.broadcast %cst_13 : f32 to vector<2x128xf32>
    %18 = arith.subf %17, %16 : vector<2x128xf32>
    %19 = math.exp %18 : vector<2x128xf32>
    %cst_14 = arith.constant 1.000000e+00 : f32
    %20 = vector.broadcast %cst_14 : f32 to vector<2x128xf32>
    %21 = arith.addf %20, %19 : vector<2x128xf32>
    %cst_15 = arith.constant 1.000000e+00 : f32
    %22 = vector.broadcast %cst_15 : f32 to vector<2x128xf32>
    %23 = arith.divf %22, %21 : vector<2x128xf32>
    %24 = vector.extract_strided_slice %13 {offsets = [0, 128], sizes = [2, 128], strides = [1, 1]} : vector<2x384xf32> to vector<2x128xf32>
    %25 = vector.extract_strided_slice %10 {offsets = [0, 128], sizes = [2, 128], strides = [1, 1]} : vector<2x384xf32> to vector<2x128xf32>
    %26 = arith.addf %24, %25 : vector<2x128xf32>
    %cst_16 = arith.constant 0.000000e+00 : f32
    %27 = vector.broadcast %cst_16 : f32 to vector<2x128xf32>
    %28 = arith.subf %27, %26 : vector<2x128xf32>
    %29 = math.exp %28 : vector<2x128xf32>
    %cst_17 = arith.constant 1.000000e+00 : f32
    %30 = vector.broadcast %cst_17 : f32 to vector<2x128xf32>
    %31 = arith.addf %30, %29 : vector<2x128xf32>
    %cst_18 = arith.constant 1.000000e+00 : f32
    %32 = vector.broadcast %cst_18 : f32 to vector<2x128xf32>
    %33 = arith.divf %32, %31 : vector<2x128xf32>
    %34 = vector.extract_strided_slice %13 {offsets = [0, 256], sizes = [2, 128], strides = [1, 1]} : vector<2x384xf32> to vector<2x128xf32>
    %35 = vector.extract_strided_slice %10 {offsets = [0, 256], sizes = [2, 128], strides = [1, 1]} : vector<2x384xf32> to vector<2x128xf32>
    %36 = arith.mulf %23, %35 : vector<2x128xf32>
    %37 = arith.addf %34, %36 : vector<2x128xf32>
    %38 = math.tanh %37 : vector<2x128xf32>
    %cst_19 = arith.constant 1.000000e+00 : f32
    %39 = vector.broadcast %cst_19 : f32 to vector<2x128xf32>
    %40 = arith.subf %39, %33 : vector<2x128xf32>
    %41 = arith.mulf %40, %38 : vector<2x128xf32>
    %42 = arith.mulf %33, %4 : vector<2x128xf32>
    %43 = arith.addf %41, %42 : vector<2x128xf32>
    %c0_20 = arith.constant 0 : index
    %c0_21 = arith.constant 0 : index
    %44 = vector.load %arg5[%c0_20, %c0_21] : memref<2x128xf32, #tpu.memory_space<vmem>>, vector<2x128xf32>
    tpu.vector_store %arg5[%c0_20, %c0_21], %43 {strides = array<i32>} : memref<2x128xf32, #tpu.memory_space<vmem>>, vector<2x128xf32>,
    %45 = arith.index_cast %c0_i32 : i32 to index
    %c0_22 = arith.constant 0 : index
    %c0_23 = arith.constant 0 : index
    %46 = vector.load %arg4[%45, %c0_22, %c0_23] : memref<8x2x256xf32, #tpu.memory_space<vmem>>, vector<1x2x128xf32>
    %47 = vector.shape_cast %46 : vector<1x2x128xf32> to vector<2x128xf32>
    %48 = vector.shape_cast %43 : vector<2x128xf32> to vector<1x2x128xf32>
    tpu.vector_store %arg4[%45, %c0_22, %c0_23], %48 {strides = array<i32>} : memref<8x2x256xf32, #tpu.memory_space<vmem>>, vector<1x2x128xf32>,
    %c7_i32 = arith.constant 7 : i32
    %49 = arith.subi %c7_i32, %c0_i32 : i32
    %c0_24 = arith.constant 0 : index
    %c0_25 = arith.constant 0 : index
    %50 = vector.load %arg6[%c0_24, %c0_25] : memref<2x128xf32, #tpu.memory_space<vmem>>, vector<2x128xf32>
    %51 = arith.truncf %50 : vector<2x128xf32> to vector<2x128xbf16>
    %c0_26 = arith.constant 0 : index
    %c384 = arith.constant 384 : index
    %52 = vector.load %arg2[%c0_26, %c384] : memref<128x768xbf16, #tpu.memory_space<vmem>>, vector<128x384xbf16>
    %cst_27 = arith.constant dense<0.000000e+00> : vector<2x384xf32>
    %53 = tpu.matmul %51, %52, %cst_27 {dimension_numbers = #tpu.dot_dimension_numbers<[1], [0], [0], [1], [0, 0, 1, 1], [], []>} : vector<2x128xbf16>, vector<128x384xbf16>, vector<2x384xf32> -> vector<2x384xf32>
    %c0_28 = arith.constant 0 : index
    %c384_29 = arith.constant 384 : index
    %54 = vector.load %arg3[%c0_28, %c384_29] : memref<1x768xf32, #tpu.memory_space<vmem>>, vector<1x384xf32>
    %55 = vector.broadcast %54 : vector<1x384xf32> to vector<2x384xf32>
    %56 = arith.addf %53, %55 : vector<2x384xf32>
    %57 = arith.index_cast %49 : i32 to index
    %c0_30 = arith.constant 0 : index
    %c384_31 = arith.constant 384 : index
    %58 = vector.load %arg1[%57, %c0_30, %c384_31] : memref<8x2x768xf32, #tpu.memory_space<vmem>>, vector<1x2x384xf32>
    %59 = vector.shape_cast %58 : vector<1x2x384xf32> to vector<2x384xf32>
    %60 = vector.extract_strided_slice %59 {offsets = [0, 0], sizes = [2, 128], strides = [1, 1]} : vector<2x384xf32> to vector<2x128xf32>
    %61 = vector.extract_strided_slice %56 {offsets = [0, 0], sizes = [2, 128], strides = [1, 1]} : vector<2x384xf32> to vector<2x128xf32>
    %62 = arith.addf %60, %61 : vector<2x128xf32>
    %cst_32 = arith.constant 0.000000e+00 : f32
    %63 = vector.broadcast %cst_32 : f32 to vector<2x128xf32>
    %64 = arith.subf %63, %62 : vector<2x128xf32>
    %65 = math.exp %64 : vector<2x128xf32>
    %cst_33 = arith.constant 1.000000e+00 : f32
    %66 = vector.broadcast %cst_33 : f32 to vector<2x128xf32>
    %67 = arith.addf %66, %65 : vector<2x128xf32>
    %cst_34 = arith.constant 1.000000e+00 : f32
    %68 = vector.broadcast %cst_34 : f32 to vector<2x128xf32>
    %69 = arith.divf %68, %67 : vector<2x128xf32>
    %70 = vector.extract_strided_slice %59 {offsets = [0, 128], sizes = [2, 128], strides = [1, 1]} : vector<2x384xf32> to vector<2x128xf32>
    %71 = vector.extract_strided_slice %56 {offsets = [0, 128], sizes = [2, 128], strides = [1, 1]} : vector<2x384xf32> to vector<2x128xf32>
    %72 = arith.addf %70, %71 : vector<2x128xf32>
    %cst_35 = arith.constant 0.000000e+00 : f32
    %73 = vector.broadcast %cst_35 : f32 to vector<2x128xf32>
    %74 = arith.subf %73, %72 : vector<2x128xf32>
    %75 = math.exp %74 : vector<2x128xf32>
    %cst_36 = arith.constant 1.000000e+00 : f32
    %76 = vector.broadcast %cst_36 : f32 to vector<2x128xf32>
    %77 = arith.addf %76, %75 : vector<2x128xf32>
    %cst_37 = arith.constant 1.000000e+00 : f32
    %78 = vector.broadcast %cst_37 : f32 to vector<2x128xf32>
    %79 = arith.divf %78, %77 : vector<2x128xf32>
    %80 = vector.extract_strided_slice %59 {offsets = [0, 256], sizes = [2, 128], strides = [1, 1]} : vector<2x384xf32> to vector<2x128xf32>
    %81 = vector.extract_strided_slice %56 {offsets = [0, 256], sizes = [2, 128], strides = [1, 1]} : vector<2x384xf32> to vector<2x128xf32>
    %82 = arith.mulf %69, %81 : vector<2x128xf32>
    %83 = arith.addf %80, %82 : vector<2x128xf32>
    %84 = math.tanh %83 : vector<2x128xf32>
    %cst_38 = arith.constant 1.000000e+00 : f32
    %85 = vector.broadcast %cst_38 : f32 to vector<2x128xf32>
    %86 = arith.subf %85, %79 : vector<2x128xf32>
    %87 = arith.mulf %86, %84 : vector<2x128xf32>
    %88 = arith.mulf %79, %50 : vector<2x128xf32>
    %89 = arith.addf %87, %88 : vector<2x128xf32>
    %c0_39 = arith.constant 0 : index
    %c0_40 = arith.constant 0 : index
    %90 = vector.load %arg6[%c0_39, %c0_40] : memref<2x128xf32, #tpu.memory_space<vmem>>, vector<2x128xf32>
    tpu.vector_store %arg6[%c0_39, %c0_40], %89 {strides = array<i32>} : memref<2x128xf32, #tpu.memory_space<vmem>>, vector<2x128xf32>,
    %91 = arith.index_cast %49 : i32 to index
    %c0_41 = arith.constant 0 : index
    %c128 = arith.constant 128 : index
    %92 = vector.load %arg4[%91, %c0_41, %c128] : memref<8x2x256xf32, #tpu.memory_space<vmem>>, vector<1x2x128xf32>
    %93 = vector.shape_cast %92 : vector<1x2x128xf32> to vector<2x128xf32>
    %94 = vector.shape_cast %89 : vector<2x128xf32> to vector<1x2x128xf32>
    tpu.vector_store %arg4[%91, %c0_41, %c128], %94 {strides = array<i32>} : memref<8x2x256xf32, #tpu.memory_space<vmem>>, vector<1x2x128xf32>,
    %c1_i32 = arith.constant 1 : i32
    %c0_42 = arith.constant 0 : index
    %c0_43 = arith.constant 0 : index
    %95 = vector.load %arg5[%c0_42, %c0_43] : memref<2x128xf32, #tpu.memory_space<vmem>>, vector<2x128xf32>
    %96 = arith.truncf %95 : vector<2x128xf32> to vector<2x128xbf16>
    %c0_44 = arith.constant 0 : index
    %c0_45 = arith.constant 0 : index
    %97 = vector.load %arg2[%c0_44, %c0_45] : memref<128x768xbf16, #tpu.memory_space<vmem>>, vector<128x384xbf16>
    %cst_46 = arith.constant dense<0.000000e+00> : vector<2x384xf32>
    %98 = tpu.matmul %96, %97, %cst_46 {dimension_numbers = #tpu.dot_dimension_numbers<[1], [0], [0], [1], [0, 0, 1, 1], [], []>} : vector<2x128xbf16>, vector<128x384xbf16>, vector<2x384xf32> -> vector<2x384xf32>
    %c0_47 = arith.constant 0 : index
    %c0_48 = arith.constant 0 : index
    %99 = vector.load %arg3[%c0_47, %c0_48] : memref<1x768xf32, #tpu.memory_space<vmem>>, vector<1x384xf32>
    %100 = vector.broadcast %99 : vector<1x384xf32> to vector<2x384xf32>
    %101 = arith.addf %98, %100 : vector<2x384xf32>
    %102 = arith.index_cast %c1_i32 : i32 to index
    %c0_49 = arith.constant 0 : index
    %c0_50 = arith.constant 0 : index
    %103 = vector.load %arg1[%102, %c0_49, %c0_50] : memref<8x2x768xf32, #tpu.memory_space<vmem>>, vector<1x2x384xf32>
    %104 = vector.shape_cast %103 : vector<1x2x384xf32> to vector<2x384xf32>
    %105 = vector.extract_strided_slice %104 {offsets = [0, 0], sizes = [2, 128], strides = [1, 1]} : vector<2x384xf32> to vector<2x128xf32>
    %106 = vector.extract_strided_slice %101 {offsets = [0, 0], sizes = [2, 128], strides = [1, 1]} : vector<2x384xf32> to vector<2x128xf32>
    %107 = arith.addf %105, %106 : vector<2x128xf32>
    %cst_51 = arith.constant 0.000000e+00 : f32
    %108 = vector.broadcast %cst_51 : f32 to vector<2x128xf32>
    %109 = arith.subf %108, %107 : vector<2x128xf32>
    %110 = math.exp %109 : vector<2x128xf32>
    %cst_52 = arith.constant 1.000000e+00 : f32
    %111 = vector.broadcast %cst_52 : f32 to vector<2x128xf32>
    %112 = arith.addf %111, %110 : vector<2x128xf32>
    %cst_53 = arith.constant 1.000000e+00 : f32
    %113 = vector.broadcast %cst_53 : f32 to vector<2x128xf32>
    %114 = arith.divf %113, %112 : vector<2x128xf32>
    %115 = vector.extract_strided_slice %104 {offsets = [0, 128], sizes = [2, 128], strides = [1, 1]} : vector<2x384xf32> to vector<2x128xf32>
    %116 = vector.extract_strided_slice %101 {offsets = [0, 128], sizes = [2, 128], strides = [1, 1]} : vector<2x384xf32> to vector<2x128xf32>
    %117 = arith.addf %115, %116 : vector<2x128xf32>
    %cst_54 = arith.constant 0.000000e+00 : f32
    %118 = vector.broadcast %cst_54 : f32 to vector<2x128xf32>
    %119 = arith.subf %118, %117 : vector<2x128xf32>
    %120 = math.exp %119 : vector<2x128xf32>
    %cst_55 = arith.constant 1.000000e+00 : f32
    %121 = vector.broadcast %cst_55 : f32 to vector<2x128xf32>
    %122 = arith.addf %121, %120 : vector<2x128xf32>
    %cst_56 = arith.constant 1.000000e+00 : f32
    %123 = vector.broadcast %cst_56 : f32 to vector<2x128xf32>
    %124 = arith.divf %123, %122 : vector<2x128xf32>
    %125 = vector.extract_strided_slice %104 {offsets = [0, 256], sizes = [2, 128], strides = [1, 1]} : vector<2x384xf32> to vector<2x128xf32>
    %126 = vector.extract_strided_slice %101 {offsets = [0, 256], sizes = [2, 128], strides = [1, 1]} : vector<2x384xf32> to vector<2x128xf32>
    %127 = arith.mulf %114, %126 : vector<2x128xf32>
    %128 = arith.addf %125, %127 : vector<2x128xf32>
    %129 = math.tanh %128 : vector<2x128xf32>
    %cst_57 = arith.constant 1.000000e+00 : f32
    %130 = vector.broadcast %cst_57 : f32 to vector<2x128xf32>
    %131 = arith.subf %130, %124 : vector<2x128xf32>
    %132 = arith.mulf %131, %129 : vector<2x128xf32>
    %133 = arith.mulf %124, %95 : vector<2x128xf32>
    %134 = arith.addf %132, %133 : vector<2x128xf32>
    %c0_58 = arith.constant 0 : index
    %c0_59 = arith.constant 0 : index
    %135 = vector.load %arg5[%c0_58, %c0_59] : memref<2x128xf32, #tpu.memory_space<vmem>>, vector<2x128xf32>
    tpu.vector_store %arg5[%c0_58, %c0_59], %134 {strides = array<i32>} : memref<2x128xf32, #tpu.memory_space<vmem>>, vector<2x128xf32>,
    %136 = arith.index_cast %c1_i32 : i32 to index
    %c0_60 = arith.constant 0 : index
    %c0_61 = arith.constant 0 : index
    %137 = vector.load %arg4[%136, %c0_60, %c0_61] : memref<8x2x256xf32, #tpu.memory_space<vmem>>, vector<1x2x128xf32>
    %138 = vector.shape_cast %137 : vector<1x2x128xf32> to vector<2x128xf32>
    %139 = vector.shape_cast %134 : vector<2x128xf32> to vector<1x2x128xf32>
    tpu.vector_store %arg4[%136, %c0_60, %c0_61], %139 {strides = array<i32>} : memref<8x2x256xf32, #tpu.memory_space<vmem>>, vector<1x2x128xf32>,
    %c7_i32_62 = arith.constant 7 : i32
    %140 = arith.subi %c7_i32_62, %c1_i32 : i32
    %c0_63 = arith.constant 0 : index
    %c0_64 = arith.constant 0 : index
    %141 = vector.load %arg6[%c0_63, %c0_64] : memref<2x128xf32, #tpu.memory_space<vmem>>, vector<2x128xf32>
    %142 = arith.truncf %141 : vector<2x128xf32> to vector<2x128xbf16>
    %c0_65 = arith.constant 0 : index
    %c384_66 = arith.constant 384 : index
    %143 = vector.load %arg2[%c0_65, %c384_66] : memref<128x768xbf16, #tpu.memory_space<vmem>>, vector<128x384xbf16>
    %cst_67 = arith.constant dense<0.000000e+00> : vector<2x384xf32>
    %144 = tpu.matmul %142, %143, %cst_67 {dimension_numbers = #tpu.dot_dimension_numbers<[1], [0], [0], [1], [0, 0, 1, 1], [], []>} : vector<2x128xbf16>, vector<128x384xbf16>, vector<2x384xf32> -> vector<2x384xf32>
    %c0_68 = arith.constant 0 : index
    %c384_69 = arith.constant 384 : index
    %145 = vector.load %arg3[%c0_68, %c384_69] : memref<1x768xf32, #tpu.memory_space<vmem>>, vector<1x384xf32>
    %146 = vector.broadcast %145 : vector<1x384xf32> to vector<2x384xf32>
    %147 = arith.addf %144, %146 : vector<2x384xf32>
    %148 = arith.index_cast %140 : i32 to index
    %c0_70 = arith.constant 0 : index
    %c384_71 = arith.constant 384 : index
    %149 = vector.load %arg1[%148, %c0_70, %c384_71] : memref<8x2x768xf32, #tpu.memory_space<vmem>>, vector<1x2x384xf32>
    %150 = vector.shape_cast %149 : vector<1x2x384xf32> to vector<2x384xf32>
    %151 = vector.extract_strided_slice %150 {offsets = [0, 0], sizes = [2, 128], strides = [1, 1]} : vector<2x384xf32> to vector<2x128xf32>
    %152 = vector.extract_strided_slice %147 {offsets = [0, 0], sizes = [2, 128], strides = [1, 1]} : vector<2x384xf32> to vector<2x128xf32>
    %153 = arith.addf %151, %152 : vector<2x128xf32>
    %cst_72 = arith.constant 0.000000e+00 : f32
    %154 = vector.broadcast %cst_72 : f32 to vector<2x128xf32>
    %155 = arith.subf %154, %153 : vector<2x128xf32>
    %156 = math.exp %155 : vector<2x128xf32>
    %cst_73 = arith.constant 1.000000e+00 : f32
    %157 = vector.broadcast %cst_73 : f32 to vector<2x128xf32>
    %158 = arith.addf %157, %156 : vector<2x128xf32>
    %cst_74 = arith.constant 1.000000e+00 : f32
    %159 = vector.broadcast %cst_74 : f32 to vector<2x128xf32>
    %160 = arith.divf %159, %158 : vector<2x128xf32>
    %161 = vector.extract_strided_slice %150 {offsets = [0, 128], sizes = [2, 128], strides = [1, 1]} : vector<2x384xf32> to vector<2x128xf32>
    %162 = vector.extract_strided_slice %147 {offsets = [0, 128], sizes = [2, 128], strides = [1, 1]} : vector<2x384xf32> to vector<2x128xf32>
    %163 = arith.addf %161, %162 : vector<2x128xf32>
    %cst_75 = arith.constant 0.000000e+00 : f32
    %164 = vector.broadcast %cst_75 : f32 to vector<2x128xf32>
    %165 = arith.subf %164, %163 : vector<2x128xf32>
    %166 = math.exp %165 : vector<2x128xf32>
    %cst_76 = arith.constant 1.000000e+00 : f32
    %167 = vector.broadcast %cst_76 : f32 to vector<2x128xf32>
    %168 = arith.addf %167, %166 : vector<2x128xf32>
    %cst_77 = arith.constant 1.000000e+00 : f32
    %169 = vector.broadcast %cst_77 : f32 to vector<2x128xf32>
    %170 = arith.divf %169, %168 : vector<2x128xf32>
    %171 = vector.extract_strided_slice %150 {offsets = [0, 256], sizes = [2, 128], strides = [1, 1]} : vector<2x384xf32> to vector<2x128xf32>
    %172 = vector.extract_strided_slice %147 {offsets = [0, 256], sizes = [2, 128], strides = [1, 1]} : vector<2x384xf32> to vector<2x128xf32>
    %173 = arith.mulf %160, %172 : vector<2x128xf32>
    %174 = arith.addf %171, %173 : vector<2x128xf32>
    %175 = math.tanh %174 : vector<2x128xf32>
    %cst_78 = arith.constant 1.000000e+00 : f32
    %176 = vector.broadcast %cst_78 : f32 to vector<2x128xf32>
    %177 = arith.subf %176, %170 : vector<2x128xf32>
    %178 = arith.mulf %177, %175 : vector<2x128xf32>
    %179 = arith.mulf %170, %141 : vector<2x128xf32>
    %180 = arith.addf %178, %179 : vector<2x128xf32>
    %c0_79 = arith.constant 0 : index
    %c0_80 = arith.constant 0 : index
    %181 = vector.load %arg6[%c0_79, %c0_80] : memref<2x128xf32, #tpu.memory_space<vmem>>, vector<2x128xf32>
    tpu.vector_store %arg6[%c0_79, %c0_80], %180 {strides = array<i32>} : memref<2x128xf32, #tpu.memory_space<vmem>>, vector<2x128xf32>,
    %182 = arith.index_cast %140 : i32 to index
    %c0_81 = arith.constant 0 : index
    %c128_82 = arith.constant 128 : index
    %183 = vector.load %arg4[%182, %c0_81, %c128_82] : memref<8x2x256xf32, #tpu.memory_space<vmem>>, vector<1x2x128xf32>
    %184 = vector.shape_cast %183 : vector<1x2x128xf32> to vector<2x128xf32>
    %185 = vector.shape_cast %180 : vector<2x128xf32> to vector<1x2x128xf32>
    tpu.vector_store %arg4[%182, %c0_81, %c128_82], %185 {strides = array<i32>} : memref<8x2x256xf32, #tpu.memory_space<vmem>>, vector<1x2x128xf32>,
    %c2_i32 = arith.constant 2 : i32
    %c0_83 = arith.constant 0 : index
    %c0_84 = arith.constant 0 : index
    %186 = vector.load %arg5[%c0_83, %c0_84] : memref<2x128xf32, #tpu.memory_space<vmem>>, vector<2x128xf32>
    %187 = arith.truncf %186 : vector<2x128xf32> to vector<2x128xbf16>
    %c0_85 = arith.constant 0 : index
    %c0_86 = arith.constant 0 : index
    %188 = vector.load %arg2[%c0_85, %c0_86] : memref<128x768xbf16, #tpu.memory_space<vmem>>, vector<128x384xbf16>
    %cst_87 = arith.constant dense<0.000000e+00> : vector<2x384xf32>
    %189 = tpu.matmul %187, %188, %cst_87 {dimension_numbers = #tpu.dot_dimension_numbers<[1], [0], [0], [1], [0, 0, 1, 1], [], []>} : vector<2x128xbf16>, vector<128x384xbf16>, vector<2x384xf32> -> vector<2x384xf32>
    %c0_88 = arith.constant 0 : index
    %c0_89 = arith.constant 0 : index
    %190 = vector.load %arg3[%c0_88, %c0_89] : memref<1x768xf32, #tpu.memory_space<vmem>>, vector<1x384xf32>
    %191 = vector.broadcast %190 : vector<1x384xf32> to vector<2x384xf32>
    %192 = arith.addf %189, %191 : vector<2x384xf32>
    %193 = arith.index_cast %c2_i32 : i32 to index
    %c0_90 = arith.constant 0 : index
    %c0_91 = arith.constant 0 : index
    %194 = vector.load %arg1[%193, %c0_90, %c0_91] : memref<8x2x768xf32, #tpu.memory_space<vmem>>, vector<1x2x384xf32>
    %195 = vector.shape_cast %194 : vector<1x2x384xf32> to vector<2x384xf32>
    %196 = vector.extract_strided_slice %195 {offsets = [0, 0], sizes = [2, 128], strides = [1, 1]} : vector<2x384xf32> to vector<2x128xf32>
    %197 = vector.extract_strided_slice %192 {offsets = [0, 0], sizes = [2, 128], strides = [1, 1]} : vector<2x384xf32> to vector<2x128xf32>
    %198 = arith.addf %196, %197 : vector<2x128xf32>
    %cst_92 = arith.constant 0.000000e+00 : f32
    %199 = vector.broadcast %cst_92 : f32 to vector<2x128xf32>
    %200 = arith.subf %199, %198 : vector<2x128xf32>
    %201 = math.exp %200 : vector<2x128xf32>
    %cst_93 = arith.constant 1.000000e+00 : f32
    %202 = vector.broadcast %cst_93 : f32 to vector<2x128xf32>
    %203 = arith.addf %202, %201 : vector<2x128xf32>
    %cst_94 = arith.constant 1.000000e+00 : f32
    %204 = vector.broadcast %cst_94 : f32 to vector<2x128xf32>
    %205 = arith.divf %204, %203 : vector<2x128xf32>
    %206 = vector.extract_strided_slice %195 {offsets = [0, 128], sizes = [2, 128], strides = [1, 1]} : vector<2x384xf32> to vector<2x128xf32>
    %207 = vector.extract_strided_slice %192 {offsets = [0, 128], sizes = [2, 128], strides = [1, 1]} : vector<2x384xf32> to vector<2x128xf32>
    %208 = arith.addf %206, %207 : vector<2x128xf32>
    %cst_95 = arith.constant 0.000000e+00 : f32
    %209 = vector.broadcast %cst_95 : f32 to vector<2x128xf32>
    %210 = arith.subf %209, %208 : vector<2x128xf32>
    %211 = math.exp %210 : vector<2x128xf32>
    %cst_96 = arith.constant 1.000000e+00 : f32
    %212 = vector.broadcast %cst_96 : f32 to vector<2x128xf32>
    %213 = arith.addf %212, %211 : vector<2x128xf32>
    %cst_97 = arith.constant 1.000000e+00 : f32
    %214 = vector.broadcast %cst_97 : f32 to vector<2x128xf32>
    %215 = arith.divf %214, %213 : vector<2x128xf32>
    %216 = vector.extract_strided_slice %195 {offsets = [0, 256], sizes = [2, 128], strides = [1, 1]} : vector<2x384xf32> to vector<2x128xf32>
    %217 = vector.extract_strided_slice %192 {offsets = [0, 256], sizes = [2, 128], strides = [1, 1]} : vector<2x384xf32> to vector<2x128xf32>
    %218 = arith.mulf %205, %217 : vector<2x128xf32>
    %219 = arith.addf %216, %218 : vector<2x128xf32>
    %220 = math.tanh %219 : vector<2x128xf32>
    %cst_98 = arith.constant 1.000000e+00 : f32
    %221 = vector.broadcast %cst_98 : f32 to vector<2x128xf32>
    %222 = arith.subf %221, %215 : vector<2x128xf32>
    %223 = arith.mulf %222, %220 : vector<2x128xf32>
    %224 = arith.mulf %215, %186 : vector<2x128xf32>
    %225 = arith.addf %223, %224 : vector<2x128xf32>
    %c0_99 = arith.constant 0 : index
    %c0_100 = arith.constant 0 : index
    %226 = vector.load %arg5[%c0_99, %c0_100] : memref<2x128xf32, #tpu.memory_space<vmem>>, vector<2x128xf32>
    tpu.vector_store %arg5[%c0_99, %c0_100], %225 {strides = array<i32>} : memref<2x128xf32, #tpu.memory_space<vmem>>, vector<2x128xf32>,
    %227 = arith.index_cast %c2_i32 : i32 to index
    %c0_101 = arith.constant 0 : index
    %c0_102 = arith.constant 0 : index
    %228 = vector.load %arg4[%227, %c0_101, %c0_102] : memref<8x2x256xf32, #tpu.memory_space<vmem>>, vector<1x2x128xf32>
    %229 = vector.shape_cast %228 : vector<1x2x128xf32> to vector<2x128xf32>
    %230 = vector.shape_cast %225 : vector<2x128xf32> to vector<1x2x128xf32>
    tpu.vector_store %arg4[%227, %c0_101, %c0_102], %230 {strides = array<i32>} : memref<8x2x256xf32, #tpu.memory_space<vmem>>, vector<1x2x128xf32>,
    %c7_i32_103 = arith.constant 7 : i32
    %231 = arith.subi %c7_i32_103, %c2_i32 : i32
    %c0_104 = arith.constant 0 : index
    %c0_105 = arith.constant 0 : index
    %232 = vector.load %arg6[%c0_104, %c0_105] : memref<2x128xf32, #tpu.memory_space<vmem>>, vector<2x128xf32>
    %233 = arith.truncf %232 : vector<2x128xf32> to vector<2x128xbf16>
    %c0_106 = arith.constant 0 : index
    %c384_107 = arith.constant 384 : index
    %234 = vector.load %arg2[%c0_106, %c384_107] : memref<128x768xbf16, #tpu.memory_space<vmem>>, vector<128x384xbf16>
    %cst_108 = arith.constant dense<0.000000e+00> : vector<2x384xf32>
    %235 = tpu.matmul %233, %234, %cst_108 {dimension_numbers = #tpu.dot_dimension_numbers<[1], [0], [0], [1], [0, 0, 1, 1], [], []>} : vector<2x128xbf16>, vector<128x384xbf16>, vector<2x384xf32> -> vector<2x384xf32>
    %c0_109 = arith.constant 0 : index
    %c384_110 = arith.constant 384 : index
    %236 = vector.load %arg3[%c0_109, %c384_110] : memref<1x768xf32, #tpu.memory_space<vmem>>, vector<1x384xf32>
    %237 = vector.broadcast %236 : vector<1x384xf32> to vector<2x384xf32>
    %238 = arith.addf %235, %237 : vector<2x384xf32>
    %239 = arith.index_cast %231 : i32 to index
    %c0_111 = arith.constant 0 : index
    %c384_112 = arith.constant 384 : index
    %240 = vector.load %arg1[%239, %c0_111, %c384_112] : memref<8x2x768xf32, #tpu.memory_space<vmem>>, vector<1x2x384xf32>
    %241 = vector.shape_cast %240 : vector<1x2x384xf32> to vector<2x384xf32>
    %242 = vector.extract_strided_slice %241 {offsets = [0, 0], sizes = [2, 128], strides = [1, 1]} : vector<2x384xf32> to vector<2x128xf32>
    %243 = vector.extract_strided_slice %238 {offsets = [0, 0], sizes = [2, 128], strides = [1, 1]} : vector<2x384xf32> to vector<2x128xf32>
    %244 = arith.addf %242, %243 : vector<2x128xf32>
    %cst_113 = arith.constant 0.000000e+00 : f32
    %245 = vector.broadcast %cst_113 : f32 to vector<2x128xf32>
    %246 = arith.subf %245, %244 : vector<2x128xf32>
    %247 = math.exp %246 : vector<2x128xf32>
    %cst_114 = arith.constant 1.000000e+00 : f32
    %248 = vector.broadcast %cst_114 : f32 to vector<2x128xf32>
    %249 = arith.addf %248, %247 : vector<2x128xf32>
    %cst_115 = arith.constant 1.000000e+00 : f32
    %250 = vector.broadcast %cst_115 : f32 to vector<2x128xf32>
    %251 = arith.divf %250, %249 : vector<2x128xf32>
    %252 = vector.extract_strided_slice %241 {offsets = [0, 128], sizes = [2, 128], strides = [1, 1]} : vector<2x384xf32> to vector<2x128xf32>
    %253 = vector.extract_strided_slice %238 {offsets = [0, 128], sizes = [2, 128], strides = [1, 1]} : vector<2x384xf32> to vector<2x128xf32>
    %254 = arith.addf %252, %253 : vector<2x128xf32>
    %cst_116 = arith.constant 0.000000e+00 : f32
    %255 = vector.broadcast %cst_116 : f32 to vector<2x128xf32>
    %256 = arith.subf %255, %254 : vector<2x128xf32>
    %257 = math.exp %256 : vector<2x128xf32>
    %cst_117 = arith.constant 1.000000e+00 : f32
    %258 = vector.broadcast %cst_117 : f32 to vector<2x128xf32>
    %259 = arith.addf %258, %257 : vector<2x128xf32>
    %cst_118 = arith.constant 1.000000e+00 : f32
    %260 = vector.broadcast %cst_118 : f32 to vector<2x128xf32>
    %261 = arith.divf %260, %259 : vector<2x128xf32>
    %262 = vector.extract_strided_slice %241 {offsets = [0, 256], sizes = [2, 128], strides = [1, 1]} : vector<2x384xf32> to vector<2x128xf32>
    %263 = vector.extract_strided_slice %238 {offsets = [0, 256], sizes = [2, 128], strides = [1, 1]} : vector<2x384xf32> to vector<2x128xf32>
    %264 = arith.mulf %251, %263 : vector<2x128xf32>
    %265 = arith.addf %262, %264 : vector<2x128xf32>
    %266 = math.tanh %265 : vector<2x128xf32>
    %cst_119 = arith.constant 1.000000e+00 : f32
    %267 = vector.broadcast %cst_119 : f32 to vector<2x128xf32>
    %268 = arith.subf %267, %261 : vector<2x128xf32>
    %269 = arith.mulf %268, %266 : vector<2x128xf32>
    %270 = arith.mulf %261, %232 : vector<2x128xf32>
    %271 = arith.addf %269, %270 : vector<2x128xf32>
    %c0_120 = arith.constant 0 : index
    %c0_121 = arith.constant 0 : index
    %272 = vector.load %arg6[%c0_120, %c0_121] : memref<2x128xf32, #tpu.memory_space<vmem>>, vector<2x128xf32>
    tpu.vector_store %arg6[%c0_120, %c0_121], %271 {strides = array<i32>} : memref<2x128xf32, #tpu.memory_space<vmem>>, vector<2x128xf32>,
    %273 = arith.index_cast %231 : i32 to index
    %c0_122 = arith.constant 0 : index
    %c128_123 = arith.constant 128 : index
    %274 = vector.load %arg4[%273, %c0_122, %c128_123] : memref<8x2x256xf32, #tpu.memory_space<vmem>>, vector<1x2x128xf32>
    %275 = vector.shape_cast %274 : vector<1x2x128xf32> to vector<2x128xf32>
    %276 = vector.shape_cast %271 : vector<2x128xf32> to vector<1x2x128xf32>
    tpu.vector_store %arg4[%273, %c0_122, %c128_123], %276 {strides = array<i32>} : memref<8x2x256xf32, #tpu.memory_space<vmem>>, vector<1x2x128xf32>,
    %c3_i32 = arith.constant 3 : i32
    %c0_124 = arith.constant 0 : index
    %c0_125 = arith.constant 0 : index
    %277 = vector.load %arg5[%c0_124, %c0_125] : memref<2x128xf32, #tpu.memory_space<vmem>>, vector<2x128xf32>
    %278 = arith.truncf %277 : vector<2x128xf32> to vector<2x128xbf16>
    %c0_126 = arith.constant 0 : index
    %c0_127 = arith.constant 0 : index
    %279 = vector.load %arg2[%c0_126, %c0_127] : memref<128x768xbf16, #tpu.memory_space<vmem>>, vector<128x384xbf16>
    %cst_128 = arith.constant dense<0.000000e+00> : vector<2x384xf32>
    %280 = tpu.matmul %278, %279, %cst_128 {dimension_numbers = #tpu.dot_dimension_numbers<[1], [0], [0], [1], [0, 0, 1, 1], [], []>} : vector<2x128xbf16>, vector<128x384xbf16>, vector<2x384xf32> -> vector<2x384xf32>
    %c0_129 = arith.constant 0 : index
    %c0_130 = arith.constant 0 : index
    %281 = vector.load %arg3[%c0_129, %c0_130] : memref<1x768xf32, #tpu.memory_space<vmem>>, vector<1x384xf32>
    %282 = vector.broadcast %281 : vector<1x384xf32> to vector<2x384xf32>
    %283 = arith.addf %280, %282 : vector<2x384xf32>
    %284 = arith.index_cast %c3_i32 : i32 to index
    %c0_131 = arith.constant 0 : index
    %c0_132 = arith.constant 0 : index
    %285 = vector.load %arg1[%284, %c0_131, %c0_132] : memref<8x2x768xf32, #tpu.memory_space<vmem>>, vector<1x2x384xf32>
    %286 = vector.shape_cast %285 : vector<1x2x384xf32> to vector<2x384xf32>
    %287 = vector.extract_strided_slice %286 {offsets = [0, 0], sizes = [2, 128], strides = [1, 1]} : vector<2x384xf32> to vector<2x128xf32>
    %288 = vector.extract_strided_slice %283 {offsets = [0, 0], sizes = [2, 128], strides = [1, 1]} : vector<2x384xf32> to vector<2x128xf32>
    %289 = arith.addf %287, %288 : vector<2x128xf32>
    %cst_133 = arith.constant 0.000000e+00 : f32
    %290 = vector.broadcast %cst_133 : f32 to vector<2x128xf32>
    %291 = arith.subf %290, %289 : vector<2x128xf32>
    %292 = math.exp %291 : vector<2x128xf32>
    %cst_134 = arith.constant 1.000000e+00 : f32
    %293 = vector.broadcast %cst_134 : f32 to vector<2x128xf32>
    %294 = arith.addf %293, %292 : vector<2x128xf32>
    %cst_135 = arith.constant 1.000000e+00 : f32
    %295 = vector.broadcast %cst_135 : f32 to vector<2x128xf32>
    %296 = arith.divf %295, %294 : vector<2x128xf32>
    %297 = vector.extract_strided_slice %286 {offsets = [0, 128], sizes = [2, 128], strides = [1, 1]} : vector<2x384xf32> to vector<2x128xf32>
    %298 = vector.extract_strided_slice %283 {offsets = [0, 128], sizes = [2, 128], strides = [1, 1]} : vector<2x384xf32> to vector<2x128xf32>
    %299 = arith.addf %297, %298 : vector<2x128xf32>
    %cst_136 = arith.constant 0.000000e+00 : f32
    %300 = vector.broadcast %cst_136 : f32 to vector<2x128xf32>
    %301 = arith.subf %300, %299 : vector<2x128xf32>
    %302 = math.exp %301 : vector<2x128xf32>
    %cst_137 = arith.constant 1.000000e+00 : f32
    %303 = vector.broadcast %cst_137 : f32 to vector<2x128xf32>
    %304 = arith.addf %303, %302 : vector<2x128xf32>
    %cst_138 = arith.constant 1.000000e+00 : f32
    %305 = vector.broadcast %cst_138 : f32 to vector<2x128xf32>
    %306 = arith.divf %305, %304 : vector<2x128xf32>
    %307 = vector.extract_strided_slice %286 {offsets = [0, 256], sizes = [2, 128], strides = [1, 1]} : vector<2x384xf32> to vector<2x128xf32>
    %308 = vector.extract_strided_slice %283 {offsets = [0, 256], sizes = [2, 128], strides = [1, 1]} : vector<2x384xf32> to vector<2x128xf32>
    %309 = arith.mulf %296, %308 : vector<2x128xf32>
    %310 = arith.addf %307, %309 : vector<2x128xf32>
    %311 = math.tanh %310 : vector<2x128xf32>
    %cst_139 = arith.constant 1.000000e+00 : f32
    %312 = vector.broadcast %cst_139 : f32 to vector<2x128xf32>
    %313 = arith.subf %312, %306 : vector<2x128xf32>
    %314 = arith.mulf %313, %311 : vector<2x128xf32>
    %315 = arith.mulf %306, %277 : vector<2x128xf32>
    %316 = arith.addf %314, %315 : vector<2x128xf32>
    %c0_140 = arith.constant 0 : index
    %c0_141 = arith.constant 0 : index
    %317 = vector.load %arg5[%c0_140, %c0_141] : memref<2x128xf32, #tpu.memory_space<vmem>>, vector<2x128xf32>
    tpu.vector_store %arg5[%c0_140, %c0_141], %316 {strides = array<i32>} : memref<2x128xf32, #tpu.memory_space<vmem>>, vector<2x128xf32>,
    %318 = arith.index_cast %c3_i32 : i32 to index
    %c0_142 = arith.constant 0 : index
    %c0_143 = arith.constant 0 : index
    %319 = vector.load %arg4[%318, %c0_142, %c0_143] : memref<8x2x256xf32, #tpu.memory_space<vmem>>, vector<1x2x128xf32>
    %320 = vector.shape_cast %319 : vector<1x2x128xf32> to vector<2x128xf32>
    %321 = vector.shape_cast %316 : vector<2x128xf32> to vector<1x2x128xf32>
    tpu.vector_store %arg4[%318, %c0_142, %c0_143], %321 {strides = array<i32>} : memref<8x2x256xf32, #tpu.memory_space<vmem>>, vector<1x2x128xf32>,
    %c7_i32_144 = arith.constant 7 : i32
    %322 = arith.subi %c7_i32_144, %c3_i32 : i32
    %c0_145 = arith.constant 0 : index
    %c0_146 = arith.constant 0 : index
    %323 = vector.load %arg6[%c0_145, %c0_146] : memref<2x128xf32, #tpu.memory_space<vmem>>, vector<2x128xf32>
    %324 = arith.truncf %323 : vector<2x128xf32> to vector<2x128xbf16>
    %c0_147 = arith.constant 0 : index
    %c384_148 = arith.constant 384 : index
    %325 = vector.load %arg2[%c0_147, %c384_148] : memref<128x768xbf16, #tpu.memory_space<vmem>>, vector<128x384xbf16>
    %cst_149 = arith.constant dense<0.000000e+00> : vector<2x384xf32>
    %326 = tpu.matmul %324, %325, %cst_149 {dimension_numbers = #tpu.dot_dimension_numbers<[1], [0], [0], [1], [0, 0, 1, 1], [], []>} : vector<2x128xbf16>, vector<128x384xbf16>, vector<2x384xf32> -> vector<2x384xf32>
    %c0_150 = arith.constant 0 : index
    %c384_151 = arith.constant 384 : index
    %327 = vector.load %arg3[%c0_150, %c384_151] : memref<1x768xf32, #tpu.memory_space<vmem>>, vector<1x384xf32>
    %328 = vector.broadcast %327 : vector<1x384xf32> to vector<2x384xf32>
    %329 = arith.addf %326, %328 : vector<2x384xf32>
    %330 = arith.index_cast %322 : i32 to index
    %c0_152 = arith.constant 0 : index
    %c384_153 = arith.constant 384 : index
    %331 = vector.load %arg1[%330, %c0_152, %c384_153] : memref<8x2x768xf32, #tpu.memory_space<vmem>>, vector<1x2x384xf32>
    %332 = vector.shape_cast %331 : vector<1x2x384xf32> to vector<2x384xf32>
    %333 = vector.extract_strided_slice %332 {offsets = [0, 0], sizes = [2, 128], strides = [1, 1]} : vector<2x384xf32> to vector<2x128xf32>
    %334 = vector.extract_strided_slice %329 {offsets = [0, 0], sizes = [2, 128], strides = [1, 1]} : vector<2x384xf32> to vector<2x128xf32>
    %335 = arith.addf %333, %334 : vector<2x128xf32>
    %cst_154 = arith.constant 0.000000e+00 : f32
    %336 = vector.broadcast %cst_154 : f32 to vector<2x128xf32>
    %337 = arith.subf %336, %335 : vector<2x128xf32>
    %338 = math.exp %337 : vector<2x128xf32>
    %cst_155 = arith.constant 1.000000e+00 : f32
    %339 = vector.broadcast %cst_155 : f32 to vector<2x128xf32>
    %340 = arith.addf %339, %338 : vector<2x128xf32>
    %cst_156 = arith.constant 1.000000e+00 : f32
    %341 = vector.broadcast %cst_156 : f32 to vector<2x128xf32>
    %342 = arith.divf %341, %340 : vector<2x128xf32>
    %343 = vector.extract_strided_slice %332 {offsets = [0, 128], sizes = [2, 128], strides = [1, 1]} : vector<2x384xf32> to vector<2x128xf32>
    %344 = vector.extract_strided_slice %329 {offsets = [0, 128], sizes = [2, 128], strides = [1, 1]} : vector<2x384xf32> to vector<2x128xf32>
    %345 = arith.addf %343, %344 : vector<2x128xf32>
    %cst_157 = arith.constant 0.000000e+00 : f32
    %346 = vector.broadcast %cst_157 : f32 to vector<2x128xf32>
    %347 = arith.subf %346, %345 : vector<2x128xf32>
    %348 = math.exp %347 : vector<2x128xf32>
    %cst_158 = arith.constant 1.000000e+00 : f32
    %349 = vector.broadcast %cst_158 : f32 to vector<2x128xf32>
    %350 = arith.addf %349, %348 : vector<2x128xf32>
    %cst_159 = arith.constant 1.000000e+00 : f32
    %351 = vector.broadcast %cst_159 : f32 to vector<2x128xf32>
    %352 = arith.divf %351, %350 : vector<2x128xf32>
    %353 = vector.extract_strided_slice %332 {offsets = [0, 256], sizes = [2, 128], strides = [1, 1]} : vector<2x384xf32> to vector<2x128xf32>
    %354 = vector.extract_strided_slice %329 {offsets = [0, 256], sizes = [2, 128], strides = [1, 1]} : vector<2x384xf32> to vector<2x128xf32>
    %355 = arith.mulf %342, %354 : vector<2x128xf32>
    %356 = arith.addf %353, %355 : vector<2x128xf32>
    %357 = math.tanh %356 : vector<2x128xf32>
    %cst_160 = arith.constant 1.000000e+00 : f32
    %358 = vector.broadcast %cst_160 : f32 to vector<2x128xf32>
    %359 = arith.subf %358, %352 : vector<2x128xf32>
    %360 = arith.mulf %359, %357 : vector<2x128xf32>
    %361 = arith.mulf %352, %323 : vector<2x128xf32>
    %362 = arith.addf %360, %361 : vector<2x128xf32>
    %c0_161 = arith.constant 0 : index
    %c0_162 = arith.constant 0 : index
    %363 = vector.load %arg6[%c0_161, %c0_162] : memref<2x128xf32, #tpu.memory_space<vmem>>, vector<2x128xf32>
    tpu.vector_store %arg6[%c0_161, %c0_162], %362 {strides = array<i32>} : memref<2x128xf32, #tpu.memory_space<vmem>>, vector<2x128xf32>,
    %364 = arith.index_cast %322 : i32 to index
    %c0_163 = arith.constant 0 : index
    %c128_164 = arith.constant 128 : index
    %365 = vector.load %arg4[%364, %c0_163, %c128_164] : memref<8x2x256xf32, #tpu.memory_space<vmem>>, vector<1x2x128xf32>
    %366 = vector.shape_cast %365 : vector<1x2x128xf32> to vector<2x128xf32>
    %367 = vector.shape_cast %362 : vector<2x128xf32> to vector<1x2x128xf32>
    tpu.vector_store %arg4[%364, %c0_163, %c128_164], %367 {strides = array<i32>} : memref<8x2x256xf32, #tpu.memory_space<vmem>>, vector<1x2x128xf32>,
    %c4_i32 = arith.constant 4 : i32
    %c0_165 = arith.constant 0 : index
    %c0_166 = arith.constant 0 : index
    %368 = vector.load %arg5[%c0_165, %c0_166] : memref<2x128xf32, #tpu.memory_space<vmem>>, vector<2x128xf32>
    %369 = arith.truncf %368 : vector<2x128xf32> to vector<2x128xbf16>
    %c0_167 = arith.constant 0 : index
    %c0_168 = arith.constant 0 : index
    %370 = vector.load %arg2[%c0_167, %c0_168] : memref<128x768xbf16, #tpu.memory_space<vmem>>, vector<128x384xbf16>
    %cst_169 = arith.constant dense<0.000000e+00> : vector<2x384xf32>
    %371 = tpu.matmul %369, %370, %cst_169 {dimension_numbers = #tpu.dot_dimension_numbers<[1], [0], [0], [1], [0, 0, 1, 1], [], []>} : vector<2x128xbf16>, vector<128x384xbf16>, vector<2x384xf32> -> vector<2x384xf32>
    %c0_170 = arith.constant 0 : index
    %c0_171 = arith.constant 0 : index
    %372 = vector.load %arg3[%c0_170, %c0_171] : memref<1x768xf32, #tpu.memory_space<vmem>>, vector<1x384xf32>
    %373 = vector.broadcast %372 : vector<1x384xf32> to vector<2x384xf32>
    %374 = arith.addf %371, %373 : vector<2x384xf32>
    %375 = arith.index_cast %c4_i32 : i32 to index
    %c0_172 = arith.constant 0 : index
    %c0_173 = arith.constant 0 : index
    %376 = vector.load %arg1[%375, %c0_172, %c0_173] : memref<8x2x768xf32, #tpu.memory_space<vmem>>, vector<1x2x384xf32>
    %377 = vector.shape_cast %376 : vector<1x2x384xf32> to vector<2x384xf32>
    %378 = vector.extract_strided_slice %377 {offsets = [0, 0], sizes = [2, 128], strides = [1, 1]} : vector<2x384xf32> to vector<2x128xf32>
    %379 = vector.extract_strided_slice %374 {offsets = [0, 0], sizes = [2, 128], strides = [1, 1]} : vector<2x384xf32> to vector<2x128xf32>
    %380 = arith.addf %378, %379 : vector<2x128xf32>
    %cst_174 = arith.constant 0.000000e+00 : f32
    %381 = vector.broadcast %cst_174 : f32 to vector<2x128xf32>
    %382 = arith.subf %381, %380 : vector<2x128xf32>
    %383 = math.exp %382 : vector<2x128xf32>
    %cst_175 = arith.constant 1.000000e+00 : f32
    %384 = vector.broadcast %cst_175 : f32 to vector<2x128xf32>
    %385 = arith.addf %384, %383 : vector<2x128xf32>
    %cst_176 = arith.constant 1.000000e+00 : f32
    %386 = vector.broadcast %cst_176 : f32 to vector<2x128xf32>
    %387 = arith.divf %386, %385 : vector<2x128xf32>
    %388 = vector.extract_strided_slice %377 {offsets = [0, 128], sizes = [2, 128], strides = [1, 1]} : vector<2x384xf32> to vector<2x128xf32>
    %389 = vector.extract_strided_slice %374 {offsets = [0, 128], sizes = [2, 128], strides = [1, 1]} : vector<2x384xf32> to vector<2x128xf32>
    %390 = arith.addf %388, %389 : vector<2x128xf32>
    %cst_177 = arith.constant 0.000000e+00 : f32
    %391 = vector.broadcast %cst_177 : f32 to vector<2x128xf32>
    %392 = arith.subf %391, %390 : vector<2x128xf32>
    %393 = math.exp %392 : vector<2x128xf32>
    %cst_178 = arith.constant 1.000000e+00 : f32
    %394 = vector.broadcast %cst_178 : f32 to vector<2x128xf32>
    %395 = arith.addf %394, %393 : vector<2x128xf32>
    %cst_179 = arith.constant 1.000000e+00 : f32
    %396 = vector.broadcast %cst_179 : f32 to vector<2x128xf32>
    %397 = arith.divf %396, %395 : vector<2x128xf32>
    %398 = vector.extract_strided_slice %377 {offsets = [0, 256], sizes = [2, 128], strides = [1, 1]} : vector<2x384xf32> to vector<2x128xf32>
    %399 = vector.extract_strided_slice %374 {offsets = [0, 256], sizes = [2, 128], strides = [1, 1]} : vector<2x384xf32> to vector<2x128xf32>
    %400 = arith.mulf %387, %399 : vector<2x128xf32>
    %401 = arith.addf %398, %400 : vector<2x128xf32>
    %402 = math.tanh %401 : vector<2x128xf32>
    %cst_180 = arith.constant 1.000000e+00 : f32
    %403 = vector.broadcast %cst_180 : f32 to vector<2x128xf32>
    %404 = arith.subf %403, %397 : vector<2x128xf32>
    %405 = arith.mulf %404, %402 : vector<2x128xf32>
    %406 = arith.mulf %397, %368 : vector<2x128xf32>
    %407 = arith.addf %405, %406 : vector<2x128xf32>
    %c0_181 = arith.constant 0 : index
    %c0_182 = arith.constant 0 : index
    %408 = vector.load %arg5[%c0_181, %c0_182] : memref<2x128xf32, #tpu.memory_space<vmem>>, vector<2x128xf32>
    tpu.vector_store %arg5[%c0_181, %c0_182], %407 {strides = array<i32>} : memref<2x128xf32, #tpu.memory_space<vmem>>, vector<2x128xf32>,
    %409 = arith.index_cast %c4_i32 : i32 to index
    %c0_183 = arith.constant 0 : index
    %c0_184 = arith.constant 0 : index
    %410 = vector.load %arg4[%409, %c0_183, %c0_184] : memref<8x2x256xf32, #tpu.memory_space<vmem>>, vector<1x2x128xf32>
    %411 = vector.shape_cast %410 : vector<1x2x128xf32> to vector<2x128xf32>
    %412 = vector.shape_cast %407 : vector<2x128xf32> to vector<1x2x128xf32>
    tpu.vector_store %arg4[%409, %c0_183, %c0_184], %412 {strides = array<i32>} : memref<8x2x256xf32, #tpu.memory_space<vmem>>, vector<1x2x128xf32>,
    %c7_i32_185 = arith.constant 7 : i32
    %413 = arith.subi %c7_i32_185, %c4_i32 : i32
    %c0_186 = arith.constant 0 : index
    %c0_187 = arith.constant 0 : index
    %414 = vector.load %arg6[%c0_186, %c0_187] : memref<2x128xf32, #tpu.memory_space<vmem>>, vector<2x128xf32>
    %415 = arith.truncf %414 : vector<2x128xf32> to vector<2x128xbf16>
    %c0_188 = arith.constant 0 : index
    %c384_189 = arith.constant 384 : index
    %416 = vector.load %arg2[%c0_188, %c384_189] : memref<128x768xbf16, #tpu.memory_space<vmem>>, vector<128x384xbf16>
    %cst_190 = arith.constant dense<0.000000e+00> : vector<2x384xf32>
    %417 = tpu.matmul %415, %416, %cst_190 {dimension_numbers = #tpu.dot_dimension_numbers<[1], [0], [0], [1], [0, 0, 1, 1], [], []>} : vector<2x128xbf16>, vector<128x384xbf16>, vector<2x384xf32> -> vector<2x384xf32>
    %c0_191 = arith.constant 0 : index
    %c384_192 = arith.constant 384 : index
    %418 = vector.load %arg3[%c0_191, %c384_192] : memref<1x768xf32, #tpu.memory_space<vmem>>, vector<1x384xf32>
    %419 = vector.broadcast %418 : vector<1x384xf32> to vector<2x384xf32>
    %420 = arith.addf %417, %419 : vector<2x384xf32>
    %421 = arith.index_cast %413 : i32 to index
    %c0_193 = arith.constant 0 : index
    %c384_194 = arith.constant 384 : index
    %422 = vector.load %arg1[%421, %c0_193, %c384_194] : memref<8x2x768xf32, #tpu.memory_space<vmem>>, vector<1x2x384xf32>
    %423 = vector.shape_cast %422 : vector<1x2x384xf32> to vector<2x384xf32>
    %424 = vector.extract_strided_slice %423 {offsets = [0, 0], sizes = [2, 128], strides = [1, 1]} : vector<2x384xf32> to vector<2x128xf32>
    %425 = vector.extract_strided_slice %420 {offsets = [0, 0], sizes = [2, 128], strides = [1, 1]} : vector<2x384xf32> to vector<2x128xf32>
    %426 = arith.addf %424, %425 : vector<2x128xf32>
    %cst_195 = arith.constant 0.000000e+00 : f32
    %427 = vector.broadcast %cst_195 : f32 to vector<2x128xf32>
    %428 = arith.subf %427, %426 : vector<2x128xf32>
    %429 = math.exp %428 : vector<2x128xf32>
    %cst_196 = arith.constant 1.000000e+00 : f32
    %430 = vector.broadcast %cst_196 : f32 to vector<2x128xf32>
    %431 = arith.addf %430, %429 : vector<2x128xf32>
    %cst_197 = arith.constant 1.000000e+00 : f32
    %432 = vector.broadcast %cst_197 : f32 to vector<2x128xf32>
    %433 = arith.divf %432, %431 : vector<2x128xf32>
    %434 = vector.extract_strided_slice %423 {offsets = [0, 128], sizes = [2, 128], strides = [1, 1]} : vector<2x384xf32> to vector<2x128xf32>
    %435 = vector.extract_strided_slice %420 {offsets = [0, 128], sizes = [2, 128], strides = [1, 1]} : vector<2x384xf32> to vector<2x128xf32>
    %436 = arith.addf %434, %435 : vector<2x128xf32>
    %cst_198 = arith.constant 0.000000e+00 : f32
    %437 = vector.broadcast %cst_198 : f32 to vector<2x128xf32>
    %438 = arith.subf %437, %436 : vector<2x128xf32>
    %439 = math.exp %438 : vector<2x128xf32>
    %cst_199 = arith.constant 1.000000e+00 : f32
    %440 = vector.broadcast %cst_199 : f32 to vector<2x128xf32>
    %441 = arith.addf %440, %439 : vector<2x128xf32>
    %cst_200 = arith.constant 1.000000e+00 : f32
    %442 = vector.broadcast %cst_200 : f32 to vector<2x128xf32>
    %443 = arith.divf %442, %441 : vector<2x128xf32>
    %444 = vector.extract_strided_slice %423 {offsets = [0, 256], sizes = [2, 128], strides = [1, 1]} : vector<2x384xf32> to vector<2x128xf32>
    %445 = vector.extract_strided_slice %420 {offsets = [0, 256], sizes = [2, 128], strides = [1, 1]} : vector<2x384xf32> to vector<2x128xf32>
    %446 = arith.mulf %433, %445 : vector<2x128xf32>
    %447 = arith.addf %444, %446 : vector<2x128xf32>
    %448 = math.tanh %447 : vector<2x128xf32>
    %cst_201 = arith.constant 1.000000e+00 : f32
    %449 = vector.broadcast %cst_201 : f32 to vector<2x128xf32>
    %450 = arith.subf %449, %443 : vector<2x128xf32>
    %451 = arith.mulf %450, %448 : vector<2x128xf32>
    %452 = arith.mulf %443, %414 : vector<2x128xf32>
    %453 = arith.addf %451, %452 : vector<2x128xf32>
    %c0_202 = arith.constant 0 : index
    %c0_203 = arith.constant 0 : index
    %454 = vector.load %arg6[%c0_202, %c0_203] : memref<2x128xf32, #tpu.memory_space<vmem>>, vector<2x128xf32>
    tpu.vector_store %arg6[%c0_202, %c0_203], %453 {strides = array<i32>} : memref<2x128xf32, #tpu.memory_space<vmem>>, vector<2x128xf32>,
    %455 = arith.index_cast %413 : i32 to index
    %c0_204 = arith.constant 0 : index
    %c128_205 = arith.constant 128 : index
    %456 = vector.load %arg4[%455, %c0_204, %c128_205] : memref<8x2x256xf32, #tpu.memory_space<vmem>>, vector<1x2x128xf32>
    %457 = vector.shape_cast %456 : vector<1x2x128xf32> to vector<2x128xf32>
    %458 = vector.shape_cast %453 : vector<2x128xf32> to vector<1x2x128xf32>
    tpu.vector_store %arg4[%455, %c0_204, %c128_205], %458 {strides = array<i32>} : memref<8x2x256xf32, #tpu.memory_space<vmem>>, vector<1x2x128xf32>,
    %c5_i32 = arith.constant 5 : i32
    %c0_206 = arith.constant 0 : index
    %c0_207 = arith.constant 0 : index
    %459 = vector.load %arg5[%c0_206, %c0_207] : memref<2x128xf32, #tpu.memory_space<vmem>>, vector<2x128xf32>
    %460 = arith.truncf %459 : vector<2x128xf32> to vector<2x128xbf16>
    %c0_208 = arith.constant 0 : index
    %c0_209 = arith.constant 0 : index
    %461 = vector.load %arg2[%c0_208, %c0_209] : memref<128x768xbf16, #tpu.memory_space<vmem>>, vector<128x384xbf16>
    %cst_210 = arith.constant dense<0.000000e+00> : vector<2x384xf32>
    %462 = tpu.matmul %460, %461, %cst_210 {dimension_numbers = #tpu.dot_dimension_numbers<[1], [0], [0], [1], [0, 0, 1, 1], [], []>} : vector<2x128xbf16>, vector<128x384xbf16>, vector<2x384xf32> -> vector<2x384xf32>
    %c0_211 = arith.constant 0 : index
    %c0_212 = arith.constant 0 : index
    %463 = vector.load %arg3[%c0_211, %c0_212] : memref<1x768xf32, #tpu.memory_space<vmem>>, vector<1x384xf32>
    %464 = vector.broadcast %463 : vector<1x384xf32> to vector<2x384xf32>
    %465 = arith.addf %462, %464 : vector<2x384xf32>
    %466 = arith.index_cast %c5_i32 : i32 to index
    %c0_213 = arith.constant 0 : index
    %c0_214 = arith.constant 0 : index
    %467 = vector.load %arg1[%466, %c0_213, %c0_214] : memref<8x2x768xf32, #tpu.memory_space<vmem>>, vector<1x2x384xf32>
    %468 = vector.shape_cast %467 : vector<1x2x384xf32> to vector<2x384xf32>
    %469 = vector.extract_strided_slice %468 {offsets = [0, 0], sizes = [2, 128], strides = [1, 1]} : vector<2x384xf32> to vector<2x128xf32>
    %470 = vector.extract_strided_slice %465 {offsets = [0, 0], sizes = [2, 128], strides = [1, 1]} : vector<2x384xf32> to vector<2x128xf32>
    %471 = arith.addf %469, %470 : vector<2x128xf32>
    %cst_215 = arith.constant 0.000000e+00 : f32
    %472 = vector.broadcast %cst_215 : f32 to vector<2x128xf32>
    %473 = arith.subf %472, %471 : vector<2x128xf32>
    %474 = math.exp %473 : vector<2x128xf32>
    %cst_216 = arith.constant 1.000000e+00 : f32
    %475 = vector.broadcast %cst_216 : f32 to vector<2x128xf32>
    %476 = arith.addf %475, %474 : vector<2x128xf32>
    %cst_217 = arith.constant 1.000000e+00 : f32
    %477 = vector.broadcast %cst_217 : f32 to vector<2x128xf32>
    %478 = arith.divf %477, %476 : vector<2x128xf32>
    %479 = vector.extract_strided_slice %468 {offsets = [0, 128], sizes = [2, 128], strides = [1, 1]} : vector<2x384xf32> to vector<2x128xf32>
    %480 = vector.extract_strided_slice %465 {offsets = [0, 128], sizes = [2, 128], strides = [1, 1]} : vector<2x384xf32> to vector<2x128xf32>
    %481 = arith.addf %479, %480 : vector<2x128xf32>
    %cst_218 = arith.constant 0.000000e+00 : f32
    %482 = vector.broadcast %cst_218 : f32 to vector<2x128xf32>
    %483 = arith.subf %482, %481 : vector<2x128xf32>
    %484 = math.exp %483 : vector<2x128xf32>
    %cst_219 = arith.constant 1.000000e+00 : f32
    %485 = vector.broadcast %cst_219 : f32 to vector<2x128xf32>
    %486 = arith.addf %485, %484 : vector<2x128xf32>
    %cst_220 = arith.constant 1.000000e+00 : f32
    %487 = vector.broadcast %cst_220 : f32 to vector<2x128xf32>
    %488 = arith.divf %487, %486 : vector<2x128xf32>
    %489 = vector.extract_strided_slice %468 {offsets = [0, 256], sizes = [2, 128], strides = [1, 1]} : vector<2x384xf32> to vector<2x128xf32>
    %490 = vector.extract_strided_slice %465 {offsets = [0, 256], sizes = [2, 128], strides = [1, 1]} : vector<2x384xf32> to vector<2x128xf32>
    %491 = arith.mulf %478, %490 : vector<2x128xf32>
    %492 = arith.addf %489, %491 : vector<2x128xf32>
    %493 = math.tanh %492 : vector<2x128xf32>
    %cst_221 = arith.constant 1.000000e+00 : f32
    %494 = vector.broadcast %cst_221 : f32 to vector<2x128xf32>
    %495 = arith.subf %494, %488 : vector<2x128xf32>
    %496 = arith.mulf %495, %493 : vector<2x128xf32>
    %497 = arith.mulf %488, %459 : vector<2x128xf32>
    %498 = arith.addf %496, %497 : vector<2x128xf32>
    %c0_222 = arith.constant 0 : index
    %c0_223 = arith.constant 0 : index
    %499 = vector.load %arg5[%c0_222, %c0_223] : memref<2x128xf32, #tpu.memory_space<vmem>>, vector<2x128xf32>
    tpu.vector_store %arg5[%c0_222, %c0_223], %498 {strides = array<i32>} : memref<2x128xf32, #tpu.memory_space<vmem>>, vector<2x128xf32>,
    %500 = arith.index_cast %c5_i32 : i32 to index
    %c0_224 = arith.constant 0 : index
    %c0_225 = arith.constant 0 : index
    %501 = vector.load %arg4[%500, %c0_224, %c0_225] : memref<8x2x256xf32, #tpu.memory_space<vmem>>, vector<1x2x128xf32>
    %502 = vector.shape_cast %501 : vector<1x2x128xf32> to vector<2x128xf32>
    %503 = vector.shape_cast %498 : vector<2x128xf32> to vector<1x2x128xf32>
    tpu.vector_store %arg4[%500, %c0_224, %c0_225], %503 {strides = array<i32>} : memref<8x2x256xf32, #tpu.memory_space<vmem>>, vector<1x2x128xf32>,
    %c7_i32_226 = arith.constant 7 : i32
    %504 = arith.subi %c7_i32_226, %c5_i32 : i32
    %c0_227 = arith.constant 0 : index
    %c0_228 = arith.constant 0 : index
    %505 = vector.load %arg6[%c0_227, %c0_228] : memref<2x128xf32, #tpu.memory_space<vmem>>, vector<2x128xf32>
    %506 = arith.truncf %505 : vector<2x128xf32> to vector<2x128xbf16>
    %c0_229 = arith.constant 0 : index
    %c384_230 = arith.constant 384 : index
    %507 = vector.load %arg2[%c0_229, %c384_230] : memref<128x768xbf16, #tpu.memory_space<vmem>>, vector<128x384xbf16>
    %cst_231 = arith.constant dense<0.000000e+00> : vector<2x384xf32>
    %508 = tpu.matmul %506, %507, %cst_231 {dimension_numbers = #tpu.dot_dimension_numbers<[1], [0], [0], [1], [0, 0, 1, 1], [], []>} : vector<2x128xbf16>, vector<128x384xbf16>, vector<2x384xf32> -> vector<2x384xf32>
    %c0_232 = arith.constant 0 : index
    %c384_233 = arith.constant 384 : index
    %509 = vector.load %arg3[%c0_232, %c384_233] : memref<1x768xf32, #tpu.memory_space<vmem>>, vector<1x384xf32>
    %510 = vector.broadcast %509 : vector<1x384xf32> to vector<2x384xf32>
    %511 = arith.addf %508, %510 : vector<2x384xf32>
    %512 = arith.index_cast %504 : i32 to index
    %c0_234 = arith.constant 0 : index
    %c384_235 = arith.constant 384 : index
    %513 = vector.load %arg1[%512, %c0_234, %c384_235] : memref<8x2x768xf32, #tpu.memory_space<vmem>>, vector<1x2x384xf32>
    %514 = vector.shape_cast %513 : vector<1x2x384xf32> to vector<2x384xf32>
    %515 = vector.extract_strided_slice %514 {offsets = [0, 0], sizes = [2, 128], strides = [1, 1]} : vector<2x384xf32> to vector<2x128xf32>
    %516 = vector.extract_strided_slice %511 {offsets = [0, 0], sizes = [2, 128], strides = [1, 1]} : vector<2x384xf32> to vector<2x128xf32>
    %517 = arith.addf %515, %516 : vector<2x128xf32>
    %cst_236 = arith.constant 0.000000e+00 : f32
    %518 = vector.broadcast %cst_236 : f32 to vector<2x128xf32>
    %519 = arith.subf %518, %517 : vector<2x128xf32>
    %520 = math.exp %519 : vector<2x128xf32>
    %cst_237 = arith.constant 1.000000e+00 : f32
    %521 = vector.broadcast %cst_237 : f32 to vector<2x128xf32>
    %522 = arith.addf %521, %520 : vector<2x128xf32>
    %cst_238 = arith.constant 1.000000e+00 : f32
    %523 = vector.broadcast %cst_238 : f32 to vector<2x128xf32>
    %524 = arith.divf %523, %522 : vector<2x128xf32>
    %525 = vector.extract_strided_slice %514 {offsets = [0, 128], sizes = [2, 128], strides = [1, 1]} : vector<2x384xf32> to vector<2x128xf32>
    %526 = vector.extract_strided_slice %511 {offsets = [0, 128], sizes = [2, 128], strides = [1, 1]} : vector<2x384xf32> to vector<2x128xf32>
    %527 = arith.addf %525, %526 : vector<2x128xf32>
    %cst_239 = arith.constant 0.000000e+00 : f32
    %528 = vector.broadcast %cst_239 : f32 to vector<2x128xf32>
    %529 = arith.subf %528, %527 : vector<2x128xf32>
    %530 = math.exp %529 : vector<2x128xf32>
    %cst_240 = arith.constant 1.000000e+00 : f32
    %531 = vector.broadcast %cst_240 : f32 to vector<2x128xf32>
    %532 = arith.addf %531, %530 : vector<2x128xf32>
    %cst_241 = arith.constant 1.000000e+00 : f32
    %533 = vector.broadcast %cst_241 : f32 to vector<2x128xf32>
    %534 = arith.divf %533, %532 : vector<2x128xf32>
    %535 = vector.extract_strided_slice %514 {offsets = [0, 256], sizes = [2, 128], strides = [1, 1]} : vector<2x384xf32> to vector<2x128xf32>
    %536 = vector.extract_strided_slice %511 {offsets = [0, 256], sizes = [2, 128], strides = [1, 1]} : vector<2x384xf32> to vector<2x128xf32>
    %537 = arith.mulf %524, %536 : vector<2x128xf32>
    %538 = arith.addf %535, %537 : vector<2x128xf32>
    %539 = math.tanh %538 : vector<2x128xf32>
    %cst_242 = arith.constant 1.000000e+00 : f32
    %540 = vector.broadcast %cst_242 : f32 to vector<2x128xf32>
    %541 = arith.subf %540, %534 : vector<2x128xf32>
    %542 = arith.mulf %541, %539 : vector<2x128xf32>
    %543 = arith.mulf %534, %505 : vector<2x128xf32>
    %544 = arith.addf %542, %543 : vector<2x128xf32>
    %c0_243 = arith.constant 0 : index
    %c0_244 = arith.constant 0 : index
    %545 = vector.load %arg6[%c0_243, %c0_244] : memref<2x128xf32, #tpu.memory_space<vmem>>, vector<2x128xf32>
    tpu.vector_store %arg6[%c0_243, %c0_244], %544 {strides = array<i32>} : memref<2x128xf32, #tpu.memory_space<vmem>>, vector<2x128xf32>,
    %546 = arith.index_cast %504 : i32 to index
    %c0_245 = arith.constant 0 : index
    %c128_246 = arith.constant 128 : index
    %547 = vector.load %arg4[%546, %c0_245, %c128_246] : memref<8x2x256xf32, #tpu.memory_space<vmem>>, vector<1x2x128xf32>
    %548 = vector.shape_cast %547 : vector<1x2x128xf32> to vector<2x128xf32>
    %549 = vector.shape_cast %544 : vector<2x128xf32> to vector<1x2x128xf32>
    tpu.vector_store %arg4[%546, %c0_245, %c128_246], %549 {strides = array<i32>} : memref<8x2x256xf32, #tpu.memory_space<vmem>>, vector<1x2x128xf32>,
    %c6_i32 = arith.constant 6 : i32
    %c0_247 = arith.constant 0 : index
    %c0_248 = arith.constant 0 : index
    %550 = vector.load %arg5[%c0_247, %c0_248] : memref<2x128xf32, #tpu.memory_space<vmem>>, vector<2x128xf32>
    %551 = arith.truncf %550 : vector<2x128xf32> to vector<2x128xbf16>
    %c0_249 = arith.constant 0 : index
    %c0_250 = arith.constant 0 : index
    %552 = vector.load %arg2[%c0_249, %c0_250] : memref<128x768xbf16, #tpu.memory_space<vmem>>, vector<128x384xbf16>
    %cst_251 = arith.constant dense<0.000000e+00> : vector<2x384xf32>
    %553 = tpu.matmul %551, %552, %cst_251 {dimension_numbers = #tpu.dot_dimension_numbers<[1], [0], [0], [1], [0, 0, 1, 1], [], []>} : vector<2x128xbf16>, vector<128x384xbf16>, vector<2x384xf32> -> vector<2x384xf32>
    %c0_252 = arith.constant 0 : index
    %c0_253 = arith.constant 0 : index
    %554 = vector.load %arg3[%c0_252, %c0_253] : memref<1x768xf32, #tpu.memory_space<vmem>>, vector<1x384xf32>
    %555 = vector.broadcast %554 : vector<1x384xf32> to vector<2x384xf32>
    %556 = arith.addf %553, %555 : vector<2x384xf32>
    %557 = arith.index_cast %c6_i32 : i32 to index
    %c0_254 = arith.constant 0 : index
    %c0_255 = arith.constant 0 : index
    %558 = vector.load %arg1[%557, %c0_254, %c0_255] : memref<8x2x768xf32, #tpu.memory_space<vmem>>, vector<1x2x384xf32>
    %559 = vector.shape_cast %558 : vector<1x2x384xf32> to vector<2x384xf32>
    %560 = vector.extract_strided_slice %559 {offsets = [0, 0], sizes = [2, 128], strides = [1, 1]} : vector<2x384xf32> to vector<2x128xf32>
    %561 = vector.extract_strided_slice %556 {offsets = [0, 0], sizes = [2, 128], strides = [1, 1]} : vector<2x384xf32> to vector<2x128xf32>
    %562 = arith.addf %560, %561 : vector<2x128xf32>
    %cst_256 = arith.constant 0.000000e+00 : f32
    %563 = vector.broadcast %cst_256 : f32 to vector<2x128xf32>
    %564 = arith.subf %563, %562 : vector<2x128xf32>
    %565 = math.exp %564 : vector<2x128xf32>
    %cst_257 = arith.constant 1.000000e+00 : f32
    %566 = vector.broadcast %cst_257 : f32 to vector<2x128xf32>
    %567 = arith.addf %566, %565 : vector<2x128xf32>
    %cst_258 = arith.constant 1.000000e+00 : f32
    %568 = vector.broadcast %cst_258 : f32 to vector<2x128xf32>
    %569 = arith.divf %568, %567 : vector<2x128xf32>
    %570 = vector.extract_strided_slice %559 {offsets = [0, 128], sizes = [2, 128], strides = [1, 1]} : vector<2x384xf32> to vector<2x128xf32>
    %571 = vector.extract_strided_slice %556 {offsets = [0, 128], sizes = [2, 128], strides = [1, 1]} : vector<2x384xf32> to vector<2x128xf32>
    %572 = arith.addf %570, %571 : vector<2x128xf32>
    %cst_259 = arith.constant 0.000000e+00 : f32
    %573 = vector.broadcast %cst_259 : f32 to vector<2x128xf32>
    %574 = arith.subf %573, %572 : vector<2x128xf32>
    %575 = math.exp %574 : vector<2x128xf32>
    %cst_260 = arith.constant 1.000000e+00 : f32
    %576 = vector.broadcast %cst_260 : f32 to vector<2x128xf32>
    %577 = arith.addf %576, %575 : vector<2x128xf32>
    %cst_261 = arith.constant 1.000000e+00 : f32
    %578 = vector.broadcast %cst_261 : f32 to vector<2x128xf32>
    %579 = arith.divf %578, %577 : vector<2x128xf32>
    %580 = vector.extract_strided_slice %559 {offsets = [0, 256], sizes = [2, 128], strides = [1, 1]} : vector<2x384xf32> to vector<2x128xf32>
    %581 = vector.extract_strided_slice %556 {offsets = [0, 256], sizes = [2, 128], strides = [1, 1]} : vector<2x384xf32> to vector<2x128xf32>
    %582 = arith.mulf %569, %581 : vector<2x128xf32>
    %583 = arith.addf %580, %582 : vector<2x128xf32>
    %584 = math.tanh %583 : vector<2x128xf32>
    %cst_262 = arith.constant 1.000000e+00 : f32
    %585 = vector.broadcast %cst_262 : f32 to vector<2x128xf32>
    %586 = arith.subf %585, %579 : vector<2x128xf32>
    %587 = arith.mulf %586, %584 : vector<2x128xf32>
    %588 = arith.mulf %579, %550 : vector<2x128xf32>
    %589 = arith.addf %587, %588 : vector<2x128xf32>
    %c0_263 = arith.constant 0 : index
    %c0_264 = arith.constant 0 : index
    %590 = vector.load %arg5[%c0_263, %c0_264] : memref<2x128xf32, #tpu.memory_space<vmem>>, vector<2x128xf32>
    tpu.vector_store %arg5[%c0_263, %c0_264], %589 {strides = array<i32>} : memref<2x128xf32, #tpu.memory_space<vmem>>, vector<2x128xf32>,
    %591 = arith.index_cast %c6_i32 : i32 to index
    %c0_265 = arith.constant 0 : index
    %c0_266 = arith.constant 0 : index
    %592 = vector.load %arg4[%591, %c0_265, %c0_266] : memref<8x2x256xf32, #tpu.memory_space<vmem>>, vector<1x2x128xf32>
    %593 = vector.shape_cast %592 : vector<1x2x128xf32> to vector<2x128xf32>
    %594 = vector.shape_cast %589 : vector<2x128xf32> to vector<1x2x128xf32>
    tpu.vector_store %arg4[%591, %c0_265, %c0_266], %594 {strides = array<i32>} : memref<8x2x256xf32, #tpu.memory_space<vmem>>, vector<1x2x128xf32>,
    %c7_i32_267 = arith.constant 7 : i32
    %595 = arith.subi %c7_i32_267, %c6_i32 : i32
    %c0_268 = arith.constant 0 : index
    %c0_269 = arith.constant 0 : index
    %596 = vector.load %arg6[%c0_268, %c0_269] : memref<2x128xf32, #tpu.memory_space<vmem>>, vector<2x128xf32>
    %597 = arith.truncf %596 : vector<2x128xf32> to vector<2x128xbf16>
    %c0_270 = arith.constant 0 : index
    %c384_271 = arith.constant 384 : index
    %598 = vector.load %arg2[%c0_270, %c384_271] : memref<128x768xbf16, #tpu.memory_space<vmem>>, vector<128x384xbf16>
    %cst_272 = arith.constant dense<0.000000e+00> : vector<2x384xf32>
    %599 = tpu.matmul %597, %598, %cst_272 {dimension_numbers = #tpu.dot_dimension_numbers<[1], [0], [0], [1], [0, 0, 1, 1], [], []>} : vector<2x128xbf16>, vector<128x384xbf16>, vector<2x384xf32> -> vector<2x384xf32>
    %c0_273 = arith.constant 0 : index
    %c384_274 = arith.constant 384 : index
    %600 = vector.load %arg3[%c0_273, %c384_274] : memref<1x768xf32, #tpu.memory_space<vmem>>, vector<1x384xf32>
    %601 = vector.broadcast %600 : vector<1x384xf32> to vector<2x384xf32>
    %602 = arith.addf %599, %601 : vector<2x384xf32>
    %603 = arith.index_cast %595 : i32 to index
    %c0_275 = arith.constant 0 : index
    %c384_276 = arith.constant 384 : index
    %604 = vector.load %arg1[%603, %c0_275, %c384_276] : memref<8x2x768xf32, #tpu.memory_space<vmem>>, vector<1x2x384xf32>
    %605 = vector.shape_cast %604 : vector<1x2x384xf32> to vector<2x384xf32>
    %606 = vector.extract_strided_slice %605 {offsets = [0, 0], sizes = [2, 128], strides = [1, 1]} : vector<2x384xf32> to vector<2x128xf32>
    %607 = vector.extract_strided_slice %602 {offsets = [0, 0], sizes = [2, 128], strides = [1, 1]} : vector<2x384xf32> to vector<2x128xf32>
    %608 = arith.addf %606, %607 : vector<2x128xf32>
    %cst_277 = arith.constant 0.000000e+00 : f32
    %609 = vector.broadcast %cst_277 : f32 to vector<2x128xf32>
    %610 = arith.subf %609, %608 : vector<2x128xf32>
    %611 = math.exp %610 : vector<2x128xf32>
    %cst_278 = arith.constant 1.000000e+00 : f32
    %612 = vector.broadcast %cst_278 : f32 to vector<2x128xf32>
    %613 = arith.addf %612, %611 : vector<2x128xf32>
    %cst_279 = arith.constant 1.000000e+00 : f32
    %614 = vector.broadcast %cst_279 : f32 to vector<2x128xf32>
    %615 = arith.divf %614, %613 : vector<2x128xf32>
    %616 = vector.extract_strided_slice %605 {offsets = [0, 128], sizes = [2, 128], strides = [1, 1]} : vector<2x384xf32> to vector<2x128xf32>
    %617 = vector.extract_strided_slice %602 {offsets = [0, 128], sizes = [2, 128], strides = [1, 1]} : vector<2x384xf32> to vector<2x128xf32>
    %618 = arith.addf %616, %617 : vector<2x128xf32>
    %cst_280 = arith.constant 0.000000e+00 : f32
    %619 = vector.broadcast %cst_280 : f32 to vector<2x128xf32>
    %620 = arith.subf %619, %618 : vector<2x128xf32>
    %621 = math.exp %620 : vector<2x128xf32>
    %cst_281 = arith.constant 1.000000e+00 : f32
    %622 = vector.broadcast %cst_281 : f32 to vector<2x128xf32>
    %623 = arith.addf %622, %621 : vector<2x128xf32>
    %cst_282 = arith.constant 1.000000e+00 : f32
    %624 = vector.broadcast %cst_282 : f32 to vector<2x128xf32>
    %625 = arith.divf %624, %623 : vector<2x128xf32>
    %626 = vector.extract_strided_slice %605 {offsets = [0, 256], sizes = [2, 128], strides = [1, 1]} : vector<2x384xf32> to vector<2x128xf32>
    %627 = vector.extract_strided_slice %602 {offsets = [0, 256], sizes = [2, 128], strides = [1, 1]} : vector<2x384xf32> to vector<2x128xf32>
    %628 = arith.mulf %615, %627 : vector<2x128xf32>
    %629 = arith.addf %626, %628 : vector<2x128xf32>
    %630 = math.tanh %629 : vector<2x128xf32>
    %cst_283 = arith.constant 1.000000e+00 : f32
    %631 = vector.broadcast %cst_283 : f32 to vector<2x128xf32>
    %632 = arith.subf %631, %625 : vector<2x128xf32>
    %633 = arith.mulf %632, %630 : vector<2x128xf32>
    %634 = arith.mulf %625, %596 : vector<2x128xf32>
    %635 = arith.addf %633, %634 : vector<2x128xf32>
    %c0_284 = arith.constant 0 : index
    %c0_285 = arith.constant 0 : index
    %636 = vector.load %arg6[%c0_284, %c0_285] : memref<2x128xf32, #tpu.memory_space<vmem>>, vector<2x128xf32>
    tpu.vector_store %arg6[%c0_284, %c0_285], %635 {strides = array<i32>} : memref<2x128xf32, #tpu.memory_space<vmem>>, vector<2x128xf32>,
    %637 = arith.index_cast %595 : i32 to index
    %c0_286 = arith.constant 0 : index
    %c128_287 = arith.constant 128 : index
    %638 = vector.load %arg4[%637, %c0_286, %c128_287] : memref<8x2x256xf32, #tpu.memory_space<vmem>>, vector<1x2x128xf32>
    %639 = vector.shape_cast %638 : vector<1x2x128xf32> to vector<2x128xf32>
    %640 = vector.shape_cast %635 : vector<2x128xf32> to vector<1x2x128xf32>
    tpu.vector_store %arg4[%637, %c0_286, %c128_287], %640 {strides = array<i32>} : memref<8x2x256xf32, #tpu.memory_space<vmem>>, vector<1x2x128xf32>,
    %c7_i32_288 = arith.constant 7 : i32
    %c0_289 = arith.constant 0 : index
    %c0_290 = arith.constant 0 : index
    %641 = vector.load %arg5[%c0_289, %c0_290] : memref<2x128xf32, #tpu.memory_space<vmem>>, vector<2x128xf32>
    %642 = arith.truncf %641 : vector<2x128xf32> to vector<2x128xbf16>
    %c0_291 = arith.constant 0 : index
    %c0_292 = arith.constant 0 : index
    %643 = vector.load %arg2[%c0_291, %c0_292] : memref<128x768xbf16, #tpu.memory_space<vmem>>, vector<128x384xbf16>
    %cst_293 = arith.constant dense<0.000000e+00> : vector<2x384xf32>
    %644 = tpu.matmul %642, %643, %cst_293 {dimension_numbers = #tpu.dot_dimension_numbers<[1], [0], [0], [1], [0, 0, 1, 1], [], []>} : vector<2x128xbf16>, vector<128x384xbf16>, vector<2x384xf32> -> vector<2x384xf32>
    %c0_294 = arith.constant 0 : index
    %c0_295 = arith.constant 0 : index
    %645 = vector.load %arg3[%c0_294, %c0_295] : memref<1x768xf32, #tpu.memory_space<vmem>>, vector<1x384xf32>
    %646 = vector.broadcast %645 : vector<1x384xf32> to vector<2x384xf32>
    %647 = arith.addf %644, %646 : vector<2x384xf32>
    %648 = arith.index_cast %c7_i32_288 : i32 to index
    %c0_296 = arith.constant 0 : index
    %c0_297 = arith.constant 0 : index
    %649 = vector.load %arg1[%648, %c0_296, %c0_297] : memref<8x2x768xf32, #tpu.memory_space<vmem>>, vector<1x2x384xf32>
    %650 = vector.shape_cast %649 : vector<1x2x384xf32> to vector<2x384xf32>
    %651 = vector.extract_strided_slice %650 {offsets = [0, 0], sizes = [2, 128], strides = [1, 1]} : vector<2x384xf32> to vector<2x128xf32>
    %652 = vector.extract_strided_slice %647 {offsets = [0, 0], sizes = [2, 128], strides = [1, 1]} : vector<2x384xf32> to vector<2x128xf32>
    %653 = arith.addf %651, %652 : vector<2x128xf32>
    %cst_298 = arith.constant 0.000000e+00 : f32
    %654 = vector.broadcast %cst_298 : f32 to vector<2x128xf32>
    %655 = arith.subf %654, %653 : vector<2x128xf32>
    %656 = math.exp %655 : vector<2x128xf32>
    %cst_299 = arith.constant 1.000000e+00 : f32
    %657 = vector.broadcast %cst_299 : f32 to vector<2x128xf32>
    %658 = arith.addf %657, %656 : vector<2x128xf32>
    %cst_300 = arith.constant 1.000000e+00 : f32
    %659 = vector.broadcast %cst_300 : f32 to vector<2x128xf32>
    %660 = arith.divf %659, %658 : vector<2x128xf32>
    %661 = vector.extract_strided_slice %650 {offsets = [0, 128], sizes = [2, 128], strides = [1, 1]} : vector<2x384xf32> to vector<2x128xf32>
    %662 = vector.extract_strided_slice %647 {offsets = [0, 128], sizes = [2, 128], strides = [1, 1]} : vector<2x384xf32> to vector<2x128xf32>
    %663 = arith.addf %661, %662 : vector<2x128xf32>
    %cst_301 = arith.constant 0.000000e+00 : f32
    %664 = vector.broadcast %cst_301 : f32 to vector<2x128xf32>
    %665 = arith.subf %664, %663 : vector<2x128xf32>
    %666 = math.exp %665 : vector<2x128xf32>
    %cst_302 = arith.constant 1.000000e+00 : f32
    %667 = vector.broadcast %cst_302 : f32 to vector<2x128xf32>
    %668 = arith.addf %667, %666 : vector<2x128xf32>
    %cst_303 = arith.constant 1.000000e+00 : f32
    %669 = vector.broadcast %cst_303 : f32 to vector<2x128xf32>
    %670 = arith.divf %669, %668 : vector<2x128xf32>
    %671 = vector.extract_strided_slice %650 {offsets = [0, 256], sizes = [2, 128], strides = [1, 1]} : vector<2x384xf32> to vector<2x128xf32>
    %672 = vector.extract_strided_slice %647 {offsets = [0, 256], sizes = [2, 128], strides = [1, 1]} : vector<2x384xf32> to vector<2x128xf32>
    %673 = arith.mulf %660, %672 : vector<2x128xf32>
    %674 = arith.addf %671, %673 : vector<2x128xf32>
    %675 = math.tanh %674 : vector<2x128xf32>
    %cst_304 = arith.constant 1.000000e+00 : f32
    %676 = vector.broadcast %cst_304 : f32 to vector<2x128xf32>
    %677 = arith.subf %676, %670 : vector<2x128xf32>
    %678 = arith.mulf %677, %675 : vector<2x128xf32>
    %679 = arith.mulf %670, %641 : vector<2x128xf32>
    %680 = arith.addf %678, %679 : vector<2x128xf32>
    %c0_305 = arith.constant 0 : index
    %c0_306 = arith.constant 0 : index
    %681 = vector.load %arg5[%c0_305, %c0_306] : memref<2x128xf32, #tpu.memory_space<vmem>>, vector<2x128xf32>
    tpu.vector_store %arg5[%c0_305, %c0_306], %680 {strides = array<i32>} : memref<2x128xf32, #tpu.memory_space<vmem>>, vector<2x128xf32>,
    %682 = arith.index_cast %c7_i32_288 : i32 to index
    %c0_307 = arith.constant 0 : index
    %c0_308 = arith.constant 0 : index
    %683 = vector.load %arg4[%682, %c0_307, %c0_308] : memref<8x2x256xf32, #tpu.memory_space<vmem>>, vector<1x2x128xf32>
    %684 = vector.shape_cast %683 : vector<1x2x128xf32> to vector<2x128xf32>
    %685 = vector.shape_cast %680 : vector<2x128xf32> to vector<1x2x128xf32>
    tpu.vector_store %arg4[%682, %c0_307, %c0_308], %685 {strides = array<i32>} : memref<8x2x256xf32, #tpu.memory_space<vmem>>, vector<1x2x128xf32>,
    %c7_i32_309 = arith.constant 7 : i32
    %686 = arith.subi %c7_i32_309, %c7_i32_288 : i32
    %c0_310 = arith.constant 0 : index
    %c0_311 = arith.constant 0 : index
    %687 = vector.load %arg6[%c0_310, %c0_311] : memref<2x128xf32, #tpu.memory_space<vmem>>, vector<2x128xf32>
    %688 = arith.truncf %687 : vector<2x128xf32> to vector<2x128xbf16>
    %c0_312 = arith.constant 0 : index
    %c384_313 = arith.constant 384 : index
    %689 = vector.load %arg2[%c0_312, %c384_313] : memref<128x768xbf16, #tpu.memory_space<vmem>>, vector<128x384xbf16>
    %cst_314 = arith.constant dense<0.000000e+00> : vector<2x384xf32>
    %690 = tpu.matmul %688, %689, %cst_314 {dimension_numbers = #tpu.dot_dimension_numbers<[1], [0], [0], [1], [0, 0, 1, 1], [], []>} : vector<2x128xbf16>, vector<128x384xbf16>, vector<2x384xf32> -> vector<2x384xf32>
    %c0_315 = arith.constant 0 : index
    %c384_316 = arith.constant 384 : index
    %691 = vector.load %arg3[%c0_315, %c384_316] : memref<1x768xf32, #tpu.memory_space<vmem>>, vector<1x384xf32>
    %692 = vector.broadcast %691 : vector<1x384xf32> to vector<2x384xf32>
    %693 = arith.addf %690, %692 : vector<2x384xf32>
    %694 = arith.index_cast %686 : i32 to index
    %c0_317 = arith.constant 0 : index
    %c384_318 = arith.constant 384 : index
    %695 = vector.load %arg1[%694, %c0_317, %c384_318] : memref<8x2x768xf32, #tpu.memory_space<vmem>>, vector<1x2x384xf32>
    %696 = vector.shape_cast %695 : vector<1x2x384xf32> to vector<2x384xf32>
    %697 = vector.extract_strided_slice %696 {offsets = [0, 0], sizes = [2, 128], strides = [1, 1]} : vector<2x384xf32> to vector<2x128xf32>
    %698 = vector.extract_strided_slice %693 {offsets = [0, 0], sizes = [2, 128], strides = [1, 1]} : vector<2x384xf32> to vector<2x128xf32>
    %699 = arith.addf %697, %698 : vector<2x128xf32>
    %cst_319 = arith.constant 0.000000e+00 : f32
    %700 = vector.broadcast %cst_319 : f32 to vector<2x128xf32>
    %701 = arith.subf %700, %699 : vector<2x128xf32>
    %702 = math.exp %701 : vector<2x128xf32>
    %cst_320 = arith.constant 1.000000e+00 : f32
    %703 = vector.broadcast %cst_320 : f32 to vector<2x128xf32>
    %704 = arith.addf %703, %702 : vector<2x128xf32>
    %cst_321 = arith.constant 1.000000e+00 : f32
    %705 = vector.broadcast %cst_321 : f32 to vector<2x128xf32>
    %706 = arith.divf %705, %704 : vector<2x128xf32>
    %707 = vector.extract_strided_slice %696 {offsets = [0, 128], sizes = [2, 128], strides = [1, 1]} : vector<2x384xf32> to vector<2x128xf32>
    %708 = vector.extract_strided_slice %693 {offsets = [0, 128], sizes = [2, 128], strides = [1, 1]} : vector<2x384xf32> to vector<2x128xf32>
    %709 = arith.addf %707, %708 : vector<2x128xf32>
    %cst_322 = arith.constant 0.000000e+00 : f32
    %710 = vector.broadcast %cst_322 : f32 to vector<2x128xf32>
    %711 = arith.subf %710, %709 : vector<2x128xf32>
    %712 = math.exp %711 : vector<2x128xf32>
    %cst_323 = arith.constant 1.000000e+00 : f32
    %713 = vector.broadcast %cst_323 : f32 to vector<2x128xf32>
    %714 = arith.addf %713, %712 : vector<2x128xf32>
    %cst_324 = arith.constant 1.000000e+00 : f32
    %715 = vector.broadcast %cst_324 : f32 to vector<2x128xf32>
    %716 = arith.divf %715, %714 : vector<2x128xf32>
    %717 = vector.extract_strided_slice %696 {offsets = [0, 256], sizes = [2, 128], strides = [1, 1]} : vector<2x384xf32> to vector<2x128xf32>
    %718 = vector.extract_strided_slice %693 {offsets = [0, 256], sizes = [2, 128], strides = [1, 1]} : vector<2x384xf32> to vector<2x128xf32>
    %719 = arith.mulf %706, %718 : vector<2x128xf32>
    %720 = arith.addf %717, %719 : vector<2x128xf32>
    %721 = math.tanh %720 : vector<2x128xf32>
    %cst_325 = arith.constant 1.000000e+00 : f32
    %722 = vector.broadcast %cst_325 : f32 to vector<2x128xf32>
    %723 = arith.subf %722, %716 : vector<2x128xf32>
    %724 = arith.mulf %723, %721 : vector<2x128xf32>
    %725 = arith.mulf %716, %687 : vector<2x128xf32>
    %726 = arith.addf %724, %725 : vector<2x128xf32>
    %c0_326 = arith.constant 0 : index
    %c0_327 = arith.constant 0 : index
    %727 = vector.load %arg6[%c0_326, %c0_327] : memref<2x128xf32, #tpu.memory_space<vmem>>, vector<2x128xf32>
    tpu.vector_store %arg6[%c0_326, %c0_327], %726 {strides = array<i32>} : memref<2x128xf32, #tpu.memory_space<vmem>>, vector<2x128xf32>,
    %728 = arith.index_cast %686 : i32 to index
    %c0_328 = arith.constant 0 : index
    %c128_329 = arith.constant 128 : index
    %729 = vector.load %arg4[%728, %c0_328, %c128_329] : memref<8x2x256xf32, #tpu.memory_space<vmem>>, vector<1x2x128xf32>
    %730 = vector.shape_cast %729 : vector<1x2x128xf32> to vector<2x128xf32>
    %731 = vector.shape_cast %726 : vector<2x128xf32> to vector<1x2x128xf32>
    tpu.vector_store %arg4[%728, %c0_328, %c128_329], %731 {strides = array<i32>} : memref<8x2x256xf32, #tpu.memory_space<vmem>>, vector<1x2x128xf32>,
    %c8_i32 = arith.constant 8 : i32
    return
  }
  func.func @transform_0(%arg0: i32) -> (i32, i32, i32) {
    %c0_i32 = arith.constant 0 : i32
    %c0_i32_0 = arith.constant 0 : i32
    %c0_i32_1 = arith.constant 0 : i32
    %c0_i32_2 = arith.constant 0 : i32
    return %c0_i32, %c0_i32_0, %c0_i32_1 : i32, i32, i32
  }
  func.func @transform_1(%arg0: i32) -> (i32, i32) {
    %c0_i32 = arith.constant 0 : i32
    %c0_i32_0 = arith.constant 0 : i32
    %c0_i32_1 = arith.constant 0 : i32
    return %c0_i32, %c0_i32_0 : i32, i32
  }
  func.func @transform_2(%arg0: i32) -> (i32, i32) {
    %c0_i32 = arith.constant 0 : i32
    %c0_i32_0 = arith.constant 0 : i32
    %c0_i32_1 = arith.constant 0 : i32
    return %c0_i32, %c0_i32_0 : i32, i32
  }
  func.func @transform_3(%arg0: i32) -> (i32, i32, i32) {
    %c0_i32 = arith.constant 0 : i32
    %c0_i32_0 = arith.constant 0 : i32
    %c0_i32_1 = arith.constant 0 : i32
    %c0_i32_2 = arith.constant 0 : i32
    return %c0_i32, %c0_i32_0, %c0_i32_1 : i32, i32, i32
  }
}

module attributes {stable_mosaic.version = 11 : i64} {
  func.func @_matmul_bias_kernel(%arg0: i32, %arg1: memref<16x384xbf16, #tpu.memory_space<vmem>>, %arg2: memref<384x768xbf16, #tpu.memory_space<vmem>>, %arg3: memref<1x768xf32, #tpu.memory_space<vmem>>, %arg4: memref<16x768xf32, #tpu.memory_space<vmem>>) attributes {dimension_semantics = [#tpu.dimension_semantics<parallel>], iteration_bounds = array<i64: 1>, scalar_prefetch = 0 : i64, scratch_operands = 0 : i64, tpu.core_type = #tpu.core_type<tc>, window_params = [{transform_indices = @transform_0, window_bounds = array<i64: 16, 384>}, {pipeline_mode = #tpu.pipeline_mode<synchronous>, transform_indices = @transform_1, window_bounds = array<i64: 384, 768>}, {pipeline_mode = #tpu.pipeline_mode<synchronous>, transform_indices = @transform_2, window_bounds = array<i64: 1, 768>}, {transform_indices = @transform_3, window_bounds = array<i64: 16, 768>}]} {
    %c0 = arith.constant 0 : index
    %c0_0 = arith.constant 0 : index
    %0 = vector.load %arg1[%c0, %c0_0] : memref<16x384xbf16, #tpu.memory_space<vmem>>, vector<16x384xbf16>
    %c0_1 = arith.constant 0 : index
    %c0_2 = arith.constant 0 : index
    %1 = vector.load %arg2[%c0_1, %c0_2] : memref<384x768xbf16, #tpu.memory_space<vmem>>, vector<384x768xbf16>
    %cst = arith.constant dense<0.000000e+00> : vector<16x768xf32>
    %2 = tpu.matmul %0, %1, %cst {dimension_numbers = #tpu.dot_dimension_numbers<[1], [0], [0], [1], [0, 0, 1, 1], [], []>} : vector<16x384xbf16>, vector<384x768xbf16>, vector<16x768xf32> -> vector<16x768xf32>
    %c0_3 = arith.constant 0 : index
    %c0_4 = arith.constant 0 : index
    %3 = vector.load %arg3[%c0_3, %c0_4] : memref<1x768xf32, #tpu.memory_space<vmem>>, vector<1x768xf32>
    %4 = vector.broadcast %3 : vector<1x768xf32> to vector<16x768xf32>
    %5 = arith.addf %2, %4 : vector<16x768xf32>
    %c0_5 = arith.constant 0 : index
    %c0_6 = arith.constant 0 : index
    %6 = vector.load %arg4[%c0_5, %c0_6] : memref<16x768xf32, #tpu.memory_space<vmem>>, vector<16x768xf32>
    tpu.vector_store %arg4[%c0_5, %c0_6], %5 {strides = array<i32>} : memref<16x768xf32, #tpu.memory_space<vmem>>, vector<16x768xf32>,
    return
  }
  func.func @transform_0(%arg0: i32) -> (i32, i32) {
    %c0_i32 = arith.constant 0 : i32
    %c0_i32_0 = arith.constant 0 : i32
    return %arg0, %c0_i32 : i32, i32
  }
  func.func @transform_1(%arg0: i32) -> (i32, i32) {
    %c0_i32 = arith.constant 0 : i32
    %c0_i32_0 = arith.constant 0 : i32
    %c0_i32_1 = arith.constant 0 : i32
    return %c0_i32, %c0_i32_0 : i32, i32
  }
  func.func @transform_2(%arg0: i32) -> (i32, i32) {
    %c0_i32 = arith.constant 0 : i32
    %c0_i32_0 = arith.constant 0 : i32
    %c0_i32_1 = arith.constant 0 : i32
    return %c0_i32, %c0_i32_0 : i32, i32
  }
  func.func @transform_3(%arg0: i32) -> (i32, i32) {
    %c0_i32 = arith.constant 0 : i32
    %c0_i32_0 = arith.constant 0 : i32
    return %arg0, %c0_i32 : i32, i32
  }
}

module attributes {stable_mosaic.version = 11 : i64} {
  func.func @_matmul_bias_kernel(%arg0: i32, %arg1: memref<128x384xbf16, #tpu.memory_space<vmem>>, %arg2: memref<384x384xbf16, #tpu.memory_space<vmem>>, %arg3: memref<1x384xf32, #tpu.memory_space<vmem>>, %arg4: memref<128x384xf32, #tpu.memory_space<vmem>>) attributes {dimension_semantics = [#tpu.dimension_semantics<parallel>], iteration_bounds = array<i64: 2>, scalar_prefetch = 0 : i64, scratch_operands = 0 : i64, tpu.core_type = #tpu.core_type<tc>, window_params = [{transform_indices = @transform_0, window_bounds = array<i64: 128, 384>}, {pipeline_mode = #tpu.pipeline_mode<synchronous>, transform_indices = @transform_1, window_bounds = array<i64: 384, 384>}, {pipeline_mode = #tpu.pipeline_mode<synchronous>, transform_indices = @transform_2, window_bounds = array<i64: 1, 384>}, {transform_indices = @transform_3, window_bounds = array<i64: 128, 384>}]} {
    %c0 = arith.constant 0 : index
    %c0_0 = arith.constant 0 : index
    %0 = vector.load %arg1[%c0, %c0_0] : memref<128x384xbf16, #tpu.memory_space<vmem>>, vector<128x384xbf16>
    %c0_1 = arith.constant 0 : index
    %c0_2 = arith.constant 0 : index
    %1 = vector.load %arg2[%c0_1, %c0_2] : memref<384x384xbf16, #tpu.memory_space<vmem>>, vector<384x384xbf16>
    %cst = arith.constant dense<0.000000e+00> : vector<128x384xf32>
    %2 = tpu.matmul %0, %1, %cst {dimension_numbers = #tpu.dot_dimension_numbers<[1], [0], [0], [1], [0, 0, 1, 1], [], []>} : vector<128x384xbf16>, vector<384x384xbf16>, vector<128x384xf32> -> vector<128x384xf32>
    %c0_3 = arith.constant 0 : index
    %c0_4 = arith.constant 0 : index
    %3 = vector.load %arg3[%c0_3, %c0_4] : memref<1x384xf32, #tpu.memory_space<vmem>>, vector<1x384xf32>
    %4 = vector.broadcast %3 : vector<1x384xf32> to vector<128x384xf32>
    %5 = arith.addf %2, %4 : vector<128x384xf32>
    %c0_5 = arith.constant 0 : index
    %c0_6 = arith.constant 0 : index
    %6 = vector.load %arg4[%c0_5, %c0_6] : memref<128x384xf32, #tpu.memory_space<vmem>>, vector<128x384xf32>
    tpu.vector_store %arg4[%c0_5, %c0_6], %5 {strides = array<i32>} : memref<128x384xf32, #tpu.memory_space<vmem>>, vector<128x384xf32>,
    return
  }
  func.func @transform_0(%arg0: i32) -> (i32, i32) {
    %c0_i32 = arith.constant 0 : i32
    %c0_i32_0 = arith.constant 0 : i32
    return %arg0, %c0_i32 : i32, i32
  }
  func.func @transform_1(%arg0: i32) -> (i32, i32) {
    %c0_i32 = arith.constant 0 : i32
    %c0_i32_0 = arith.constant 0 : i32
    %c0_i32_1 = arith.constant 0 : i32
    return %c0_i32, %c0_i32_0 : i32, i32
  }
  func.func @transform_2(%arg0: i32) -> (i32, i32) {
    %c0_i32 = arith.constant 0 : i32
    %c0_i32_0 = arith.constant 0 : i32
    %c0_i32_1 = arith.constant 0 : i32
    return %c0_i32, %c0_i32_0 : i32, i32
  }
  func.func @transform_3(%arg0: i32) -> (i32, i32) {
    %c0_i32 = arith.constant 0 : i32
    %c0_i32_0 = arith.constant 0 : i32
    return %arg0, %c0_i32 : i32, i32
  }
}

module attributes {stable_mosaic.version = 11 : i64} {
  func.func @_gru_recurrence_kernel(%arg0: i32, %arg1: memref<128x2x384xf32, #tpu.memory_space<vmem>>, %arg2: memref<128x384xbf16, #tpu.memory_space<vmem>>, %arg3: memref<1x384xf32, #tpu.memory_space<vmem>>, %arg4: memref<128x2x128xf32, #tpu.memory_space<vmem>>, %arg5: memref<2x128xf32, #tpu.memory_space<vmem>>) attributes {dimension_semantics = [#tpu.dimension_semantics<arbitrary>], iteration_bounds = array<i64: 1>, scalar_prefetch = 0 : i64, scratch_operands = 1 : i64, tpu.core_type = #tpu.core_type<tc>, window_params = [{pipeline_mode = #tpu.pipeline_mode<synchronous>, transform_indices = @transform_0, window_bounds = array<i64: 128, 2, 384>}, {pipeline_mode = #tpu.pipeline_mode<synchronous>, transform_indices = @transform_1, window_bounds = array<i64: 128, 384>}, {pipeline_mode = #tpu.pipeline_mode<synchronous>, transform_indices = @transform_2, window_bounds = array<i64: 1, 384>}, {pipeline_mode = #tpu.pipeline_mode<synchronous>, transform_indices = @transform_3, window_bounds = array<i64: 128, 2, 128>}]} {
    %cst = arith.constant 0.000000e+00 : f32
    %0 = vector.broadcast %cst : f32 to vector<2x128xf32>
    %c0 = arith.constant 0 : index
    %c0_0 = arith.constant 0 : index
    %1 = vector.load %arg5[%c0, %c0_0] : memref<2x128xf32, #tpu.memory_space<vmem>>, vector<2x128xf32>
    tpu.vector_store %arg5[%c0, %c0_0], %0 {strides = array<i32>} : memref<2x128xf32, #tpu.memory_space<vmem>>, vector<2x128xf32>,
    %c0_i32 = arith.constant 0 : i32
    %c128_i32 = arith.constant 128 : i32
    %2 = arith.addi %c0_i32, %c128_i32 : i32
    %c1_i32 = arith.constant 1 : i32
    scf.for %arg6 = %c0_i32 to %2 step %c1_i32  : i32 {
      %c0_2 = arith.constant 0 : index
      %c0_3 = arith.constant 0 : index
      %3 = vector.load %arg5[%c0_2, %c0_3] : memref<2x128xf32, #tpu.memory_space<vmem>>, vector<2x128xf32>
      %4 = arith.truncf %3 : vector<2x128xf32> to vector<2x128xbf16>
      %c0_4 = arith.constant 0 : index
      %c0_5 = arith.constant 0 : index
      %5 = vector.load %arg2[%c0_4, %c0_5] : memref<128x384xbf16, #tpu.memory_space<vmem>>, vector<128x384xbf16>
      %cst_6 = arith.constant dense<0.000000e+00> : vector<2x384xf32>
      %6 = tpu.matmul %4, %5, %cst_6 {dimension_numbers = #tpu.dot_dimension_numbers<[1], [0], [0], [1], [0, 0, 1, 1], [], []>} : vector<2x128xbf16>, vector<128x384xbf16>, vector<2x384xf32> -> vector<2x384xf32>
      %c0_7 = arith.constant 0 : index
      %c0_8 = arith.constant 0 : index
      %7 = vector.load %arg3[%c0_7, %c0_8] : memref<1x384xf32, #tpu.memory_space<vmem>>, vector<1x384xf32>
      %8 = vector.broadcast %7 : vector<1x384xf32> to vector<2x384xf32>
      %9 = arith.addf %6, %8 : vector<2x384xf32>
      %10 = arith.index_cast %arg6 : i32 to index
      %c0_9 = arith.constant 0 : index
      %c0_10 = arith.constant 0 : index
      %11 = vector.load %arg1[%10, %c0_9, %c0_10] : memref<128x2x384xf32, #tpu.memory_space<vmem>>, vector<1x2x384xf32>
      %12 = vector.shape_cast %11 : vector<1x2x384xf32> to vector<2x384xf32>
      %13 = vector.extract_strided_slice %12 {offsets = [0, 0], sizes = [2, 128], strides = [1, 1]} : vector<2x384xf32> to vector<2x128xf32>
      %14 = vector.extract_strided_slice %9 {offsets = [0, 0], sizes = [2, 128], strides = [1, 1]} : vector<2x384xf32> to vector<2x128xf32>
      %15 = arith.addf %13, %14 : vector<2x128xf32>
      %cst_11 = arith.constant 0.000000e+00 : f32
      %16 = vector.broadcast %cst_11 : f32 to vector<2x128xf32>
      %17 = arith.subf %16, %15 : vector<2x128xf32>
      %18 = math.exp %17 : vector<2x128xf32>
      %cst_12 = arith.constant 1.000000e+00 : f32
      %19 = vector.broadcast %cst_12 : f32 to vector<2x128xf32>
      %20 = arith.addf %19, %18 : vector<2x128xf32>
      %cst_13 = arith.constant 1.000000e+00 : f32
      %21 = vector.broadcast %cst_13 : f32 to vector<2x128xf32>
      %22 = arith.divf %21, %20 : vector<2x128xf32>
      %23 = vector.extract_strided_slice %12 {offsets = [0, 128], sizes = [2, 128], strides = [1, 1]} : vector<2x384xf32> to vector<2x128xf32>
      %24 = vector.extract_strided_slice %9 {offsets = [0, 128], sizes = [2, 128], strides = [1, 1]} : vector<2x384xf32> to vector<2x128xf32>
      %25 = arith.addf %23, %24 : vector<2x128xf32>
      %cst_14 = arith.constant 0.000000e+00 : f32
      %26 = vector.broadcast %cst_14 : f32 to vector<2x128xf32>
      %27 = arith.subf %26, %25 : vector<2x128xf32>
      %28 = math.exp %27 : vector<2x128xf32>
      %cst_15 = arith.constant 1.000000e+00 : f32
      %29 = vector.broadcast %cst_15 : f32 to vector<2x128xf32>
      %30 = arith.addf %29, %28 : vector<2x128xf32>
      %cst_16 = arith.constant 1.000000e+00 : f32
      %31 = vector.broadcast %cst_16 : f32 to vector<2x128xf32>
      %32 = arith.divf %31, %30 : vector<2x128xf32>
      %33 = vector.extract_strided_slice %12 {offsets = [0, 256], sizes = [2, 128], strides = [1, 1]} : vector<2x384xf32> to vector<2x128xf32>
      %34 = vector.extract_strided_slice %9 {offsets = [0, 256], sizes = [2, 128], strides = [1, 1]} : vector<2x384xf32> to vector<2x128xf32>
      %35 = arith.mulf %22, %34 : vector<2x128xf32>
      %36 = arith.addf %33, %35 : vector<2x128xf32>
      %37 = math.tanh %36 : vector<2x128xf32>
      %cst_17 = arith.constant 1.000000e+00 : f32
      %38 = vector.broadcast %cst_17 : f32 to vector<2x128xf32>
      %39 = arith.subf %38, %32 : vector<2x128xf32>
      %40 = arith.mulf %39, %37 : vector<2x128xf32>
      %41 = arith.mulf %32, %3 : vector<2x128xf32>
      %42 = arith.addf %40, %41 : vector<2x128xf32>
      %c0_18 = arith.constant 0 : index
      %c0_19 = arith.constant 0 : index
      %43 = vector.load %arg5[%c0_18, %c0_19] : memref<2x128xf32, #tpu.memory_space<vmem>>, vector<2x128xf32>
      tpu.vector_store %arg5[%c0_18, %c0_19], %42 {strides = array<i32>} : memref<2x128xf32, #tpu.memory_space<vmem>>, vector<2x128xf32>,
      %44 = arith.index_cast %arg6 : i32 to index
      %c0_20 = arith.constant 0 : index
      %c0_21 = arith.constant 0 : index
      %45 = vector.load %arg4[%44, %c0_20, %c0_21] : memref<128x2x128xf32, #tpu.memory_space<vmem>>, vector<1x2x128xf32>
      %46 = vector.shape_cast %45 : vector<1x2x128xf32> to vector<2x128xf32>
      %47 = vector.shape_cast %42 : vector<2x128xf32> to vector<1x2x128xf32>
      tpu.vector_store %arg4[%44, %c0_20, %c0_21], %47 {strides = array<i32>} : memref<128x2x128xf32, #tpu.memory_space<vmem>>, vector<1x2x128xf32>,
    }
    %c128_i32_1 = arith.constant 128 : i32
    return
  }
  func.func @transform_0(%arg0: i32) -> (i32, i32, i32) {
    %c0_i32 = arith.constant 0 : i32
    %c0_i32_0 = arith.constant 0 : i32
    %c0_i32_1 = arith.constant 0 : i32
    %c0_i32_2 = arith.constant 0 : i32
    return %c0_i32, %c0_i32_0, %c0_i32_1 : i32, i32, i32
  }
  func.func @transform_1(%arg0: i32) -> (i32, i32) {
    %c0_i32 = arith.constant 0 : i32
    %c0_i32_0 = arith.constant 0 : i32
    %c0_i32_1 = arith.constant 0 : i32
    return %c0_i32, %c0_i32_0 : i32, i32
  }
  func.func @transform_2(%arg0: i32) -> (i32, i32) {
    %c0_i32 = arith.constant 0 : i32
    %c0_i32_0 = arith.constant 0 : i32
    %c0_i32_1 = arith.constant 0 : i32
    return %c0_i32, %c0_i32_0 : i32, i32
  }
  func.func @transform_3(%arg0: i32) -> (i32, i32, i32) {
    %c0_i32 = arith.constant 0 : i32
    %c0_i32_0 = arith.constant 0 : i32
    %c0_i32_1 = arith.constant 0 : i32
    %c0_i32_2 = arith.constant 0 : i32
    return %c0_i32, %c0_i32_0, %c0_i32_1 : i32, i32, i32
  }
}

module attributes {stable_mosaic.version = 11 : i64} {
  func.func @_mlp_head_kernel(%arg0: i32, %arg1: memref<128x128xbf16, #tpu.memory_space<vmem>>, %arg2: memref<128x128xbf16, #tpu.memory_space<vmem>>, %arg3: memref<1x128xf32, #tpu.memory_space<vmem>>, %arg4: memref<128x256xbf16, #tpu.memory_space<vmem>>, %arg5: memref<1x256xf32, #tpu.memory_space<vmem>>, %arg6: memref<128x256xf32, #tpu.memory_space<vmem>>) attributes {dimension_semantics = [#tpu.dimension_semantics<parallel>], iteration_bounds = array<i64: 2>, scalar_prefetch = 0 : i64, scratch_operands = 0 : i64, tpu.core_type = #tpu.core_type<tc>, window_params = [{transform_indices = @transform_0, window_bounds = array<i64: 128, 128>}, {pipeline_mode = #tpu.pipeline_mode<synchronous>, transform_indices = @transform_1, window_bounds = array<i64: 128, 128>}, {pipeline_mode = #tpu.pipeline_mode<synchronous>, transform_indices = @transform_2, window_bounds = array<i64: 1, 128>}, {pipeline_mode = #tpu.pipeline_mode<synchronous>, transform_indices = @transform_3, window_bounds = array<i64: 128, 256>}, {pipeline_mode = #tpu.pipeline_mode<synchronous>, transform_indices = @transform_4, window_bounds = array<i64: 1, 256>}, {transform_indices = @transform_5, window_bounds = array<i64: 128, 256>}]} {
    %c0 = arith.constant 0 : index
    %c0_0 = arith.constant 0 : index
    %0 = vector.load %arg1[%c0, %c0_0] : memref<128x128xbf16, #tpu.memory_space<vmem>>, vector<128x128xbf16>
    %c0_1 = arith.constant 0 : index
    %c0_2 = arith.constant 0 : index
    %1 = vector.load %arg2[%c0_1, %c0_2] : memref<128x128xbf16, #tpu.memory_space<vmem>>, vector<128x128xbf16>
    %cst = arith.constant dense<0.000000e+00> : vector<128x128xf32>
    %2 = tpu.matmul %0, %1, %cst {dimension_numbers = #tpu.dot_dimension_numbers<[1], [0], [0], [1], [0, 0, 1, 1], [], []>} : vector<128x128xbf16>, vector<128x128xbf16>, vector<128x128xf32> -> vector<128x128xf32>
    %c0_3 = arith.constant 0 : index
    %c0_4 = arith.constant 0 : index
    %3 = vector.load %arg3[%c0_3, %c0_4] : memref<1x128xf32, #tpu.memory_space<vmem>>, vector<1x128xf32>
    %4 = vector.broadcast %3 : vector<1x128xf32> to vector<128x128xf32>
    %5 = arith.addf %2, %4 : vector<128x128xf32>
    %cst_5 = arith.constant 0.000000e+00 : f32
    %6 = vector.broadcast %cst_5 : f32 to vector<128x128xf32>
    %7 = arith.maximumf %5, %6 : vector<128x128xf32>
    %8 = arith.truncf %7 : vector<128x128xf32> to vector<128x128xbf16>
    %c0_6 = arith.constant 0 : index
    %c0_7 = arith.constant 0 : index
    %9 = vector.load %arg4[%c0_6, %c0_7] : memref<128x256xbf16, #tpu.memory_space<vmem>>, vector<128x256xbf16>
    %cst_8 = arith.constant dense<0.000000e+00> : vector<128x256xf32>
    %10 = tpu.matmul %8, %9, %cst_8 {dimension_numbers = #tpu.dot_dimension_numbers<[1], [0], [0], [1], [0, 0, 1, 1], [], []>} : vector<128x128xbf16>, vector<128x256xbf16>, vector<128x256xf32> -> vector<128x256xf32>
    %c0_9 = arith.constant 0 : index
    %c0_10 = arith.constant 0 : index
    %11 = vector.load %arg5[%c0_9, %c0_10] : memref<1x256xf32, #tpu.memory_space<vmem>>, vector<1x256xf32>
    %12 = vector.broadcast %11 : vector<1x256xf32> to vector<128x256xf32>
    %13 = arith.addf %10, %12 : vector<128x256xf32>
    %c0_11 = arith.constant 0 : index
    %c0_12 = arith.constant 0 : index
    %14 = vector.load %arg6[%c0_11, %c0_12] : memref<128x256xf32, #tpu.memory_space<vmem>>, vector<128x256xf32>
    tpu.vector_store %arg6[%c0_11, %c0_12], %13 {strides = array<i32>} : memref<128x256xf32, #tpu.memory_space<vmem>>, vector<128x256xf32>,
    return
  }
  func.func @transform_0(%arg0: i32) -> (i32, i32) {
    %c0_i32 = arith.constant 0 : i32
    %c0_i32_0 = arith.constant 0 : i32
    return %arg0, %c0_i32 : i32, i32
  }
  func.func @transform_1(%arg0: i32) -> (i32, i32) {
    %c0_i32 = arith.constant 0 : i32
    %c0_i32_0 = arith.constant 0 : i32
    %c0_i32_1 = arith.constant 0 : i32
    return %c0_i32, %c0_i32_0 : i32, i32
  }
  func.func @transform_2(%arg0: i32) -> (i32, i32) {
    %c0_i32 = arith.constant 0 : i32
    %c0_i32_0 = arith.constant 0 : i32
    %c0_i32_1 = arith.constant 0 : i32
    return %c0_i32, %c0_i32_0 : i32, i32
  }
  func.func @transform_3(%arg0: i32) -> (i32, i32) {
    %c0_i32 = arith.constant 0 : i32
    %c0_i32_0 = arith.constant 0 : i32
    %c0_i32_1 = arith.constant 0 : i32
    return %c0_i32, %c0_i32_0 : i32, i32
  }
  func.func @transform_4(%arg0: i32) -> (i32, i32) {
    %c0_i32 = arith.constant 0 : i32
    %c0_i32_0 = arith.constant 0 : i32
    %c0_i32_1 = arith.constant 0 : i32
    return %c0_i32, %c0_i32_0 : i32, i32
  }
  func.func @transform_5(%arg0: i32) -> (i32, i32) {
    %c0_i32 = arith.constant 0 : i32
    %c0_i32_0 = arith.constant 0 : i32
    return %arg0, %c0_i32 : i32, i32
  }
}

</mosaic_0001>

<llo_original>
// kernel: forward.13
$region0: #{forward.13}
  #allocation0 [shape = 'u32[]', space=smem, size = 0x4, offset = 0x4, fixed_abs, tag = 'smem constant byte address 0x4 - core index']
  #allocation1 [shape = 'u32[144,128]{1,0:T(1,128)}', space=vmem, size = 0x12000, scoped, tag = 'internal scratch']
  %s0 = inlined_call_operand.vmem [shape: bf16[16,256], index: 0, kind: input, shape index: {}]
  %s1 = inlined_call_operand.vmem [shape: bf16[256,768], index: 1, kind: input, shape index: {}]
  %s2 = inlined_call_operand.vmem [shape: f32[1,768], index: 2, kind: input, shape index: {}]
  %s3 = inlined_call_operand.vmem [shape: f32[16,768], index: 3, kind: output, shape index: {}]
  %s4 = sld [smem:[#allocation0]]
  $region22: #{forward.13} parent=0
    _
  %s6 = ssub.s32 1, %s4
  %s7 = scalar_select 0, %s6, %s4
  // Predicated region
  $region2: #{forward.13} parent=0 // pred_check
    _
  $region3: #{forward.13} parent=0 // pred_check_branch
    %9 = sbr.rel (0) target = $region5
  $region4: #{forward.13} parent=0 // pred_region
    _
  $region5: #{forward.13} parent=0 // pred_fallthru
    _
  // Predicated region
  $region6: #{forward.13} parent=0 // pred_check
    _
  $region7: #{forward.13} parent=0 // pred_check_branch
    %11 = sbr.rel (0) target = $region9
  $region8: #{forward.13} parent=0 // pred_region
    _
  $region9: #{forward.13} parent=0 // pred_fallthru
    _
  // Predicated region
  $region10: #{forward.13} parent=0 // pred_check
    _
  $region11: #{forward.13} parent=0 // pred_check_branch
    %13 = sbr.rel (0) target = $region13
  $region12: #{forward.13} parent=0 // pred_region
    _
  $region13: #{forward.13} parent=0 // pred_fallthru
    _
  %v14 = vld [vmem:[%s0] sm:$0xff]
  %v15 = vld [vmem:[%s0 + $0x8] sm:$0xff]
  %v16 = vld [vmem:[%s1] sm:$0xff]
  %v17 = vld [vmem:[%s1 + $0x8] sm:$0xff]
  %v18 = vld [vmem:[%s1 + $0x10] sm:$0xff]
  %v19 = vld [vmem:[%s1 + $0x18] sm:$0xff]
  %v20 = vld [vmem:[%s1 + $0x20] sm:$0xff]
  %v21 = vld [vmem:[%s1 + $0x28] sm:$0xff]
  %v22 = vld [vmem:[%s1 + $0x30] sm:$0xff]
  %v23 = vld [vmem:[%s1 + $0x38] sm:$0xff]
  %v24 = vld [vmem:[%s1 + $0x40] sm:$0xff]
  %v25 = vld [vmem:[%s1 + $0x48] sm:$0xff]
  %v26 = vld [vmem:[%s1 + $0x50] sm:$0xff]
  %v27 = vld [vmem:[%s1 + $0x58] sm:$0xff]
  %v28 = vld [vmem:[%s1 + $0x60] sm:$0xff]
  %v29 = vld [vmem:[%s1 + $0x68] sm:$0xff]
  %v30 = vld [vmem:[%s1 + $0x70] sm:$0xff]
  %v31 = vld [vmem:[%s1 + $0x78] sm:$0xff]
  %v32 = vld [vmem:[%s1 + $0x80] sm:$0xff]
  %v33 = vld [vmem:[%s1 + $0x88] sm:$0xff]
  %v34 = vld [vmem:[%s1 + $0x90] sm:$0xff]
  %v35 = vld [vmem:[%s1 + $0x98] sm:$0xff]
  %v36 = vld [vmem:[%s1 + $0xa0] sm:$0xff]
  %v37 = vld [vmem:[%s1 + $0xa8] sm:$0xff]
  %v38 = vld [vmem:[%s1 + $0xb0] sm:$0xff]
  %v39 = vld [vmem:[%s1 + $0xb8] sm:$0xff]
  %v40 = vld [vmem:[%s1 + $0xc0] sm:$0xff]
  %v41 = vld [vmem:[%s1 + $0xc8] sm:$0xff]
  %v42 = vld [vmem:[%s1 + $0xd0] sm:$0xff]
  %v43 = vld [vmem:[%s1 + $0xd8] sm:$0xff]
  %v44 = vld [vmem:[%s1 + $0xe0] sm:$0xff]
  %v45 = vld [vmem:[%s1 + $0xe8] sm:$0xff]
  %v46 = vld [vmem:[%s1 + $0xf0] sm:$0xff]
  %v47 = vld [vmem:[%s1 + $0xf8] sm:$0xff]
  %v48 = vld [vmem:[%s1 + $0x100] sm:$0xff]
  %v49 = vld [vmem:[%s1 + $0x108] sm:$0xff]
  %v50 = vld [vmem:[%s1 + $0x110] sm:$0xff]
  %v51 = vld [vmem:[%s1 + $0x118] sm:$0xff]
  %v52 = vld [vmem:[%s1 + $0x120] sm:$0xff]
  %v53 = vld [vmem:[%s1 + $0x128] sm:$0xff]
  %v54 = vld [vmem:[%s1 + $0x130] sm:$0xff]
  %v55 = vld [vmem:[%s1 + $0x138] sm:$0xff]
  %v56 = vld [vmem:[%s1 + $0x140] sm:$0xff]
  %v57 = vld [vmem:[%s1 + $0x148] sm:$0xff]
  %v58 = vld [vmem:[%s1 + $0x150] sm:$0xff]
  %v59 = vld [vmem:[%s1 + $0x158] sm:$0xff]
  %v60 = vld [vmem:[%s1 + $0x160] sm:$0xff]
  %v61 = vld [vmem:[%s1 + $0x168] sm:$0xff]
  %v62 = vld [vmem:[%s1 + $0x170] sm:$0xff]
  %v63 = vld [vmem:[%s1 + $0x178] sm:$0xff]
  %v64 = vld [vmem:[%s1 + $0x180] sm:$0xff]
  %v65 = vld [vmem:[%s1 + $0x188] sm:$0xff]
  %v66 = vld [vmem:[%s1 + $0x190] sm:$0xff]
  %v67 = vld [vmem:[%s1 + $0x198] sm:$0xff]
  %v68 = vld [vmem:[%s1 + $0x1a0] sm:$0xff]
  %v69 = vld [vmem:[%s1 + $0x1a8] sm:$0xff]
  %v70 = vld [vmem:[%s1 + $0x1b0] sm:$0xff]
  %v71 = vld [vmem:[%s1 + $0x1b8] sm:$0xff]
  %v72 = vld [vmem:[%s1 + $0x1c0] sm:$0xff]
  %v73 = vld [vmem:[%s1 + $0x1c8] sm:$0xff]
  %v74 = vld [vmem:[%s1 + $0x1d0] sm:$0xff]
  %v75 = vld [vmem:[%s1 + $0x1d8] sm:$0xff]
  %v76 = vld [vmem:[%s1 + $0x1e0] sm:$0xff]
  %v77 = vld [vmem:[%s1 + $0x1e8] sm:$0xff]
  %v78 = vld [vmem:[%s1 + $0x1f0] sm:$0xff]
  %v79 = vld [vmem:[%s1 + $0x1f8] sm:$0xff]
  %v80 = vld [vmem:[%s1 + $0x200] sm:$0xff]
  %v81 = vld [vmem:[%s1 + $0x208] sm:$0xff]
  %v82 = vld [vmem:[%s1 + $0x210] sm:$0xff]
  %v83 = vld [vmem:[%s1 + $0x218] sm:$0xff]
  %v84 = vld [vmem:[%s1 + $0x220] sm:$0xff]
  %v85 = vld [vmem:[%s1 + $0x228] sm:$0xff]
  %v86 = vld [vmem:[%s1 + $0x230] sm:$0xff]
  %v87 = vld [vmem:[%s1 + $0x238] sm:$0xff]
  %v88 = vld [vmem:[%s1 + $0x240] sm:$0xff]
  %v89 = vld [vmem:[%s1 + $0x248] sm:$0xff]
  %v90 = vld [vmem:[%s1 + $0x250] sm:$0xff]
  %v91 = vld [vmem:[%s1 + $0x258] sm:$0xff]
  %v92 = vld [vmem:[%s1 + $0x260] sm:$0xff]
  %v93 = vld [vmem:[%s1 + $0x268] sm:$0xff]
  %v94 = vld [vmem:[%s1 + $0x270] sm:$0xff]
  %v95 = vld [vmem:[%s1 + $0x278] sm:$0xff]
  %v96 = vld [vmem:[%s1 + $0x280] sm:$0xff]
  %v97 = vld [vmem:[%s1 + $0x288] sm:$0xff]
  %v98 = vld [vmem:[%s1 + $0x290] sm:$0xff]
  %v99 = vld [vmem:[%s1 + $0x298] sm:$0xff]
  %v100 = vld [vmem:[%s1 + $0x2a0] sm:$0xff]
  %v101 = vld [vmem:[%s1 + $0x2a8] sm:$0xff]
  %v102 = vld [vmem:[%s1 + $0x2b0] sm:$0xff]
  %v103 = vld [vmem:[%s1 + $0x2b8] sm:$0xff]
  %v104 = vld [vmem:[%s1 + $0x2c0] sm:$0xff]
  %v105 = vld [vmem:[%s1 + $0x2c8] sm:$0xff]
  %v106 = vld [vmem:[%s1 + $0x2d0] sm:$0xff]
  %v107 = vld [vmem:[%s1 + $0x2d8] sm:$0xff]
  %v108 = vld [vmem:[%s1 + $0x2e0] sm:$0xff]
  %v109 = vld [vmem:[%s1 + $0x2e8] sm:$0xff]
  %v110 = vld [vmem:[%s1 + $0x2f0] sm:$0xff]
  %v111 = vld [vmem:[%s1 + $0x2f8] sm:$0xff]
  %v112 = vld [vmem:[%s2] sm:$0x3f]
  %v114 = vlaneseq
  %v115 = vshrl.u32 %v114, 7
  %v116 = vsub.s32 0, %v115
  %v117 = vrot.slane %v112, %v116
  %v118 = vlaneseq
  %v119 = vshrl.u32 %v118, 7
  %v120 = vsub.s32 1, %v119
  %v121 = vrot.slane %v112, %v120
  %v122 = vlaneseq
  %v123 = vshrl.u32 %v122, 7
  %v124 = vsub.s32 2, %v123
  %v125 = vrot.slane %v112, %v124
  %v126 = vlaneseq
  %v127 = vshrl.u32 %v126, 7
  %v128 = vsub.s32 3, %v127
  %v129 = vrot.slane %v112, %v128
  %v130 = vlaneseq
  %v131 = vshrl.u32 %v130, 7
  %v132 = vsub.s32 4, %v131
  %v133 = vrot.slane %v112, %v132
  %v134 = vlaneseq
  %v135 = vshrl.u32 %v134, 7
  %v136 = vsub.s32 5, %v135
  %v137 = vrot.slane %v112, %v136
  %v146 = vunpack.c.l.b16 %v14
  %v147 = vunpack.c.h.b16 %v14
  %v148 = vunpack.c.l.b16 %v15
  %v149 = vunpack.c.h.b16 %v15
  %v150 = vpack.c.b16 %v148, %v146
  %v151 = vpack.c.b16 %v149, %v147
  %v250 = vunpack.c.l.b16 %v16
  %v251 = vunpack.c.h.b16 %v16
  %v252 = vunpack.c.l.b16 %v17
  %v253 = vunpack.c.h.b16 %v17
  %v254 = vunpack.c.l.b16 %v18
  %v255 = vunpack.c.h.b16 %v18
  %v256 = vunpack.c.l.b16 %v19
  %v257 = vunpack.c.h.b16 %v19
  %v258 = vunpack.c.l.b16 %v20
  %v259 = vunpack.c.h.b16 %v20
  %v260 = vunpack.c.l.b16 %v21
  %v261 = vunpack.c.h.b16 %v21
  %v262 = vunpack.c.l.b16 %v22
  %v263 = vunpack.c.h.b16 %v22
  %v264 = vunpack.c.l.b16 %v23
  %v265 = vunpack.c.h.b16 %v23
  %v266 = vunpack.c.l.b16 %v24
  %v267 = vunpack.c.h.b16 %v24
  %v268 = vunpack.c.l.b16 %v25
  %v269 = vunpack.c.h.b16 %v25
  %v270 = vunpack.c.l.b16 %v26
  %v271 = vunpack.c.h.b16 %v26
  %v272 = vunpack.c.l.b16 %v27
  %v273 = vunpack.c.h.b16 %v27
  %v274 = vunpack.c.l.b16 %v28
  %v275 = vunpack.c.h.b16 %v28
  %v276 = vunpack.c.l.b16 %v29
  %v277 = vunpack.c.h.b16 %v29
  %v278 = vunpack.c.l.b16 %v30
  %v279 = vunpack.c.h.b16 %v30
  %v280 = vunpack.c.l.b16 %v31
  %v281 = vunpack.c.h.b16 %v31
  %v282 = vunpack.c.l.b16 %v32
  %v283 = vunpack.c.h.b16 %v32
  %v284 = vunpack.c.l.b16 %v33
  %v285 = vunpack.c.h.b16 %v33
  %v286 = vunpack.c.l.b16 %v34
  %v287 = vunpack.c.h.b16 %v34
  %v288 = vunpack.c.l.b16 %v35
  %v289 = vunpack.c.h.b16 %v35
  %v290 = vunpack.c.l.b16 %v36
  %v291 = vunpack.c.h.b16 %v36
  %v292 = vunpack.c.l.b16 %v37
  %v293 = vunpack.c.h.b16 %v37
  %v294 = vunpack.c.l.b16 %v38
  %v295 = vunpack.c.h.b16 %v38
  %v296 = vunpack.c.l.b16 %v39
  %v297 = vunpack.c.h.b16 %v39
  %v298 = vunpack.c.l.b16 %v40
  %v299 = vunpack.c.h.b16 %v40
  %v300 = vunpack.c.l.b16 %v41
  %v301 = vunpack.c.h.b16 %v41
  %v302 = vunpack.c.l.b16 %v42
  %v303 = vunpack.c.h.b16 %v42
  %v304 = vunpack.c.l.b16 %v43
  %v305 = vunpack.c.h.b16 %v43
  %v306 = vunpack.c.l.b16 %v44
  %v307 = vunpack.c.h.b16 %v44
  %v308 = vunpack.c.l.b16 %v45
  %v309 = vunpack.c.h.b16 %v45
  %v310 = vunpack.c.l.b16 %v46
  %v311 = vunpack.c.h.b16 %v46
  %v312 = vunpack.c.l.b16 %v47
  %v313 = vunpack.c.h.b16 %v47
  %v314 = vunpack.c.l.b16 %v48
  %v315 = vunpack.c.h.b16 %v48
  %v316 = vunpack.c.l.b16 %v49
  %v317 = vunpack.c.h.b16 %v49
  %v318 = vunpack.c.l.b16 %v50
  %v319 = vunpack.c.h.b16 %v50
  %v320 = vunpack.c.l.b16 %v51
  %v321 = vunpack.c.h.b16 %v51
  %v322 = vunpack.c.l.b16 %v52
  %v323 = vunpack.c.h.b16 %v52
  %v324 = vunpack.c.l.b16 %v53
  %v325 = vunpack.c.h.b16 %v53
  %v326 = vunpack.c.l.b16 %v54
  %v327 = vunpack.c.h.b16 %v54
  %v328 = vunpack.c.l.b16 %v55
  %v329 = vunpack.c.h.b16 %v55
  %v330 = vunpack.c.l.b16 %v56
  %v331 = vunpack.c.h.b16 %v56
  %v332 = vunpack.c.l.b16 %v57
  %v333 = vunpack.c.h.b16 %v57
  %v334 = vunpack.c.l.b16 %v58
  %v335 = vunpack.c.h.b16 %v58
  %v336 = vunpack.c.l.b16 %v59
  %v337 = vunpack.c.h.b16 %v59
  %v338 = vunpack.c.l.b16 %v60
  %v339 = vunpack.c.h.b16 %v60
  %v340 = vunpack.c.l.b16 %v61
  %v341 = vunpack.c.h.b16 %v61
  %v342 = vunpack.c.l.b16 %v62
  %v343 = vunpack.c.h.b16 %v62
  %v344 = vunpack.c.l.b16 %v63
  %v345 = vunpack.c.h.b16 %v63
  %v346 = vunpack.c.l.b16 %v64
  %v347 = vunpack.c.h.b16 %v64
  %v348 = vunpack.c.l.b16 %v65
  %v349 = vunpack.c.h.b16 %v65
  %v350 = vunpack.c.l.b16 %v66
  %v351 = vunpack.c.h.b16 %v66
  %v352 = vunpack.c.l.b16 %v67
  %v353 = vunpack.c.h.b16 %v67
  %v354 = vunpack.c.l.b16 %v68
  %v355 = vunpack.c.h.b16 %v68
  %v356 = vunpack.c.l.b16 %v69
  %v357 = vunpack.c.h.b16 %v69
  %v358 = vunpack.c.l.b16 %v70
  %v359 = vunpack.c.h.b16 %v70
  %v360 = vunpack.c.l.b16 %v71
  %v361 = vunpack.c.h.b16 %v71
  %v362 = vunpack.c.l.b16 %v72
  %v363 = vunpack.c.h.b16 %v72
  %v364 = vunpack.c.l.b16 %v73
  %v365 = vunpack.c.h.b16 %v73
  %v366 = vunpack.c.l.b16 %v74
  %v367 = vunpack.c.h.b16 %v74
  %v368 = vunpack.c.l.b16 %v75
  %v369 = vunpack.c.h.b16 %v75
  %v370 = vunpack.c.l.b16 %v76
  %v371 = vunpack.c.h.b16 %v76
  %v372 = vunpack.c.l.b16 %v77
  %v373 = vunpack.c.h.b16 %v77
  %v374 = vunpack.c.l.b16 %v78
  %v375 = vunpack.c.h.b16 %v78
  %v376 = vunpack.c.l.b16 %v79
  %v377 = vunpack.c.h.b16 %v79
  %v378 = vunpack.c.l.b16 %v80
  %v379 = vunpack.c.h.b16 %v80
  %v380 = vunpack.c.l.b16 %v81
  %v381 = vunpack.c.h.b16 %v81
  %v382 = vunpack.c.l.b16 %v82
  %v383 = vunpack.c.h.b16 %v82
  %v384 = vunpack.c.l.b16 %v83
  %v385 = vunpack.c.h.b16 %v83
  %v386 = vunpack.c.l.b16 %v84
  %v387 = vunpack.c.h.b16 %v84
  %v388 = vunpack.c.l.b16 %v85
  %v389 = vunpack.c.h.b16 %v85
  %v390 = vunpack.c.l.b16 %v86
  %v391 = vunpack.c.h.b16 %v86
  %v392 = vunpack.c.l.b16 %v87
  %v393 = vunpack.c.h.b16 %v87
  %v394 = vunpack.c.l.b16 %v88
  %v395 = vunpack.c.h.b16 %v88
  %v396 = vunpack.c.l.b16 %v89
  %v397 = vunpack.c.h.b16 %v89
  %v398 = vunpack.c.l.b16 %v90
  %v399 = vunpack.c.h.b16 %v90
  %v400 = vunpack.c.l.b16 %v91
  %v401 = vunpack.c.h.b16 %v91
  %v402 = vunpack.c.l.b16 %v92
  %v403 = vunpack.c.h.b16 %v92
  %v404 = vunpack.c.l.b16 %v93
  %v405 = vunpack.c.h.b16 %v93
  %v406 = vunpack.c.l.b16 %v94
  %v407 = vunpack.c.h.b16 %v94
  %v408 = vunpack.c.l.b16 %v95
  %v409 = vunpack.c.h.b16 %v95
  %v410 = vunpack.c.l.b16 %v96
  %v411 = vunpack.c.h.b16 %v96
  %v412 = vunpack.c.l.b16 %v97
  %v413 = vunpack.c.h.b16 %v97
  %v414 = vunpack.c.l.b16 %v98
  %v415 = vunpack.c.h.b16 %v98
  %v416 = vunpack.c.l.b16 %v99
  %v417 = vunpack.c.h.b16 %v99
  %v418 = vunpack.c.l.b16 %v100
  %v419 = vunpack.c.h.b16 %v100
  %v420 = vunpack.c.l.b16 %v101
  %v421 = vunpack.c.h.b16 %v101
  %v422 = vunpack.c.l.b16 %v102
  %v423 = vunpack.c.h.b16 %v102
  %v424 = vunpack.c.l.b16 %v103
  %v425 = vunpack.c.h.b16 %v103
  %v426 = vunpack.c.l.b16 %v104
  %v427 = vunpack.c.h.b16 %v104
  %v428 = vunpack.c.l.b16 %v105
  %v429 = vunpack.c.h.b16 %v105
  %v430 = vunpack.c.l.b16 %v106
  %v431 = vunpack.c.h.b16 %v106
  %v432 = vunpack.c.l.b16 %v107
  %v433 = vunpack.c.h.b16 %v107
  %v434 = vunpack.c.l.b16 %v108
  %v435 = vunpack.c.h.b16 %v108
  %v436 = vunpack.c.l.b16 %v109
  %v437 = vunpack.c.h.b16 %v109
  %v438 = vunpack.c.l.b16 %v110
  %v439 = vunpack.c.h.b16 %v110
  %v440 = vunpack.c.l.b16 %v111
  %v441 = vunpack.c.h.b16 %v111
  %v442 = vpack.c.b16 %v256, %v250
  %v443 = vpack.c.b16 %v257, %v251
  %v444 = vpack.c.b16 %v258, %v252
  %v445 = vpack.c.b16 %v259, %v253
  %v446 = vpack.c.b16 %v260, %v254
  %v447 = vpack.c.b16 %v261, %v255
  %v448 = vpack.c.b16 %v268, %v262
  %v449 = vpack.c.b16 %v269, %v263
  %v450 = vpack.c.b16 %v270, %v264
  %v451 = vpack.c.b16 %v271, %v265
  %v452 = vpack.c.b16 %v272, %v266
  %v453 = vpack.c.b16 %v273, %v267
  %v454 = vpack.c.b16 %v280, %v274
  %v455 = vpack.c.b16 %v281, %v275
  %v456 = vpack.c.b16 %v282, %v276
  %v457 = vpack.c.b16 %v283, %v277
  %v458 = vpack.c.b16 %v284, %v278
  %v459 = vpack.c.b16 %v285, %v279
  %v460 = vpack.c.b16 %v292, %v286
  %v461 = vpack.c.b16 %v293, %v287
  %v462 = vpack.c.b16 %v294, %v288
  %v463 = vpack.c.b16 %v295, %v289
  %v464 = vpack.c.b16 %v296, %v290
  %v465 = vpack.c.b16 %v297, %v291
  %v466 = vpack.c.b16 %v304, %v298
  %v467 = vpack.c.b16 %v305, %v299
  %v468 = vpack.c.b16 %v306, %v300
  %v469 = vpack.c.b16 %v307, %v301
  %v470 = vpack.c.b16 %v308, %v302
  %v471 = vpack.c.b16 %v309, %v303
  %v472 = vpack.c.b16 %v316, %v310
  %v473 = vpack.c.b16 %v317, %v311
  %v474 = vpack.c.b16 %v318, %v312
  %v475 = vpack.c.b16 %v319, %v313
  %v476 = vpack.c.b16 %v320, %v314
  %v477 = vpack.c.b16 %v321, %v315
  %v478 = vpack.c.b16 %v328, %v322
  %v479 = vpack.c.b16 %v329, %v323
  %v480 = vpack.c.b16 %v330, %v324
  %v481 = vpack.c.b16 %v331, %v325
  %v482 = vpack.c.b16 %v332, %v326
  %v483 = vpack.c.b16 %v333, %v327
  %v484 = vpack.c.b16 %v340, %v334
  %v485 = vpack.c.b16 %v341, %v335
  %v486 = vpack.c.b16 %v342, %v336
  %v487 = vpack.c.b16 %v343, %v337
  %v488 = vpack.c.b16 %v344, %v338
  %v489 = vpack.c.b16 %v345, %v339
  %v490 = vpack.c.b16 %v352, %v346
  %v491 = vpack.c.b16 %v353, %v347
  %v492 = vpack.c.b16 %v354, %v348
  %v493 = vpack.c.b16 %v355, %v349
  %v494 = vpack.c.b16 %v356, %v350
  %v495 = vpack.c.b16 %v357, %v351
  %v496 = vpack.c.b16 %v364, %v358
  %v497 = vpack.c.b16 %v365, %v359
  %v498 = vpack.c.b16 %v366, %v360
  %v499 = vpack.c.b16 %v367, %v361
  %v500 = vpack.c.b16 %v368, %v362
  %v501 = vpack.c.b16 %v369, %v363
  %v502 = vpack.c.b16 %v376, %v370
  %v503 = vpack.c.b16 %v377, %v371
  %v504 = vpack.c.b16 %v378, %v372
  %v505 = vpack.c.b16 %v379, %v373
  %v506 = vpack.c.b16 %v380, %v374
  %v507 = vpack.c.b16 %v381, %v375
  %v508 = vpack.c.b16 %v388, %v382
  %v509 = vpack.c.b16 %v389, %v383
  %v510 = vpack.c.b16 %v390, %v384
  %v511 = vpack.c.b16 %v391, %v385
  %v512 = vpack.c.b16 %v392, %v386
  %v513 = vpack.c.b16 %v393, %v387
  %v514 = vpack.c.b16 %v400, %v394
  %v515 = vpack.c.b16 %v401, %v395
  %v516 = vpack.c.b16 %v402, %v396
  %v517 = vpack.c.b16 %v403, %v397
  %v518 = vpack.c.b16 %v404, %v398
  %v519 = vpack.c.b16 %v405, %v399
  %v520 = vpack.c.b16 %v412, %v406
  %v521 = vpack.c.b16 %v413, %v407
  %v522 = vpack.c.b16 %v414, %v408
  %v523 = vpack.c.b16 %v415, %v409
  %v524 = vpack.c.b16 %v416, %v410
  %v525 = vpack.c.b16 %v417, %v411
  %v526 = vpack.c.b16 %v424, %v418
  %v527 = vpack.c.b16 %v425, %v419
  %v528 = vpack.c.b16 %v426, %v420
  %v529 = vpack.c.b16 %v427, %v421
  %v530 = vpack.c.b16 %v428, %v422
  %v531 = vpack.c.b16 %v429, %v423
  %v532 = vpack.c.b16 %v436, %v430
  %v533 = vpack.c.b16 %v437, %v431
  %v534 = vpack.c.b16 %v438, %v432
  %v535 = vpack.c.b16 %v439, %v433
  %v536 = vpack.c.b16 %v440, %v434
  %v537 = vpack.c.b16 %v441, %v435
  %634 = vmatprep.subr.bf16.mxu0 %v443
  %635 = vmatpush1.bf16.msra.mxu0 %v442
  %636 = vmatprep.subr.bf16.mxu0 %v449
  %637 = vmatpush1.bf16.msra.mxu0 %v448
  %638 = vmatprep.subr.bf16.mxu0 %v455
  %639 = vmatpush1.bf16.msra.mxu0 %v454
  %640 = vmatprep.subr.bf16.mxu0 %v461
  %641 = vmatpush1.bf16.msra.mxu0 %v460
  %642 = vmatprep.subr.bf16.mxu0 %v467
  %643 = vmatpush1.bf16.msra.mxu0 %v466
  %644 = vmatprep.subr.bf16.mxu0 %v473
  %645 = vmatpush1.bf16.msra.mxu0 %v472
  %646 = vmatprep.subr.bf16.mxu0 %v479
  %647 = vmatpush1.bf16.msra.mxu0 %v478
  %648 = vmatprep.subr.bf16.mxu0 %v485
  %649 = vmatpush1.bf16.msra.mxu0 %v484
  %650 = vmatprep.subr.bf16.mxu0 %v491
  %651 = vmatpush1.bf16.msra.mxu0 %v490
  %652 = vmatprep.subr.bf16.mxu0 %v497
  %653 = vmatpush1.bf16.msra.mxu0 %v496
  %654 = vmatprep.subr.bf16.mxu0 %v503
  %655 = vmatpush1.bf16.msra.mxu0 %v502
  %656 = vmatprep.subr.bf16.mxu0 %v509
  %657 = vmatpush1.bf16.msra.mxu0 %v508
  %658 = vmatprep.subr.bf16.mxu0 %v515
  %659 = vmatpush1.bf16.msra.mxu0 %v514
  %660 = vmatprep.subr.bf16.mxu0 %v521
  %661 = vmatpush1.bf16.msra.mxu0 %v520
  %662 = vmatprep.subr.bf16.mxu0 %v527
  %663 = vmatpush1.bf16.msra.mxu0 %v526
  %664 = vmatprep.subr.bf16.mxu0 %v533
  %665 = vmatpush1.bf16.msra.mxu0 %v532
  %666 = vmatprep.mubr.bf16.mxu0 %v151
  %667 = vmatmul.mubr.bf16.gmra.mrb[0].mxu0 %v150
  %v668 = vpop.f32.mrb[0].mxu0
  %v669 = vadd.f32 %v117, %v668
  %v670 = vpop.f32.mrb[0].mxu0
  %v671 = vadd.f32 %v121, %v670
  %v672 = vpop.f32.mrb[0].mxu0
  %v673 = vadd.f32 %v117, %v672
  %v674 = vpop.f32.mrb[0].mxu0
  %v675 = vadd.f32 %v121, %v674
  %676 = vdwg.mxu0
  %677 = vmatprep.subr.bf16.mxu0 %v445
  %678 = vmatpush1.bf16.msra.mxu0 %v444
  %679 = vmatprep.subr.bf16.mxu0 %v451
  %680 = vmatpush1.bf16.msra.mxu0 %v450
  %681 = vmatprep.subr.bf16.mxu0 %v457
  %682 = vmatpush1.bf16.msra.mxu0 %v456
  %683 = vmatprep.subr.bf16.mxu0 %v463
  %684 = vmatpush1.bf16.msra.mxu0 %v462
  %685 = vmatprep.subr.bf16.mxu0 %v469
  %686 = vmatpush1.bf16.msra.mxu0 %v468
  %687 = vmatprep.subr.bf16.mxu0 %v475
  %688 = vmatpush1.bf16.msra.mxu0 %v474
  %689 = vmatprep.subr.bf16.mxu0 %v481
  %690 = vmatpush1.bf16.msra.mxu0 %v480
  %691 = vmatprep.subr.bf16.mxu0 %v487
  %692 = vmatpush1.bf16.msra.mxu0 %v486
  %693 = vmatprep.subr.bf16.mxu0 %v493
  %694 = vmatpush1.bf16.msra.mxu0 %v492
  %695 = vmatprep.subr.bf16.mxu0 %v499
  %696 = vmatpush1.bf16.msra.mxu0 %v498
  %697 = vmatprep.subr.bf16.mxu0 %v505
  %698 = vmatpush1.bf16.msra.mxu0 %v504
  %699 = vmatprep.subr.bf16.mxu0 %v511
  %700 = vmatpush1.bf16.msra.mxu0 %v510
  %701 = vmatprep.subr.bf16.mxu0 %v517
  %702 = vmatpush1.bf16.msra.mxu0 %v516
  %703 = vmatprep.subr.bf16.mxu0 %v523
  %704 = vmatpush1.bf16.msra.mxu0 %v522
  %705 = vmatprep.subr.bf16.mxu0 %v529
  %706 = vmatpush1.bf16.msra.mxu0 %v528
  %707 = vmatprep.subr.bf16.mxu0 %v535
  %708 = vmatpush1.bf16.msra.mxu0 %v534
  %709 = vmatprep.mubr.bf16.mxu0 %v151
  %710 = vmatmul.mubr.bf16.gmra.mrb[0].mxu0 %v150
  %v711 = vpop.f32.mrb[0].mxu0
  %v712 = vadd.f32 %v125, %v711
  %v713 = vpop.f32.mrb[0].mxu0
  %v714 = vadd.f32 %v129, %v713
  %v715 = vpop.f32.mrb[0].mxu0
  %v716 = vadd.f32 %v125, %v715
  %v717 = vpop.f32.mrb[0].mxu0
  %v718 = vadd.f32 %v129, %v717
  %719 = vdwg.mxu0
  %720 = vmatprep.subr.bf16.mxu0 %v447
  %721 = vmatpush1.bf16.msra.mxu0 %v446
  %722 = vmatprep.subr.bf16.mxu0 %v453
  %723 = vmatpush1.bf16.msra.mxu0 %v452
  %724 = vmatprep.subr.bf16.mxu0 %v459
  %725 = vmatpush1.bf16.msra.mxu0 %v458
  %726 = vmatprep.subr.bf16.mxu0 %v465
  %727 = vmatpush1.bf16.msra.mxu0 %v464
  %728 = vmatprep.subr.bf16.mxu0 %v471
  %729 = vmatpush1.bf16.msra.mxu0 %v470
  %730 = vmatprep.subr.bf16.mxu0 %v477
  %731 = vmatpush1.bf16.msra.mxu0 %v476
  %732 = vmatprep.subr.bf16.mxu0 %v483
  %733 = vmatpush1.bf16.msra.mxu0 %v482
  %734 = vmatprep.subr.bf16.mxu0 %v489
  %735 = vmatpush1.bf16.msra.mxu0 %v488
  %736 = vmatprep.subr.bf16.mxu0 %v495
  %737 = vmatpush1.bf16.msra.mxu0 %v494
  %738 = vmatprep.subr.bf16.mxu0 %v501
  %739 = vmatpush1.bf16.msra.mxu0 %v500
  %740 = vmatprep.subr.bf16.mxu0 %v507
  %741 = vmatpush1.bf16.msra.mxu0 %v506
  %742 = vmatprep.subr.bf16.mxu0 %v513
  %743 = vmatpush1.bf16.msra.mxu0 %v512
  %744 = vmatprep.subr.bf16.mxu0 %v519
  %745 = vmatpush1.bf16.msra.mxu0 %v518
  %746 = vmatprep.subr.bf16.mxu0 %v525
  %747 = vmatpush1.bf16.msra.mxu0 %v524
  %748 = vmatprep.subr.bf16.mxu0 %v531
  %749 = vmatpush1.bf16.msra.mxu0 %v530
  %750 = vmatprep.subr.bf16.mxu0 %v537
  %751 = vmatpush1.bf16.msra.mxu0 %v536
  %752 = vmatprep.mubr.bf16.mxu0 %v151
  %753 = vmatmul.mubr.bf16.gmra.mrb[0].mxu0 %v150
  %v754 = vpop.f32.mrb[0].mxu0
  %v755 = vadd.f32 %v133, %v754
  %v756 = vpop.f32.mrb[0].mxu0
  %v757 = vadd.f32 %v137, %v756
  %v758 = vpop.f32.mrb[0].mxu0
  %v759 = vadd.f32 %v133, %v758
  %v760 = vpop.f32.mrb[0].mxu0
  %v761 = vadd.f32 %v137, %v760
  %762 = vdwg.mxu0
  %763 = vst [vmem:[%s3] sm:$0xff] %v669
  %764 = vst [vmem:[%s3 + $0x8] sm:$0xff] %v671
  %765 = vst [vmem:[%s3 + $0x10] sm:$0xff] %v712
  %766 = vst [vmem:[%s3 + $0x18] sm:$0xff] %v714
  %767 = vst [vmem:[%s3 + $0x20] sm:$0xff] %v755
  %768 = vst [vmem:[%s3 + $0x28] sm:$0xff] %v757
  %769 = vst [vmem:[%s3 + $0x30] sm:$0xff] %v673
  %770 = vst [vmem:[%s3 + $0x38] sm:$0xff] %v675
  %771 = vst [vmem:[%s3 + $0x40] sm:$0xff] %v716
  %772 = vst [vmem:[%s3 + $0x48] sm:$0xff] %v718
  %773 = vst [vmem:[%s3 + $0x50] sm:$0xff] %v759
  %774 = vst [vmem:[%s3 + $0x58] sm:$0xff] %v761
  // Predicated region
  $region14: #{forward.13} parent=0 // pred_check
    _
  $region15: #{forward.13} parent=0 // pred_check_branch
    %776 = sbr.rel (0) target = $region17
  $region16: #{forward.13} parent=0 // pred_region
    _
  $region17: #{forward.13} parent=0 // pred_fallthru
    _
  // Predicated region
  $region18: #{forward.13} parent=0 // pred_check
    _
  $region19: #{forward.13} parent=0 // pred_check_branch
    %778 = sbr.rel (0) target = $region21
  $region20: #{forward.13} parent=0 // pred_region
    _
  $region21: #{forward.13} parent=0 // pred_fallthru
    _

// kernel: forward.11
$region0: #{forward.11}
  #allocation0 [shape = 'u32[]', space=smem, size = 0x4, offset = 0x4, fixed_abs, tag = 'smem constant byte address 0x4 - core index']
  #allocation1 [shape = 'u32[144,128]{1,0:T(1,128)}', space=vmem, size = 0x12000, scoped, tag = 'internal scratch']
  %s0 = inlined_call_operand.vmem [shape: bf16[16,192], index: 0, kind: input, shape index: {}]
  %s1 = inlined_call_operand.vmem [shape: bf16[192,768], index: 1, kind: input, shape index: {}]
  %s2 = inlined_call_operand.vmem [shape: f32[1,768], index: 2, kind: input, shape index: {}]
  %s3 = inlined_call_operand.vmem [shape: f32[16,768], index: 3, kind: output, shape index: {}]
  %s4 = sld [smem:[#allocation0]]
  $region22: #{forward.11} parent=0
    _
  %s6 = ssub.s32 1, %s4
  %s7 = scalar_select 0, %s6, %s4
  // Predicated region
  $region2: #{forward.11} parent=0 // pred_check
    _
  $region3: #{forward.11} parent=0 // pred_check_branch
    %9 = sbr.rel (0) target = $region5
  $region4: #{forward.11} parent=0 // pred_region
    _
  $region5: #{forward.11} parent=0 // pred_fallthru
    _
  // Predicated region
  $region6: #{forward.11} parent=0 // pred_check
    _
  $region7: #{forward.11} parent=0 // pred_check_branch
    %11 = sbr.rel (0) target = $region9
  $region8: #{forward.11} parent=0 // pred_region
    _
  $region9: #{forward.11} parent=0 // pred_fallthru
    _
  // Predicated region
  $region10: #{forward.11} parent=0 // pred_check
    _
  $region11: #{forward.11} parent=0 // pred_check_branch
    %13 = sbr.rel (0) target = $region13
  $region12: #{forward.11} parent=0 // pred_region
    _
  $region13: #{forward.11} parent=0 // pred_fallthru
    _
  %v15 = vld [vmem:[%s0] sm:$0xff]
  %v16 = vld [vmem:[%s0 + $0x8] sm:$0xff]
  %v17 = vld [vmem:[%s1] sm:$0xff]
  %v18 = vld [vmem:[%s1 + $0x8] sm:$0xff]
  %v19 = vld [vmem:[%s1 + $0x10] sm:$0xff]
  %v20 = vld [vmem:[%s1 + $0x18] sm:$0xff]
  %v21 = vld [vmem:[%s1 + $0x20] sm:$0xff]
  %v22 = vld [vmem:[%s1 + $0x28] sm:$0xff]
  %v23 = vld [vmem:[%s1 + $0x30] sm:$0xff]
  %v24 = vld [vmem:[%s1 + $0x38] sm:$0xff]
  %v25 = vld [vmem:[%s1 + $0x40] sm:$0xff]
  %v26 = vld [vmem:[%s1 + $0x48] sm:$0xff]
  %v27 = vld [vmem:[%s1 + $0x50] sm:$0xff]
  %v28 = vld [vmem:[%s1 + $0x58] sm:$0xff]
  %v29 = vld [vmem:[%s1 + $0x60] sm:$0xff]
  %v30 = vld [vmem:[%s1 + $0x68] sm:$0xff]
  %v31 = vld [vmem:[%s1 + $0x70] sm:$0xff]
  %v32 = vld [vmem:[%s1 + $0x78] sm:$0xff]
  %v33 = vld [vmem:[%s1 + $0x80] sm:$0xff]
  %v34 = vld [vmem:[%s1 + $0x88] sm:$0xff]
  %v35 = vld [vmem:[%s1 + $0x90] sm:$0xff]
  %v36 = vld [vmem:[%s1 + $0x98] sm:$0xff]
  %v37 = vld [vmem:[%s1 + $0xa0] sm:$0xff]
  %v38 = vld [vmem:[%s1 + $0xa8] sm:$0xff]
  %v39 = vld [vmem:[%s1 + $0xb0] sm:$0xff]
  %v40 = vld [vmem:[%s1 + $0xb8] sm:$0xff]
  %v41 = vld [vmem:[%s1 + $0xc0] sm:$0xff]
  %v42 = vld [vmem:[%s1 + $0xc8] sm:$0xff]
  %v43 = vld [vmem:[%s1 + $0xd0] sm:$0xff]
  %v44 = vld [vmem:[%s1 + $0xd8] sm:$0xff]
  %v45 = vld [vmem:[%s1 + $0xe0] sm:$0xff]
  %v46 = vld [vmem:[%s1 + $0xe8] sm:$0xff]
  %v47 = vld [vmem:[%s1 + $0xf0] sm:$0xff]
  %v48 = vld [vmem:[%s1 + $0xf8] sm:$0xff]
  %v49 = vld [vmem:[%s1 + $0x100] sm:$0xff]
  %v50 = vld [vmem:[%s1 + $0x108] sm:$0xff]
  %v51 = vld [vmem:[%s1 + $0x110] sm:$0xff]
  %v52 = vld [vmem:[%s1 + $0x118] sm:$0xff]
  %v53 = vld [vmem:[%s1 + $0x120] sm:$0xff]
  %v54 = vld [vmem:[%s1 + $0x128] sm:$0xff]
  %v55 = vld [vmem:[%s1 + $0x130] sm:$0xff]
  %v56 = vld [vmem:[%s1 + $0x138] sm:$0xff]
  %v57 = vld [vmem:[%s1 + $0x140] sm:$0xff]
  %v58 = vld [vmem:[%s1 + $0x148] sm:$0xff]
  %v59 = vld [vmem:[%s1 + $0x150] sm:$0xff]
  %v60 = vld [vmem:[%s1 + $0x158] sm:$0xff]
  %v61 = vld [vmem:[%s1 + $0x160] sm:$0xff]
  %v62 = vld [vmem:[%s1 + $0x168] sm:$0xff]
  %v63 = vld [vmem:[%s1 + $0x170] sm:$0xff]
  %v64 = vld [vmem:[%s1 + $0x178] sm:$0xff]
  %v65 = vld [vmem:[%s1 + $0x180] sm:$0xff]
  %v66 = vld [vmem:[%s1 + $0x188] sm:$0xff]
  %v67 = vld [vmem:[%s1 + $0x190] sm:$0xff]
  %v68 = vld [vmem:[%s1 + $0x198] sm:$0xff]
  %v69 = vld [vmem:[%s1 + $0x1a0] sm:$0xff]
  %v70 = vld [vmem:[%s1 + $0x1a8] sm:$0xff]
  %v71 = vld [vmem:[%s1 + $0x1b0] sm:$0xff]
  %v72 = vld [vmem:[%s1 + $0x1b8] sm:$0xff]
  %v73 = vld [vmem:[%s1 + $0x1c0] sm:$0xff]
  %v74 = vld [vmem:[%s1 + $0x1c8] sm:$0xff]
  %v75 = vld [vmem:[%s1 + $0x1d0] sm:$0xff]
  %v76 = vld [vmem:[%s1 + $0x1d8] sm:$0xff]
  %v77 = vld [vmem:[%s1 + $0x1e0] sm:$0xff]
  %v78 = vld [vmem:[%s1 + $0x1e8] sm:$0xff]
  %v79 = vld [vmem:[%s1 + $0x1f0] sm:$0xff]
  %v80 = vld [vmem:[%s1 + $0x1f8] sm:$0xff]
  %v81 = vld [vmem:[%s1 + $0x200] sm:$0xff]
  %v82 = vld [vmem:[%s1 + $0x208] sm:$0xff]
  %v83 = vld [vmem:[%s1 + $0x210] sm:$0xff]
  %v84 = vld [vmem:[%s1 + $0x218] sm:$0xff]
  %v85 = vld [vmem:[%s1 + $0x220] sm:$0xff]
  %v86 = vld [vmem:[%s1 + $0x228] sm:$0xff]
  %v87 = vld [vmem:[%s1 + $0x230] sm:$0xff]
  %v88 = vld [vmem:[%s1 + $0x238] sm:$0xff]
  %v89 = vld [vmem:[%s2] sm:$0x3f]
  %v91 = vlaneseq
  %v92 = vshrl.u32 %v91, 7
  %v93 = vsub.s32 0, %v92
  %v94 = vrot.slane %v89, %v93
  %v95 = vlaneseq
  %v96 = vshrl.u32 %v95, 7
  %v97 = vsub.s32 1, %v96
  %v98 = vrot.slane %v89, %v97
  %v99 = vlaneseq
  %v100 = vshrl.u32 %v99, 7
  %v101 = vsub.s32 2, %v100
  %v102 = vrot.slane %v89, %v101
  %v103 = vlaneseq
  %v104 = vshrl.u32 %v103, 7
  %v105 = vsub.s32 3, %v104
  %v106 = vrot.slane %v89, %v105
  %v107 = vlaneseq
  %v108 = vshrl.u32 %v107, 7
  %v109 = vsub.s32 4, %v108
  %v110 = vrot.slane %v89, %v109
  %v111 = vlaneseq
  %v112 = vshrl.u32 %v111, 7
  %v113 = vsub.s32 5, %v112
  %v114 = vrot.slane %v89, %v113
  %v123 = vunpack.c.l.b16 %v15
  %v124 = vunpack.c.h.b16 %v15
  %v125 = vunpack.c.l.b16 %v16
  %v126 = vunpack.c.h.b16 %v16
  %v127 = vpack.c.b16 %v125, %v123
  %v128 = vpack.c.b16 %v126, %v124
  %v202 = vunpack.c.l.b16 %v17
  %v203 = vunpack.c.h.b16 %v17
  %v204 = vunpack.c.l.b16 %v18
  %v205 = vunpack.c.h.b16 %v18
  %v206 = vunpack.c.l.b16 %v19
  %v207 = vunpack.c.h.b16 %v19
  %v208 = vunpack.c.l.b16 %v20
  %v209 = vunpack.c.h.b16 %v20
  %v210 = vunpack.c.l.b16 %v21
  %v211 = vunpack.c.h.b16 %v21
  %v212 = vunpack.c.l.b16 %v22
  %v213 = vunpack.c.h.b16 %v22
  %v214 = vunpack.c.l.b16 %v23
  %v215 = vunpack.c.h.b16 %v23
  %v216 = vunpack.c.l.b16 %v24
  %v217 = vunpack.c.h.b16 %v24
  %v218 = vunpack.c.l.b16 %v25
  %v219 = vunpack.c.h.b16 %v25
  %v220 = vunpack.c.l.b16 %v26
  %v221 = vunpack.c.h.b16 %v26
  %v222 = vunpack.c.l.b16 %v27
  %v223 = vunpack.c.h.b16 %v27
  %v224 = vunpack.c.l.b16 %v28
  %v225 = vunpack.c.h.b16 %v28
  %v226 = vunpack.c.l.b16 %v29
  %v227 = vunpack.c.h.b16 %v29
  %v228 = vunpack.c.l.b16 %v30
  %v229 = vunpack.c.h.b16 %v30
  %v230 = vunpack.c.l.b16 %v31
  %v231 = vunpack.c.h.b16 %v31
  %v232 = vunpack.c.l.b16 %v32
  %v233 = vunpack.c.h.b16 %v32
  %v234 = vunpack.c.l.b16 %v33
  %v235 = vunpack.c.h.b16 %v33
  %v236 = vunpack.c.l.b16 %v34
  %v237 = vunpack.c.h.b16 %v34
  %v238 = vunpack.c.l.b16 %v35
  %v239 = vunpack.c.h.b16 %v35
  %v240 = vunpack.c.l.b16 %v36
  %v241 = vunpack.c.h.b16 %v36
  %v242 = vunpack.c.l.b16 %v37
  %v243 = vunpack.c.h.b16 %v37
  %v244 = vunpack.c.l.b16 %v38
  %v245 = vunpack.c.h.b16 %v38
  %v246 = vunpack.c.l.b16 %v39
  %v247 = vunpack.c.h.b16 %v39
  %v248 = vunpack.c.l.b16 %v40
  %v249 = vunpack.c.h.b16 %v40
  %v250 = vunpack.c.l.b16 %v41
  %v251 = vunpack.c.h.b16 %v41
  %v252 = vunpack.c.l.b16 %v42
  %v253 = vunpack.c.h.b16 %v42
  %v254 = vunpack.c.l.b16 %v43
  %v255 = vunpack.c.h.b16 %v43
  %v256 = vunpack.c.l.b16 %v44
  %v257 = vunpack.c.h.b16 %v44
  %v258 = vunpack.c.l.b16 %v45
  %v259 = vunpack.c.h.b16 %v45
  %v260 = vunpack.c.l.b16 %v46
  %v261 = vunpack.c.h.b16 %v46
  %v262 = vunpack.c.l.b16 %v47
  %v263 = vunpack.c.h.b16 %v47
  %v264 = vunpack.c.l.b16 %v48
  %v265 = vunpack.c.h.b16 %v48
  %v266 = vunpack.c.l.b16 %v49
  %v267 = vunpack.c.h.b16 %v49
  %v268 = vunpack.c.l.b16 %v50
  %v269 = vunpack.c.h.b16 %v50
  %v270 = vunpack.c.l.b16 %v51
  %v271 = vunpack.c.h.b16 %v51
  %v272 = vunpack.c.l.b16 %v52
  %v273 = vunpack.c.h.b16 %v52
  %v274 = vunpack.c.l.b16 %v53
  %v275 = vunpack.c.h.b16 %v53
  %v276 = vunpack.c.l.b16 %v54
  %v277 = vunpack.c.h.b16 %v54
  %v278 = vunpack.c.l.b16 %v55
  %v279 = vunpack.c.h.b16 %v55
  %v280 = vunpack.c.l.b16 %v56
  %v281 = vunpack.c.h.b16 %v56
  %v282 = vunpack.c.l.b16 %v57
  %v283 = vunpack.c.h.b16 %v57
  %v284 = vunpack.c.l.b16 %v58
  %v285 = vunpack.c.h.b16 %v58
  %v286 = vunpack.c.l.b16 %v59
  %v287 = vunpack.c.h.b16 %v59
  %v288 = vunpack.c.l.b16 %v60
  %v289 = vunpack.c.h.b16 %v60
  %v290 = vunpack.c.l.b16 %v61
  %v291 = vunpack.c.h.b16 %v61
  %v292 = vunpack.c.l.b16 %v62
  %v293 = vunpack.c.h.b16 %v62
  %v294 = vunpack.c.l.b16 %v63
  %v295 = vunpack.c.h.b16 %v63
  %v296 = vunpack.c.l.b16 %v64
  %v297 = vunpack.c.h.b16 %v64
  %v298 = vunpack.c.l.b16 %v65
  %v299 = vunpack.c.h.b16 %v65
  %v300 = vunpack.c.l.b16 %v66
  %v301 = vunpack.c.h.b16 %v66
  %v302 = vunpack.c.l.b16 %v67
  %v303 = vunpack.c.h.b16 %v67
  %v304 = vunpack.c.l.b16 %v68
  %v305 = vunpack.c.h.b16 %v68
  %v306 = vunpack.c.l.b16 %v69
  %v307 = vunpack.c.h.b16 %v69
  %v308 = vunpack.c.l.b16 %v70
  %v309 = vunpack.c.h.b16 %v70
  %v310 = vunpack.c.l.b16 %v71
  %v311 = vunpack.c.h.b16 %v71
  %v312 = vunpack.c.l.b16 %v72
  %v313 = vunpack.c.h.b16 %v72
  %v314 = vunpack.c.l.b16 %v73
  %v315 = vunpack.c.h.b16 %v73
  %v316 = vunpack.c.l.b16 %v74
  %v317 = vunpack.c.h.b16 %v74
  %v318 = vunpack.c.l.b16 %v75
  %v319 = vunpack.c.h.b16 %v75
  %v320 = vunpack.c.l.b16 %v76
  %v321 = vunpack.c.h.b16 %v76
  %v322 = vunpack.c.l.b16 %v77
  %v323 = vunpack.c.h.b16 %v77
  %v324 = vunpack.c.l.b16 %v78
  %v325 = vunpack.c.h.b16 %v78
  %v326 = vunpack.c.l.b16 %v79
  %v327 = vunpack.c.h.b16 %v79
  %v328 = vunpack.c.l.b16 %v80
  %v329 = vunpack.c.h.b16 %v80
  %v330 = vunpack.c.l.b16 %v81
  %v331 = vunpack.c.h.b16 %v81
  %v332 = vunpack.c.l.b16 %v82
  %v333 = vunpack.c.h.b16 %v82
  %v334 = vunpack.c.l.b16 %v83
  %v335 = vunpack.c.h.b16 %v83
  %v336 = vunpack.c.l.b16 %v84
  %v337 = vunpack.c.h.b16 %v84
  %v338 = vunpack.c.l.b16 %v85
  %v339 = vunpack.c.h.b16 %v85
  %v340 = vunpack.c.l.b16 %v86
  %v341 = vunpack.c.h.b16 %v86
  %v342 = vunpack.c.l.b16 %v87
  %v343 = vunpack.c.h.b16 %v87
  %v344 = vunpack.c.l.b16 %v88
  %v345 = vunpack.c.h.b16 %v88
  %v346 = vpack.c.b16 %v208, %v202
  %v347 = vpack.c.b16 %v209, %v203
  %v348 = vpack.c.b16 %v210, %v204
  %v349 = vpack.c.b16 %v211, %v205
  %v350 = vpack.c.b16 %v212, %v206
  %v351 = vpack.c.b16 %v213, %v207
  %v352 = vpack.c.b16 %v220, %v214
  %v353 = vpack.c.b16 %v221, %v215
  %v354 = vpack.c.b16 %v222, %v216
  %v355 = vpack.c.b16 %v223, %v217
  %v356 = vpack.c.b16 %v224, %v218
  %v357 = vpack.c.b16 %v225, %v219
  %v358 = vpack.c.b16 %v232, %v226
  %v359 = vpack.c.b16 %v233, %v227
  %v360 = vpack.c.b16 %v234, %v228
  %v361 = vpack.c.b16 %v235, %v229
  %v362 = vpack.c.b16 %v236, %v230
  %v363 = vpack.c.b16 %v237, %v231
  %v364 = vpack.c.b16 %v244, %v238
  %v365 = vpack.c.b16 %v245, %v239
  %v366 = vpack.c.b16 %v246, %v240
  %v367 = vpack.c.b16 %v247, %v241
  %v368 = vpack.c.b16 %v248, %v242
  %v369 = vpack.c.b16 %v249, %v243
  %v370 = vpack.c.b16 %v256, %v250
  %v371 = vpack.c.b16 %v257, %v251
  %v372 = vpack.c.b16 %v258, %v252
  %v373 = vpack.c.b16 %v259, %v253
  %v374 = vpack.c.b16 %v260, %v254
  %v375 = vpack.c.b16 %v261, %v255
  %v376 = vpack.c.b16 %v268, %v262
  %v377 = vpack.c.b16 %v269, %v263
  %v378 = vpack.c.b16 %v270, %v264
  %v379 = vpack.c.b16 %v271, %v265
  %v380 = vpack.c.b16 %v272, %v266
  %v381 = vpack.c.b16 %v273, %v267
  %v382 = vpack.c.b16 %v280, %v274
  %v383 = vpack.c.b16 %v281, %v275
  %v384 = vpack.c.b16 %v282, %v276
  %v385 = vpack.c.b16 %v283, %v277
  %v386 = vpack.c.b16 %v284, %v278
  %v387 = vpack.c.b16 %v285, %v279
  %v388 = vpack.c.b16 %v292, %v286
  %v389 = vpack.c.b16 %v293, %v287
  %v390 = vpack.c.b16 %v294, %v288
  %v391 = vpack.c.b16 %v295, %v289
  %v392 = vpack.c.b16 %v296, %v290
  %v393 = vpack.c.b16 %v297, %v291
  %v394 = vpack.c.b16 %v304, %v298
  %v395 = vpack.c.b16 %v305, %v299
  %v396 = vpack.c.b16 %v306, %v300
  %v397 = vpack.c.b16 %v307, %v301
  %v398 = vpack.c.b16 %v308, %v302
  %v399 = vpack.c.b16 %v309, %v303
  %v400 = vpack.c.b16 %v316, %v310
  %v401 = vpack.c.b16 %v317, %v311
  %v402 = vpack.c.b16 %v318, %v312
  %v403 = vpack.c.b16 %v319, %v313
  %v404 = vpack.c.b16 %v320, %v314
  %v405 = vpack.c.b16 %v321, %v315
  %v406 = vpack.c.b16 %v328, %v322
  %v407 = vpack.c.b16 %v329, %v323
  %v408 = vpack.c.b16 %v330, %v324
  %v409 = vpack.c.b16 %v331, %v325
  %v410 = vpack.c.b16 %v332, %v326
  %v411 = vpack.c.b16 %v333, %v327
  %v412 = vpack.c.b16 %v340, %v334
  %v413 = vpack.c.b16 %v341, %v335
  %v414 = vpack.c.b16 %v342, %v336
  %v415 = vpack.c.b16 %v343, %v337
  %v416 = vpack.c.b16 %v344, %v338
  %v417 = vpack.c.b16 %v345, %v339
  %vm490 = vcmask 523264
  %v492 = vsel %vm490, %v128, 0
  %494 = vmatprep.subr.bf16.mxu0 %v347
  %495 = vmatpush1.bf16.msra.mxu0 %v346
  %496 = vmatprep.subr.bf16.mxu0 %v353
  %497 = vmatpush1.bf16.msra.mxu0 %v352
  %498 = vmatprep.subr.bf16.mxu0 %v359
  %499 = vmatpush1.bf16.msra.mxu0 %v358
  %500 = vmatprep.subr.bf16.mxu0 %v365
  %501 = vmatpush1.bf16.msra.mxu0 %v364
  %502 = vmatprep.subr.bf16.mxu0 %v371
  %503 = vmatpush1.bf16.msra.mxu0 %v370
  %504 = vmatprep.subr.bf16.mxu0 %v377
  %505 = vmatpush1.bf16.msra.mxu0 %v376
  %506 = vmatprep.subr.bf16.mxu0 %v383
  %507 = vmatpush1.bf16.msra.mxu0 %v382
  %508 = vmatprep.subr.bf16.mxu0 %v389
  %509 = vmatpush1.bf16.msra.mxu0 %v388
  %510 = vmatprep.subr.bf16.mxu0 %v395
  %511 = vmatpush1.bf16.msra.mxu0 %v394
  %512 = vmatprep.subr.bf16.mxu0 %v401
  %513 = vmatpush1.bf16.msra.mxu0 %v400
  %514 = vmatprep.subr.bf16.mxu0 %v407
  %515 = vmatpush1.bf16.msra.mxu0 %v406
  %516 = vmatprep.subr.bf16.mxu0 %v413
  %517 = vmatpush1.bf16.msra.mxu0 %v412
  %518 = vmatprep.subr.bf16.mxu0 0
  %519 = vmatpush1.bf16.msra.mxu0 0
  %520 = vmatprep.subr.bf16.mxu0 0
  %521 = vmatpush1.bf16.msra.mxu0 0
  %522 = vmatprep.subr.bf16.mxu0 0
  %523 = vmatpush1.bf16.msra.mxu0 0
  %524 = vmatprep.subr.bf16.mxu0 0
  %525 = vmatpush1.bf16.msra.mxu0 0
  %526 = vmatprep.mubr.bf16.mxu0 %v492
  %527 = vmatmul.mubr.bf16.gmra.mrb[0].mxu0 %v127
  %v528 = vpop.f32.mrb[0].mxu0
  %v529 = vadd.f32 %v94, %v528
  %v530 = vpop.f32.mrb[0].mxu0
  %v531 = vadd.f32 %v98, %v530
  %v532 = vpop.f32.mrb[0].mxu0
  %v533 = vadd.f32 %v94, %v532
  %v534 = vpop.f32.mrb[0].mxu0
  %v535 = vadd.f32 %v98, %v534
  %536 = vdwg.mxu0
  %537 = vmatprep.subr.bf16.mxu0 %v349
  %538 = vmatpush1.bf16.msra.mxu0 %v348
  %539 = vmatprep.subr.bf16.mxu0 %v355
  %540 = vmatpush1.bf16.msra.mxu0 %v354
  %541 = vmatprep.subr.bf16.mxu0 %v361
  %542 = vmatpush1.bf16.msra.mxu0 %v360
  %543 = vmatprep.subr.bf16.mxu0 %v367
  %544 = vmatpush1.bf16.msra.mxu0 %v366
  %545 = vmatprep.subr.bf16.mxu0 %v373
  %546 = vmatpush1.bf16.msra.mxu0 %v372
  %547 = vmatprep.subr.bf16.mxu0 %v379
  %548 = vmatpush1.bf16.msra.mxu0 %v378
  %549 = vmatprep.subr.bf16.mxu0 %v385
  %550 = vmatpush1.bf16.msra.mxu0 %v384
  %551 = vmatprep.subr.bf16.mxu0 %v391
  %552 = vmatpush1.bf16.msra.mxu0 %v390
  %553 = vmatprep.subr.bf16.mxu0 %v397
  %554 = vmatpush1.bf16.msra.mxu0 %v396
  %555 = vmatprep.subr.bf16.mxu0 %v403
  %556 = vmatpush1.bf16.msra.mxu0 %v402
  %557 = vmatprep.subr.bf16.mxu0 %v409
  %558 = vmatpush1.bf16.msra.mxu0 %v408
  %559 = vmatprep.subr.bf16.mxu0 %v415
  %560 = vmatpush1.bf16.msra.mxu0 %v414
  %561 = vmatprep.subr.bf16.mxu0 0
  %562 = vmatpush1.bf16.msra.mxu0 0
  %563 = vmatprep.subr.bf16.mxu0 0
  %564 = vmatpush1.bf16.msra.mxu0 0
  %565 = vmatprep.subr.bf16.mxu0 0
  %566 = vmatpush1.bf16.msra.mxu0 0
  %567 = vmatprep.subr.bf16.mxu0 0
  %568 = vmatpush1.bf16.msra.mxu0 0
  %569 = vmatprep.mubr.bf16.mxu0 %v492
  %570 = vmatmul.mubr.bf16.gmra.mrb[0].mxu0 %v127
  %v571 = vpop.f32.mrb[0].mxu0
  %v572 = vadd.f32 %v102, %v571
  %v573 = vpop.f32.mrb[0].mxu0
  %v574 = vadd.f32 %v106, %v573
  %v575 = vpop.f32.mrb[0].mxu0
  %v576 = vadd.f32 %v102, %v575
  %v577 = vpop.f32.mrb[0].mxu0
  %v578 = vadd.f32 %v106, %v577
  %579 = vdwg.mxu0
  %580 = vmatprep.subr.bf16.mxu0 %v351
  %581 = vmatpush1.bf16.msra.mxu0 %v350
  %582 = vmatprep.subr.bf16.mxu0 %v357
  %583 = vmatpush1.bf16.msra.mxu0 %v356
  %584 = vmatprep.subr.bf16.mxu0 %v363
  %585 = vmatpush1.bf16.msra.mxu0 %v362
  %586 = vmatprep.subr.bf16.mxu0 %v369
  %587 = vmatpush1.bf16.msra.mxu0 %v368
  %588 = vmatprep.subr.bf16.mxu0 %v375
  %589 = vmatpush1.bf16.msra.mxu0 %v374
  %590 = vmatprep.subr.bf16.mxu0 %v381
  %591 = vmatpush1.bf16.msra.mxu0 %v380
  %592 = vmatprep.subr.bf16.mxu0 %v387
  %593 = vmatpush1.bf16.msra.mxu0 %v386
  %594 = vmatprep.subr.bf16.mxu0 %v393
  %595 = vmatpush1.bf16.msra.mxu0 %v392
  %596 = vmatprep.subr.bf16.mxu0 %v399
  %597 = vmatpush1.bf16.msra.mxu0 %v398
  %598 = vmatprep.subr.bf16.mxu0 %v405
  %599 = vmatpush1.bf16.msra.mxu0 %v404
  %600 = vmatprep.subr.bf16.mxu0 %v411
  %601 = vmatpush1.bf16.msra.mxu0 %v410
  %602 = vmatprep.subr.bf16.mxu0 %v417
  %603 = vmatpush1.bf16.msra.mxu0 %v416
  %604 = vmatprep.subr.bf16.mxu0 0
  %605 = vmatpush1.bf16.msra.mxu0 0
  %606 = vmatprep.subr.bf16.mxu0 0
  %607 = vmatpush1.bf16.msra.mxu0 0
  %608 = vmatprep.subr.bf16.mxu0 0
  %609 = vmatpush1.bf16.msra.mxu0 0
  %610 = vmatprep.subr.bf16.mxu0 0
  %611 = vmatpush1.bf16.msra.mxu0 0
  %612 = vmatprep.mubr.bf16.mxu0 %v492
  %613 = vmatmul.mubr.bf16.gmra.mrb[0].mxu0 %v127
  %v614 = vpop.f32.mrb[0].mxu0
  %v615 = vadd.f32 %v110, %v614
  %v616 = vpop.f32.mrb[0].mxu0
  %v617 = vadd.f32 %v114, %v616
  %v618 = vpop.f32.mrb[0].mxu0
  %v619 = vadd.f32 %v110, %v618
  %v620 = vpop.f32.mrb[0].mxu0
  %v621 = vadd.f32 %v114, %v620
  %622 = vdwg.mxu0
  %623 = vst [vmem:[%s3] sm:$0xff] %v529
  %624 = vst [vmem:[%s3 + $0x8] sm:$0xff] %v531
  %625 = vst [vmem:[%s3 + $0x10] sm:$0xff] %v572
  %626 = vst [vmem:[%s3 + $0x18] sm:$0xff] %v574
  %627 = vst [vmem:[%s3 + $0x20] sm:$0xff] %v615
  %628 = vst [vmem:[%s3 + $0x28] sm:$0xff] %v617
  %629 = vst [vmem:[%s3 + $0x30] sm:$0xff] %v533
  %630 = vst [vmem:[%s3 + $0x38] sm:$0xff] %v535
  %631 = vst [vmem:[%s3 + $0x40] sm:$0xff] %v576
  %632 = vst [vmem:[%s3 + $0x48] sm:$0xff] %v578
  %633 = vst [vmem:[%s3 + $0x50] sm:$0xff] %v619
  %634 = vst [vmem:[%s3 + $0x58] sm:$0xff] %v621
  // Predicated region
  $region14: #{forward.11} parent=0 // pred_check
    _
  $region15: #{forward.11} parent=0 // pred_check_branch
    %636 = sbr.rel (0) target = $region17
  $region16: #{forward.11} parent=0 // pred_region
    _
  $region17: #{forward.11} parent=0 // pred_fallthru
    _
  // Predicated region
  $region18: #{forward.11} parent=0 // pred_check
    _
  $region19: #{forward.11} parent=0 // pred_check_branch
    %638 = sbr.rel (0) target = $region21
  $region20: #{forward.11} parent=0 // pred_region
    _
  $region21: #{forward.11} parent=0 // pred_fallthru
    _

// kernel: forward.15
$region0: #{forward.15}
  #allocation0 [shape = 'u32[]', space=smem, size = 0x4, offset = 0x4, fixed_abs, tag = 'smem constant byte address 0x4 - core index']
  #allocation1 [shape = 'u32[144,128]{1,0:T(1,128)}', space=vmem, size = 0x12000, scoped, tag = 'internal scratch']
  %s0 = inlined_call_operand.vmem [shape: bf16[16,384], index: 0, kind: input, shape index: {}]
  %s1 = inlined_call_operand.vmem [shape: bf16[384,768], index: 1, kind: input, shape index: {}]
  %s2 = inlined_call_operand.vmem [shape: f32[1,768], index: 2, kind: input, shape index: {}]
  %s3 = inlined_call_operand.vmem [shape: f32[16,768], index: 3, kind: output, shape index: {}]
  %s4 = sld [smem:[#allocation0]]
  $region22: #{forward.15} parent=0
    _
  %s6 = ssub.s32 1, %s4
  %s7 = scalar_select 0, %s6, %s4
  // Predicated region
  $region2: #{forward.15} parent=0 // pred_check
    _
  $region3: #{forward.15} parent=0 // pred_check_branch
    %9 = sbr.rel (0) target = $region5
  $region4: #{forward.15} parent=0 // pred_region
    _
  $region5: #{forward.15} parent=0 // pred_fallthru
    _
  // Predicated region
  $region6: #{forward.15} parent=0 // pred_check
    _
  $region7: #{forward.15} parent=0 // pred_check_branch
    %11 = sbr.rel (0) target = $region9
  $region8: #{forward.15} parent=0 // pred_region
    _
  $region9: #{forward.15} parent=0 // pred_fallthru
    _
  // Predicated region
  $region10: #{forward.15} parent=0 // pred_check
    _
  $region11: #{forward.15} parent=0 // pred_check_branch
    %13 = sbr.rel (0) target = $region13
  $region12: #{forward.15} parent=0 // pred_region
    _
  $region13: #{forward.15} parent=0 // pred_fallthru
    _
  %v15 = vld [vmem:[%s0] sm:$0xff]
  %v16 = vld [vmem:[%s0 + $0x8] sm:$0xf]
  %v17 = vld [vmem:[%s0 + $0xc] sm:$0xff]
  %v18 = vld [vmem:[%s0 + $0x14] sm:$0xf]
  %v19 = vld [vmem:[%s1] sm:$0xff]
  %v20 = vld [vmem:[%s1 + $0x8] sm:$0xff]
  %v21 = vld [vmem:[%s1 + $0x10] sm:$0xff]
  %v22 = vld [vmem:[%s1 + $0x18] sm:$0xff]
  %v23 = vld [vmem:[%s1 + $0x20] sm:$0xff]
  %v24 = vld [vmem:[%s1 + $0x28] sm:$0xff]
  %v25 = vld [vmem:[%s1 + $0x30] sm:$0xff]
  %v26 = vld [vmem:[%s1 + $0x38] sm:$0xff]
  %v27 = vld [vmem:[%s1 + $0x40] sm:$0xff]
  %v28 = vld [vmem:[%s1 + $0x48] sm:$0xff]
  %v29 = vld [vmem:[%s1 + $0x50] sm:$0xff]
  %v30 = vld [vmem:[%s1 + $0x58] sm:$0xff]
  %v31 = vld [vmem:[%s1 + $0x60] sm:$0xff]
  %v32 = vld [vmem:[%s1 + $0x68] sm:$0xff]
  %v33 = vld [vmem:[%s1 + $0x70] sm:$0xff]
  %v34 = vld [vmem:[%s1 + $0x78] sm:$0xff]
  %v35 = vld [vmem:[%s1 + $0x80] sm:$0xff]
  %v36 = vld [vmem:[%s1 + $0x88] sm:$0xff]
  %v37 = vld [vmem:[%s1 + $0x90] sm:$0xff]
  %v38 = vld [vmem:[%s1 + $0x98] sm:$0xff]
  %v39 = vld [vmem:[%s1 + $0xa0] sm:$0xff]
  %v40 = vld [vmem:[%s1 + $0xa8] sm:$0xff]
  %v41 = vld [vmem:[%s1 + $0xb0] sm:$0xff]
  %v42 = vld [vmem:[%s1 + $0xb8] sm:$0xff]
  %v43 = vld [vmem:[%s1 + $0xc0] sm:$0xff]
  %v44 = vld [vmem:[%s1 + $0xc8] sm:$0xff]
  %v45 = vld [vmem:[%s1 + $0xd0] sm:$0xff]
  %v46 = vld [vmem:[%s1 + $0xd8] sm:$0xff]
  %v47 = vld [vmem:[%s1 + $0xe0] sm:$0xff]
  %v48 = vld [vmem:[%s1 + $0xe8] sm:$0xff]
  %v49 = vld [vmem:[%s1 + $0xf0] sm:$0xff]
  %v50 = vld [vmem:[%s1 + $0xf8] sm:$0xff]
  %v51 = vld [vmem:[%s1 + $0x100] sm:$0xff]
  %v52 = vld [vmem:[%s1 + $0x108] sm:$0xff]
  %v53 = vld [vmem:[%s1 + $0x110] sm:$0xff]
  %v54 = vld [vmem:[%s1 + $0x118] sm:$0xff]
  %v55 = vld [vmem:[%s1 + $0x120] sm:$0xff]
  %v56 = vld [vmem:[%s1 + $0x128] sm:$0xff]
  %v57 = vld [vmem:[%s1 + $0x130] sm:$0xff]
  %v58 = vld [vmem:[%s1 + $0x138] sm:$0xff]
  %v59 = vld [vmem:[%s1 + $0x140] sm:$0xff]
  %v60 = vld [vmem:[%s1 + $0x148] sm:$0xff]
  %v61 = vld [vmem:[%s1 + $0x150] sm:$0xff]
  %v62 = vld [vmem:[%s1 + $0x158] sm:$0xff]
  %v63 = vld [vmem:[%s1 + $0x160] sm:$0xff]
  %v64 = vld [vmem:[%s1 + $0x168] sm:$0xff]
  %v65 = vld [vmem:[%s1 + $0x170] sm:$0xff]
  %v66 = vld [vmem:[%s1 + $0x178] sm:$0xff]
  %v67 = vld [vmem:[%s1 + $0x180] sm:$0xff]
  %v68 = vld [vmem:[%s1 + $0x188] sm:$0xff]
  %v69 = vld [vmem:[%s1 + $0x190] sm:$0xff]
  %v70 = vld [vmem:[%s1 + $0x198] sm:$0xff]
  %v71 = vld [vmem:[%s1 + $0x1a0] sm:$0xff]
  %v72 = vld [vmem:[%s1 + $0x1a8] sm:$0xff]
  %v73 = vld [vmem:[%s1 + $0x1b0] sm:$0xff]
  %v74 = vld [vmem:[%s1 + $0x1b8] sm:$0xff]
  %v75 = vld [vmem:[%s1 + $0x1c0] sm:$0xff]
  %v76 = vld [vmem:[%s1 + $0x1c8] sm:$0xff]
  %v77 = vld [vmem:[%s1 + $0x1d0] sm:$0xff]
  %v78 = vld [vmem:[%s1 + $0x1d8] sm:$0xff]
  %v79 = vld [vmem:[%s1 + $0x1e0] sm:$0xff]
  %v80 = vld [vmem:[%s1 + $0x1e8] sm:$0xff]
  %v81 = vld [vmem:[%s1 + $0x1f0] sm:$0xff]
  %v82 = vld [vmem:[%s1 + $0x1f8] sm:$0xff]
  %v83 = vld [vmem:[%s1 + $0x200] sm:$0xff]
  %v84 = vld [vmem:[%s1 + $0x208] sm:$0xff]
  %v85 = vld [vmem:[%s1 + $0x210] sm:$0xff]
  %v86 = vld [vmem:[%s1 + $0x218] sm:$0xff]
  %v87 = vld [vmem:[%s1 + $0x220] sm:$0xff]
  %v88 = vld [vmem:[%s1 + $0x228] sm:$0xff]
  %v89 = vld [vmem:[%s1 + $0x230] sm:$0xff]
  %v90 = vld [vmem:[%s1 + $0x238] sm:$0xff]
  %v91 = vld [vmem:[%s1 + $0x240] sm:$0xff]
  %v92 = vld [vmem:[%s1 + $0x248] sm:$0xff]
  %v93 = vld [vmem:[%s1 + $0x250] sm:$0xff]
  %v94 = vld [vmem:[%s1 + $0x258] sm:$0xff]
  %v95 = vld [vmem:[%s1 + $0x260] sm:$0xff]
  %v96 = vld [vmem:[%s1 + $0x268] sm:$0xff]
  %v97 = vld [vmem:[%s1 + $0x270] sm:$0xff]
  %v98 = vld [vmem:[%s1 + $0x278] sm:$0xff]
  %v99 = vld [vmem:[%s1 + $0x280] sm:$0xff]
  %v100 = vld [vmem:[%s1 + $0x288] sm:$0xff]
  %v101 = vld [vmem:[%s1 + $0x290] sm:$0xff]
  %v102 = vld [vmem:[%s1 + $0x298] sm:$0xff]
  %v103 = vld [vmem:[%s1 + $0x2a0] sm:$0xff]
  %v104 = vld [vmem:[%s1 + $0x2a8] sm:$0xff]
  %v105 = vld [vmem:[%s1 + $0x2b0] sm:$0xff]
  %v106 = vld [vmem:[%s1 + $0x2b8] sm:$0xff]
  %v107 = vld [vmem:[%s1 + $0x2c0] sm:$0xff]
  %v108 = vld [vmem:[%s1 + $0x2c8] sm:$0xff]
  %v109 = vld [vmem:[%s1 + $0x2d0] sm:$0xff]
  %v110 = vld [vmem:[%s1 + $0x2d8] sm:$0xff]
  %v111 = vld [vmem:[%s1 + $0x2e0] sm:$0xff]
  %v112 = vld [vmem:[%s1 + $0x2e8] sm:$0xff]
  %v113 = vld [vmem:[%s1 + $0x2f0] sm:$0xff]
  %v114 = vld [vmem:[%s1 + $0x2f8] sm:$0xff]
  %v115 = vld [vmem:[%s1 + $0x300] sm:$0xff]
  %v116 = vld [vmem:[%s1 + $0x308] sm:$0xff]
  %v117 = vld [vmem:[%s1 + $0x310] sm:$0xff]
  %v118 = vld [vmem:[%s1 + $0x318] sm:$0xff]
  %v119 = vld [vmem:[%s1 + $0x320] sm:$0xff]
  %v120 = vld [vmem:[%s1 + $0x328] sm:$0xff]
  %v121 = vld [vmem:[%s1 + $0x330] sm:$0xff]
  %v122 = vld [vmem:[%s1 + $0x338] sm:$0xff]
  %v123 = vld [vmem:[%s1 + $0x340] sm:$0xff]
  %v124 = vld [vmem:[%s1 + $0x348] sm:$0xff]
  %v125 = vld [vmem:[%s1 + $0x350] sm:$0xff]
  %v126 = vld [vmem:[%s1 + $0x358] sm:$0xff]
  %v127 = vld [vmem:[%s1 + $0x360] sm:$0xff]
  %v128 = vld [vmem:[%s1 + $0x368] sm:$0xff]
  %v129 = vld [vmem:[%s1 + $0x370] sm:$0xff]
  %v130 = vld [vmem:[%s1 + $0x378] sm:$0xff]
  %v131 = vld [vmem:[%s1 + $0x380] sm:$0xff]
  %v132 = vld [vmem:[%s1 + $0x388] sm:$0xff]
  %v133 = vld [vmem:[%s1 + $0x390] sm:$0xff]
  %v134 = vld [vmem:[%s1 + $0x398] sm:$0xff]
  %v135 = vld [vmem:[%s1 + $0x3a0] sm:$0xff]
  %v136 = vld [vmem:[%s1 + $0x3a8] sm:$0xff]
  %v137 = vld [vmem:[%s1 + $0x3b0] sm:$0xff]
  %v138 = vld [vmem:[%s1 + $0x3b8] sm:$0xff]
  %v139 = vld [vmem:[%s1 + $0x3c0] sm:$0xff]
  %v140 = vld [vmem:[%s1 + $0x3c8] sm:$0xff]
  %v141 = vld [vmem:[%s1 + $0x3d0] sm:$0xff]
  %v142 = vld [vmem:[%s1 + $0x3d8] sm:$0xff]
  %v143 = vld [vmem:[%s1 + $0x3e0] sm:$0xff]
  %v144 = vld [vmem:[%s1 + $0x3e8] sm:$0xff]
  %v145 = vld [vmem:[%s1 + $0x3f0] sm:$0xff]
  %v146 = vld [vmem:[%s1 + $0x3f8] sm:$0xff]
  %v147 = vld [vmem:[%s1 + $0x400] sm:$0xff]
  %v148 = vld [vmem:[%s1 + $0x408] sm:$0xff]
  %v149 = vld [vmem:[%s1 + $0x410] sm:$0xff]
  %v150 = vld [vmem:[%s1 + $0x418] sm:$0xff]
  %v151 = vld [vmem:[%s1 + $0x420] sm:$0xff]
  %v152 = vld [vmem:[%s1 + $0x428] sm:$0xff]
  %v153 = vld [vmem:[%s1 + $0x430] sm:$0xff]
  %v154 = vld [vmem:[%s1 + $0x438] sm:$0xff]
  %v155 = vld [vmem:[%s1 + $0x440] sm:$0xff]
  %v156 = vld [vmem:[%s1 + $0x448] sm:$0xff]
  %v157 = vld [vmem:[%s1 + $0x450] sm:$0xff]
  %v158 = vld [vmem:[%s1 + $0x458] sm:$0xff]
  %v159 = vld [vmem:[%s1 + $0x460] sm:$0xff]
  %v160 = vld [vmem:[%s1 + $0x468] sm:$0xff]
  %v161 = vld [vmem:[%s1 + $0x470] sm:$0xff]
  %v162 = vld [vmem:[%s1 + $0x478] sm:$0xff]
  %v163 = vld [vmem:[%s2] sm:$0x3f]
  %v165 = vlaneseq
  %v166 = vshrl.u32 %v165, 7
  %v167 = vsub.s32 0, %v166
  %v168 = vrot.slane %v163, %v167
  %v169 = vlaneseq
  %v170 = vshrl.u32 %v169, 7
  %v171 = vsub.s32 1, %v170
  %v172 = vrot.slane %v163, %v171
  %v173 = vlaneseq
  %v174 = vshrl.u32 %v173, 7
  %v175 = vsub.s32 2, %v174
  %v176 = vrot.slane %v163, %v175
  %v177 = vlaneseq
  %v178 = vshrl.u32 %v177, 7
  %v179 = vsub.s32 3, %v178
  %v180 = vrot.slane %v163, %v179
  %v181 = vlaneseq
  %v182 = vshrl.u32 %v181, 7
  %v183 = vsub.s32 4, %v182
  %v184 = vrot.slane %v163, %v183
  %v185 = vlaneseq
  %v186 = vshrl.u32 %v185, 7
  %v187 = vsub.s32 5, %v186
  %v188 = vrot.slane %v163, %v187
  %v199 = vunpack.c.l.b16 %v15
  %v200 = vunpack.c.h.b16 %v15
  %v201 = vunpack.c.l.b16 %v16
  %v202 = vunpack.c.l.b16 %v17
  %v203 = vunpack.c.h.b16 %v17
  %v204 = vunpack.c.l.b16 %v18
  %v205 = vpack.c.b16 %v202, %v199
  %v206 = vpack.c.b16 %v203, %v200
  %v207 = vpack.c.b16 %v204, %v201
  %v355 = vunpack.c.l.b16 %v19
  %v356 = vunpack.c.h.b16 %v19
  %v357 = vunpack.c.l.b16 %v20
  %v358 = vunpack.c.h.b16 %v20
  %v359 = vunpack.c.l.b16 %v21
  %v360 = vunpack.c.h.b16 %v21
  %v361 = vunpack.c.l.b16 %v22
  %v362 = vunpack.c.h.b16 %v22
  %v363 = vunpack.c.l.b16 %v23
  %v364 = vunpack.c.h.b16 %v23
  %v365 = vunpack.c.l.b16 %v24
  %v366 = vunpack.c.h.b16 %v24
  %v367 = vunpack.c.l.b16 %v25
  %v368 = vunpack.c.h.b16 %v25
  %v369 = vunpack.c.l.b16 %v26
  %v370 = vunpack.c.h.b16 %v26
  %v371 = vunpack.c.l.b16 %v27
  %v372 = vunpack.c.h.b16 %v27
  %v373 = vunpack.c.l.b16 %v28
  %v374 = vunpack.c.h.b16 %v28
  %v375 = vunpack.c.l.b16 %v29
  %v376 = vunpack.c.h.b16 %v29
  %v377 = vunpack.c.l.b16 %v30
  %v378 = vunpack.c.h.b16 %v30
  %v379 = vunpack.c.l.b16 %v31
  %v380 = vunpack.c.h.b16 %v31
  %v381 = vunpack.c.l.b16 %v32
  %v382 = vunpack.c.h.b16 %v32
  %v383 = vunpack.c.l.b16 %v33
  %v384 = vunpack.c.h.b16 %v33
  %v385 = vunpack.c.l.b16 %v34
  %v386 = vunpack.c.h.b16 %v34
  %v387 = vunpack.c.l.b16 %v35
  %v388 = vunpack.c.h.b16 %v35
  %v389 = vunpack.c.l.b16 %v36
  %v390 = vunpack.c.h.b16 %v36
  %v391 = vunpack.c.l.b16 %v37
  %v392 = vunpack.c.h.b16 %v37
  %v393 = vunpack.c.l.b16 %v38
  %v394 = vunpack.c.h.b16 %v38
  %v395 = vunpack.c.l.b16 %v39
  %v396 = vunpack.c.h.b16 %v39
  %v397 = vunpack.c.l.b16 %v40
  %v398 = vunpack.c.h.b16 %v40
  %v399 = vunpack.c.l.b16 %v41
  %v400 = vunpack.c.h.b16 %v41
  %v401 = vunpack.c.l.b16 %v42
  %v402 = vunpack.c.h.b16 %v42
  %v403 = vunpack.c.l.b16 %v43
  %v404 = vunpack.c.h.b16 %v43
  %v405 = vunpack.c.l.b16 %v44
  %v406 = vunpack.c.h.b16 %v44
  %v407 = vunpack.c.l.b16 %v45
  %v408 = vunpack.c.h.b16 %v45
  %v409 = vunpack.c.l.b16 %v46
  %v410 = vunpack.c.h.b16 %v46
  %v411 = vunpack.c.l.b16 %v47
  %v412 = vunpack.c.h.b16 %v47
  %v413 = vunpack.c.l.b16 %v48
  %v414 = vunpack.c.h.b16 %v48
  %v415 = vunpack.c.l.b16 %v49
  %v416 = vunpack.c.h.b16 %v49
  %v417 = vunpack.c.l.b16 %v50
  %v418 = vunpack.c.h.b16 %v50
  %v419 = vunpack.c.l.b16 %v51
  %v420 = vunpack.c.h.b16 %v51
  %v421 = vunpack.c.l.b16 %v52
  %v422 = vunpack.c.h.b16 %v52
  %v423 = vunpack.c.l.b16 %v53
  %v424 = vunpack.c.h.b16 %v53
  %v425 = vunpack.c.l.b16 %v54
  %v426 = vunpack.c.h.b16 %v54
  %v427 = vunpack.c.l.b16 %v55
  %v428 = vunpack.c.h.b16 %v55
  %v429 = vunpack.c.l.b16 %v56
  %v430 = vunpack.c.h.b16 %v56
  %v431 = vunpack.c.l.b16 %v57
  %v432 = vunpack.c.h.b16 %v57
  %v433 = vunpack.c.l.b16 %v58
  %v434 = vunpack.c.h.b16 %v58
  %v435 = vunpack.c.l.b16 %v59
  %v436 = vunpack.c.h.b16 %v59
  %v437 = vunpack.c.l.b16 %v60
  %v438 = vunpack.c.h.b16 %v60
  %v439 = vunpack.c.l.b16 %v61
  %v440 = vunpack.c.h.b16 %v61
  %v441 = vunpack.c.l.b16 %v62
  %v442 = vunpack.c.h.b16 %v62
  %v443 = vunpack.c.l.b16 %v63
  %v444 = vunpack.c.h.b16 %v63
  %v445 = vunpack.c.l.b16 %v64
  %v446 = vunpack.c.h.b16 %v64
  %v447 = vunpack.c.l.b16 %v65
  %v448 = vunpack.c.h.b16 %v65
  %v449 = vunpack.c.l.b16 %v66
  %v450 = vunpack.c.h.b16 %v66
  %v451 = vunpack.c.l.b16 %v67
  %v452 = vunpack.c.h.b16 %v67
  %v453 = vunpack.c.l.b16 %v68
  %v454 = vunpack.c.h.b16 %v68
  %v455 = vunpack.c.l.b16 %v69
  %v456 = vunpack.c.h.b16 %v69
  %v457 = vunpack.c.l.b16 %v70
  %v458 = vunpack.c.h.b16 %v70
  %v459 = vunpack.c.l.b16 %v71
  %v460 = vunpack.c.h.b16 %v71
  %v461 = vunpack.c.l.b16 %v72
  %v462 = vunpack.c.h.b16 %v72
  %v463 = vunpack.c.l.b16 %v73
  %v464 = vunpack.c.h.b16 %v73
  %v465 = vunpack.c.l.b16 %v74
  %v466 = vunpack.c.h.b16 %v74
  %v467 = vunpack.c.l.b16 %v75
  %v468 = vunpack.c.h.b16 %v75
  %v469 = vunpack.c.l.b16 %v76
  %v470 = vunpack.c.h.b16 %v76
  %v471 = vunpack.c.l.b16 %v77
  %v472 = vunpack.c.h.b16 %v77
  %v473 = vunpack.c.l.b16 %v78
  %v474 = vunpack.c.h.b16 %v78
  %v475 = vunpack.c.l.b16 %v79
  %v476 = vunpack.c.h.b16 %v79
  %v477 = vunpack.c.l.b16 %v80
  %v478 = vunpack.c.h.b16 %v80
  %v479 = vunpack.c.l.b16 %v81
  %v480 = vunpack.c.h.b16 %v81
  %v481 = vunpack.c.l.b16 %v82
  %v482 = vunpack.c.h.b16 %v82
  %v483 = vunpack.c.l.b16 %v83
  %v484 = vunpack.c.h.b16 %v83
  %v485 = vunpack.c.l.b16 %v84
  %v486 = vunpack.c.h.b16 %v84
  %v487 = vunpack.c.l.b16 %v85
  %v488 = vunpack.c.h.b16 %v85
  %v489 = vunpack.c.l.b16 %v86
  %v490 = vunpack.c.h.b16 %v86
  %v491 = vunpack.c.l.b16 %v87
  %v492 = vunpack.c.h.b16 %v87
  %v493 = vunpack.c.l.b16 %v88
  %v494 = vunpack.c.h.b16 %v88
  %v495 = vunpack.c.l.b16 %v89
  %v496 = vunpack.c.h.b16 %v89
  %v497 = vunpack.c.l.b16 %v90
  %v498 = vunpack.c.h.b16 %v90
  %v499 = vunpack.c.l.b16 %v91
  %v500 = vunpack.c.h.b16 %v91
  %v501 = vunpack.c.l.b16 %v92
  %v502 = vunpack.c.h.b16 %v92
  %v503 = vunpack.c.l.b16 %v93
  %v504 = vunpack.c.h.b16 %v93
  %v505 = vunpack.c.l.b16 %v94
  %v506 = vunpack.c.h.b16 %v94
  %v507 = vunpack.c.l.b16 %v95
  %v508 = vunpack.c.h.b16 %v95
  %v509 = vunpack.c.l.b16 %v96
  %v510 = vunpack.c.h.b16 %v96
  %v511 = vunpack.c.l.b16 %v97
  %v512 = vunpack.c.h.b16 %v97
  %v513 = vunpack.c.l.b16 %v98
  %v514 = vunpack.c.h.b16 %v98
  %v515 = vunpack.c.l.b16 %v99
  %v516 = vunpack.c.h.b16 %v99
  %v517 = vunpack.c.l.b16 %v100
  %v518 = vunpack.c.h.b16 %v100
  %v519 = vunpack.c.l.b16 %v101
  %v520 = vunpack.c.h.b16 %v101
  %v521 = vunpack.c.l.b16 %v102
  %v522 = vunpack.c.h.b16 %v102
  %v523 = vunpack.c.l.b16 %v103
  %v524 = vunpack.c.h.b16 %v103
  %v525 = vunpack.c.l.b16 %v104
  %v526 = vunpack.c.h.b16 %v104
  %v527 = vunpack.c.l.b16 %v105
  %v528 = vunpack.c.h.b16 %v105
  %v529 = vunpack.c.l.b16 %v106
  %v530 = vunpack.c.h.b16 %v106
  %v531 = vunpack.c.l.b16 %v107
  %v532 = vunpack.c.h.b16 %v107
  %v533 = vunpack.c.l.b16 %v108
  %v534 = vunpack.c.h.b16 %v108
  %v535 = vunpack.c.l.b16 %v109
  %v536 = vunpack.c.h.b16 %v109
  %v537 = vunpack.c.l.b16 %v110
  %v538 = vunpack.c.h.b16 %v110
  %v539 = vunpack.c.l.b16 %v111
  %v540 = vunpack.c.h.b16 %v111
  %v541 = vunpack.c.l.b16 %v112
  %v542 = vunpack.c.h.b16 %v112
  %v543 = vunpack.c.l.b16 %v113
  %v544 = vunpack.c.h.b16 %v113
  %v545 = vunpack.c.l.b16 %v114
  %v546 = vunpack.c.h.b16 %v114
  %v547 = vunpack.c.l.b16 %v115
  %v548 = vunpack.c.h.b16 %v115
  %v549 = vunpack.c.l.b16 %v116
  %v550 = vunpack.c.h.b16 %v116
  %v551 = vunpack.c.l.b16 %v117
  %v552 = vunpack.c.h.b16 %v117
  %v553 = vunpack.c.l.b16 %v118
  %v554 = vunpack.c.h.b16 %v118
  %v555 = vunpack.c.l.b16 %v119
  %v556 = vunpack.c.h.b16 %v119
  %v557 = vunpack.c.l.b16 %v120
  %v558 = vunpack.c.h.b16 %v120
  %v559 = vunpack.c.l.b16 %v121
  %v560 = vunpack.c.h.b16 %v121
  %v561 = vunpack.c.l.b16 %v122
  %v562 = vunpack.c.h.b16 %v122
  %v563 = vunpack.c.l.b16 %v123
  %v564 = vunpack.c.h.b16 %v123
  %v565 = vunpack.c.l.b16 %v124
  %v566 = vunpack.c.h.b16 %v124
  %v567 = vunpack.c.l.b16 %v125
  %v568 = vunpack.c.h.b16 %v125
  %v569 = vunpack.c.l.b16 %v126
  %v570 = vunpack.c.h.b16 %v126
  %v571 = vunpack.c.l.b16 %v127
  %v572 = vunpack.c.h.b16 %v127
  %v573 = vunpack.c.l.b16 %v128
  %v574 = vunpack.c.h.b16 %v128
  %v575 = vunpack.c.l.b16 %v129
  %v576 = vunpack.c.h.b16 %v129
  %v577 = vunpack.c.l.b16 %v130
  %v578 = vunpack.c.h.b16 %v130
  %v579 = vunpack.c.l.b16 %v131
  %v580 = vunpack.c.h.b16 %v131
  %v581 = vunpack.c.l.b16 %v132
  %v582 = vunpack.c.h.b16 %v132
  %v583 = vunpack.c.l.b16 %v133
  %v584 = vunpack.c.h.b16 %v133
  %v585 = vunpack.c.l.b16 %v134
  %v586 = vunpack.c.h.b16 %v134
  %v587 = vunpack.c.l.b16 %v135
  %v588 = vunpack.c.h.b16 %v135
  %v589 = vunpack.c.l.b16 %v136
  %v590 = vunpack.c.h.b16 %v136
  %v591 = vunpack.c.l.b16 %v137
  %v592 = vunpack.c.h.b16 %v137
  %v593 = vunpack.c.l.b16 %v138
  %v594 = vunpack.c.h.b16 %v138
  %v595 = vunpack.c.l.b16 %v139
  %v596 = vunpack.c.h.b16 %v139
  %v597 = vunpack.c.l.b16 %v140
  %v598 = vunpack.c.h.b16 %v140
  %v599 = vunpack.c.l.b16 %v141
  %v600 = vunpack.c.h.b16 %v141
  %v601 = vunpack.c.l.b16 %v142
  %v602 = vunpack.c.h.b16 %v142
  %v603 = vunpack.c.l.b16 %v143
  %v604 = vunpack.c.h.b16 %v143
  %v605 = vunpack.c.l.b16 %v144
  %v606 = vunpack.c.h.b16 %v144
  %v607 = vunpack.c.l.b16 %v145
  %v608 = vunpack.c.h.b16 %v145
  %v609 = vunpack.c.l.b16 %v146
  %v610 = vunpack.c.h.b16 %v146
  %v611 = vunpack.c.l.b16 %v147
  %v612 = vunpack.c.h.b16 %v147
  %v613 = vunpack.c.l.b16 %v148
  %v614 = vunpack.c.h.b16 %v148
  %v615 = vunpack.c.l.b16 %v149
  %v616 = vunpack.c.h.b16 %v149
  %v617 = vunpack.c.l.b16 %v150
  %v618 = vunpack.c.h.b16 %v150
  %v619 = vunpack.c.l.b16 %v151
  %v620 = vunpack.c.h.b16 %v151
  %v621 = vunpack.c.l.b16 %v152
  %v622 = vunpack.c.h.b16 %v152
  %v623 = vunpack.c.l.b16 %v153
  %v624 = vunpack.c.h.b16 %v153
  %v625 = vunpack.c.l.b16 %v154
  %v626 = vunpack.c.h.b16 %v154
  %v627 = vunpack.c.l.b16 %v155
  %v628 = vunpack.c.h.b16 %v155
  %v629 = vunpack.c.l.b16 %v156
  %v630 = vunpack.c.h.b16 %v156
  %v631 = vunpack.c.l.b16 %v157
  %v632 = vunpack.c.h.b16 %v157
  %v633 = vunpack.c.l.b16 %v158
  %v634 = vunpack.c.h.b16 %v158
  %v635 = vunpack.c.l.b16 %v159
  %v636 = vunpack.c.h.b16 %v159
  %v637 = vunpack.c.l.b16 %v160
  %v638 = vunpack.c.h.b16 %v160
  %v639 = vunpack.c.l.b16 %v161
  %v640 = vunpack.c.h.b16 %v161
  %v641 = vunpack.c.l.b16 %v162
  %v642 = vunpack.c.h.b16 %v162
  %v643 = vpack.c.b16 %v361, %v355
  %v644 = vpack.c.b16 %v362, %v356
  %v645 = vpack.c.b16 %v363, %v357
  %v646 = vpack.c.b16 %v364, %v358
  %v647 = vpack.c.b16 %v365, %v359
  %v648 = vpack.c.b16 %v366, %v360
  %v649 = vpack.c.b16 %v373, %v367
  %v650 = vpack.c.b16 %v374, %v368
  %v651 = vpack.c.b16 %v375, %v369
  %v652 = vpack.c.b16 %v376, %v370
  %v653 = vpack.c.b16 %v377, %v371
  %v654 = vpack.c.b16 %v378, %v372
  %v655 = vpack.c.b16 %v385, %v379
  %v656 = vpack.c.b16 %v386, %v380
  %v657 = vpack.c.b16 %v387, %v381
  %v658 = vpack.c.b16 %v388, %v382
  %v659 = vpack.c.b16 %v389, %v383
  %v660 = vpack.c.b16 %v390, %v384
  %v661 = vpack.c.b16 %v397, %v391
  %v662 = vpack.c.b16 %v398, %v392
  %v663 = vpack.c.b16 %v399, %v393
  %v664 = vpack.c.b16 %v400, %v394
  %v665 = vpack.c.b16 %v401, %v395
  %v666 = vpack.c.b16 %v402, %v396
  %v667 = vpack.c.b16 %v409, %v403
  %v668 = vpack.c.b16 %v410, %v404
  %v669 = vpack.c.b16 %v411, %v405
  %v670 = vpack.c.b16 %v412, %v406
  %v671 = vpack.c.b16 %v413, %v407
  %v672 = vpack.c.b16 %v414, %v408
  %v673 = vpack.c.b16 %v421, %v415
  %v674 = vpack.c.b16 %v422, %v416
  %v675 = vpack.c.b16 %v423, %v417
  %v676 = vpack.c.b16 %v424, %v418
  %v677 = vpack.c.b16 %v425, %v419
  %v678 = vpack.c.b16 %v426, %v420
  %v679 = vpack.c.b16 %v433, %v427
  %v680 = vpack.c.b16 %v434, %v428
  %v681 = vpack.c.b16 %v435, %v429
  %v682 = vpack.c.b16 %v436, %v430
  %v683 = vpack.c.b16 %v437, %v431
  %v684 = vpack.c.b16 %v438, %v432
  %v685 = vpack.c.b16 %v445, %v439
  %v686 = vpack.c.b16 %v446, %v440
  %v687 = vpack.c.b16 %v447, %v441
  %v688 = vpack.c.b16 %v448, %v442
  %v689 = vpack.c.b16 %v449, %v443
  %v690 = vpack.c.b16 %v450, %v444
  %v691 = vpack.c.b16 %v457, %v451
  %v692 = vpack.c.b16 %v458, %v452
  %v693 = vpack.c.b16 %v459, %v453
  %v694 = vpack.c.b16 %v460, %v454
  %v695 = vpack.c.b16 %v461, %v455
  %v696 = vpack.c.b16 %v462, %v456
  %v697 = vpack.c.b16 %v469, %v463
  %v698 = vpack.c.b16 %v470, %v464
  %v699 = vpack.c.b16 %v471, %v465
  %v700 = vpack.c.b16 %v472, %v466
  %v701 = vpack.c.b16 %v473, %v467
  %v702 = vpack.c.b16 %v474, %v468
  %v703 = vpack.c.b16 %v481, %v475
  %v704 = vpack.c.b16 %v482, %v476
  %v705 = vpack.c.b16 %v483, %v477
  %v706 = vpack.c.b16 %v484, %v478
  %v707 = vpack.c.b16 %v485, %v479
  %v708 = vpack.c.b16 %v486, %v480
  %v709 = vpack.c.b16 %v493, %v487
  %v710 = vpack.c.b16 %v494, %v488
  %v711 = vpack.c.b16 %v495, %v489
  %v712 = vpack.c.b16 %v496, %v490
  %v713 = vpack.c.b16 %v497, %v491
  %v714 = vpack.c.b16 %v498, %v492
  %v715 = vpack.c.b16 %v505, %v499
  %v716 = vpack.c.b16 %v506, %v500
  %v717 = vpack.c.b16 %v507, %v501
  %v718 = vpack.c.b16 %v508, %v502
  %v719 = vpack.c.b16 %v509, %v503
  %v720 = vpack.c.b16 %v510, %v504
  %v721 = vpack.c.b16 %v517, %v511
  %v722 = vpack.c.b16 %v518, %v512
  %v723 = vpack.c.b16 %v519, %v513
  %v724 = vpack.c.b16 %v520, %v514
  %v725 = vpack.c.b16 %v521, %v515
  %v726 = vpack.c.b16 %v522, %v516
  %v727 = vpack.c.b16 %v529, %v523
  %v728 = vpack.c.b16 %v530, %v524
  %v729 = vpack.c.b16 %v531, %v525
  %v730 = vpack.c.b16 %v532, %v526
  %v731 = vpack.c.b16 %v533, %v527
  %v732 = vpack.c.b16 %v534, %v528
  %v733 = vpack.c.b16 %v541, %v535
  %v734 = vpack.c.b16 %v542, %v536
  %v735 = vpack.c.b16 %v543, %v537
  %v736 = vpack.c.b16 %v544, %v538
  %v737 = vpack.c.b16 %v545, %v539
  %v738 = vpack.c.b16 %v546, %v540
  %v739 = vpack.c.b16 %v553, %v547
  %v740 = vpack.c.b16 %v554, %v548
  %v741 = vpack.c.b16 %v555, %v549
  %v742 = vpack.c.b16 %v556, %v550
  %v743 = vpack.c.b16 %v557, %v551
  %v744 = vpack.c.b16 %v558, %v552
  %v745 = vpack.c.b16 %v565, %v559
  %v746 = vpack.c.b16 %v566, %v560
  %v747 = vpack.c.b16 %v567, %v561
  %v748 = vpack.c.b16 %v568, %v562
  %v749 = vpack.c.b16 %v569, %v563
  %v750 = vpack.c.b16 %v570, %v564
  %v751 = vpack.c.b16 %v577, %v571
  %v752 = vpack.c.b16 %v578, %v572
  %v753 = vpack.c.b16 %v579, %v573
  %v754 = vpack.c.b16 %v580, %v574
  %v755 = vpack.c.b16 %v581, %v575
  %v756 = vpack.c.b16 %v582, %v576
  %v757 = vpack.c.b16 %v589, %v583
  %v758 = vpack.c.b16 %v590, %v584
  %v759 = vpack.c.b16 %v591, %v585
  %v760 = vpack.c.b16 %v592, %v586
  %v761 = vpack.c.b16 %v593, %v587
  %v762 = vpack.c.b16 %v594, %v588
  %v763 = vpack.c.b16 %v601, %v595
  %v764 = vpack.c.b16 %v602, %v596
  %v765 = vpack.c.b16 %v603, %v597
  %v766 = vpack.c.b16 %v604, %v598
  %v767 = vpack.c.b16 %v605, %v599
  %v768 = vpack.c.b16 %v606, %v600
  %v769 = vpack.c.b16 %v613, %v607
  %v770 = vpack.c.b16 %v614, %v608
  %v771 = vpack.c.b16 %v615, %v609
  %v772 = vpack.c.b16 %v616, %v610
  %v773 = vpack.c.b16 %v617, %v611
  %v774 = vpack.c.b16 %v618, %v612
  %v775 = vpack.c.b16 %v625, %v619
  %v776 = vpack.c.b16 %v626, %v620
  %v777 = vpack.c.b16 %v627, %v621
  %v778 = vpack.c.b16 %v628, %v622
  %v779 = vpack.c.b16 %v629, %v623
  %v780 = vpack.c.b16 %v630, %v624
  %v781 = vpack.c.b16 %v637, %v631
  %v782 = vpack.c.b16 %v638, %v632
  %v783 = vpack.c.b16 %v639, %v633
  %v784 = vpack.c.b16 %v640, %v634
  %v785 = vpack.c.b16 %v641, %v635
  %v786 = vpack.c.b16 %v642, %v636
  %931 = vmatprep.subr.bf16.mxu0 %v644
  %932 = vmatpush1.bf16.msra.mxu0 %v643
  %933 = vmatprep.subr.bf16.mxu0 %v650
  %934 = vmatpush1.bf16.msra.mxu0 %v649
  %935 = vmatprep.subr.bf16.mxu0 %v656
  %936 = vmatpush1.bf16.msra.mxu0 %v655
  %937 = vmatprep.subr.bf16.mxu0 %v662
  %938 = vmatpush1.bf16.msra.mxu0 %v661
  %939 = vmatprep.subr.bf16.mxu0 %v668
  %940 = vmatpush1.bf16.msra.mxu0 %v667
  %941 = vmatprep.subr.bf16.mxu0 %v674
  %942 = vmatpush1.bf16.msra.mxu0 %v673
  %943 = vmatprep.subr.bf16.mxu0 %v680
  %944 = vmatpush1.bf16.msra.mxu0 %v679
  %945 = vmatprep.subr.bf16.mxu0 %v686
  %946 = vmatpush1.bf16.msra.mxu0 %v685
  %947 = vmatprep.subr.bf16.mxu0 %v692
  %948 = vmatpush1.bf16.msra.mxu0 %v691
  %949 = vmatprep.subr.bf16.mxu0 %v698
  %950 = vmatpush1.bf16.msra.mxu0 %v697
  %951 = vmatprep.subr.bf16.mxu0 %v704
  %952 = vmatpush1.bf16.msra.mxu0 %v703
  %953 = vmatprep.subr.bf16.mxu0 %v710
  %954 = vmatpush1.bf16.msra.mxu0 %v709
  %955 = vmatprep.subr.bf16.mxu0 %v716
  %956 = vmatpush1.bf16.msra.mxu0 %v715
  %957 = vmatprep.subr.bf16.mxu0 %v722
  %958 = vmatpush1.bf16.msra.mxu0 %v721
  %959 = vmatprep.subr.bf16.mxu0 %v728
  %960 = vmatpush1.bf16.msra.mxu0 %v727
  %961 = vmatprep.subr.bf16.mxu0 %v734
  %962 = vmatpush1.bf16.msra.mxu0 %v733
  %963 = vmatprep.mubr.bf16.mxu0 %v206
  %964 = vmatmul.mubr.bf16.gmra.mrb[0].mxu0 %v205
  %v965 = vpop.f32.mrb[0].mxu0
  %v966 = vadd.f32 %v168, %v965
  %v967 = vpop.f32.mrb[0].mxu0
  %v968 = vadd.f32 %v172, %v967
  %v969 = vpop.f32.mrb[0].mxu0
  %v970 = vadd.f32 %v168, %v969
  %v971 = vpop.f32.mrb[0].mxu0
  %v972 = vadd.f32 %v172, %v971
  %973 = vdwg.mxu0
  %974 = vmatprep.subr.bf16.mxu0 %v740
  %975 = vmatpush1.bf16.msra.mxu0 %v739
  %976 = vmatprep.subr.bf16.mxu0 %v746
  %977 = vmatpush1.bf16.msra.mxu0 %v745
  %978 = vmatprep.subr.bf16.mxu0 %v752
  %979 = vmatpush1.bf16.msra.mxu0 %v751
  %980 = vmatprep.subr.bf16.mxu0 %v758
  %981 = vmatpush1.bf16.msra.mxu0 %v757
  %982 = vmatprep.subr.bf16.mxu0 %v764
  %983 = vmatpush1.bf16.msra.mxu0 %v763
  %984 = vmatprep.subr.bf16.mxu0 %v770
  %985 = vmatpush1.bf16.msra.mxu0 %v769
  %986 = vmatprep.subr.bf16.mxu0 %v776
  %987 = vmatpush1.bf16.msra.mxu0 %v775
  %988 = vmatprep.subr.bf16.mxu0 %v782
  %989 = vmatpush1.bf16.msra.mxu0 %v781
  %990 = vmatprep.subr.bf16.mxu0 0
  %991 = vmatpush1.bf16.msra.mxu0 0
  %992 = vmatprep.subr.bf16.mxu0 0
  %993 = vmatpush1.bf16.msra.mxu0 0
  %994 = vmatprep.subr.bf16.mxu0 0
  %995 = vmatpush1.bf16.msra.mxu0 0
  %996 = vmatprep.subr.bf16.mxu0 0
  %997 = vmatpush1.bf16.msra.mxu0 0
  %998 = vmatprep.subr.bf16.mxu0 0
  %999 = vmatpush1.bf16.msra.mxu0 0
  %1000 = vmatprep.subr.bf16.mxu0 0
  %1001 = vmatpush1.bf16.msra.mxu0 0
  %1002 = vmatprep.subr.bf16.mxu0 0
  %1003 = vmatpush1.bf16.msra.mxu0 0
  %1004 = vmatprep.subr.bf16.mxu0 0
  %1005 = vmatpush1.bf16.msra.mxu0 0
  %1006 = vmatprep.mubr.bf16.mxu0 0
  %1007 = vmatmul.mubr.bf16.gmra.mrb[0].mxu0 %v207
  %v1008 = vpop.f32.mrb[0].mxu0
  %v1009 = vadd.f32 %v966, %v1008
  %v1010 = vpop.f32.mrb[0].mxu0
  %v1011 = vadd.f32 %v968, %v1010
  %v1012 = vpop.f32.mrb[0].mxu0
  %v1013 = vadd.f32 %v970, %v1012
  %v1014 = vpop.f32.mrb[0].mxu0
  %v1015 = vadd.f32 %v972, %v1014
  %1016 = vdwg.mxu0
  %1017 = vmatprep.subr.bf16.mxu0 %v646
  %1018 = vmatpush1.bf16.msra.mxu0 %v645
  %1019 = vmatprep.subr.bf16.mxu0 %v652
  %1020 = vmatpush1.bf16.msra.mxu0 %v651
  %1021 = vmatprep.subr.bf16.mxu0 %v658
  %1022 = vmatpush1.bf16.msra.mxu0 %v657
  %1023 = vmatprep.subr.bf16.mxu0 %v664
  %1024 = vmatpush1.bf16.msra.mxu0 %v663
  %1025 = vmatprep.subr.bf16.mxu0 %v670
  %1026 = vmatpush1.bf16.msra.mxu0 %v669
  %1027 = vmatprep.subr.bf16.mxu0 %v676
  %1028 = vmatpush1.bf16.msra.mxu0 %v675
  %1029 = vmatprep.subr.bf16.mxu0 %v682
  %1030 = vmatpush1.bf16.msra.mxu0 %v681
  %1031 = vmatprep.subr.bf16.mxu0 %v688
  %1032 = vmatpush1.bf16.msra.mxu0 %v687
  %1033 = vmatprep.subr.bf16.mxu0 %v694
  %1034 = vmatpush1.bf16.msra.mxu0 %v693
  %1035 = vmatprep.subr.bf16.mxu0 %v700
  %1036 = vmatpush1.bf16.msra.mxu0 %v699
  %1037 = vmatprep.subr.bf16.mxu0 %v706
  %1038 = vmatpush1.bf16.msra.mxu0 %v705
  %1039 = vmatprep.subr.bf16.mxu0 %v712
  %1040 = vmatpush1.bf16.msra.mxu0 %v711
  %1041 = vmatprep.subr.bf16.mxu0 %v718
  %1042 = vmatpush1.bf16.msra.mxu0 %v717
  %1043 = vmatprep.subr.bf16.mxu0 %v724
  %1044 = vmatpush1.bf16.msra.mxu0 %v723
  %1045 = vmatprep.subr.bf16.mxu0 %v730
  %1046 = vmatpush1.bf16.msra.mxu0 %v729
  %1047 = vmatprep.subr.bf16.mxu0 %v736
  %1048 = vmatpush1.bf16.msra.mxu0 %v735
  %1049 = vmatprep.mubr.bf16.mxu0 %v206
  %1050 = vmatmul.mubr.bf16.gmra.mrb[0].mxu0 %v205
  %v1051 = vpop.f32.mrb[0].mxu0
  %v1052 = vadd.f32 %v176, %v1051
  %v1053 = vpop.f32.mrb[0].mxu0
  %v1054 = vadd.f32 %v180, %v1053
  %v1055 = vpop.f32.mrb[0].mxu0
  %v1056 = vadd.f32 %v176, %v1055
  %v1057 = vpop.f32.mrb[0].mxu0
  %v1058 = vadd.f32 %v180, %v1057
  %1059 = vdwg.mxu0
  %1060 = vmatprep.subr.bf16.mxu0 %v742
  %1061 = vmatpush1.bf16.msra.mxu0 %v741
  %1062 = vmatprep.subr.bf16.mxu0 %v748
  %1063 = vmatpush1.bf16.msra.mxu0 %v747
  %1064 = vmatprep.subr.bf16.mxu0 %v754
  %1065 = vmatpush1.bf16.msra.mxu0 %v753
  %1066 = vmatprep.subr.bf16.mxu0 %v760
  %1067 = vmatpush1.bf16.msra.mxu0 %v759
  %1068 = vmatprep.subr.bf16.mxu0 %v766
  %1069 = vmatpush1.bf16.msra.mxu0 %v765
  %1070 = vmatprep.subr.bf16.mxu0 %v772
  %1071 = vmatpush1.bf16.msra.mxu0 %v771
  %1072 = vmatprep.subr.bf16.mxu0 %v778
  %1073 = vmatpush1.bf16.msra.mxu0 %v777
  %1074 = vmatprep.subr.bf16.mxu0 %v784
  %1075 = vmatpush1.bf16.msra.mxu0 %v783
  %1076 = vmatprep.subr.bf16.mxu0 0
  %1077 = vmatpush1.bf16.msra.mxu0 0
  %1078 = vmatprep.subr.bf16.mxu0 0
  %1079 = vmatpush1.bf16.msra.mxu0 0
  %1080 = vmatprep.subr.bf16.mxu0 0
  %1081 = vmatpush1.bf16.msra.mxu0 0
  %1082 = vmatprep.subr.bf16.mxu0 0
  %1083 = vmatpush1.bf16.msra.mxu0 0
  %1084 = vmatprep.subr.bf16.mxu0 0
  %1085 = vmatpush1.bf16.msra.mxu0 0
  %1086 = vmatprep.subr.bf16.mxu0 0
  %1087 = vmatpush1.bf16.msra.mxu0 0
  %1088 = vmatprep.subr.bf16.mxu0 0
  %1089 = vmatpush1.bf16.msra.mxu0 0
  %1090 = vmatprep.subr.bf16.mxu0 0
  %1091 = vmatpush1.bf16.msra.mxu0 0
  %1092 = vmatprep.mubr.bf16.mxu0 0
  %1093 = vmatmul.mubr.bf16.gmra.mrb[0].mxu0 %v207
  %v1094 = vpop.f32.mrb[0].mxu0
  %v1095 = vadd.f32 %v1052, %v1094
  %v1096 = vpop.f32.mrb[0].mxu0
  %v1097 = vadd.f32 %v1054, %v1096
  %v1098 = vpop.f32.mrb[0].mxu0
  %v1099 = vadd.f32 %v1056, %v1098
  %v1100 = vpop.f32.mrb[0].mxu0
  %v1101 = vadd.f32 %v1058, %v1100
  %1102 = vdwg.mxu0
  %1103 = vmatprep.subr.bf16.mxu0 %v648
  %1104 = vmatpush1.bf16.msra.mxu0 %v647
  %1105 = vmatprep.subr.bf16.mxu0 %v654
  %1106 = vmatpush1.bf16.msra.mxu0 %v653
  %1107 = vmatprep.subr.bf16.mxu0 %v660
  %1108 = vmatpush1.bf16.msra.mxu0 %v659
  %1109 = vmatprep.subr.bf16.mxu0 %v666
  %1110 = vmatpush1.bf16.msra.mxu0 %v665
  %1111 = vmatprep.subr.bf16.mxu0 %v672
  %1112 = vmatpush1.bf16.msra.mxu0 %v671
  %1113 = vmatprep.subr.bf16.mxu0 %v678
  %1114 = vmatpush1.bf16.msra.mxu0 %v677
  %1115 = vmatprep.subr.bf16.mxu0 %v684
  %1116 = vmatpush1.bf16.msra.mxu0 %v683
  %1117 = vmatprep.subr.bf16.mxu0 %v690
  %1118 = vmatpush1.bf16.msra.mxu0 %v689
  %1119 = vmatprep.subr.bf16.mxu0 %v696
  %1120 = vmatpush1.bf16.msra.mxu0 %v695
  %1121 = vmatprep.subr.bf16.mxu0 %v702
  %1122 = vmatpush1.bf16.msra.mxu0 %v701
  %1123 = vmatprep.subr.bf16.mxu0 %v708
  %1124 = vmatpush1.bf16.msra.mxu0 %v707
  %1125 = vmatprep.subr.bf16.mxu0 %v714
  %1126 = vmatpush1.bf16.msra.mxu0 %v713
  %1127 = vmatprep.subr.bf16.mxu0 %v720
  %1128 = vmatpush1.bf16.msra.mxu0 %v719
  %1129 = vmatprep.subr.bf16.mxu0 %v726
  %1130 = vmatpush1.bf16.msra.mxu0 %v725
  %1131 = vmatprep.subr.bf16.mxu0 %v732
  %1132 = vmatpush1.bf16.msra.mxu0 %v731
  %1133 = vmatprep.subr.bf16.mxu0 %v738
  %1134 = vmatpush1.bf16.msra.mxu0 %v737
  %1135 = vmatprep.mubr.bf16.mxu0 %v206
  %1136 = vmatmul.mubr.bf16.gmra.mrb[0].mxu0 %v205
  %v1137 = vpop.f32.mrb[0].mxu0
  %v1138 = vadd.f32 %v184, %v1137
  %v1139 = vpop.f32.mrb[0].mxu0
  %v1140 = vadd.f32 %v188, %v1139
  %v1141 = vpop.f32.mrb[0].mxu0
  %v1142 = vadd.f32 %v184, %v1141
  %v1143 = vpop.f32.mrb[0].mxu0
  %v1144 = vadd.f32 %v188, %v1143
  %1145 = vdwg.mxu0
  %1146 = vmatprep.subr.bf16.mxu0 %v744
  %1147 = vmatpush1.bf16.msra.mxu0 %v743
  %1148 = vmatprep.subr.bf16.mxu0 %v750
  %1149 = vmatpush1.bf16.msra.mxu0 %v749
  %1150 = vmatprep.subr.bf16.mxu0 %v756
  %1151 = vmatpush1.bf16.msra.mxu0 %v755
  %1152 = vmatprep.subr.bf16.mxu0 %v762
  %1153 = vmatpush1.bf16.msra.mxu0 %v761
  %1154 = vmatprep.subr.bf16.mxu0 %v768
  %1155 = vmatpush1.bf16.msra.mxu0 %v767
  %1156 = vmatprep.subr.bf16.mxu0 %v774
  %1157 = vmatpush1.bf16.msra.mxu0 %v773
  %1158 = vmatprep.subr.bf16.mxu0 %v780
  %1159 = vmatpush1.bf16.msra.mxu0 %v779
  %1160 = vmatprep.subr.bf16.mxu0 %v786
  %1161 = vmatpush1.bf16.msra.mxu0 %v785
  %1162 = vmatprep.subr.bf16.mxu0 0
  %1163 = vmatpush1.bf16.msra.mxu0 0
  %1164 = vmatprep.subr.bf16.mxu0 0
  %1165 = vmatpush1.bf16.msra.mxu0 0
  %1166 = vmatprep.subr.bf16.mxu0 0
  %1167 = vmatpush1.bf16.msra.mxu0 0
  %1168 = vmatprep.subr.bf16.mxu0 0
  %1169 = vmatpush1.bf16.msra.mxu0 0
  %1170 = vmatprep.subr.bf16.mxu0 0
  %1171 = vmatpush1.bf16.msra.mxu0 0
  %1172 = vmatprep.subr.bf16.mxu0 0
  %1173 = vmatpush1.bf16.msra.mxu0 0
  %1174 = vmatprep.subr.bf16.mxu0 0
  %1175 = vmatpush1.bf16.msra.mxu0 0
  %1176 = vmatprep.subr.bf16.mxu0 0
  %1177 = vmatpush1.bf16.msra.mxu0 0
  %1178 = vmatprep.mubr.bf16.mxu0 0
  %1179 = vmatmul.mubr.bf16.gmra.mrb[0].mxu0 %v207
  %v1180 = vpop.f32.mrb[0].mxu0
  %v1181 = vadd.f32 %v1138, %v1180
  %v1182 = vpop.f32.mrb[0].mxu0
  %v1183 = vadd.f32 %v1140, %v1182
  %v1184 = vpop.f32.mrb[0].mxu0
  %v1185 = vadd.f32 %v1142, %v1184
  %v1186 = vpop.f32.mrb[0].mxu0
  %v1187 = vadd.f32 %v1144, %v1186
  %1188 = vdwg.mxu0
  %1189 = vst [vmem:[%s3] sm:$0xff] %v1009
  %1190 = vst [vmem:[%s3 + $0x8] sm:$0xff] %v1011
  %1191 = vst [vmem:[%s3 + $0x10] sm:$0xff] %v1095
  %1192 = vst [vmem:[%s3 + $0x18] sm:$0xff] %v1097
  %1193 = vst [vmem:[%s3 + $0x20] sm:$0xff] %v1181
  %1194 = vst [vmem:[%s3 + $0x28] sm:$0xff] %v1183
  %1195 = vst [vmem:[%s3 + $0x30] sm:$0xff] %v1013
  %1196 = vst [vmem:[%s3 + $0x38] sm:$0xff] %v1015
  %1197 = vst [vmem:[%s3 + $0x40] sm:$0xff] %v1099
  %1198 = vst [vmem:[%s3 + $0x48] sm:$0xff] %v1101
  %1199 = vst [vmem:[%s3 + $0x50] sm:$0xff] %v1185
  %1200 = vst [vmem:[%s3 + $0x58] sm:$0xff] %v1187
  // Predicated region
  $region14: #{forward.15} parent=0 // pred_check
    _
  $region15: #{forward.15} parent=0 // pred_check_branch
    %1202 = sbr.rel (0) target = $region17
  $region16: #{forward.15} parent=0 // pred_region
    _
  $region17: #{forward.15} parent=0 // pred_fallthru
    _
  // Predicated region
  $region18: #{forward.15} parent=0 // pred_check
    _
  $region19: #{forward.15} parent=0 // pred_check_branch
    %1204 = sbr.rel (0) target = $region21
  $region20: #{forward.15} parent=0 // pred_region
    _
  $region21: #{forward.15} parent=0 // pred_fallthru
    _

// kernel: forward.12
$region0: #{forward.12}
  #allocation0 [shape = 'u32[]', space=smem, size = 0x4, offset = 0x4, fixed_abs, tag = 'smem constant byte address 0x4 - core index']
  #allocation1 [shape = 'u32[144,128]{1,0:T(1,128)}', space=vmem, size = 0x12000, scoped, tag = 'internal scratch']
  #allocation2 [shape = 'f32[2,128]{1,0:T(2,128)}', space=vmem, size = 0x400, scoped, tag = 'scratch operand']
  #allocation3 [shape = 'f32[2,128]{1,0:T(2,128)}', space=vmem, size = 0x400, scoped, tag = 'scratch operand']
  %s0 = inlined_call_operand.vmem [shape: f32[8,2,768], index: 0, kind: input, shape index: {}]
  %s1 = inlined_call_operand.vmem [shape: bf16[128,768], index: 1, kind: input, shape index: {}]
  %s2 = inlined_call_operand.vmem [shape: f32[1,768], index: 2, kind: input, shape index: {}]
  %s3 = inlined_call_operand.vmem [shape: f32[8,2,256], index: 3, kind: output, shape index: {}]
  %s4 = sld [smem:[#allocation0]]
  $region22: #{forward.12} parent=0
    _
  %s6 = ssub.s32 1, %s4
  %s7 = scalar_select 0, %s6, %s4
  // Predicated region
  $region2: #{forward.12} parent=0 // pred_check
    _
  $region3: #{forward.12} parent=0 // pred_check_branch
    %9 = sbr.rel (0) target = $region5
  $region4: #{forward.12} parent=0 // pred_region
    _
  $region5: #{forward.12} parent=0 // pred_fallthru
    _
  // Predicated region
  $region6: #{forward.12} parent=0 // pred_check
    _
  $region7: #{forward.12} parent=0 // pred_check_branch
    %11 = sbr.rel (0) target = $region9
  $region8: #{forward.12} parent=0 // pred_region
    _
  $region9: #{forward.12} parent=0 // pred_fallthru
    _
  // Predicated region
  $region10: #{forward.12} parent=0 // pred_check
    _
  $region11: #{forward.12} parent=0 // pred_check_branch
    %13 = sbr.rel (0) target = $region13
  $region12: #{forward.12} parent=0 // pred_region
    _
  $region13: #{forward.12} parent=0 // pred_fallthru
    _
  %15 = vst [vmem:[#allocation2] sm:$0x3] 0.0
  %16 = vst [vmem:[#allocation3] sm:$0x3] 0.0
  %v17 = vld [vmem:[#allocation2] sm:$0x3]
  %v18 = vpack.c.bf16 %v17, %v17
  %v19 = vld [vmem:[%s1] sm:$0xff]
  %v20 = vld [vmem:[%s1 + $0x8] sm:$0xf]
  %v21 = vld [vmem:[%s1 + $0x18] sm:$0xff]
  %v22 = vld [vmem:[%s1 + $0x20] sm:$0xf]
  %v23 = vld [vmem:[%s1 + $0x30] sm:$0xff]
  %v24 = vld [vmem:[%s1 + $0x38] sm:$0xf]
  %v25 = vld [vmem:[%s1 + $0x48] sm:$0xff]
  %v26 = vld [vmem:[%s1 + $0x50] sm:$0xf]
  %v27 = vld [vmem:[%s1 + $0x60] sm:$0xff]
  %v28 = vld [vmem:[%s1 + $0x68] sm:$0xf]
  %v29 = vld [vmem:[%s1 + $0x78] sm:$0xff]
  %v30 = vld [vmem:[%s1 + $0x80] sm:$0xf]
  %v31 = vld [vmem:[%s1 + $0x90] sm:$0xff]
  %v32 = vld [vmem:[%s1 + $0x98] sm:$0xf]
  %v33 = vld [vmem:[%s1 + $0xa8] sm:$0xff]
  %v34 = vld [vmem:[%s1 + $0xb0] sm:$0xf]
  %v35 = vld [vmem:[%s1 + $0xc0] sm:$0xff]
  %v36 = vld [vmem:[%s1 + $0xc8] sm:$0xf]
  %v37 = vld [vmem:[%s1 + $0xd8] sm:$0xff]
  %v38 = vld [vmem:[%s1 + $0xe0] sm:$0xf]
  %v39 = vld [vmem:[%s1 + $0xf0] sm:$0xff]
  %v40 = vld [vmem:[%s1 + $0xf8] sm:$0xf]
  %v41 = vld [vmem:[%s1 + $0x108] sm:$0xff]
  %v42 = vld [vmem:[%s1 + $0x110] sm:$0xf]
  %v43 = vld [vmem:[%s1 + $0x120] sm:$0xff]
  %v44 = vld [vmem:[%s1 + $0x128] sm:$0xf]
  %v45 = vld [vmem:[%s1 + $0x138] sm:$0xff]
  %v46 = vld [vmem:[%s1 + $0x140] sm:$0xf]
  %v47 = vld [vmem:[%s1 + $0x150] sm:$0xff]
  %v48 = vld [vmem:[%s1 + $0x158] sm:$0xf]
  %v49 = vld [vmem:[%s1 + $0x168] sm:$0xff]
  %v50 = vld [vmem:[%s1 + $0x170] sm:$0xf]
  %v51 = vld [vmem:[%s2] sm:$0x7]
  %v53 = vlaneseq
  %v54 = vshrl.u32 %v53, 7
  %v55 = vsub.s32 0, %v54
  %v56 = vrot.slane %v51, %v55
  %v57 = vlaneseq
  %v58 = vshrl.u32 %v57, 7
  %v59 = vsub.s32 1, %v58
  %v60 = vrot.slane %v51, %v59
  %v61 = vlaneseq
  %v62 = vshrl.u32 %v61, 7
  %v63 = vsub.s32 2, %v62
  %v64 = vrot.slane %v51, %v63
  %v100 = vunpack.c.l.b16 %v19
  %v101 = vunpack.c.h.b16 %v19
  %v102 = vunpack.c.l.b16 %v20
  %v103 = vunpack.c.l.b16 %v21
  %v104 = vunpack.c.h.b16 %v21
  %v105 = vunpack.c.l.b16 %v22
  %v106 = vunpack.c.l.b16 %v23
  %v107 = vunpack.c.h.b16 %v23
  %v108 = vunpack.c.l.b16 %v24
  %v109 = vunpack.c.l.b16 %v25
  %v110 = vunpack.c.h.b16 %v25
  %v111 = vunpack.c.l.b16 %v26
  %v112 = vunpack.c.l.b16 %v27
  %v113 = vunpack.c.h.b16 %v27
  %v114 = vunpack.c.l.b16 %v28
  %v115 = vunpack.c.l.b16 %v29
  %v116 = vunpack.c.h.b16 %v29
  %v117 = vunpack.c.l.b16 %v30
  %v118 = vunpack.c.l.b16 %v31
  %v119 = vunpack.c.h.b16 %v31
  %v120 = vunpack.c.l.b16 %v32
  %v121 = vunpack.c.l.b16 %v33
  %v122 = vunpack.c.h.b16 %v33
  %v123 = vunpack.c.l.b16 %v34
  %v124 = vunpack.c.l.b16 %v35
  %v125 = vunpack.c.h.b16 %v35
  %v126 = vunpack.c.l.b16 %v36
  %v127 = vunpack.c.l.b16 %v37
  %v128 = vunpack.c.h.b16 %v37
  %v129 = vunpack.c.l.b16 %v38
  %v130 = vunpack.c.l.b16 %v39
  %v131 = vunpack.c.h.b16 %v39
  %v132 = vunpack.c.l.b16 %v40
  %v133 = vunpack.c.l.b16 %v41
  %v134 = vunpack.c.h.b16 %v41
  %v135 = vunpack.c.l.b16 %v42
  %v136 = vunpack.c.l.b16 %v43
  %v137 = vunpack.c.h.b16 %v43
  %v138 = vunpack.c.l.b16 %v44
  %v139 = vunpack.c.l.b16 %v45
  %v140 = vunpack.c.h.b16 %v45
  %v141 = vunpack.c.l.b16 %v46
  %v142 = vunpack.c.l.b16 %v47
  %v143 = vunpack.c.h.b16 %v47
  %v144 = vunpack.c.l.b16 %v48
  %v145 = vunpack.c.l.b16 %v49
  %v146 = vunpack.c.h.b16 %v49
  %v147 = vunpack.c.l.b16 %v50
  %v148 = vpack.c.b16 %v103, %v100
  %v149 = vpack.c.b16 %v104, %v101
  %v150 = vpack.c.b16 %v105, %v102
  %v151 = vpack.c.b16 %v109, %v106
  %v152 = vpack.c.b16 %v110, %v107
  %v153 = vpack.c.b16 %v111, %v108
  %v154 = vpack.c.b16 %v115, %v112
  %v155 = vpack.c.b16 %v116, %v113
  %v156 = vpack.c.b16 %v117, %v114
  %v157 = vpack.c.b16 %v121, %v118
  %v158 = vpack.c.b16 %v122, %v119
  %v159 = vpack.c.b16 %v123, %v120
  %v160 = vpack.c.b16 %v127, %v124
  %v161 = vpack.c.b16 %v128, %v125
  %v162 = vpack.c.b16 %v129, %v126
  %v163 = vpack.c.b16 %v133, %v130
  %v164 = vpack.c.b16 %v134, %v131
  %v165 = vpack.c.b16 %v135, %v132
  %v166 = vpack.c.b16 %v139, %v136
  %v167 = vpack.c.b16 %v140, %v137
  %v168 = vpack.c.b16 %v141, %v138
  %v169 = vpack.c.b16 %v145, %v142
  %v170 = vpack.c.b16 %v146, %v143
  %v171 = vpack.c.b16 %v147, %v144
  %196 = vmatprep.subr.bf16.mxu0 %v149
  %197 = vmatpush1.bf16.msra.mxu0 %v148
  %198 = vmatprep.subr.bf16.mxu0 %v152
  %199 = vmatpush1.bf16.msra.mxu0 %v151
  %200 = vmatprep.subr.bf16.mxu0 %v155
  %201 = vmatpush1.bf16.msra.mxu0 %v154
  %202 = vmatprep.subr.bf16.mxu0 %v158
  %203 = vmatpush1.bf16.msra.mxu0 %v157
  %204 = vmatprep.subr.bf16.mxu0 %v161
  %205 = vmatpush1.bf16.msra.mxu0 %v160
  %206 = vmatprep.subr.bf16.mxu0 %v164
  %207 = vmatpush1.bf16.msra.mxu0 %v163
  %208 = vmatprep.subr.bf16.mxu0 %v167
  %209 = vmatpush1.bf16.msra.mxu0 %v166
  %210 = vmatprep.subr.bf16.mxu0 %v170
  %211 = vmatpush1.bf16.msra.mxu0 %v169
  %212 = vmatprep.subr.bf16.mxu0 0
  %213 = vmatpush1.bf16.msra.mxu0 0
  %214 = vmatprep.subr.bf16.mxu0 0
  %215 = vmatpush1.bf16.msra.mxu0 0
  %216 = vmatprep.subr.bf16.mxu0 0
  %217 = vmatpush1.bf16.msra.mxu0 0
  %218 = vmatprep.subr.bf16.mxu0 0
  %219 = vmatpush1.bf16.msra.mxu0 0
  %220 = vmatprep.subr.bf16.mxu0 0
  %221 = vmatpush1.bf16.msra.mxu0 0
  %222 = vmatprep.subr.bf16.mxu0 0
  %223 = vmatpush1.bf16.msra.mxu0 0
  %224 = vmatprep.subr.bf16.mxu0 0
  %225 = vmatpush1.bf16.msra.mxu0 0
  %226 = vmatprep.subr.bf16.mxu0 0
  %227 = vmatpush1.bf16.msra.mxu0 0
  %228 = vmatprep.mubr.bf16.mxu0 0
  %229 = vmatmul.mubr.bf16.gmra.mrb[0].mxu0 %v18
  %v230 = vpop.f32.mrb[0].mxu0
  %v231 = vadd.f32 %v56, %v230
  %v232 = vpop.f32.mrb[0].mxu0
  %v233 = vadd.f32 %v60, %v232
  %v234 = vpop.f32.mrb[0].mxu0
  %v235 = vpop.f32.mrb[0].mxu0
  %236 = vdwg.mxu0
  %237 = vmatprep.subr.bf16.mxu0 0
  %238 = vmatpush1.bf16.msra.mxu0 %v150
  %239 = vmatprep.subr.bf16.mxu0 0
  %240 = vmatpush1.bf16.msra.mxu0 %v153
  %241 = vmatprep.subr.bf16.mxu0 0
  %242 = vmatpush1.bf16.msra.mxu0 %v156
  %243 = vmatprep.subr.bf16.mxu0 0
  %244 = vmatpush1.bf16.msra.mxu0 %v159
  %245 = vmatprep.subr.bf16.mxu0 0
  %246 = vmatpush1.bf16.msra.mxu0 %v162
  %247 = vmatprep.subr.bf16.mxu0 0
  %248 = vmatpush1.bf16.msra.mxu0 %v165
  %249 = vmatprep.subr.bf16.mxu0 0
  %250 = vmatpush1.bf16.msra.mxu0 %v168
  %251 = vmatprep.subr.bf16.mxu0 0
  %252 = vmatpush1.bf16.msra.mxu0 %v171
  %253 = vmatprep.subr.bf16.mxu0 0
  %254 = vmatpush1.bf16.msra.mxu0 0
  %255 = vmatprep.subr.bf16.mxu0 0
  %256 = vmatpush1.bf16.msra.mxu0 0
  %257 = vmatprep.subr.bf16.mxu0 0
  %258 = vmatpush1.bf16.msra.mxu0 0
  %259 = vmatprep.subr.bf16.mxu0 0
  %260 = vmatpush1.bf16.msra.mxu0 0
  %261 = vmatprep.subr.bf16.mxu0 0
  %262 = vmatpush1.bf16.msra.mxu0 0
  %263 = vmatprep.subr.bf16.mxu0 0
  %264 = vmatpush1.bf16.msra.mxu0 0
  %265 = vmatprep.subr.bf16.mxu0 0
  %266 = vmatpush1.bf16.msra.mxu0 0
  %267 = vmatprep.subr.bf16.mxu0 0
  %268 = vmatpush1.bf16.msra.mxu0 0
  %269 = vmatprep.mubr.bf16.mxu0 0
  %270 = vmatmul.mubr.bf16.gmra.mrb[0].mxu0 %v18
  %v271 = vpop.f32.mrb[0].mxu0
  %v272 = vadd.f32 %v64, %v271
  %v273 = vpop.f32.mrb[0].mxu0
  %v274 = vpop.f32.mrb[0].mxu0
  %v275 = vpop.f32.mrb[0].mxu0
  %276 = vdwg.mxu0
  %v277 = vld [vmem:[%s0] sm:$0x3f]
  %v278 = vadd.f32 %v277, %v231
  %v279 = vsub.f32 0.0, %v278
  %v280 = vmul.f32 %v279, 1.442695
  %v281 = vpow.pop %v280
  %v282 = vadd.f32 %v281, 1.0
  %v283 = vrcp.pop %v282
  %v284 = vmul.f32 1.0, %v283
  %v286 = vrot.slane %v277, 2
  %v288 = vadd.f32 %v286, %v233
  %v289 = vsub.f32 0.0, %v288
  %v290 = vmul.f32 %v289, 1.442695
  %v291 = vpow.pop %v290
  %v292 = vadd.f32 %v291, 1.0
  %v293 = vrcp.pop %v292
  %v294 = vmul.f32 1.0, %v293
  %v295 = vmul.f32 %v284, %v272
  %v296 = vrot.slane %v277, 4
  %v298 = vadd.f32 %v296, %v295
  %v299 = vtanh.pop %v298
  %v300 = vsub.f32 1.0, %v294
  %v301 = vmul.f32 %v300, %v299
  %v302 = vmul.f32 %v294, %v17
  %v303 = vadd.f32 %v301, %v302
  %304 = vst [vmem:[#allocation2] sm:$0x3] %v303
  %305 = vst [vmem:[%s3] sm:$0x3] %v303
  %v306 = vld [vmem:[#allocation3] sm:$0x3]
  %v307 = vpack.c.bf16 %v306, %v306
  %v308 = vld [vmem:[%s1 + $0xc] sm:$0xff]
  %v309 = vld [vmem:[%s1 + $0x14] sm:$0xf]
  %v310 = vld [vmem:[%s1 + $0x24] sm:$0xff]
  %v311 = vld [vmem:[%s1 + $0x2c] sm:$0xf]
  %v312 = vld [vmem:[%s1 + $0x3c] sm:$0xff]
  %v313 = vld [vmem:[%s1 + $0x44] sm:$0xf]
  %v314 = vld [vmem:[%s1 + $0x54] sm:$0xff]
  %v315 = vld [vmem:[%s1 + $0x5c] sm:$0xf]
  %v316 = vld [vmem:[%s1 + $0x6c] sm:$0xff]
  %v317 = vld [vmem:[%s1 + $0x74] sm:$0xf]
  %v318 = vld [vmem:[%s1 + $0x84] sm:$0xff]
  %v319 = vld [vmem:[%s1 + $0x8c] sm:$0xf]
  %v320 = vld [vmem:[%s1 + $0x9c] sm:$0xff]
  %v321 = vld [vmem:[%s1 + $0xa4] sm:$0xf]
  %v322 = vld [vmem:[%s1 + $0xb4] sm:$0xff]
  %v323 = vld [vmem:[%s1 + $0xbc] sm:$0xf]
  %v324 = vld [vmem:[%s1 + $0xcc] sm:$0xff]
  %v325 = vld [vmem:[%s1 + $0xd4] sm:$0xf]
  %v326 = vld [vmem:[%s1 + $0xe4] sm:$0xff]
  %v327 = vld [vmem:[%s1 + $0xec] sm:$0xf]
  %v328 = vld [vmem:[%s1 + $0xfc] sm:$0xff]
  %v329 = vld [vmem:[%s1 + $0x104] sm:$0xf]
  %v330 = vld [vmem:[%s1 + $0x114] sm:$0xff]
  %v331 = vld [vmem:[%s1 + $0x11c] sm:$0xf]
  %v332 = vld [vmem:[%s1 + $0x12c] sm:$0xff]
  %v333 = vld [vmem:[%s1 + $0x134] sm:$0xf]
  %v334 = vld [vmem:[%s1 + $0x144] sm:$0xff]
  %v335 = vld [vmem:[%s1 + $0x14c] sm:$0xf]
  %v336 = vld [vmem:[%s1 + $0x15c] sm:$0xff]
  %v337 = vld [vmem:[%s1 + $0x164] sm:$0xf]
  %v338 = vld [vmem:[%s1 + $0x174] sm:$0xff]
  %v339 = vld [vmem:[%s1 + $0x17c] sm:$0xf]
  %v340 = vld [vmem:[%s2 + $0x3] sm:$0x7]
  %v342 = vlaneseq
  %v343 = vshrl.u32 %v342, 7
  %v344 = vsub.s32 0, %v343
  %v345 = vrot.slane %v340, %v344
  %v346 = vlaneseq
  %v347 = vshrl.u32 %v346, 7
  %v348 = vsub.s32 1, %v347
  %v349 = vrot.slane %v340, %v348
  %v350 = vlaneseq
  %v351 = vshrl.u32 %v350, 7
  %v352 = vsub.s32 2, %v351
  %v353 = vrot.slane %v340, %v352
  %v389 = vunpack.c.l.b16 %v308
  %v390 = vunpack.c.h.b16 %v308
  %v391 = vunpack.c.l.b16 %v309
  %v392 = vunpack.c.l.b16 %v310
  %v393 = vunpack.c.h.b16 %v310
  %v394 = vunpack.c.l.b16 %v311
  %v395 = vunpack.c.l.b16 %v312
  %v396 = vunpack.c.h.b16 %v312
  %v397 = vunpack.c.l.b16 %v313
  %v398 = vunpack.c.l.b16 %v314
  %v399 = vunpack.c.h.b16 %v314
  %v400 = vunpack.c.l.b16 %v315
  %v401 = vunpack.c.l.b16 %v316
  %v402 = vunpack.c.h.b16 %v316
  %v403 = vunpack.c.l.b16 %v317
  %v404 = vunpack.c.l.b16 %v318
  %v405 = vunpack.c.h.b16 %v318
  %v406 = vunpack.c.l.b16 %v319
  %v407 = vunpack.c.l.b16 %v320
  %v408 = vunpack.c.h.b16 %v320
  %v409 = vunpack.c.l.b16 %v321
  %v410 = vunpack.c.l.b16 %v322
  %v411 = vunpack.c.h.b16 %v322
  %v412 = vunpack.c.l.b16 %v323
  %v413 = vunpack.c.l.b16 %v324
  %v414 = vunpack.c.h.b16 %v324
  %v415 = vunpack.c.l.b16 %v325
  %v416 = vunpack.c.l.b16 %v326
  %v417 = vunpack.c.h.b16 %v326
  %v418 = vunpack.c.l.b16 %v327
  %v419 = vunpack.c.l.b16 %v328
  %v420 = vunpack.c.h.b16 %v328
  %v421 = vunpack.c.l.b16 %v329
  %v422 = vunpack.c.l.b16 %v330
  %v423 = vunpack.c.h.b16 %v330
  %v424 = vunpack.c.l.b16 %v331
  %v425 = vunpack.c.l.b16 %v332
  %v426 = vunpack.c.h.b16 %v332
  %v427 = vunpack.c.l.b16 %v333
  %v428 = vunpack.c.l.b16 %v334
  %v429 = vunpack.c.h.b16 %v334
  %v430 = vunpack.c.l.b16 %v335
  %v431 = vunpack.c.l.b16 %v336
  %v432 = vunpack.c.h.b16 %v336
  %v433 = vunpack.c.l.b16 %v337
  %v434 = vunpack.c.l.b16 %v338
  %v435 = vunpack.c.h.b16 %v338
  %v436 = vunpack.c.l.b16 %v339
  %v437 = vpack.c.b16 %v392, %v389
  %v438 = vpack.c.b16 %v393, %v390
  %v439 = vpack.c.b16 %v394, %v391
  %v440 = vpack.c.b16 %v398, %v395
  %v441 = vpack.c.b16 %v399, %v396
  %v442 = vpack.c.b16 %v400, %v397
  %v443 = vpack.c.b16 %v404, %v401
  %v444 = vpack.c.b16 %v405, %v402
  %v445 = vpack.c.b16 %v406, %v403
  %v446 = vpack.c.b16 %v410, %v407
  %v447 = vpack.c.b16 %v411, %v408
  %v448 = vpack.c.b16 %v412, %v409
  %v449 = vpack.c.b16 %v416, %v413
  %v450 = vpack.c.b16 %v417, %v414
  %v451 = vpack.c.b16 %v418, %v415
  %v452 = vpack.c.b16 %v422, %v419
  %v453 = vpack.c.b16 %v423, %v420
  %v454 = vpack.c.b16 %v424, %v421
  %v455 = vpack.c.b16 %v428, %v425
  %v456 = vpack.c.b16 %v429, %v426
  %v457 = vpack.c.b16 %v430, %v427
  %v458 = vpack.c.b16 %v434, %v431
  %v459 = vpack.c.b16 %v435, %v432
  %v460 = vpack.c.b16 %v436, %v433
  %485 = vmatprep.subr.bf16.mxu0 %v438
  %486 = vmatpush1.bf16.msra.mxu0 %v437
  %487 = vmatprep.subr.bf16.mxu0 %v441
  %488 = vmatpush1.bf16.msra.mxu0 %v440
  %489 = vmatprep.subr.bf16.mxu0 %v444
  %490 = vmatpush1.bf16.msra.mxu0 %v443
  %491 = vmatprep.subr.bf16.mxu0 %v447
  %492 = vmatpush1.bf16.msra.mxu0 %v446
  %493 = vmatprep.subr.bf16.mxu0 %v450
  %494 = vmatpush1.bf16.msra.mxu0 %v449
  %495 = vmatprep.subr.bf16.mxu0 %v453
  %496 = vmatpush1.bf16.msra.mxu0 %v452
  %497 = vmatprep.subr.bf16.mxu0 %v456
  %498 = vmatpush1.bf16.msra.mxu0 %v455
  %499 = vmatprep.subr.bf16.mxu0 %v459
  %500 = vmatpush1.bf16.msra.mxu0 %v458
  %501 = vmatprep.subr.bf16.mxu0 0
  %502 = vmatpush1.bf16.msra.mxu0 0
  %503 = vmatprep.subr.bf16.mxu0 0
  %504 = vmatpush1.bf16.msra.mxu0 0
  %505 = vmatprep.subr.bf16.mxu0 0
  %506 = vmatpush1.bf16.msra.mxu0 0
  %507 = vmatprep.subr.bf16.mxu0 0
  %508 = vmatpush1.bf16.msra.mxu0 0
  %509 = vmatprep.subr.bf16.mxu0 0
  %510 = vmatpush1.bf16.msra.mxu0 0
  %511 = vmatprep.subr.bf16.mxu0 0
  %512 = vmatpush1.bf16.msra.mxu0 0
  %513 = vmatprep.subr.bf16.mxu0 0
  %514 = vmatpush1.bf16.msra.mxu0 0
  %515 = vmatprep.subr.bf16.mxu0 0
  %516 = vmatpush1.bf16.msra.mxu0 0
  %517 = vmatprep.mubr.bf16.mxu0 0
  %518 = vmatmul.mubr.bf16.gmra.mrb[0].mxu0 %v307
  %v519 = vpop.f32.mrb[0].mxu0
  %v520 = vadd.f32 %v345, %v519
  %v521 = vpop.f32.mrb[0].mxu0
  %v522 = vadd.f32 %v349, %v521
  %v523 = vpop.f32.mrb[0].mxu0
  %v524 = vpop.f32.mrb[0].mxu0
  %525 = vdwg.mxu0
  %526 = vmatprep.subr.bf16.mxu0 0
  %527 = vmatpush1.bf16.msra.mxu0 %v439
  %528 = vmatprep.subr.bf16.mxu0 0
  %529 = vmatpush1.bf16.msra.mxu0 %v442
  %530 = vmatprep.subr.bf16.mxu0 0
  %531 = vmatpush1.bf16.msra.mxu0 %v445
  %532 = vmatprep.subr.bf16.mxu0 0
  %533 = vmatpush1.bf16.msra.mxu0 %v448
  %534 = vmatprep.subr.bf16.mxu0 0
  %535 = vmatpush1.bf16.msra.mxu0 %v451
  %536 = vmatprep.subr.bf16.mxu0 0
  %537 = vmatpush1.bf16.msra.mxu0 %v454
  %538 = vmatprep.subr.bf16.mxu0 0
  %539 = vmatpush1.bf16.msra.mxu0 %v457
  %540 = vmatprep.subr.bf16.mxu0 0
  %541 = vmatpush1.bf16.msra.mxu0 %v460
  %542 = vmatprep.subr.bf16.mxu0 0
  %543 = vmatpush1.bf16.msra.mxu0 0
  %544 = vmatprep.subr.bf16.mxu0 0
  %545 = vmatpush1.bf16.msra.mxu0 0
  %546 = vmatprep.subr.bf16.mxu0 0
  %547 = vmatpush1.bf16.msra.mxu0 0
  %548 = vmatprep.subr.bf16.mxu0 0
  %549 = vmatpush1.bf16.msra.mxu0 0
  %550 = vmatprep.subr.bf16.mxu0 0
  %551 = vmatpush1.bf16.msra.mxu0 0
  %552 = vmatprep.subr.bf16.mxu0 0
  %553 = vmatpush1.bf16.msra.mxu0 0
  %554 = vmatprep.subr.bf16.mxu0 0
  %555 = vmatpush1.bf16.msra.mxu0 0
  %556 = vmatprep.subr.bf16.mxu0 0
  %557 = vmatpush1.bf16.msra.mxu0 0
  %558 = vmatprep.mubr.bf16.mxu0 0
  %559 = vmatmul.mubr.bf16.gmra.mrb[0].mxu0 %v307
  %v560 = vpop.f32.mrb[0].mxu0
  %v561 = vadd.f32 %v353, %v560
  %v562 = vpop.f32.mrb[0].mxu0
  %v563 = vpop.f32.mrb[0].mxu0
  %v564 = vpop.f32.mrb[0].mxu0
  %565 = vdwg.mxu0
  %s566 = scalar_lea.vmem %s0, 84
  %v567 = vld [vmem:[%s566 + $0x6] sm:$0x3f]
  %v568 = vadd.f32 %v567, %v520
  %v569 = vsub.f32 0.0, %v568
  %v570 = vmul.f32 %v569, 1.442695
  %v571 = vpow.pop %v570
  %v572 = vadd.f32 %v571, 1.0
  %v573 = vrcp.pop %v572
  %v574 = vmul.f32 1.0, %v573
  %v576 = vrot.slane %v567, 2
  %v578 = vadd.f32 %v576, %v522
  %v579 = vsub.f32 0.0, %v578
  %v580 = vmul.f32 %v579, 1.442695
  %v581 = vpow.pop %v580
  %v582 = vadd.f32 %v581, 1.0
  %v583 = vrcp.pop %v582
  %v584 = vmul.f32 1.0, %v583
  %v585 = vmul.f32 %v574, %v561
  %v586 = vrot.slane %v567, 4
  %v588 = vadd.f32 %v586, %v585
  %v589 = vtanh.pop %v588
  %v590 = vsub.f32 1.0, %v584
  %v591 = vmul.f32 %v590, %v589
  %v592 = vmul.f32 %v584, %v306
  %v593 = vadd.f32 %v591, %v592
  %594 = vst [vmem:[#allocation3] sm:$0x3] %v593
  %s595 = scalar_lea.vmem %s3, 28
  %596 = vst [vmem:[%s595 + $0x2] sm:$0x3] %v593
  %v597 = vld [vmem:[#allocation2] sm:$0x3]
  %v598 = vpack.c.bf16 %v597, %v597
  %v599 = vld [vmem:[%s1] sm:$0xff]
  %v600 = vld [vmem:[%s1 + $0x8] sm:$0xf]
  %v601 = vld [vmem:[%s1 + $0x18] sm:$0xff]
  %v602 = vld [vmem:[%s1 + $0x20] sm:$0xf]
  %v603 = vld [vmem:[%s1 + $0x30] sm:$0xff]
  %v604 = vld [vmem:[%s1 + $0x38] sm:$0xf]
  %v605 = vld [vmem:[%s1 + $0x48] sm:$0xff]
  %v606 = vld [vmem:[%s1 + $0x50] sm:$0xf]
  %v607 = vld [vmem:[%s1 + $0x60] sm:$0xff]
  %v608 = vld [vmem:[%s1 + $0x68] sm:$0xf]
  %v609 = vld [vmem:[%s1 + $0x78] sm:$0xff]
  %v610 = vld [vmem:[%s1 + $0x80] sm:$0xf]
  %v611 = vld [vmem:[%s1 + $0x90] sm:$0xff]
  %v612 = vld [vmem:[%s1 + $0x98] sm:$0xf]
  %v613 = vld [vmem:[%s1 + $0xa8] sm:$0xff]
  %v614 = vld [vmem:[%s1 + $0xb0] sm:$0xf]
  %v615 = vld [vmem:[%s1 + $0xc0] sm:$0xff]
  %v616 = vld [vmem:[%s1 + $0xc8] sm:$0xf]
  %v617 = vld [vmem:[%s1 + $0xd8] sm:$0xff]
  %v618 = vld [vmem:[%s1 + $0xe0] sm:$0xf]
  %v619 = vld [vmem:[%s1 + $0xf0] sm:$0xff]
  %v620 = vld [vmem:[%s1 + $0xf8] sm:$0xf]
  %v621 = vld [vmem:[%s1 + $0x108] sm:$0xff]
  %v622 = vld [vmem:[%s1 + $0x110] sm:$0xf]
  %v623 = vld [vmem:[%s1 + $0x120] sm:$0xff]
  %v624 = vld [vmem:[%s1 + $0x128] sm:$0xf]
  %v625 = vld [vmem:[%s1 + $0x138] sm:$0xff]
  %v626 = vld [vmem:[%s1 + $0x140] sm:$0xf]
  %v627 = vld [vmem:[%s1 + $0x150] sm:$0xff]
  %v628 = vld [vmem:[%s1 + $0x158] sm:$0xf]
  %v629 = vld [vmem:[%s1 + $0x168] sm:$0xff]
  %v630 = vld [vmem:[%s1 + $0x170] sm:$0xf]
  %v631 = vld [vmem:[%s2] sm:$0x7]
  %v633 = vlaneseq
  %v634 = vshrl.u32 %v633, 7
  %v635 = vsub.s32 0, %v634
  %v636 = vrot.slane %v631, %v635
  %v637 = vlaneseq
  %v638 = vshrl.u32 %v637, 7
  %v639 = vsub.s32 1, %v638
  %v640 = vrot.slane %v631, %v639
  %v641 = vlaneseq
  %v642 = vshrl.u32 %v641, 7
  %v643 = vsub.s32 2, %v642
  %v644 = vrot.slane %v631, %v643
  %v680 = vunpack.c.l.b16 %v599
  %v681 = vunpack.c.h.b16 %v599
  %v682 = vunpack.c.l.b16 %v600
  %v683 = vunpack.c.l.b16 %v601
  %v684 = vunpack.c.h.b16 %v601
  %v685 = vunpack.c.l.b16 %v602
  %v686 = vunpack.c.l.b16 %v603
  %v687 = vunpack.c.h.b16 %v603
  %v688 = vunpack.c.l.b16 %v604
  %v689 = vunpack.c.l.b16 %v605
  %v690 = vunpack.c.h.b16 %v605
  %v691 = vunpack.c.l.b16 %v606
  %v692 = vunpack.c.l.b16 %v607
  %v693 = vunpack.c.h.b16 %v607
  %v694 = vunpack.c.l.b16 %v608
  %v695 = vunpack.c.l.b16 %v609
  %v696 = vunpack.c.h.b16 %v609
  %v697 = vunpack.c.l.b16 %v610
  %v698 = vunpack.c.l.b16 %v611
  %v699 = vunpack.c.h.b16 %v611
  %v700 = vunpack.c.l.b16 %v612
  %v701 = vunpack.c.l.b16 %v613
  %v702 = vunpack.c.h.b16 %v613
  %v703 = vunpack.c.l.b16 %v614
  %v704 = vunpack.c.l.b16 %v615
  %v705 = vunpack.c.h.b16 %v615
  %v706 = vunpack.c.l.b16 %v616
  %v707 = vunpack.c.l.b16 %v617
  %v708 = vunpack.c.h.b16 %v617
  %v709 = vunpack.c.l.b16 %v618
  %v710 = vunpack.c.l.b16 %v619
  %v711 = vunpack.c.h.b16 %v619
  %v712 = vunpack.c.l.b16 %v620
  %v713 = vunpack.c.l.b16 %v621
  %v714 = vunpack.c.h.b16 %v621
  %v715 = vunpack.c.l.b16 %v622
  %v716 = vunpack.c.l.b16 %v623
  %v717 = vunpack.c.h.b16 %v623
  %v718 = vunpack.c.l.b16 %v624
  %v719 = vunpack.c.l.b16 %v625
  %v720 = vunpack.c.h.b16 %v625
  %v721 = vunpack.c.l.b16 %v626
  %v722 = vunpack.c.l.b16 %v627
  %v723 = vunpack.c.h.b16 %v627
  %v724 = vunpack.c.l.b16 %v628
  %v725 = vunpack.c.l.b16 %v629
  %v726 = vunpack.c.h.b16 %v629
  %v727 = vunpack.c.l.b16 %v630
  %v728 = vpack.c.b16 %v683, %v680
  %v729 = vpack.c.b16 %v684, %v681
  %v730 = vpack.c.b16 %v685, %v682
  %v731 = vpack.c.b16 %v689, %v686
  %v732 = vpack.c.b16 %v690, %v687
  %v733 = vpack.c.b16 %v691, %v688
  %v734 = vpack.c.b16 %v695, %v692
  %v735 = vpack.c.b16 %v696, %v693
  %v736 = vpack.c.b16 %v697, %v694
  %v737 = vpack.c.b16 %v701, %v698
  %v738 = vpack.c.b16 %v702, %v699
  %v739 = vpack.c.b16 %v703, %v700
  %v740 = vpack.c.b16 %v707, %v704
  %v741 = vpack.c.b16 %v708, %v705
  %v742 = vpack.c.b16 %v709, %v706
  %v743 = vpack.c.b16 %v713, %v710
  %v744 = vpack.c.b16 %v714, %v711
  %v745 = vpack.c.b16 %v715, %v712
  %v746 = vpack.c.b16 %v719, %v716
  %v747 = vpack.c.b16 %v720, %v717
  %v748 = vpack.c.b16 %v721, %v718
  %v749 = vpack.c.b16 %v725, %v722
  %v750 = vpack.c.b16 %v726, %v723
  %v751 = vpack.c.b16 %v727, %v724
  %776 = vmatprep.subr.bf16.mxu0 %v729
  %777 = vmatpush1.bf16.msra.mxu0 %v728
  %778 = vmatprep.subr.bf16.mxu0 %v732
  %779 = vmatpush1.bf16.msra.mxu0 %v731
  %780 = vmatprep.subr.bf16.mxu0 %v735
  %781 = vmatpush1.bf16.msra.mxu0 %v734
  %782 = vmatprep.subr.bf16.mxu0 %v738
  %783 = vmatpush1.bf16.msra.mxu0 %v737
  %784 = vmatprep.subr.bf16.mxu0 %v741
  %785 = vmatpush1.bf16.msra.mxu0 %v740
  %786 = vmatprep.subr.bf16.mxu0 %v744
  %787 = vmatpush1.bf16.msra.mxu0 %v743
  %788 = vmatprep.subr.bf16.mxu0 %v747
  %789 = vmatpush1.bf16.msra.mxu0 %v746
  %790 = vmatprep.subr.bf16.mxu0 %v750
  %791 = vmatpush1.bf16.msra.mxu0 %v749
  %792 = vmatprep.subr.bf16.mxu0 0
  %793 = vmatpush1.bf16.msra.mxu0 0
  %794 = vmatprep.subr.bf16.mxu0 0
  %795 = vmatpush1.bf16.msra.mxu0 0
  %796 = vmatprep.subr.bf16.mxu0 0
  %797 = vmatpush1.bf16.msra.mxu0 0
  %798 = vmatprep.subr.bf16.mxu0 0
  %799 = vmatpush1.bf16.msra.mxu0 0
  %800 = vmatprep.subr.bf16.mxu0 0
  %801 = vmatpush1.bf16.msra.mxu0 0
  %802 = vmatprep.subr.bf16.mxu0 0
  %803 = vmatpush1.bf16.msra.mxu0 0
  %804 = vmatprep.subr.bf16.mxu0 0
  %805 = vmatpush1.bf16.msra.mxu0 0
  %806 = vmatprep.subr.bf16.mxu0 0
  %807 = vmatpush1.bf16.msra.mxu0 0
  %808 = vmatprep.mubr.bf16.mxu0 0
  %809 = vmatmul.mubr.bf16.gmra.mrb[0].mxu0 %v598
  %v810 = vpop.f32.mrb[0].mxu0
  %v811 = vadd.f32 %v636, %v810
  %v812 = vpop.f32.mrb[0].mxu0
  %v813 = vadd.f32 %v640, %v812
  %v814 = vpop.f32.mrb[0].mxu0
  %v815 = vpop.f32.mrb[0].mxu0
  %816 = vdwg.mxu0
  %817 = vmatprep.subr.bf16.mxu0 0
  %818 = vmatpush1.bf16.msra.mxu0 %v730
  %819 = vmatprep.subr.bf16.mxu0 0
  %820 = vmatpush1.bf16.msra.mxu0 %v733
  %821 = vmatprep.subr.bf16.mxu0 0
  %822 = vmatpush1.bf16.msra.mxu0 %v736
  %823 = vmatprep.subr.bf16.mxu0 0
  %824 = vmatpush1.bf16.msra.mxu0 %v739
  %825 = vmatprep.subr.bf16.mxu0 0
  %826 = vmatpush1.bf16.msra.mxu0 %v742
  %827 = vmatprep.subr.bf16.mxu0 0
  %828 = vmatpush1.bf16.msra.mxu0 %v745
  %829 = vmatprep.subr.bf16.mxu0 0
  %830 = vmatpush1.bf16.msra.mxu0 %v748
  %831 = vmatprep.subr.bf16.mxu0 0
  %832 = vmatpush1.bf16.msra.mxu0 %v751
  %833 = vmatprep.subr.bf16.mxu0 0
  %834 = vmatpush1.bf16.msra.mxu0 0
  %835 = vmatprep.subr.bf16.mxu0 0
  %836 = vmatpush1.bf16.msra.mxu0 0
  %837 = vmatprep.subr.bf16.mxu0 0
  %838 = vmatpush1.bf16.msra.mxu0 0
  %839 = vmatprep.subr.bf16.mxu0 0
  %840 = vmatpush1.bf16.msra.mxu0 0
  %841 = vmatprep.subr.bf16.mxu0 0
  %842 = vmatpush1.bf16.msra.mxu0 0
  %843 = vmatprep.subr.bf16.mxu0 0
  %844 = vmatpush1.bf16.msra.mxu0 0
  %845 = vmatprep.subr.bf16.mxu0 0
  %846 = vmatpush1.bf16.msra.mxu0 0
  %847 = vmatprep.subr.bf16.mxu0 0
  %848 = vmatpush1.bf16.msra.mxu0 0
  %849 = vmatprep.mubr.bf16.mxu0 0
  %850 = vmatmul.mubr.bf16.gmra.mrb[0].mxu0 %v598
  %v851 = vpop.f32.mrb[0].mxu0
  %v852 = vadd.f32 %v644, %v851
  %v853 = vpop.f32.mrb[0].mxu0
  %v854 = vpop.f32.mrb[0].mxu0
  %v855 = vpop.f32.mrb[0].mxu0
  %856 = vdwg.mxu0
  %s857 = scalar_lea.vmem %s0, 12
  %v858 = vld [vmem:[%s857] sm:$0x3f]
  %v859 = vadd.f32 %v858, %v811
  %v860 = vsub.f32 0.0, %v859
  %v861 = vmul.f32 %v860, 1.442695
  %v862 = vpow.pop %v861
  %v863 = vadd.f32 %v862, 1.0
  %v864 = vrcp.pop %v863
  %v865 = vmul.f32 1.0, %v864
  %v867 = vrot.slane %v858, 2
  %v869 = vadd.f32 %v867, %v813
  %v870 = vsub.f32 0.0, %v869
  %v871 = vmul.f32 %v870, 1.442695
  %v872 = vpow.pop %v871
  %v873 = vadd.f32 %v872, 1.0
  %v874 = vrcp.pop %v873
  %v875 = vmul.f32 1.0, %v874
  %v876 = vmul.f32 %v865, %v852
  %v877 = vrot.slane %v858, 4
  %v879 = vadd.f32 %v877, %v876
  %v880 = vtanh.pop %v879
  %v881 = vsub.f32 1.0, %v875
  %v882 = vmul.f32 %v881, %v880
  %v883 = vmul.f32 %v875, %v597
  %v884 = vadd.f32 %v882, %v883
  %885 = vst [vmem:[#allocation2] sm:$0x3] %v884
  %s886 = scalar_lea.vmem %s3, 4
  %887 = vst [vmem:[%s886] sm:$0x3] %v884
  %v888 = vld [vmem:[#allocation3] sm:$0x3]
  %v889 = vpack.c.bf16 %v888, %v888
  %v890 = vld [vmem:[%s1 + $0xc] sm:$0xff]
  %v891 = vld [vmem:[%s1 + $0x14] sm:$0xf]
  %v892 = vld [vmem:[%s1 + $0x24] sm:$0xff]
  %v893 = vld [vmem:[%s1 + $0x2c] sm:$0xf]
  %v894 = vld [vmem:[%s1 + $0x3c] sm:$0xff]
  %v895 = vld [vmem:[%s1 + $0x44] sm:$0xf]
  %v896 = vld [vmem:[%s1 + $0x54] sm:$0xff]
  %v897 = vld [vmem:[%s1 + $0x5c] sm:$0xf]
  %v898 = vld [vmem:[%s1 + $0x6c] sm:$0xff]
  %v899 = vld [vmem:[%s1 + $0x74] sm:$0xf]
  %v900 = vld [vmem:[%s1 + $0x84] sm:$0xff]
  %v901 = vld [vmem:[%s1 + $0x8c] sm:$0xf]
  %v902 = vld [vmem:[%s1 + $0x9c] sm:$0xff]
  %v903 = vld [vmem:[%s1 + $0xa4] sm:$0xf]
  %v904 = vld [vmem:[%s1 + $0xb4] sm:$0xff]
  %v905 = vld [vmem:[%s1 + $0xbc] sm:$0xf]
  %v906 = vld [vmem:[%s1 + $0xcc] sm:$0xff]
  %v907 = vld [vmem:[%s1 + $0xd4] sm:$0xf]
  %v908 = vld [vmem:[%s1 + $0xe4] sm:$0xff]
  %v909 = vld [vmem:[%s1 + $0xec] sm:$0xf]
  %v910 = vld [vmem:[%s1 + $0xfc] sm:$0xff]
  %v911 = vld [vmem:[%s1 + $0x104] sm:$0xf]
  %v912 = vld [vmem:[%s1 + $0x114] sm:$0xff]
  %v913 = vld [vmem:[%s1 + $0x11c] sm:$0xf]
  %v914 = vld [vmem:[%s1 + $0x12c] sm:$0xff]
  %v915 = vld [vmem:[%s1 + $0x134] sm:$0xf]
  %v916 = vld [vmem:[%s1 + $0x144] sm:$0xff]
  %v917 = vld [vmem:[%s1 + $0x14c] sm:$0xf]
  %v918 = vld [vmem:[%s1 + $0x15c] sm:$0xff]
  %v919 = vld [vmem:[%s1 + $0x164] sm:$0xf]
  %v920 = vld [vmem:[%s1 + $0x174] sm:$0xff]
  %v921 = vld [vmem:[%s1 + $0x17c] sm:$0xf]
  %v922 = vld [vmem:[%s2 + $0x3] sm:$0x7]
  %v924 = vlaneseq
  %v925 = vshrl.u32 %v924, 7
  %v926 = vsub.s32 0, %v925
  %v927 = vrot.slane %v922, %v926
  %v928 = vlaneseq
  %v929 = vshrl.u32 %v928, 7
  %v930 = vsub.s32 1, %v929
  %v931 = vrot.slane %v922, %v930
  %v932 = vlaneseq
  %v933 = vshrl.u32 %v932, 7
  %v934 = vsub.s32 2, %v933
  %v935 = vrot.slane %v922, %v934
  %v971 = vunpack.c.l.b16 %v890
  %v972 = vunpack.c.h.b16 %v890
  %v973 = vunpack.c.l.b16 %v891
  %v974 = vunpack.c.l.b16 %v892
  %v975 = vunpack.c.h.b16 %v892
  %v976 = vunpack.c.l.b16 %v893
  %v977 = vunpack.c.l.b16 %v894
  %v978 = vunpack.c.h.b16 %v894
  %v979 = vunpack.c.l.b16 %v895
  %v980 = vunpack.c.l.b16 %v896
  %v981 = vunpack.c.h.b16 %v896
  %v982 = vunpack.c.l.b16 %v897
  %v983 = vunpack.c.l.b16 %v898
  %v984 = vunpack.c.h.b16 %v898
  %v985 = vunpack.c.l.b16 %v899
  %v986 = vunpack.c.l.b16 %v900
  %v987 = vunpack.c.h.b16 %v900
  %v988 = vunpack.c.l.b16 %v901
  %v989 = vunpack.c.l.b16 %v902
  %v990 = vunpack.c.h.b16 %v902
  %v991 = vunpack.c.l.b16 %v903
  %v992 = vunpack.c.l.b16 %v904
  %v993 = vunpack.c.h.b16 %v904
  %v994 = vunpack.c.l.b16 %v905
  %v995 = vunpack.c.l.b16 %v906
  %v996 = vunpack.c.h.b16 %v906
  %v997 = vunpack.c.l.b16 %v907
  %v998 = vunpack.c.l.b16 %v908
  %v999 = vunpack.c.h.b16 %v908
  %v1000 = vunpack.c.l.b16 %v909
  %v1001 = vunpack.c.l.b16 %v910
  %v1002 = vunpack.c.h.b16 %v910
  %v1003 = vunpack.c.l.b16 %v911
  %v1004 = vunpack.c.l.b16 %v912
  %v1005 = vunpack.c.h.b16 %v912
  %v1006 = vunpack.c.l.b16 %v913
  %v1007 = vunpack.c.l.b16 %v914
  %v1008 = vunpack.c.h.b16 %v914
  %v1009 = vunpack.c.l.b16 %v915
  %v1010 = vunpack.c.l.b16 %v916
  %v1011 = vunpack.c.h.b16 %v916
  %v1012 = vunpack.c.l.b16 %v917
  %v1013 = vunpack.c.l.b16 %v918
  %v1014 = vunpack.c.h.b16 %v918
  %v1015 = vunpack.c.l.b16 %v919
  %v1016 = vunpack.c.l.b16 %v920
  %v1017 = vunpack.c.h.b16 %v920
  %v1018 = vunpack.c.l.b16 %v921
  %v1019 = vpack.c.b16 %v974, %v971
  %v1020 = vpack.c.b16 %v975, %v972
  %v1021 = vpack.c.b16 %v976, %v973
  %v1022 = vpack.c.b16 %v980, %v977
  %v1023 = vpack.c.b16 %v981, %v978
  %v1024 = vpack.c.b16 %v982, %v979
  %v1025 = vpack.c.b16 %v986, %v983
  %v1026 = vpack.c.b16 %v987, %v984
  %v1027 = vpack.c.b16 %v988, %v985
  %v1028 = vpack.c.b16 %v992, %v989
  %v1029 = vpack.c.b16 %v993, %v990
  %v1030 = vpack.c.b16 %v994, %v991
  %v1031 = vpack.c.b16 %v998, %v995
  %v1032 = vpack.c.b16 %v999, %v996
  %v1033 = vpack.c.b16 %v1000, %v997
  %v1034 = vpack.c.b16 %v1004, %v1001
  %v1035 = vpack.c.b16 %v1005, %v1002
  %v1036 = vpack.c.b16 %v1006, %v1003
  %v1037 = vpack.c.b16 %v1010, %v1007
  %v1038 = vpack.c.b16 %v1011, %v1008
  %v1039 = vpack.c.b16 %v1012, %v1009
  %v1040 = vpack.c.b16 %v1016, %v1013
  %v1041 = vpack.c.b16 %v1017, %v1014
  %v1042 = vpack.c.b16 %v1018, %v1015
  %1067 = vmatprep.subr.bf16.mxu0 %v1020
  %1068 = vmatpush1.bf16.msra.mxu0 %v1019
  %1069 = vmatprep.subr.bf16.mxu0 %v1023
  %1070 = vmatpush1.bf16.msra.mxu0 %v1022
  %1071 = vmatprep.subr.bf16.mxu0 %v1026
  %1072 = vmatpush1.bf16.msra.mxu0 %v1025
  %1073 = vmatprep.subr.bf16.mxu0 %v1029
  %1074 = vmatpush1.bf16.msra.mxu0 %v1028
  %1075 = vmatprep.subr.bf16.mxu0 %v1032
  %1076 = vmatpush1.bf16.msra.mxu0 %v1031
  %1077 = vmatprep.subr.bf16.mxu0 %v1035
  %1078 = vmatpush1.bf16.msra.mxu0 %v1034
  %1079 = vmatprep.subr.bf16.mxu0 %v1038
  %1080 = vmatpush1.bf16.msra.mxu0 %v1037
  %1081 = vmatprep.subr.bf16.mxu0 %v1041
  %1082 = vmatpush1.bf16.msra.mxu0 %v1040
  %1083 = vmatprep.subr.bf16.mxu0 0
  %1084 = vmatpush1.bf16.msra.mxu0 0
  %1085 = vmatprep.subr.bf16.mxu0 0
  %1086 = vmatpush1.bf16.msra.mxu0 0
  %1087 = vmatprep.subr.bf16.mxu0 0
  %1088 = vmatpush1.bf16.msra.mxu0 0
  %1089 = vmatprep.subr.bf16.mxu0 0
  %1090 = vmatpush1.bf16.msra.mxu0 0
  %1091 = vmatprep.subr.bf16.mxu0 0
  %1092 = vmatpush1.bf16.msra.mxu0 0
  %1093 = vmatprep.subr.bf16.mxu0 0
  %1094 = vmatpush1.bf16.msra.mxu0 0
  %1095 = vmatprep.subr.bf16.mxu0 0
  %1096 = vmatpush1.bf16.msra.mxu0 0
  %1097 = vmatprep.subr.bf16.mxu0 0
  %1098 = vmatpush1.bf16.msra.mxu0 0
  %1099 = vmatprep.mubr.bf16.mxu0 0
  %1100 = vmatmul.mubr.bf16.gmra.mrb[0].mxu0 %v889
  %v1101 = vpop.f32.mrb[0].mxu0
  %v1102 = vadd.f32 %v927, %v1101
  %v1103 = vpop.f32.mrb[0].mxu0
  %v1104 = vadd.f32 %v931, %v1103
  %v1105 = vpop.f32.mrb[0].mxu0
  %v1106 = vpop.f32.mrb[0].mxu0
  %1107 = vdwg.mxu0
  %1108 = vmatprep.subr.bf16.mxu0 0
  %1109 = vmatpush1.bf16.msra.mxu0 %v1021
  %1110 = vmatprep.subr.bf16.mxu0 0
  %1111 = vmatpush1.bf16.msra.mxu0 %v1024
  %1112 = vmatprep.subr.bf16.mxu0 0
  %1113 = vmatpush1.bf16.msra.mxu0 %v1027
  %1114 = vmatprep.subr.bf16.mxu0 0
  %1115 = vmatpush1.bf16.msra.mxu0 %v1030
  %1116 = vmatprep.subr.bf16.mxu0 0
  %1117 = vmatpush1.bf16.msra.mxu0 %v1033
  %1118 = vmatprep.subr.bf16.mxu0 0
  %1119 = vmatpush1.bf16.msra.mxu0 %v1036
  %1120 = vmatprep.subr.bf16.mxu0 0
  %1121 = vmatpush1.bf16.msra.mxu0 %v1039
  %1122 = vmatprep.subr.bf16.mxu0 0
  %1123 = vmatpush1.bf16.msra.mxu0 %v1042
  %1124 = vmatprep.subr.bf16.mxu0 0
  %1125 = vmatpush1.bf16.msra.mxu0 0
  %1126 = vmatprep.subr.bf16.mxu0 0
  %1127 = vmatpush1.bf16.msra.mxu0 0
  %1128 = vmatprep.subr.bf16.mxu0 0
  %1129 = vmatpush1.bf16.msra.mxu0 0
  %1130 = vmatprep.subr.bf16.mxu0 0
  %1131 = vmatpush1.bf16.msra.mxu0 0
  %1132 = vmatprep.subr.bf16.mxu0 0
  %1133 = vmatpush1.bf16.msra.mxu0 0
  %1134 = vmatprep.subr.bf16.mxu0 0
  %1135 = vmatpush1.bf16.msra.mxu0 0
  %1136 = vmatprep.subr.bf16.mxu0 0
  %1137 = vmatpush1.bf16.msra.mxu0 0
  %1138 = vmatprep.subr.bf16.mxu0 0
  %1139 = vmatpush1.bf16.msra.mxu0 0
  %1140 = vmatprep.mubr.bf16.mxu0 0
  %1141 = vmatmul.mubr.bf16.gmra.mrb[0].mxu0 %v889
  %v1142 = vpop.f32.mrb[0].mxu0
  %v1143 = vadd.f32 %v935, %v1142
  %v1144 = vpop.f32.mrb[0].mxu0
  %v1145 = vpop.f32.mrb[0].mxu0
  %v1146 = vpop.f32.mrb[0].mxu0
  %1147 = vdwg.mxu0
  %s1148 = scalar_lea.vmem %s0, 72
  %v1149 = vld [vmem:[%s1148 + $0x6] sm:$0x3f]
  %v1150 = vadd.f32 %v1149, %v1102
  %v1151 = vsub.f32 0.0, %v1150
  %v1152 = vmul.f32 %v1151, 1.442695
  %v1153 = vpow.pop %v1152
  %v1154 = vadd.f32 %v1153, 1.0
  %v1155 = vrcp.pop %v1154
  %v1156 = vmul.f32 1.0, %v1155
  %v1158 = vrot.slane %v1149, 2
  %v1160 = vadd.f32 %v1158, %v1104
  %v1161 = vsub.f32 0.0, %v1160
  %v1162 = vmul.f32 %v1161, 1.442695
  %v1163 = vpow.pop %v1162
  %v1164 = vadd.f32 %v1163, 1.0
  %v1165 = vrcp.pop %v1164
  %v1166 = vmul.f32 1.0, %v1165
  %v1167 = vmul.f32 %v1156, %v1143
  %v1168 = vrot.slane %v1149, 4
  %v1170 = vadd.f32 %v1168, %v1167
  %v1171 = vtanh.pop %v1170
  %v1172 = vsub.f32 1.0, %v1166
  %v1173 = vmul.f32 %v1172, %v1171
  %v1174 = vmul.f32 %v1166, %v888
  %v1175 = vadd.f32 %v1173, %v1174
  %1176 = vst [vmem:[#allocation3] sm:$0x3] %v1175
  %s1177 = scalar_lea.vmem %s3, 24
  %1178 = vst [vmem:[%s1177 + $0x2] sm:$0x3] %v1175
  %v1179 = vld [vmem:[#allocation2] sm:$0x3]
  %v1180 = vpack.c.bf16 %v1179, %v1179
  %v1181 = vld [vmem:[%s1] sm:$0xff]
  %v1182 = vld [vmem:[%s1 + $0x8] sm:$0xf]
  %v1183 = vld [vmem:[%s1 + $0x18] sm:$0xff]
  %v1184 = vld [vmem:[%s1 + $0x20] sm:$0xf]
  %v1185 = vld [vmem:[%s1 + $0x30] sm:$0xff]
  %v1186 = vld [vmem:[%s1 + $0x38] sm:$0xf]
  %v1187 = vld [vmem:[%s1 + $0x48] sm:$0xff]
  %v1188 = vld [vmem:[%s1 + $0x50] sm:$0xf]
  %v1189 = vld [vmem:[%s1 + $0x60] sm:$0xff]
  %v1190 = vld [vmem:[%s1 + $0x68] sm:$0xf]
  %v1191 = vld [vmem:[%s1 + $0x78] sm:$0xff]
  %v1192 = vld [vmem:[%s1 + $0x80] sm:$0xf]
  %v1193 = vld [vmem:[%s1 + $0x90] sm:$0xff]
  %v1194 = vld [vmem:[%s1 + $0x98] sm:$0xf]
  %v1195 = vld [vmem:[%s1 + $0xa8] sm:$0xff]
  %v1196 = vld [vmem:[%s1 + $0xb0] sm:$0xf]
  %v1197 = vld [vmem:[%s1 + $0xc0] sm:$0xff]
  %v1198 = vld [vmem:[%s1 + $0xc8] sm:$0xf]
  %v1199 = vld [vmem:[%s1 + $0xd8] sm:$0xff]
  %v1200 = vld [vmem:[%s1 + $0xe0] sm:$0xf]
  %v1201 = vld [vmem:[%s1 + $0xf0] sm:$0xff]
  %v1202 = vld [vmem:[%s1 + $0xf8] sm:$0xf]
  %v1203 = vld [vmem:[%s1 + $0x108] sm:$0xff]
  %v1204 = vld [vmem:[%s1 + $0x110] sm:$0xf]
  %v1205 = vld [vmem:[%s1 + $0x120] sm:$0xff]
  %v1206 = vld [vmem:[%s1 + $0x128] sm:$0xf]
  %v1207 = vld [vmem:[%s1 + $0x138] sm:$0xff]
  %v1208 = vld [vmem:[%s1 + $0x140] sm:$0xf]
  %v1209 = vld [vmem:[%s1 + $0x150] sm:$0xff]
  %v1210 = vld [vmem:[%s1 + $0x158] sm:$0xf]
  %v1211 = vld [vmem:[%s1 + $0x168] sm:$0xff]
  %v1212 = vld [vmem:[%s1 + $0x170] sm:$0xf]
  %v1213 = vld [vmem:[%s2] sm:$0x7]
  %v1215 = vlaneseq
  %v1216 = vshrl.u32 %v1215, 7
  %v1217 = vsub.s32 0, %v1216
  %v1218 = vrot.slane %v1213, %v1217
  %v1219 = vlaneseq
  %v1220 = vshrl.u32 %v1219, 7
  %v1221 = vsub.s32 1, %v1220
  %v1222 = vrot.slane %v1213, %v1221
  %v1223 = vlaneseq
  %v1224 = vshrl.u32 %v1223, 7
  %v1225 = vsub.s32 2, %v1224
  %v1226 = vrot.slane %v1213, %v1225
  %v1262 = vunpack.c.l.b16 %v1181
  %v1263 = vunpack.c.h.b16 %v1181
  %v1264 = vunpack.c.l.b16 %v1182
  %v1265 = vunpack.c.l.b16 %v1183
  %v1266 = vunpack.c.h.b16 %v1183
  %v1267 = vunpack.c.l.b16 %v1184
  %v1268 = vunpack.c.l.b16 %v1185
  %v1269 = vunpack.c.h.b16 %v1185
  %v1270 = vunpack.c.l.b16 %v1186
  %v1271 = vunpack.c.l.b16 %v1187
  %v1272 = vunpack.c.h.b16 %v1187
  %v1273 = vunpack.c.l.b16 %v1188
  %v1274 = vunpack.c.l.b16 %v1189
  %v1275 = vunpack.c.h.b16 %v1189
  %v1276 = vunpack.c.l.b16 %v1190
  %v1277 = vunpack.c.l.b16 %v1191
  %v1278 = vunpack.c.h.b16 %v1191
  %v1279 = vunpack.c.l.b16 %v1192
  %v1280 = vunpack.c.l.b16 %v1193
  %v1281 = vunpack.c.h.b16 %v1193
  %v1282 = vunpack.c.l.b16 %v1194
  %v1283 = vunpack.c.l.b16 %v1195
  %v1284 = vunpack.c.h.b16 %v1195
  %v1285 = vunpack.c.l.b16 %v1196
  %v1286 = vunpack.c.l.b16 %v1197
  %v1287 = vunpack.c.h.b16 %v1197
  %v1288 = vunpack.c.l.b16 %v1198
  %v1289 = vunpack.c.l.b16 %v1199
  %v1290 = vunpack.c.h.b16 %v1199
  %v1291 = vunpack.c.l.b16 %v1200
  %v1292 = vunpack.c.l.b16 %v1201
  %v1293 = vunpack.c.h.b16 %v1201
  %v1294 = vunpack.c.l.b16 %v1202
  %v1295 = vunpack.c.l.b16 %v1203
  %v1296 = vunpack.c.h.b16 %v1203
  %v1297 = vunpack.c.l.b16 %v1204
  %v1298 = vunpack.c.l.b16 %v1205
  %v1299 = vunpack.c.h.b16 %v1205
  %v1300 = vunpack.c.l.b16 %v1206
  %v1301 = vunpack.c.l.b16 %v1207
  %v1302 = vunpack.c.h.b16 %v1207
  %v1303 = vunpack.c.l.b16 %v1208
  %v1304 = vunpack.c.l.b16 %v1209
  %v1305 = vunpack.c.h.b16 %v1209
  %v1306 = vunpack.c.l.b16 %v1210
  %v1307 = vunpack.c.l.b16 %v1211
  %v1308 = vunpack.c.h.b16 %v1211
  %v1309 = vunpack.c.l.b16 %v1212
  %v1310 = vpack.c.b16 %v1265, %v1262
  %v1311 = vpack.c.b16 %v1266, %v1263
  %v1312 = vpack.c.b16 %v1267, %v1264
  %v1313 = vpack.c.b16 %v1271, %v1268
  %v1314 = vpack.c.b16 %v1272, %v1269
  %v1315 = vpack.c.b16 %v1273, %v1270
  %v1316 = vpack.c.b16 %v1277, %v1274
  %v1317 = vpack.c.b16 %v1278, %v1275
  %v1318 = vpack.c.b16 %v1279, %v1276
  %v1319 = vpack.c.b16 %v1283, %v1280
  %v1320 = vpack.c.b16 %v1284, %v1281
  %v1321 = vpack.c.b16 %v1285, %v1282
  %v1322 = vpack.c.b16 %v1289, %v1286
  %v1323 = vpack.c.b16 %v1290, %v1287
  %v1324 = vpack.c.b16 %v1291, %v1288
  %v1325 = vpack.c.b16 %v1295, %v1292
  %v1326 = vpack.c.b16 %v1296, %v1293
  %v1327 = vpack.c.b16 %v1297, %v1294
  %v1328 = vpack.c.b16 %v1301, %v1298
  %v1329 = vpack.c.b16 %v1302, %v1299
  %v1330 = vpack.c.b16 %v1303, %v1300
  %v1331 = vpack.c.b16 %v1307, %v1304
  %v1332 = vpack.c.b16 %v1308, %v1305
  %v1333 = vpack.c.b16 %v1309, %v1306
  %1358 = vmatprep.subr.bf16.mxu0 %v1311
  %1359 = vmatpush1.bf16.msra.mxu0 %v1310
  %1360 = vmatprep.subr.bf16.mxu0 %v1314
  %1361 = vmatpush1.bf16.msra.mxu0 %v1313
  %1362 = vmatprep.subr.bf16.mxu0 %v1317
  %1363 = vmatpush1.bf16.msra.mxu0 %v1316
  %1364 = vmatprep.subr.bf16.mxu0 %v1320
  %1365 = vmatpush1.bf16.msra.mxu0 %v1319
  %1366 = vmatprep.subr.bf16.mxu0 %v1323
  %1367 = vmatpush1.bf16.msra.mxu0 %v1322
  %1368 = vmatprep.subr.bf16.mxu0 %v1326
  %1369 = vmatpush1.bf16.msra.mxu0 %v1325
  %1370 = vmatprep.subr.bf16.mxu0 %v1329
  %1371 = vmatpush1.bf16.msra.mxu0 %v1328
  %1372 = vmatprep.subr.bf16.mxu0 %v1332
  %1373 = vmatpush1.bf16.msra.mxu0 %v1331
  %1374 = vmatprep.subr.bf16.mxu0 0
  %1375 = vmatpush1.bf16.msra.mxu0 0
  %1376 = vmatprep.subr.bf16.mxu0 0
  %1377 = vmatpush1.bf16.msra.mxu0 0
  %1378 = vmatprep.subr.bf16.mxu0 0
  %1379 = vmatpush1.bf16.msra.mxu0 0
  %1380 = vmatprep.subr.bf16.mxu0 0
  %1381 = vmatpush1.bf16.msra.mxu0 0
  %1382 = vmatprep.subr.bf16.mxu0 0
  %1383 = vmatpush1.bf16.msra.mxu0 0
  %1384 = vmatprep.subr.bf16.mxu0 0
  %1385 = vmatpush1.bf16.msra.mxu0 0
  %1386 = vmatprep.subr.bf16.mxu0 0
  %1387 = vmatpush1.bf16.msra.mxu0 0
  %1388 = vmatprep.subr.bf16.mxu0 0
  %1389 = vmatpush1.bf16.msra.mxu0 0
  %1390 = vmatprep.mubr.bf16.mxu0 0
  %1391 = vmatmul.mubr.bf16.gmra.mrb[0].mxu0 %v1180
  %v1392 = vpop.f32.mrb[0].mxu0
  %v1393 = vadd.f32 %v1218, %v1392
  %v1394 = vpop.f32.mrb[0].mxu0
  %v1395 = vadd.f32 %v1222, %v1394
  %v1396 = vpop.f32.mrb[0].mxu0
  %v1397 = vpop.f32.mrb[0].mxu0
  %1398 = vdwg.mxu0
  %1399 = vmatprep.subr.bf16.mxu0 0
  %1400 = vmatpush1.bf16.msra.mxu0 %v1312
  %1401 = vmatprep.subr.bf16.mxu0 0
  %1402 = vmatpush1.bf16.msra.mxu0 %v1315
  %1403 = vmatprep.subr.bf16.mxu0 0
  %1404 = vmatpush1.bf16.msra.mxu0 %v1318
  %1405 = vmatprep.subr.bf16.mxu0 0
  %1406 = vmatpush1.bf16.msra.mxu0 %v1321
  %1407 = vmatprep.subr.bf16.mxu0 0
  %1408 = vmatpush1.bf16.msra.mxu0 %v1324
  %1409 = vmatprep.subr.bf16.mxu0 0
  %1410 = vmatpush1.bf16.msra.mxu0 %v1327
  %1411 = vmatprep.subr.bf16.mxu0 0
  %1412 = vmatpush1.bf16.msra.mxu0 %v1330
  %1413 = vmatprep.subr.bf16.mxu0 0
  %1414 = vmatpush1.bf16.msra.mxu0 %v1333
  %1415 = vmatprep.subr.bf16.mxu0 0
  %1416 = vmatpush1.bf16.msra.mxu0 0
  %1417 = vmatprep.subr.bf16.mxu0 0
  %1418 = vmatpush1.bf16.msra.mxu0 0
  %1419 = vmatprep.subr.bf16.mxu0 0
  %1420 = vmatpush1.bf16.msra.mxu0 0
  %1421 = vmatprep.subr.bf16.mxu0 0
  %1422 = vmatpush1.bf16.msra.mxu0 0
  %1423 = vmatprep.subr.bf16.mxu0 0
  %1424 = vmatpush1.bf16.msra.mxu0 0
  %1425 = vmatprep.subr.bf16.mxu0 0
  %1426 = vmatpush1.bf16.msra.mxu0 0
  %1427 = vmatprep.subr.bf16.mxu0 0
  %1428 = vmatpush1.bf16.msra.mxu0 0
  %1429 = vmatprep.subr.bf16.mxu0 0
  %1430 = vmatpush1.bf16.msra.mxu0 0
  %1431 = vmatprep.mubr.bf16.mxu0 0
  %1432 = vmatmul.mubr.bf16.gmra.mrb[0].mxu0 %v1180
  %v1433 = vpop.f32.mrb[0].mxu0
  %v1434 = vadd.f32 %v1226, %v1433
  %v1435 = vpop.f32.mrb[0].mxu0
  %v1436 = vpop.f32.mrb[0].mxu0
  %v1437 = vpop.f32.mrb[0].mxu0
  %1438 = vdwg.mxu0
  %s1439 = scalar_lea.vmem %s0, 24
  %v1440 = vld [vmem:[%s1439] sm:$0x3f]
  %v1441 = vadd.f32 %v1440, %v1393
  %v1442 = vsub.f32 0.0, %v1441
  %v1443 = vmul.f32 %v1442, 1.442695
  %v1444 = vpow.pop %v1443
  %v1445 = vadd.f32 %v1444, 1.0
  %v1446 = vrcp.pop %v1445
  %v1447 = vmul.f32 1.0, %v1446
  %v1449 = vrot.slane %v1440, 2
  %v1451 = vadd.f32 %v1449, %v1395
  %v1452 = vsub.f32 0.0, %v1451
  %v1453 = vmul.f32 %v1452, 1.442695
  %v1454 = vpow.pop %v1453
  %v1455 = vadd.f32 %v1454, 1.0
  %v1456 = vrcp.pop %v1455
  %v1457 = vmul.f32 1.0, %v1456
  %v1458 = vmul.f32 %v1447, %v1434
  %v1459 = vrot.slane %v1440, 4
  %v1461 = vadd.f32 %v1459, %v1458
  %v1462 = vtanh.pop %v1461
  %v1463 = vsub.f32 1.0, %v1457
  %v1464 = vmul.f32 %v1463, %v1462
  %v1465 = vmul.f32 %v1457, %v1179
  %v1466 = vadd.f32 %v1464, %v1465
  %1467 = vst [vmem:[#allocation2] sm:$0x3] %v1466
  %s1468 = scalar_lea.vmem %s3, 8
  %1469 = vst [vmem:[%s1468] sm:$0x3] %v1466
  %v1470 = vld [vmem:[#allocation3] sm:$0x3]
  %v1471 = vpack.c.bf16 %v1470, %v1470
  %v1472 = vld [vmem:[%s1 + $0xc] sm:$0xff]
  %v1473 = vld [vmem:[%s1 + $0x14] sm:$0xf]
  %v1474 = vld [vmem:[%s1 + $0x24] sm:$0xff]
  %v1475 = vld [vmem:[%s1 + $0x2c] sm:$0xf]
  %v1476 = vld [vmem:[%s1 + $0x3c] sm:$0xff]
  %v1477 = vld [vmem:[%s1 + $0x44] sm:$0xf]
  %v1478 = vld [vmem:[%s1 + $0x54] sm:$0xff]
  %v1479 = vld [vmem:[%s1 + $0x5c] sm:$0xf]
  %v1480 = vld [vmem:[%s1 + $0x6c] sm:$0xff]
  %v1481 = vld [vmem:[%s1 + $0x74] sm:$0xf]
  %v1482 = vld [vmem:[%s1 + $0x84] sm:$0xff]
  %v1483 = vld [vmem:[%s1 + $0x8c] sm:$0xf]
  %v1484 = vld [vmem:[%s1 + $0x9c] sm:$0xff]
  %v1485 = vld [vmem:[%s1 + $0xa4] sm:$0xf]
  %v1486 = vld [vmem:[%s1 + $0xb4] sm:$0xff]
  %v1487 = vld [vmem:[%s1 + $0xbc] sm:$0xf]
  %v1488 = vld [vmem:[%s1 + $0xcc] sm:$0xff]
  %v1489 = vld [vmem:[%s1 + $0xd4] sm:$0xf]
  %v1490 = vld [vmem:[%s1 + $0xe4] sm:$0xff]
  %v1491 = vld [vmem:[%s1 + $0xec] sm:$0xf]
  %v1492 = vld [vmem:[%s1 + $0xfc] sm:$0xff]
  %v1493 = vld [vmem:[%s1 + $0x104] sm:$0xf]
  %v1494 = vld [vmem:[%s1 + $0x114] sm:$0xff]
  %v1495 = vld [vmem:[%s1 + $0x11c] sm:$0xf]
  %v1496 = vld [vmem:[%s1 + $0x12c] sm:$0xff]
  %v1497 = vld [vmem:[%s1 + $0x134] sm:$0xf]
  %v1498 = vld [vmem:[%s1 + $0x144] sm:$0xff]
  %v1499 = vld [vmem:[%s1 + $0x14c] sm:$0xf]
  %v1500 = vld [vmem:[%s1 + $0x15c] sm:$0xff]
  %v1501 = vld [vmem:[%s1 + $0x164] sm:$0xf]
  %v1502 = vld [vmem:[%s1 + $0x174] sm:$0xff]
  %v1503 = vld [vmem:[%s1 + $0x17c] sm:$0xf]
  %v1504 = vld [vmem:[%s2 + $0x3] sm:$0x7]
  %v1506 = vlaneseq
  %v1507 = vshrl.u32 %v1506, 7
  %v1508 = vsub.s32 0, %v1507
  %v1509 = vrot.slane %v1504, %v1508
  %v1510 = vlaneseq
  %v1511 = vshrl.u32 %v1510, 7
  %v1512 = vsub.s32 1, %v1511
  %v1513 = vrot.slane %v1504, %v1512
  %v1514 = vlaneseq
  %v1515 = vshrl.u32 %v1514, 7
  %v1516 = vsub.s32 2, %v1515
  %v1517 = vrot.slane %v1504, %v1516
  %v1553 = vunpack.c.l.b16 %v1472
  %v1554 = vunpack.c.h.b16 %v1472
  %v1555 = vunpack.c.l.b16 %v1473
  %v1556 = vunpack.c.l.b16 %v1474
  %v1557 = vunpack.c.h.b16 %v1474
  %v1558 = vunpack.c.l.b16 %v1475
  %v1559 = vunpack.c.l.b16 %v1476
  %v1560 = vunpack.c.h.b16 %v1476
  %v1561 = vunpack.c.l.b16 %v1477
  %v1562 = vunpack.c.l.b16 %v1478
  %v1563 = vunpack.c.h.b16 %v1478
  %v1564 = vunpack.c.l.b16 %v1479
  %v1565 = vunpack.c.l.b16 %v1480
  %v1566 = vunpack.c.h.b16 %v1480
  %v1567 = vunpack.c.l.b16 %v1481
  %v1568 = vunpack.c.l.b16 %v1482
  %v1569 = vunpack.c.h.b16 %v1482
  %v1570 = vunpack.c.l.b16 %v1483
  %v1571 = vunpack.c.l.b16 %v1484
  %v1572 = vunpack.c.h.b16 %v1484
  %v1573 = vunpack.c.l.b16 %v1485
  %v1574 = vunpack.c.l.b16 %v1486
  %v1575 = vunpack.c.h.b16 %v1486
  %v1576 = vunpack.c.l.b16 %v1487
  %v1577 = vunpack.c.l.b16 %v1488
  %v1578 = vunpack.c.h.b16 %v1488
  %v1579 = vunpack.c.l.b16 %v1489
  %v1580 = vunpack.c.l.b16 %v1490
  %v1581 = vunpack.c.h.b16 %v1490
  %v1582 = vunpack.c.l.b16 %v1491
  %v1583 = vunpack.c.l.b16 %v1492
  %v1584 = vunpack.c.h.b16 %v1492
  %v1585 = vunpack.c.l.b16 %v1493
  %v1586 = vunpack.c.l.b16 %v1494
  %v1587 = vunpack.c.h.b16 %v1494
  %v1588 = vunpack.c.l.b16 %v1495
  %v1589 = vunpack.c.l.b16 %v1496
  %v1590 = vunpack.c.h.b16 %v1496
  %v1591 = vunpack.c.l.b16 %v1497
  %v1592 = vunpack.c.l.b16 %v1498
  %v1593 = vunpack.c.h.b16 %v1498
  %v1594 = vunpack.c.l.b16 %v1499
  %v1595 = vunpack.c.l.b16 %v1500
  %v1596 = vunpack.c.h.b16 %v1500
  %v1597 = vunpack.c.l.b16 %v1501
  %v1598 = vunpack.c.l.b16 %v1502
  %v1599 = vunpack.c.h.b16 %v1502
  %v1600 = vunpack.c.l.b16 %v1503
  %v1601 = vpack.c.b16 %v1556, %v1553
  %v1602 = vpack.c.b16 %v1557, %v1554
  %v1603 = vpack.c.b16 %v1558, %v1555
  %v1604 = vpack.c.b16 %v1562, %v1559
  %v1605 = vpack.c.b16 %v1563, %v1560
  %v1606 = vpack.c.b16 %v1564, %v1561
  %v1607 = vpack.c.b16 %v1568, %v1565
  %v1608 = vpack.c.b16 %v1569, %v1566
  %v1609 = vpack.c.b16 %v1570, %v1567
  %v1610 = vpack.c.b16 %v1574, %v1571
  %v1611 = vpack.c.b16 %v1575, %v1572
  %v1612 = vpack.c.b16 %v1576, %v1573
  %v1613 = vpack.c.b16 %v1580, %v1577
  %v1614 = vpack.c.b16 %v1581, %v1578
  %v1615 = vpack.c.b16 %v1582, %v1579
  %v1616 = vpack.c.b16 %v1586, %v1583
  %v1617 = vpack.c.b16 %v1587, %v1584
  %v1618 = vpack.c.b16 %v1588, %v1585
  %v1619 = vpack.c.b16 %v1592, %v1589
  %v1620 = vpack.c.b16 %v1593, %v1590
  %v1621 = vpack.c.b16 %v1594, %v1591
  %v1622 = vpack.c.b16 %v1598, %v1595
  %v1623 = vpack.c.b16 %v1599, %v1596
  %v1624 = vpack.c.b16 %v1600, %v1597
  %1649 = vmatprep.subr.bf16.mxu0 %v1602
  %1650 = vmatpush1.bf16.msra.mxu0 %v1601
  %1651 = vmatprep.subr.bf16.mxu0 %v1605
  %1652 = vmatpush1.bf16.msra.mxu0 %v1604
  %1653 = vmatprep.subr.bf16.mxu0 %v1608
  %1654 = vmatpush1.bf16.msra.mxu0 %v1607
  %1655 = vmatprep.subr.bf16.mxu0 %v1611
  %1656 = vmatpush1.bf16.msra.mxu0 %v1610
  %1657 = vmatprep.subr.bf16.mxu0 %v1614
  %1658 = vmatpush1.bf16.msra.mxu0 %v1613
  %1659 = vmatprep.subr.bf16.mxu0 %v1617
  %1660 = vmatpush1.bf16.msra.mxu0 %v1616
  %1661 = vmatprep.subr.bf16.mxu0 %v1620
  %1662 = vmatpush1.bf16.msra.mxu0 %v1619
  %1663 = vmatprep.subr.bf16.mxu0 %v1623
  %1664 = vmatpush1.bf16.msra.mxu0 %v1622
  %1665 = vmatprep.subr.bf16.mxu0 0
  %1666 = vmatpush1.bf16.msra.mxu0 0
  %1667 = vmatprep.subr.bf16.mxu0 0
  %1668 = vmatpush1.bf16.msra.mxu0 0
  %1669 = vmatprep.subr.bf16.mxu0 0
  %1670 = vmatpush1.bf16.msra.mxu0 0
  %1671 = vmatprep.subr.bf16.mxu0 0
  %1672 = vmatpush1.bf16.msra.mxu0 0
  %1673 = vmatprep.subr.bf16.mxu0 0
  %1674 = vmatpush1.bf16.msra.mxu0 0
  %1675 = vmatprep.subr.bf16.mxu0 0
  %1676 = vmatpush1.bf16.msra.mxu0 0
  %1677 = vmatprep.subr.bf16.mxu0 0
  %1678 = vmatpush1.bf16.msra.mxu0 0
  %1679 = vmatprep.subr.bf16.mxu0 0
  %1680 = vmatpush1.bf16.msra.mxu0 0
  %1681 = vmatprep.mubr.bf16.mxu0 0
  %1682 = vmatmul.mubr.bf16.gmra.mrb[0].mxu0 %v1471
  %v1683 = vpop.f32.mrb[0].mxu0
  %v1684 = vadd.f32 %v1509, %v1683
  %v1685 = vpop.f32.mrb[0].mxu0
  %v1686 = vadd.f32 %v1513, %v1685
  %v1687 = vpop.f32.mrb[0].mxu0
  %v1688 = vpop.f32.mrb[0].mxu0
  %1689 = vdwg.mxu0
  %1690 = vmatprep.subr.bf16.mxu0 0
  %1691 = vmatpush1.bf16.msra.mxu0 %v1603
  %1692 = vmatprep.subr.bf16.mxu0 0
  %1693 = vmatpush1.bf16.msra.mxu0 %v1606
  %1694 = vmatprep.subr.bf16.mxu0 0
  %1695 = vmatpush1.bf16.msra.mxu0 %v1609
  %1696 = vmatprep.subr.bf16.mxu0 0
  %1697 = vmatpush1.bf16.msra.mxu0 %v1612
  %1698 = vmatprep.subr.bf16.mxu0 0
  %1699 = vmatpush1.bf16.msra.mxu0 %v1615
  %1700 = vmatprep.subr.bf16.mxu0 0
  %1701 = vmatpush1.bf16.msra.mxu0 %v1618
  %1702 = vmatprep.subr.bf16.mxu0 0
  %1703 = vmatpush1.bf16.msra.mxu0 %v1621
  %1704 = vmatprep.subr.bf16.mxu0 0
  %1705 = vmatpush1.bf16.msra.mxu0 %v1624
  %1706 = vmatprep.subr.bf16.mxu0 0
  %1707 = vmatpush1.bf16.msra.mxu0 0
  %1708 = vmatprep.subr.bf16.mxu0 0
  %1709 = vmatpush1.bf16.msra.mxu0 0
  %1710 = vmatprep.subr.bf16.mxu0 0
  %1711 = vmatpush1.bf16.msra.mxu0 0
  %1712 = vmatprep.subr.bf16.mxu0 0
  %1713 = vmatpush1.bf16.msra.mxu0 0
  %1714 = vmatprep.subr.bf16.mxu0 0
  %1715 = vmatpush1.bf16.msra.mxu0 0
  %1716 = vmatprep.subr.bf16.mxu0 0
  %1717 = vmatpush1.bf16.msra.mxu0 0
  %1718 = vmatprep.subr.bf16.mxu0 0
  %1719 = vmatpush1.bf16.msra.mxu0 0
  %1720 = vmatprep.subr.bf16.mxu0 0
  %1721 = vmatpush1.bf16.msra.mxu0 0
  %1722 = vmatprep.mubr.bf16.mxu0 0
  %1723 = vmatmul.mubr.bf16.gmra.mrb[0].mxu0 %v1471
  %v1724 = vpop.f32.mrb[0].mxu0
  %v1725 = vadd.f32 %v1517, %v1724
  %v1726 = vpop.f32.mrb[0].mxu0
  %v1727 = vpop.f32.mrb[0].mxu0
  %v1728 = vpop.f32.mrb[0].mxu0
  %1729 = vdwg.mxu0
  %s1730 = scalar_lea.vmem %s0, 60
  %v1731 = vld [vmem:[%s1730 + $0x6] sm:$0x3f]
  %v1732 = vadd.f32 %v1731, %v1684
  %v1733 = vsub.f32 0.0, %v1732
  %v1734 = vmul.f32 %v1733, 1.442695
  %v1735 = vpow.pop %v1734
  %v1736 = vadd.f32 %v1735, 1.0
  %v1737 = vrcp.pop %v1736
  %v1738 = vmul.f32 1.0, %v1737
  %v1740 = vrot.slane %v1731, 2
  %v1742 = vadd.f32 %v1740, %v1686
  %v1743 = vsub.f32 0.0, %v1742
  %v1744 = vmul.f32 %v1743, 1.442695
  %v1745 = vpow.pop %v1744
  %v1746 = vadd.f32 %v1745, 1.0
  %v1747 = vrcp.pop %v1746
  %v1748 = vmul.f32 1.0, %v1747
  %v1749 = vmul.f32 %v1738, %v1725
  %v1750 = vrot.slane %v1731, 4
  %v1752 = vadd.f32 %v1750, %v1749
  %v1753 = vtanh.pop %v1752
  %v1754 = vsub.f32 1.0, %v1748
  %v1755 = vmul.f32 %v1754, %v1753
  %v1756 = vmul.f32 %v1748, %v1470
  %v1757 = vadd.f32 %v1755, %v1756
  %1758 = vst [vmem:[#allocation3] sm:$0x3] %v1757
  %s1759 = scalar_lea.vmem %s3, 20
  %1760 = vst [vmem:[%s1759 + $0x2] sm:$0x3] %v1757
  %v1761 = vld [vmem:[#allocation2] sm:$0x3]
  %v1762 = vpack.c.bf16 %v1761, %v1761
  %v1763 = vld [vmem:[%s1] sm:$0xff]
  %v1764 = vld [vmem:[%s1 + $0x8] sm:$0xf]
  %v1765 = vld [vmem:[%s1 + $0x18] sm:$0xff]
  %v1766 = vld [vmem:[%s1 + $0x20] sm:$0xf]
  %v1767 = vld [vmem:[%s1 + $0x30] sm:$0xff]
  %v1768 = vld [vmem:[%s1 + $0x38] sm:$0xf]
  %v1769 = vld [vmem:[%s1 + $0x48] sm:$0xff]
  %v1770 = vld [vmem:[%s1 + $0x50] sm:$0xf]
  %v1771 = vld [vmem:[%s1 + $0x60] sm:$0xff]
  %v1772 = vld [vmem:[%s1 + $0x68] sm:$0xf]
  %v1773 = vld [vmem:[%s1 + $0x78] sm:$0xff]
  %v1774 = vld [vmem:[%s1 + $0x80] sm:$0xf]
  %v1775 = vld [vmem:[%s1 + $0x90] sm:$0xff]
  %v1776 = vld [vmem:[%s1 + $0x98] sm:$0xf]
  %v1777 = vld [vmem:[%s1 + $0xa8] sm:$0xff]
  %v1778 = vld [vmem:[%s1 + $0xb0] sm:$0xf]
  %v1779 = vld [vmem:[%s1 + $0xc0] sm:$0xff]
  %v1780 = vld [vmem:[%s1 + $0xc8] sm:$0xf]
  %v1781 = vld [vmem:[%s1 + $0xd8] sm:$0xff]
  %v1782 = vld [vmem:[%s1 + $0xe0] sm:$0xf]
  %v1783 = vld [vmem:[%s1 + $0xf0] sm:$0xff]
  %v1784 = vld [vmem:[%s1 + $0xf8] sm:$0xf]
  %v1785 = vld [vmem:[%s1 + $0x108] sm:$0xff]
  %v1786 = vld [vmem:[%s1 + $0x110] sm:$0xf]
  %v1787 = vld [vmem:[%s1 + $0x120] sm:$0xff]
  %v1788 = vld [vmem:[%s1 + $0x128] sm:$0xf]
  %v1789 = vld [vmem:[%s1 + $0x138] sm:$0xff]
  %v1790 = vld [vmem:[%s1 + $0x140] sm:$0xf]
  %v1791 = vld [vmem:[%s1 + $0x150] sm:$0xff]
  %v1792 = vld [vmem:[%s1 + $0x158] sm:$0xf]
  %v1793 = vld [vmem:[%s1 + $0x168] sm:$0xff]
  %v1794 = vld [vmem:[%s1 + $0x170] sm:$0xf]
  %v1795 = vld [vmem:[%s2] sm:$0x7]
  %v1797 = vlaneseq
  %v1798 = vshrl.u32 %v1797, 7
  %v1799 = vsub.s32 0, %v1798
  %v1800 = vrot.slane %v1795, %v1799
  %v1801 = vlaneseq
  %v1802 = vshrl.u32 %v1801, 7
  %v1803 = vsub.s32 1, %v1802
  %v1804 = vrot.slane %v1795, %v1803
  %v1805 = vlaneseq
  %v1806 = vshrl.u32 %v1805, 7
  %v1807 = vsub.s32 2, %v1806
  %v1808 = vrot.slane %v1795, %v1807
  %v1844 = vunpack.c.l.b16 %v1763
  %v1845 = vunpack.c.h.b16 %v1763
  %v1846 = vunpack.c.l.b16 %v1764
  %v1847 = vunpack.c.l.b16 %v1765
  %v1848 = vunpack.c.h.b16 %v1765
  %v1849 = vunpack.c.l.b16 %v1766
  %v1850 = vunpack.c.l.b16 %v1767
  %v1851 = vunpack.c.h.b16 %v1767
  %v1852 = vunpack.c.l.b16 %v1768
  %v1853 = vunpack.c.l.b16 %v1769
  %v1854 = vunpack.c.h.b16 %v1769
  %v1855 = vunpack.c.l.b16 %v1770
  %v1856 = vunpack.c.l.b16 %v1771
  %v1857 = vunpack.c.h.b16 %v1771
  %v1858 = vunpack.c.l.b16 %v1772
  %v1859 = vunpack.c.l.b16 %v1773
  %v1860 = vunpack.c.h.b16 %v1773
  %v1861 = vunpack.c.l.b16 %v1774
  %v1862 = vunpack.c.l.b16 %v1775
  %v1863 = vunpack.c.h.b16 %v1775
  %v1864 = vunpack.c.l.b16 %v1776
  %v1865 = vunpack.c.l.b16 %v1777
  %v1866 = vunpack.c.h.b16 %v1777
  %v1867 = vunpack.c.l.b16 %v1778
  %v1868 = vunpack.c.l.b16 %v1779
  %v1869 = vunpack.c.h.b16 %v1779
  %v1870 = vunpack.c.l.b16 %v1780
  %v1871 = vunpack.c.l.b16 %v1781
  %v1872 = vunpack.c.h.b16 %v1781
  %v1873 = vunpack.c.l.b16 %v1782
  %v1874 = vunpack.c.l.b16 %v1783
  %v1875 = vunpack.c.h.b16 %v1783
  %v1876 = vunpack.c.l.b16 %v1784
  %v1877 = vunpack.c.l.b16 %v1785
  %v1878 = vunpack.c.h.b16 %v1785
  %v1879 = vunpack.c.l.b16 %v1786
  %v1880 = vunpack.c.l.b16 %v1787
  %v1881 = vunpack.c.h.b16 %v1787
  %v1882 = vunpack.c.l.b16 %v1788
  %v1883 = vunpack.c.l.b16 %v1789
  %v1884 = vunpack.c.h.b16 %v1789
  %v1885 = vunpack.c.l.b16 %v1790
  %v1886 = vunpack.c.l.b16 %v1791
  %v1887 = vunpack.c.h.b16 %v1791
  %v1888 = vunpack.c.l.b16 %v1792
  %v1889 = vunpack.c.l.b16 %v1793
  %v1890 = vunpack.c.h.b16 %v1793
  %v1891 = vunpack.c.l.b16 %v1794
  %v1892 = vpack.c.b16 %v1847, %v1844
  %v1893 = vpack.c.b16 %v1848, %v1845
  %v1894 = vpack.c.b16 %v1849, %v1846
  %v1895 = vpack.c.b16 %v1853, %v1850
  %v1896 = vpack.c.b16 %v1854, %v1851
  %v1897 = vpack.c.b16 %v1855, %v1852
  %v1898 = vpack.c.b16 %v1859, %v1856
  %v1899 = vpack.c.b16 %v1860, %v1857
  %v1900 = vpack.c.b16 %v1861, %v1858
  %v1901 = vpack.c.b16 %v1865, %v1862
  %v1902 = vpack.c.b16 %v1866, %v1863
  %v1903 = vpack.c.b16 %v1867, %v1864
  %v1904 = vpack.c.b16 %v1871, %v1868
  %v1905 = vpack.c.b16 %v1872, %v1869
  %v1906 = vpack.c.b16 %v1873, %v1870
  %v1907 = vpack.c.b16 %v1877, %v1874
  %v1908 = vpack.c.b16 %v1878, %v1875
  %v1909 = vpack.c.b16 %v1879, %v1876
  %v1910 = vpack.c.b16 %v1883, %v1880
  %v1911 = vpack.c.b16 %v1884, %v1881
  %v1912 = vpack.c.b16 %v1885, %v1882
  %v1913 = vpack.c.b16 %v1889, %v1886
  %v1914 = vpack.c.b16 %v1890, %v1887
  %v1915 = vpack.c.b16 %v1891, %v1888
  %1940 = vmatprep.subr.bf16.mxu0 %v1893
  %1941 = vmatpush1.bf16.msra.mxu0 %v1892
  %1942 = vmatprep.subr.bf16.mxu0 %v1896
  %1943 = vmatpush1.bf16.msra.mxu0 %v1895
  %1944 = vmatprep.subr.bf16.mxu0 %v1899
  %1945 = vmatpush1.bf16.msra.mxu0 %v1898
  %1946 = vmatprep.subr.bf16.mxu0 %v1902
  %1947 = vmatpush1.bf16.msra.mxu0 %v1901
  %1948 = vmatprep.subr.bf16.mxu0 %v1905
  %1949 = vmatpush1.bf16.msra.mxu0 %v1904
  %1950 = vmatprep.subr.bf16.mxu0 %v1908
  %1951 = vmatpush1.bf16.msra.mxu0 %v1907
  %1952 = vmatprep.subr.bf16.mxu0 %v1911
  %1953 = vmatpush1.bf16.msra.mxu0 %v1910
  %1954 = vmatprep.subr.bf16.mxu0 %v1914
  %1955 = vmatpush1.bf16.msra.mxu0 %v1913
  %1956 = vmatprep.subr.bf16.mxu0 0
  %1957 = vmatpush1.bf16.msra.mxu0 0
  %1958 = vmatprep.subr.bf16.mxu0 0
  %1959 = vmatpush1.bf16.msra.mxu0 0
  %1960 = vmatprep.subr.bf16.mxu0 0
  %1961 = vmatpush1.bf16.msra.mxu0 0
  %1962 = vmatprep.subr.bf16.mxu0 0
  %1963 = vmatpush1.bf16.msra.mxu0 0
  %1964 = vmatprep.subr.bf16.mxu0 0
  %1965 = vmatpush1.bf16.msra.mxu0 0
  %1966 = vmatprep.subr.bf16.mxu0 0
  %1967 = vmatpush1.bf16.msra.mxu0 0
  %1968 = vmatprep.subr.bf16.mxu0 0
  %1969 = vmatpush1.bf16.msra.mxu0 0
  %1970 = vmatprep.subr.bf16.mxu0 0
  %1971 = vmatpush1.bf16.msra.mxu0 0
  %1972 = vmatprep.mubr.bf16.mxu0 0
  %1973 = vmatmul.mubr.bf16.gmra.mrb[0].mxu0 %v1762
  %v1974 = vpop.f32.mrb[0].mxu0
  %v1975 = vadd.f32 %v1800, %v1974
  %v1976 = vpop.f32.mrb[0].mxu0
  %v1977 = vadd.f32 %v1804, %v1976
  %v1978 = vpop.f32.mrb[0].mxu0
  %v1979 = vpop.f32.mrb[0].mxu0
  %1980 = vdwg.mxu0
  %1981 = vmatprep.subr.bf16.mxu0 0
  %1982 = vmatpush1.bf16.msra.mxu0 %v1894
  %1983 = vmatprep.subr.bf16.mxu0 0
  %1984 = vmatpush1.bf16.msra.mxu0 %v1897
  %1985 = vmatprep.subr.bf16.mxu0 0
  %1986 = vmatpush1.bf16.msra.mxu0 %v1900
  %1987 = vmatprep.subr.bf16.mxu0 0
  %1988 = vmatpush1.bf16.msra.mxu0 %v1903
  %1989 = vmatprep.subr.bf16.mxu0 0
  %1990 = vmatpush1.bf16.msra.mxu0 %v1906
  %1991 = vmatprep.subr.bf16.mxu0 0
  %1992 = vmatpush1.bf16.msra.mxu0 %v1909
  %1993 = vmatprep.subr.bf16.mxu0 0
  %1994 = vmatpush1.bf16.msra.mxu0 %v1912
  %1995 = vmatprep.subr.bf16.mxu0 0
  %1996 = vmatpush1.bf16.msra.mxu0 %v1915
  %1997 = vmatprep.subr.bf16.mxu0 0
  %1998 = vmatpush1.bf16.msra.mxu0 0
  %1999 = vmatprep.subr.bf16.mxu0 0
  %2000 = vmatpush1.bf16.msra.mxu0 0
  %2001 = vmatprep.subr.bf16.mxu0 0
  %2002 = vmatpush1.bf16.msra.mxu0 0
  %2003 = vmatprep.subr.bf16.mxu0 0
  %2004 = vmatpush1.bf16.msra.mxu0 0
  %2005 = vmatprep.subr.bf16.mxu0 0
  %2006 = vmatpush1.bf16.msra.mxu0 0
  %2007 = vmatprep.subr.bf16.mxu0 0
  %2008 = vmatpush1.bf16.msra.mxu0 0
  %2009 = vmatprep.subr.bf16.mxu0 0
  %2010 = vmatpush1.bf16.msra.mxu0 0
  %2011 = vmatprep.subr.bf16.mxu0 0
  %2012 = vmatpush1.bf16.msra.mxu0 0
  %2013 = vmatprep.mubr.bf16.mxu0 0
  %2014 = vmatmul.mubr.bf16.gmra.mrb[0].mxu0 %v1762
  %v2015 = vpop.f32.mrb[0].mxu0
  %v2016 = vadd.f32 %v1808, %v2015
  %v2017 = vpop.f32.mrb[0].mxu0
  %v2018 = vpop.f32.mrb[0].mxu0
  %v2019 = vpop.f32.mrb[0].mxu0
  %2020 = vdwg.mxu0
  %s2021 = scalar_lea.vmem %s0, 36
  %v2022 = vld [vmem:[%s2021] sm:$0x3f]
  %v2023 = vadd.f32 %v2022, %v1975
  %v2024 = vsub.f32 0.0, %v2023
  %v2025 = vmul.f32 %v2024, 1.442695
  %v2026 = vpow.pop %v2025
  %v2027 = vadd.f32 %v2026, 1.0
  %v2028 = vrcp.pop %v2027
  %v2029 = vmul.f32 1.0, %v2028
  %v2031 = vrot.slane %v2022, 2
  %v2033 = vadd.f32 %v2031, %v1977
  %v2034 = vsub.f32 0.0, %v2033
  %v2035 = vmul.f32 %v2034, 1.442695
  %v2036 = vpow.pop %v2035
  %v2037 = vadd.f32 %v2036, 1.0
  %v2038 = vrcp.pop %v2037
  %v2039 = vmul.f32 1.0, %v2038
  %v2040 = vmul.f32 %v2029, %v2016
  %v2041 = vrot.slane %v2022, 4
  %v2043 = vadd.f32 %v2041, %v2040
  %v2044 = vtanh.pop %v2043
  %v2045 = vsub.f32 1.0, %v2039
  %v2046 = vmul.f32 %v2045, %v2044
  %v2047 = vmul.f32 %v2039, %v1761
  %v2048 = vadd.f32 %v2046, %v2047
  %2049 = vst [vmem:[#allocation2] sm:$0x3] %v2048
  %s2050 = scalar_lea.vmem %s3, 12
  %2051 = vst [vmem:[%s2050] sm:$0x3] %v2048
  %v2052 = vld [vmem:[#allocation3] sm:$0x3]
  %v2053 = vpack.c.bf16 %v2052, %v2052
  %v2054 = vld [vmem:[%s1 + $0xc] sm:$0xff]
  %v2055 = vld [vmem:[%s1 + $0x14] sm:$0xf]
  %v2056 = vld [vmem:[%s1 + $0x24] sm:$0xff]
  %v2057 = vld [vmem:[%s1 + $0x2c] sm:$0xf]
  %v2058 = vld [vmem:[%s1 + $0x3c] sm:$0xff]
  %v2059 = vld [vmem:[%s1 + $0x44] sm:$0xf]
  %v2060 = vld [vmem:[%s1 + $0x54] sm:$0xff]
  %v2061 = vld [vmem:[%s1 + $0x5c] sm:$0xf]
  %v2062 = vld [vmem:[%s1 + $0x6c] sm:$0xff]
  %v2063 = vld [vmem:[%s1 + $0x74] sm:$0xf]
  %v2064 = vld [vmem:[%s1 + $0x84] sm:$0xff]
  %v2065 = vld [vmem:[%s1 + $0x8c] sm:$0xf]
  %v2066 = vld [vmem:[%s1 + $0x9c] sm:$0xff]
  %v2067 = vld [vmem:[%s1 + $0xa4] sm:$0xf]
  %v2068 = vld [vmem:[%s1 + $0xb4] sm:$0xff]
  %v2069 = vld [vmem:[%s1 + $0xbc] sm:$0xf]
  %v2070 = vld [vmem:[%s1 + $0xcc] sm:$0xff]
  %v2071 = vld [vmem:[%s1 + $0xd4] sm:$0xf]
  %v2072 = vld [vmem:[%s1 + $0xe4] sm:$0xff]
  %v2073 = vld [vmem:[%s1 + $0xec] sm:$0xf]
  %v2074 = vld [vmem:[%s1 + $0xfc] sm:$0xff]
  %v2075 = vld [vmem:[%s1 + $0x104] sm:$0xf]
  %v2076 = vld [vmem:[%s1 + $0x114] sm:$0xff]
  %v2077 = vld [vmem:[%s1 + $0x11c] sm:$0xf]
  %v2078 = vld [vmem:[%s1 + $0x12c] sm:$0xff]
  %v2079 = vld [vmem:[%s1 + $0x134] sm:$0xf]
  %v2080 = vld [vmem:[%s1 + $0x144] sm:$0xff]
  %v2081 = vld [vmem:[%s1 + $0x14c] sm:$0xf]
  %v2082 = vld [vmem:[%s1 + $0x15c] sm:$0xff]
  %v2083 = vld [vmem:[%s1 + $0x164] sm:$0xf]
  %v2084 = vld [vmem:[%s1 + $0x174] sm:$0xff]
  %v2085 = vld [vmem:[%s1 + $0x17c] sm:$0xf]
  %v2086 = vld [vmem:[%s2 + $0x3] sm:$0x7]
  %v2088 = vlaneseq
  %v2089 = vshrl.u32 %v2088, 7
  %v2090 = vsub.s32 0, %v2089
  %v2091 = vrot.slane %v2086, %v2090
  %v2092 = vlaneseq
  %v2093 = vshrl.u32 %v2092, 7
  %v2094 = vsub.s32 1, %v2093
  %v2095 = vrot.slane %v2086, %v2094
  %v2096 = vlaneseq
  %v2097 = vshrl.u32 %v2096, 7
  %v2098 = vsub.s32 2, %v2097
  %v2099 = vrot.slane %v2086, %v2098
  %v2135 = vunpack.c.l.b16 %v2054
  %v2136 = vunpack.c.h.b16 %v2054
  %v2137 = vunpack.c.l.b16 %v2055
  %v2138 = vunpack.c.l.b16 %v2056
  %v2139 = vunpack.c.h.b16 %v2056
  %v2140 = vunpack.c.l.b16 %v2057
  %v2141 = vunpack.c.l.b16 %v2058
  %v2142 = vunpack.c.h.b16 %v2058
  %v2143 = vunpack.c.l.b16 %v2059
  %v2144 = vunpack.c.l.b16 %v2060
  %v2145 = vunpack.c.h.b16 %v2060
  %v2146 = vunpack.c.l.b16 %v2061
  %v2147 = vunpack.c.l.b16 %v2062
  %v2148 = vunpack.c.h.b16 %v2062
  %v2149 = vunpack.c.l.b16 %v2063
  %v2150 = vunpack.c.l.b16 %v2064
  %v2151 = vunpack.c.h.b16 %v2064
  %v2152 = vunpack.c.l.b16 %v2065
  %v2153 = vunpack.c.l.b16 %v2066
  %v2154 = vunpack.c.h.b16 %v2066
  %v2155 = vunpack.c.l.b16 %v2067
  %v2156 = vunpack.c.l.b16 %v2068
  %v2157 = vunpack.c.h.b16 %v2068
  %v2158 = vunpack.c.l.b16 %v2069
  %v2159 = vunpack.c.l.b16 %v2070
  %v2160 = vunpack.c.h.b16 %v2070
  %v2161 = vunpack.c.l.b16 %v2071
  %v2162 = vunpack.c.l.b16 %v2072
  %v2163 = vunpack.c.h.b16 %v2072
  %v2164 = vunpack.c.l.b16 %v2073
  %v2165 = vunpack.c.l.b16 %v2074
  %v2166 = vunpack.c.h.b16 %v2074
  %v2167 = vunpack.c.l.b16 %v2075
  %v2168 = vunpack.c.l.b16 %v2076
  %v2169 = vunpack.c.h.b16 %v2076
  %v2170 = vunpack.c.l.b16 %v2077
  %v2171 = vunpack.c.l.b16 %v2078
  %v2172 = vunpack.c.h.b16 %v2078
  %v2173 = vunpack.c.l.b16 %v2079
  %v2174 = vunpack.c.l.b16 %v2080
  %v2175 = vunpack.c.h.b16 %v2080
  %v2176 = vunpack.c.l.b16 %v2081
  %v2177 = vunpack.c.l.b16 %v2082
  %v2178 = vunpack.c.h.b16 %v2082
  %v2179 = vunpack.c.l.b16 %v2083
  %v2180 = vunpack.c.l.b16 %v2084
  %v2181 = vunpack.c.h.b16 %v2084
  %v2182 = vunpack.c.l.b16 %v2085
  %v2183 = vpack.c.b16 %v2138, %v2135
  %v2184 = vpack.c.b16 %v2139, %v2136
  %v2185 = vpack.c.b16 %v2140, %v2137
  %v2186 = vpack.c.b16 %v2144, %v2141
  %v2187 = vpack.c.b16 %v2145, %v2142
  %v2188 = vpack.c.b16 %v2146, %v2143
  %v2189 = vpack.c.b16 %v2150, %v2147
  %v2190 = vpack.c.b16 %v2151, %v2148
  %v2191 = vpack.c.b16 %v2152, %v2149
  %v2192 = vpack.c.b16 %v2156, %v2153
  %v2193 = vpack.c.b16 %v2157, %v2154
  %v2194 = vpack.c.b16 %v2158, %v2155
  %v2195 = vpack.c.b16 %v2162, %v2159
  %v2196 = vpack.c.b16 %v2163, %v2160
  %v2197 = vpack.c.b16 %v2164, %v2161
  %v2198 = vpack.c.b16 %v2168, %v2165
  %v2199 = vpack.c.b16 %v2169, %v2166
  %v2200 = vpack.c.b16 %v2170, %v2167
  %v2201 = vpack.c.b16 %v2174, %v2171
  %v2202 = vpack.c.b16 %v2175, %v2172
  %v2203 = vpack.c.b16 %v2176, %v2173
  %v2204 = vpack.c.b16 %v2180, %v2177
  %v2205 = vpack.c.b16 %v2181, %v2178
  %v2206 = vpack.c.b16 %v2182, %v2179
  %2231 = vmatprep.subr.bf16.mxu0 %v2184
  %2232 = vmatpush1.bf16.msra.mxu0 %v2183
  %2233 = vmatprep.subr.bf16.mxu0 %v2187
  %2234 = vmatpush1.bf16.msra.mxu0 %v2186
  %2235 = vmatprep.subr.bf16.mxu0 %v2190
  %2236 = vmatpush1.bf16.msra.mxu0 %v2189
  %2237 = vmatprep.subr.bf16.mxu0 %v2193
  %2238 = vmatpush1.bf16.msra.mxu0 %v2192
  %2239 = vmatprep.subr.bf16.mxu0 %v2196
  %2240 = vmatpush1.bf16.msra.mxu0 %v2195
  %2241 = vmatprep.subr.bf16.mxu0 %v2199
  %2242 = vmatpush1.bf16.msra.mxu0 %v2198
  %2243 = vmatprep.subr.bf16.mxu0 %v2202
  %2244 = vmatpush1.bf16.msra.mxu0 %v2201
  %2245 = vmatprep.subr.bf16.mxu0 %v2205
  %2246 = vmatpush1.bf16.msra.mxu0 %v2204
  %2247 = vmatprep.subr.bf16.mxu0 0
  %2248 = vmatpush1.bf16.msra.mxu0 0
  %2249 = vmatprep.subr.bf16.mxu0 0
  %2250 = vmatpush1.bf16.msra.mxu0 0
  %2251 = vmatprep.subr.bf16.mxu0 0
  %2252 = vmatpush1.bf16.msra.mxu0 0
  %2253 = vmatprep.subr.bf16.mxu0 0
  %2254 = vmatpush1.bf16.msra.mxu0 0
  %2255 = vmatprep.subr.bf16.mxu0 0
  %2256 = vmatpush1.bf16.msra.mxu0 0
  %2257 = vmatprep.subr.bf16.mxu0 0
  %2258 = vmatpush1.bf16.msra.mxu0 0
  %2259 = vmatprep.subr.bf16.mxu0 0
  %2260 = vmatpush1.bf16.msra.mxu0 0
  %2261 = vmatprep.subr.bf16.mxu0 0
  %2262 = vmatpush1.bf16.msra.mxu0 0
  %2263 = vmatprep.mubr.bf16.mxu0 0
  %2264 = vmatmul.mubr.bf16.gmra.mrb[0].mxu0 %v2053
  %v2265 = vpop.f32.mrb[0].mxu0
  %v2266 = vadd.f32 %v2091, %v2265
  %v2267 = vpop.f32.mrb[0].mxu0
  %v2268 = vadd.f32 %v2095, %v2267
  %v2269 = vpop.f32.mrb[0].mxu0
  %v2270 = vpop.f32.mrb[0].mxu0
  %2271 = vdwg.mxu0
  %2272 = vmatprep.subr.bf16.mxu0 0
  %2273 = vmatpush1.bf16.msra.mxu0 %v2185
  %2274 = vmatprep.subr.bf16.mxu0 0
  %2275 = vmatpush1.bf16.msra.mxu0 %v2188
  %2276 = vmatprep.subr.bf16.mxu0 0
  %2277 = vmatpush1.bf16.msra.mxu0 %v2191
  %2278 = vmatprep.subr.bf16.mxu0 0
  %2279 = vmatpush1.bf16.msra.mxu0 %v2194
  %2280 = vmatprep.subr.bf16.mxu0 0
  %2281 = vmatpush1.bf16.msra.mxu0 %v2197
  %2282 = vmatprep.subr.bf16.mxu0 0
  %2283 = vmatpush1.bf16.msra.mxu0 %v2200
  %2284 = vmatprep.subr.bf16.mxu0 0
  %2285 = vmatpush1.bf16.msra.mxu0 %v2203
  %2286 = vmatprep.subr.bf16.mxu0 0
  %2287 = vmatpush1.bf16.msra.mxu0 %v2206
  %2288 = vmatprep.subr.bf16.mxu0 0
  %2289 = vmatpush1.bf16.msra.mxu0 0
  %2290 = vmatprep.subr.bf16.mxu0 0
  %2291 = vmatpush1.bf16.msra.mxu0 0
  %2292 = vmatprep.subr.bf16.mxu0 0
  %2293 = vmatpush1.bf16.msra.mxu0 0
  %2294 = vmatprep.subr.bf16.mxu0 0
  %2295 = vmatpush1.bf16.msra.mxu0 0
  %2296 = vmatprep.subr.bf16.mxu0 0
  %2297 = vmatpush1.bf16.msra.mxu0 0
  %2298 = vmatprep.subr.bf16.mxu0 0
  %2299 = vmatpush1.bf16.msra.mxu0 0
  %2300 = vmatprep.subr.bf16.mxu0 0
  %2301 = vmatpush1.bf16.msra.mxu0 0
  %2302 = vmatprep.subr.bf16.mxu0 0
  %2303 = vmatpush1.bf16.msra.mxu0 0
  %2304 = vmatprep.mubr.bf16.mxu0 0
  %2305 = vmatmul.mubr.bf16.gmra.mrb[0].mxu0 %v2053
  %v2306 = vpop.f32.mrb[0].mxu0
  %v2307 = vadd.f32 %v2099, %v2306
  %v2308 = vpop.f32.mrb[0].mxu0
  %v2309 = vpop.f32.mrb[0].mxu0
  %v2310 = vpop.f32.mrb[0].mxu0
  %2311 = vdwg.mxu0
  %s2312 = scalar_lea.vmem %s0, 48
  %v2313 = vld [vmem:[%s2312 + $0x6] sm:$0x3f]
  %v2314 = vadd.f32 %v2313, %v2266
  %v2315 = vsub.f32 0.0, %v2314
  %v2316 = vmul.f32 %v2315, 1.442695
  %v2317 = vpow.pop %v2316
  %v2318 = vadd.f32 %v2317, 1.0
  %v2319 = vrcp.pop %v2318
  %v2320 = vmul.f32 1.0, %v2319
  %v2322 = vrot.slane %v2313, 2
  %v2324 = vadd.f32 %v2322, %v2268
  %v2325 = vsub.f32 0.0, %v2324
  %v2326 = vmul.f32 %v2325, 1.442695
  %v2327 = vpow.pop %v2326
  %v2328 = vadd.f32 %v2327, 1.0
  %v2329 = vrcp.pop %v2328
  %v2330 = vmul.f32 1.0, %v2329
  %v2331 = vmul.f32 %v2320, %v2307
  %v2332 = vrot.slane %v2313, 4
  %v2334 = vadd.f32 %v2332, %v2331
  %v2335 = vtanh.pop %v2334
  %v2336 = vsub.f32 1.0, %v2330
  %v2337 = vmul.f32 %v2336, %v2335
  %v2338 = vmul.f32 %v2330, %v2052
  %v2339 = vadd.f32 %v2337, %v2338
  %2340 = vst [vmem:[#allocation3] sm:$0x3] %v2339
  %s2341 = scalar_lea.vmem %s3, 16
  %2342 = vst [vmem:[%s2341 + $0x2] sm:$0x3] %v2339
  %v2343 = vld [vmem:[#allocation2] sm:$0x3]
  %v2344 = vpack.c.bf16 %v2343, %v2343
  %v2345 = vld [vmem:[%s1] sm:$0xff]
  %v2346 = vld [vmem:[%s1 + $0x8] sm:$0xf]
  %v2347 = vld [vmem:[%s1 + $0x18] sm:$0xff]
  %v2348 = vld [vmem:[%s1 + $0x20] sm:$0xf]
  %v2349 = vld [vmem:[%s1 + $0x30] sm:$0xff]
  %v2350 = vld [vmem:[%s1 + $0x38] sm:$0xf]
  %v2351 = vld [vmem:[%s1 + $0x48] sm:$0xff]
  %v2352 = vld [vmem:[%s1 + $0x50] sm:$0xf]
  %v2353 = vld [vmem:[%s1 + $0x60] sm:$0xff]
  %v2354 = vld [vmem:[%s1 + $0x68] sm:$0xf]
  %v2355 = vld [vmem:[%s1 + $0x78] sm:$0xff]
  %v2356 = vld [vmem:[%s1 + $0x80] sm:$0xf]
  %v2357 = vld [vmem:[%s1 + $0x90] sm:$0xff]
  %v2358 = vld [vmem:[%s1 + $0x98] sm:$0xf]
  %v2359 = vld [vmem:[%s1 + $0xa8] sm:$0xff]
  %v2360 = vld [vmem:[%s1 + $0xb0] sm:$0xf]
  %v2361 = vld [vmem:[%s1 + $0xc0] sm:$0xff]
  %v2362 = vld [vmem:[%s1 + $0xc8] sm:$0xf]
  %v2363 = vld [vmem:[%s1 + $0xd8] sm:$0xff]
  %v2364 = vld [vmem:[%s1 + $0xe0] sm:$0xf]
  %v2365 = vld [vmem:[%s1 + $0xf0] sm:$0xff]
  %v2366 = vld [vmem:[%s1 + $0xf8] sm:$0xf]
  %v2367 = vld [vmem:[%s1 + $0x108] sm:$0xff]
  %v2368 = vld [vmem:[%s1 + $0x110] sm:$0xf]
  %v2369 = vld [vmem:[%s1 + $0x120] sm:$0xff]
  %v2370 = vld [vmem:[%s1 + $0x128] sm:$0xf]
  %v2371 = vld [vmem:[%s1 + $0x138] sm:$0xff]
  %v2372 = vld [vmem:[%s1 + $0x140] sm:$0xf]
  %v2373 = vld [vmem:[%s1 + $0x150] sm:$0xff]
  %v2374 = vld [vmem:[%s1 + $0x158] sm:$0xf]
  %v2375 = vld [vmem:[%s1 + $0x168] sm:$0xff]
  %v2376 = vld [vmem:[%s1 + $0x170] sm:$0xf]
  %v2377 = vld [vmem:[%s2] sm:$0x7]
  %v2379 = vlaneseq
  %v2380 = vshrl.u32 %v2379, 7
  %v2381 = vsub.s32 0, %v2380
  %v2382 = vrot.slane %v2377, %v2381
  %v2383 = vlaneseq
  %v2384 = vshrl.u32 %v2383, 7
  %v2385 = vsub.s32 1, %v2384
  %v2386 = vrot.slane %v2377, %v2385
  %v2387 = vlaneseq
  %v2388 = vshrl.u32 %v2387, 7
  %v2389 = vsub.s32 2, %v2388
  %v2390 = vrot.slane %v2377, %v2389
  %v2426 = vunpack.c.l.b16 %v2345
  %v2427 = vunpack.c.h.b16 %v2345
  %v2428 = vunpack.c.l.b16 %v2346
  %v2429 = vunpack.c.l.b16 %v2347
  %v2430 = vunpack.c.h.b16 %v2347
  %v2431 = vunpack.c.l.b16 %v2348
  %v2432 = vunpack.c.l.b16 %v2349
  %v2433 = vunpack.c.h.b16 %v2349
  %v2434 = vunpack.c.l.b16 %v2350
  %v2435 = vunpack.c.l.b16 %v2351
  %v2436 = vunpack.c.h.b16 %v2351
  %v2437 = vunpack.c.l.b16 %v2352
  %v2438 = vunpack.c.l.b16 %v2353
  %v2439 = vunpack.c.h.b16 %v2353
  %v2440 = vunpack.c.l.b16 %v2354
  %v2441 = vunpack.c.l.b16 %v2355
  %v2442 = vunpack.c.h.b16 %v2355
  %v2443 = vunpack.c.l.b16 %v2356
  %v2444 = vunpack.c.l.b16 %v2357
  %v2445 = vunpack.c.h.b16 %v2357
  %v2446 = vunpack.c.l.b16 %v2358
  %v2447 = vunpack.c.l.b16 %v2359
  %v2448 = vunpack.c.h.b16 %v2359
  %v2449 = vunpack.c.l.b16 %v2360
  %v2450 = vunpack.c.l.b16 %v2361
  %v2451 = vunpack.c.h.b16 %v2361
  %v2452 = vunpack.c.l.b16 %v2362
  %v2453 = vunpack.c.l.b16 %v2363
  %v2454 = vunpack.c.h.b16 %v2363
  %v2455 = vunpack.c.l.b16 %v2364
  %v2456 = vunpack.c.l.b16 %v2365
  %v2457 = vunpack.c.h.b16 %v2365
  %v2458 = vunpack.c.l.b16 %v2366
  %v2459 = vunpack.c.l.b16 %v2367
  %v2460 = vunpack.c.h.b16 %v2367
  %v2461 = vunpack.c.l.b16 %v2368
  %v2462 = vunpack.c.l.b16 %v2369
  %v2463 = vunpack.c.h.b16 %v2369
  %v2464 = vunpack.c.l.b16 %v2370
  %v2465 = vunpack.c.l.b16 %v2371
  %v2466 = vunpack.c.h.b16 %v2371
  %v2467 = vunpack.c.l.b16 %v2372
  %v2468 = vunpack.c.l.b16 %v2373
  %v2469 = vunpack.c.h.b16 %v2373
  %v2470 = vunpack.c.l.b16 %v2374
  %v2471 = vunpack.c.l.b16 %v2375
  %v2472 = vunpack.c.h.b16 %v2375
  %v2473 = vunpack.c.l.b16 %v2376
  %v2474 = vpack.c.b16 %v2429, %v2426
  %v2475 = vpack.c.b16 %v2430, %v2427
  %v2476 = vpack.c.b16 %v2431, %v2428
  %v2477 = vpack.c.b16 %v2435, %v2432
  %v2478 = vpack.c.b16 %v2436, %v2433
  %v2479 = vpack.c.b16 %v2437, %v2434
  %v2480 = vpack.c.b16 %v2441, %v2438
  %v2481 = vpack.c.b16 %v2442, %v2439
  %v2482 = vpack.c.b16 %v2443, %v2440
  %v2483 = vpack.c.b16 %v2447, %v2444
  %v2484 = vpack.c.b16 %v2448, %v2445
  %v2485 = vpack.c.b16 %v2449, %v2446
  %v2486 = vpack.c.b16 %v2453, %v2450
  %v2487 = vpack.c.b16 %v2454, %v2451
  %v2488 = vpack.c.b16 %v2455, %v2452
  %v2489 = vpack.c.b16 %v2459, %v2456
  %v2490 = vpack.c.b16 %v2460, %v2457
  %v2491 = vpack.c.b16 %v2461, %v2458
  %v2492 = vpack.c.b16 %v2465, %v2462
  %v2493 = vpack.c.b16 %v2466, %v2463
  %v2494 = vpack.c.b16 %v2467, %v2464
  %v2495 = vpack.c.b16 %v2471, %v2468
  %v2496 = vpack.c.b16 %v2472, %v2469
  %v2497 = vpack.c.b16 %v2473, %v2470
  %2522 = vmatprep.subr.bf16.mxu0 %v2475
  %2523 = vmatpush1.bf16.msra.mxu0 %v2474
  %2524 = vmatprep.subr.bf16.mxu0 %v2478
  %2525 = vmatpush1.bf16.msra.mxu0 %v2477
  %2526 = vmatprep.subr.bf16.mxu0 %v2481
  %2527 = vmatpush1.bf16.msra.mxu0 %v2480
  %2528 = vmatprep.subr.bf16.mxu0 %v2484
  %2529 = vmatpush1.bf16.msra.mxu0 %v2483
  %2530 = vmatprep.subr.bf16.mxu0 %v2487
  %2531 = vmatpush1.bf16.msra.mxu0 %v2486
  %2532 = vmatprep.subr.bf16.mxu0 %v2490
  %2533 = vmatpush1.bf16.msra.mxu0 %v2489
  %2534 = vmatprep.subr.bf16.mxu0 %v2493
  %2535 = vmatpush1.bf16.msra.mxu0 %v2492
  %2536 = vmatprep.subr.bf16.mxu0 %v2496
  %2537 = vmatpush1.bf16.msra.mxu0 %v2495
  %2538 = vmatprep.subr.bf16.mxu0 0
  %2539 = vmatpush1.bf16.msra.mxu0 0
  %2540 = vmatprep.subr.bf16.mxu0 0
  %2541 = vmatpush1.bf16.msra.mxu0 0
  %2542 = vmatprep.subr.bf16.mxu0 0
  %2543 = vmatpush1.bf16.msra.mxu0 0
  %2544 = vmatprep.subr.bf16.mxu0 0
  %2545 = vmatpush1.bf16.msra.mxu0 0
  %2546 = vmatprep.subr.bf16.mxu0 0
  %2547 = vmatpush1.bf16.msra.mxu0 0
  %2548 = vmatprep.subr.bf16.mxu0 0
  %2549 = vmatpush1.bf16.msra.mxu0 0
  %2550 = vmatprep.subr.bf16.mxu0 0
  %2551 = vmatpush1.bf16.msra.mxu0 0
  %2552 = vmatprep.subr.bf16.mxu0 0
  %2553 = vmatpush1.bf16.msra.mxu0 0
  %2554 = vmatprep.mubr.bf16.mxu0 0
  %2555 = vmatmul.mubr.bf16.gmra.mrb[0].mxu0 %v2344
  %v2556 = vpop.f32.mrb[0].mxu0
  %v2557 = vadd.f32 %v2382, %v2556
  %v2558 = vpop.f32.mrb[0].mxu0
  %v2559 = vadd.f32 %v2386, %v2558
  %v2560 = vpop.f32.mrb[0].mxu0
  %v2561 = vpop.f32.mrb[0].mxu0
  %2562 = vdwg.mxu0
  %2563 = vmatprep.subr.bf16.mxu0 0
  %2564 = vmatpush1.bf16.msra.mxu0 %v2476
  %2565 = vmatprep.subr.bf16.mxu0 0
  %2566 = vmatpush1.bf16.msra.mxu0 %v2479
  %2567 = vmatprep.subr.bf16.mxu0 0
  %2568 = vmatpush1.bf16.msra.mxu0 %v2482
  %2569 = vmatprep.subr.bf16.mxu0 0
  %2570 = vmatpush1.bf16.msra.mxu0 %v2485
  %2571 = vmatprep.subr.bf16.mxu0 0
  %2572 = vmatpush1.bf16.msra.mxu0 %v2488
  %2573 = vmatprep.subr.bf16.mxu0 0
  %2574 = vmatpush1.bf16.msra.mxu0 %v2491
  %2575 = vmatprep.subr.bf16.mxu0 0
  %2576 = vmatpush1.bf16.msra.mxu0 %v2494
  %2577 = vmatprep.subr.bf16.mxu0 0
  %2578 = vmatpush1.bf16.msra.mxu0 %v2497
  %2579 = vmatprep.subr.bf16.mxu0 0
  %2580 = vmatpush1.bf16.msra.mxu0 0
  %2581 = vmatprep.subr.bf16.mxu0 0
  %2582 = vmatpush1.bf16.msra.mxu0 0
  %2583 = vmatprep.subr.bf16.mxu0 0
  %2584 = vmatpush1.bf16.msra.mxu0 0
  %2585 = vmatprep.subr.bf16.mxu0 0
  %2586 = vmatpush1.bf16.msra.mxu0 0
  %2587 = vmatprep.subr.bf16.mxu0 0
  %2588 = vmatpush1.bf16.msra.mxu0 0
  %2589 = vmatprep.subr.bf16.mxu0 0
  %2590 = vmatpush1.bf16.msra.mxu0 0
  %2591 = vmatprep.subr.bf16.mxu0 0
  %2592 = vmatpush1.bf16.msra.mxu0 0
  %2593 = vmatprep.subr.bf16.mxu0 0
  %2594 = vmatpush1.bf16.msra.mxu0 0
  %2595 = vmatprep.mubr.bf16.mxu0 0
  %2596 = vmatmul.mubr.bf16.gmra.mrb[0].mxu0 %v2344
  %v2597 = vpop.f32.mrb[0].mxu0
  %v2598 = vadd.f32 %v2390, %v2597
  %v2599 = vpop.f32.mrb[0].mxu0
  %v2600 = vpop.f32.mrb[0].mxu0
  %v2601 = vpop.f32.mrb[0].mxu0
  %2602 = vdwg.mxu0
  %v2603 = vld [vmem:[%s2312] sm:$0x3f]
  %v2604 = vadd.f32 %v2603, %v2557
  %v2605 = vsub.f32 0.0, %v2604
  %v2606 = vmul.f32 %v2605, 1.442695
  %v2607 = vpow.pop %v2606
  %v2608 = vadd.f32 %v2607, 1.0
  %v2609 = vrcp.pop %v2608
  %v2610 = vmul.f32 1.0, %v2609
  %v2612 = vrot.slane %v2603, 2
  %v2614 = vadd.f32 %v2612, %v2559
  %v2615 = vsub.f32 0.0, %v2614
  %v2616 = vmul.f32 %v2615, 1.442695
  %v2617 = vpow.pop %v2616
  %v2618 = vadd.f32 %v2617, 1.0
  %v2619 = vrcp.pop %v2618
  %v2620 = vmul.f32 1.0, %v2619
  %v2621 = vmul.f32 %v2610, %v2598
  %v2622 = vrot.slane %v2603, 4
  %v2624 = vadd.f32 %v2622, %v2621
  %v2625 = vtanh.pop %v2624
  %v2626 = vsub.f32 1.0, %v2620
  %v2627 = vmul.f32 %v2626, %v2625
  %v2628 = vmul.f32 %v2620, %v2343
  %v2629 = vadd.f32 %v2627, %v2628
  %2630 = vst [vmem:[#allocation2] sm:$0x3] %v2629
  %2631 = vst [vmem:[%s2341] sm:$0x3] %v2629
  %v2632 = vld [vmem:[#allocation3] sm:$0x3]
  %v2633 = vpack.c.bf16 %v2632, %v2632
  %v2634 = vld [vmem:[%s1 + $0xc] sm:$0xff]
  %v2635 = vld [vmem:[%s1 + $0x14] sm:$0xf]
  %v2636 = vld [vmem:[%s1 + $0x24] sm:$0xff]
  %v2637 = vld [vmem:[%s1 + $0x2c] sm:$0xf]
  %v2638 = vld [vmem:[%s1 + $0x3c] sm:$0xff]
  %v2639 = vld [vmem:[%s1 + $0x44] sm:$0xf]
  %v2640 = vld [vmem:[%s1 + $0x54] sm:$0xff]
  %v2641 = vld [vmem:[%s1 + $0x5c] sm:$0xf]
  %v2642 = vld [vmem:[%s1 + $0x6c] sm:$0xff]
  %v2643 = vld [vmem:[%s1 + $0x74] sm:$0xf]
  %v2644 = vld [vmem:[%s1 + $0x84] sm:$0xff]
  %v2645 = vld [vmem:[%s1 + $0x8c] sm:$0xf]
  %v2646 = vld [vmem:[%s1 + $0x9c] sm:$0xff]
  %v2647 = vld [vmem:[%s1 + $0xa4] sm:$0xf]
  %v2648 = vld [vmem:[%s1 + $0xb4] sm:$0xff]
  %v2649 = vld [vmem:[%s1 + $0xbc] sm:$0xf]
  %v2650 = vld [vmem:[%s1 + $0xcc] sm:$0xff]
  %v2651 = vld [vmem:[%s1 + $0xd4] sm:$0xf]
  %v2652 = vld [vmem:[%s1 + $0xe4] sm:$0xff]
  %v2653 = vld [vmem:[%s1 + $0xec] sm:$0xf]
  %v2654 = vld [vmem:[%s1 + $0xfc] sm:$0xff]
  %v2655 = vld [vmem:[%s1 + $0x104] sm:$0xf]
  %v2656 = vld [vmem:[%s1 + $0x114] sm:$0xff]
  %v2657 = vld [vmem:[%s1 + $0x11c] sm:$0xf]
  %v2658 = vld [vmem:[%s1 + $0x12c] sm:$0xff]
  %v2659 = vld [vmem:[%s1 + $0x134] sm:$0xf]
  %v2660 = vld [vmem:[%s1 + $0x144] sm:$0xff]
  %v2661 = vld [vmem:[%s1 + $0x14c] sm:$0xf]
  %v2662 = vld [vmem:[%s1 + $0x15c] sm:$0xff]
  %v2663 = vld [vmem:[%s1 + $0x164] sm:$0xf]
  %v2664 = vld [vmem:[%s1 + $0x174] sm:$0xff]
  %v2665 = vld [vmem:[%s1 + $0x17c] sm:$0xf]
  %v2666 = vld [vmem:[%s2 + $0x3] sm:$0x7]
  %v2668 = vlaneseq
  %v2669 = vshrl.u32 %v2668, 7
  %v2670 = vsub.s32 0, %v2669
  %v2671 = vrot.slane %v2666, %v2670
  %v2672 = vlaneseq
  %v2673 = vshrl.u32 %v2672, 7
  %v2674 = vsub.s32 1, %v2673
  %v2675 = vrot.slane %v2666, %v2674
  %v2676 = vlaneseq
  %v2677 = vshrl.u32 %v2676, 7
  %v2678 = vsub.s32 2, %v2677
  %v2679 = vrot.slane %v2666, %v2678
  %v2715 = vunpack.c.l.b16 %v2634
  %v2716 = vunpack.c.h.b16 %v2634
  %v2717 = vunpack.c.l.b16 %v2635
  %v2718 = vunpack.c.l.b16 %v2636
  %v2719 = vunpack.c.h.b16 %v2636
  %v2720 = vunpack.c.l.b16 %v2637
  %v2721 = vunpack.c.l.b16 %v2638
  %v2722 = vunpack.c.h.b16 %v2638
  %v2723 = vunpack.c.l.b16 %v2639
  %v2724 = vunpack.c.l.b16 %v2640
  %v2725 = vunpack.c.h.b16 %v2640
  %v2726 = vunpack.c.l.b16 %v2641
  %v2727 = vunpack.c.l.b16 %v2642
  %v2728 = vunpack.c.h.b16 %v2642
  %v2729 = vunpack.c.l.b16 %v2643
  %v2730 = vunpack.c.l.b16 %v2644
  %v2731 = vunpack.c.h.b16 %v2644
  %v2732 = vunpack.c.l.b16 %v2645
  %v2733 = vunpack.c.l.b16 %v2646
  %v2734 = vunpack.c.h.b16 %v2646
  %v2735 = vunpack.c.l.b16 %v2647
  %v2736 = vunpack.c.l.b16 %v2648
  %v2737 = vunpack.c.h.b16 %v2648
  %v2738 = vunpack.c.l.b16 %v2649
  %v2739 = vunpack.c.l.b16 %v2650
  %v2740 = vunpack.c.h.b16 %v2650
  %v2741 = vunpack.c.l.b16 %v2651
  %v2742 = vunpack.c.l.b16 %v2652
  %v2743 = vunpack.c.h.b16 %v2652
  %v2744 = vunpack.c.l.b16 %v2653
  %v2745 = vunpack.c.l.b16 %v2654
  %v2746 = vunpack.c.h.b16 %v2654
  %v2747 = vunpack.c.l.b16 %v2655
  %v2748 = vunpack.c.l.b16 %v2656
  %v2749 = vunpack.c.h.b16 %v2656
  %v2750 = vunpack.c.l.b16 %v2657
  %v2751 = vunpack.c.l.b16 %v2658
  %v2752 = vunpack.c.h.b16 %v2658
  %v2753 = vunpack.c.l.b16 %v2659
  %v2754 = vunpack.c.l.b16 %v2660
  %v2755 = vunpack.c.h.b16 %v2660
  %v2756 = vunpack.c.l.b16 %v2661
  %v2757 = vunpack.c.l.b16 %v2662
  %v2758 = vunpack.c.h.b16 %v2662
  %v2759 = vunpack.c.l.b16 %v2663
  %v2760 = vunpack.c.l.b16 %v2664
  %v2761 = vunpack.c.h.b16 %v2664
  %v2762 = vunpack.c.l.b16 %v2665
  %v2763 = vpack.c.b16 %v2718, %v2715
  %v2764 = vpack.c.b16 %v2719, %v2716
  %v2765 = vpack.c.b16 %v2720, %v2717
  %v2766 = vpack.c.b16 %v2724, %v2721
  %v2767 = vpack.c.b16 %v2725, %v2722
  %v2768 = vpack.c.b16 %v2726, %v2723
  %v2769 = vpack.c.b16 %v2730, %v2727
  %v2770 = vpack.c.b16 %v2731, %v2728
  %v2771 = vpack.c.b16 %v2732, %v2729
  %v2772 = vpack.c.b16 %v2736, %v2733
  %v2773 = vpack.c.b16 %v2737, %v2734
  %v2774 = vpack.c.b16 %v2738, %v2735
  %v2775 = vpack.c.b16 %v2742, %v2739
  %v2776 = vpack.c.b16 %v2743, %v2740
  %v2777 = vpack.c.b16 %v2744, %v2741
  %v2778 = vpack.c.b16 %v2748, %v2745
  %v2779 = vpack.c.b16 %v2749, %v2746
  %v2780 = vpack.c.b16 %v2750, %v2747
  %v2781 = vpack.c.b16 %v2754, %v2751
  %v2782 = vpack.c.b16 %v2755, %v2752
  %v2783 = vpack.c.b16 %v2756, %v2753
  %v2784 = vpack.c.b16 %v2760, %v2757
  %v2785 = vpack.c.b16 %v2761, %v2758
  %v2786 = vpack.c.b16 %v2762, %v2759
  %2811 = vmatprep.subr.bf16.mxu0 %v2764
  %2812 = vmatpush1.bf16.msra.mxu0 %v2763
  %2813 = vmatprep.subr.bf16.mxu0 %v2767
  %2814 = vmatpush1.bf16.msra.mxu0 %v2766
  %2815 = vmatprep.subr.bf16.mxu0 %v2770
  %2816 = vmatpush1.bf16.msra.mxu0 %v2769
  %2817 = vmatprep.subr.bf16.mxu0 %v2773
  %2818 = vmatpush1.bf16.msra.mxu0 %v2772
  %2819 = vmatprep.subr.bf16.mxu0 %v2776
  %2820 = vmatpush1.bf16.msra.mxu0 %v2775
  %2821 = vmatprep.subr.bf16.mxu0 %v2779
  %2822 = vmatpush1.bf16.msra.mxu0 %v2778
  %2823 = vmatprep.subr.bf16.mxu0 %v2782
  %2824 = vmatpush1.bf16.msra.mxu0 %v2781
  %2825 = vmatprep.subr.bf16.mxu0 %v2785
  %2826 = vmatpush1.bf16.msra.mxu0 %v2784
  %2827 = vmatprep.subr.bf16.mxu0 0
  %2828 = vmatpush1.bf16.msra.mxu0 0
  %2829 = vmatprep.subr.bf16.mxu0 0
  %2830 = vmatpush1.bf16.msra.mxu0 0
  %2831 = vmatprep.subr.bf16.mxu0 0
  %2832 = vmatpush1.bf16.msra.mxu0 0
  %2833 = vmatprep.subr.bf16.mxu0 0
  %2834 = vmatpush1.bf16.msra.mxu0 0
  %2835 = vmatprep.subr.bf16.mxu0 0
  %2836 = vmatpush1.bf16.msra.mxu0 0
  %2837 = vmatprep.subr.bf16.mxu0 0
  %2838 = vmatpush1.bf16.msra.mxu0 0
  %2839 = vmatprep.subr.bf16.mxu0 0
  %2840 = vmatpush1.bf16.msra.mxu0 0
  %2841 = vmatprep.subr.bf16.mxu0 0
  %2842 = vmatpush1.bf16.msra.mxu0 0
  %2843 = vmatprep.mubr.bf16.mxu0 0
  %2844 = vmatmul.mubr.bf16.gmra.mrb[0].mxu0 %v2633
  %v2845 = vpop.f32.mrb[0].mxu0
  %v2846 = vadd.f32 %v2671, %v2845
  %v2847 = vpop.f32.mrb[0].mxu0
  %v2848 = vadd.f32 %v2675, %v2847
  %v2849 = vpop.f32.mrb[0].mxu0
  %v2850 = vpop.f32.mrb[0].mxu0
  %2851 = vdwg.mxu0
  %2852 = vmatprep.subr.bf16.mxu0 0
  %2853 = vmatpush1.bf16.msra.mxu0 %v2765
  %2854 = vmatprep.subr.bf16.mxu0 0
  %2855 = vmatpush1.bf16.msra.mxu0 %v2768
  %2856 = vmatprep.subr.bf16.mxu0 0
  %2857 = vmatpush1.bf16.msra.mxu0 %v2771
  %2858 = vmatprep.subr.bf16.mxu0 0
  %2859 = vmatpush1.bf16.msra.mxu0 %v2774
  %2860 = vmatprep.subr.bf16.mxu0 0
  %2861 = vmatpush1.bf16.msra.mxu0 %v2777
  %2862 = vmatprep.subr.bf16.mxu0 0
  %2863 = vmatpush1.bf16.msra.mxu0 %v2780
  %2864 = vmatprep.subr.bf16.mxu0 0
  %2865 = vmatpush1.bf16.msra.mxu0 %v2783
  %2866 = vmatprep.subr.bf16.mxu0 0
  %2867 = vmatpush1.bf16.msra.mxu0 %v2786
  %2868 = vmatprep.subr.bf16.mxu0 0
  %2869 = vmatpush1.bf16.msra.mxu0 0
  %2870 = vmatprep.subr.bf16.mxu0 0
  %2871 = vmatpush1.bf16.msra.mxu0 0
  %2872 = vmatprep.subr.bf16.mxu0 0
  %2873 = vmatpush1.bf16.msra.mxu0 0
  %2874 = vmatprep.subr.bf16.mxu0 0
  %2875 = vmatpush1.bf16.msra.mxu0 0
  %2876 = vmatprep.subr.bf16.mxu0 0
  %2877 = vmatpush1.bf16.msra.mxu0 0
  %2878 = vmatprep.subr.bf16.mxu0 0
  %2879 = vmatpush1.bf16.msra.mxu0 0
  %2880 = vmatprep.subr.bf16.mxu0 0
  %2881 = vmatpush1.bf16.msra.mxu0 0
  %2882 = vmatprep.subr.bf16.mxu0 0
  %2883 = vmatpush1.bf16.msra.mxu0 0
  %2884 = vmatprep.mubr.bf16.mxu0 0
  %2885 = vmatmul.mubr.bf16.gmra.mrb[0].mxu0 %v2633
  %v2886 = vpop.f32.mrb[0].mxu0
  %v2887 = vadd.f32 %v2679, %v2886
  %v2888 = vpop.f32.mrb[0].mxu0
  %v2889 = vpop.f32.mrb[0].mxu0
  %v2890 = vpop.f32.mrb[0].mxu0
  %2891 = vdwg.mxu0
  %v2892 = vld [vmem:[%s2021 + $0x6] sm:$0x3f]
  %v2893 = vadd.f32 %v2892, %v2846
  %v2894 = vsub.f32 0.0, %v2893
  %v2895 = vmul.f32 %v2894, 1.442695
  %v2896 = vpow.pop %v2895
  %v2897 = vadd.f32 %v2896, 1.0
  %v2898 = vrcp.pop %v2897
  %v2899 = vmul.f32 1.0, %v2898
  %v2901 = vrot.slane %v2892, 2
  %v2903 = vadd.f32 %v2901, %v2848
  %v2904 = vsub.f32 0.0, %v2903
  %v2905 = vmul.f32 %v2904, 1.442695
  %v2906 = vpow.pop %v2905
  %v2907 = vadd.f32 %v2906, 1.0
  %v2908 = vrcp.pop %v2907
  %v2909 = vmul.f32 1.0, %v2908
  %v2910 = vmul.f32 %v2899, %v2887
  %v2911 = vrot.slane %v2892, 4
  %v2913 = vadd.f32 %v2911, %v2910
  %v2914 = vtanh.pop %v2913
  %v2915 = vsub.f32 1.0, %v2909
  %v2916 = vmul.f32 %v2915, %v2914
  %v2917 = vmul.f32 %v2909, %v2632
  %v2918 = vadd.f32 %v2916, %v2917
  %2919 = vst [vmem:[#allocation3] sm:$0x3] %v2918
  %2920 = vst [vmem:[%s2050 + $0x2] sm:$0x3] %v2918
  %v2921 = vld [vmem:[#allocation2] sm:$0x3]
  %v2922 = vpack.c.bf16 %v2921, %v2921
  %v2923 = vld [vmem:[%s1] sm:$0xff]
  %v2924 = vld [vmem:[%s1 + $0x8] sm:$0xf]
  %v2925 = vld [vmem:[%s1 + $0x18] sm:$0xff]
  %v2926 = vld [vmem:[%s1 + $0x20] sm:$0xf]
  %v2927 = vld [vmem:[%s1 + $0x30] sm:$0xff]
  %v2928 = vld [vmem:[%s1 + $0x38] sm:$0xf]
  %v2929 = vld [vmem:[%s1 + $0x48] sm:$0xff]
  %v2930 = vld [vmem:[%s1 + $0x50] sm:$0xf]
  %v2931 = vld [vmem:[%s1 + $0x60] sm:$0xff]
  %v2932 = vld [vmem:[%s1 + $0x68] sm:$0xf]
  %v2933 = vld [vmem:[%s1 + $0x78] sm:$0xff]
  %v2934 = vld [vmem:[%s1 + $0x80] sm:$0xf]
  %v2935 = vld [vmem:[%s1 + $0x90] sm:$0xff]
  %v2936 = vld [vmem:[%s1 + $0x98] sm:$0xf]
  %v2937 = vld [vmem:[%s1 + $0xa8] sm:$0xff]
  %v2938 = vld [vmem:[%s1 + $0xb0] sm:$0xf]
  %v2939 = vld [vmem:[%s1 + $0xc0] sm:$0xff]
  %v2940 = vld [vmem:[%s1 + $0xc8] sm:$0xf]
  %v2941 = vld [vmem:[%s1 + $0xd8] sm:$0xff]
  %v2942 = vld [vmem:[%s1 + $0xe0] sm:$0xf]
  %v2943 = vld [vmem:[%s1 + $0xf0] sm:$0xff]
  %v2944 = vld [vmem:[%s1 + $0xf8] sm:$0xf]
  %v2945 = vld [vmem:[%s1 + $0x108] sm:$0xff]
  %v2946 = vld [vmem:[%s1 + $0x110] sm:$0xf]
  %v2947 = vld [vmem:[%s1 + $0x120] sm:$0xff]
  %v2948 = vld [vmem:[%s1 + $0x128] sm:$0xf]
  %v2949 = vld [vmem:[%s1 + $0x138] sm:$0xff]
  %v2950 = vld [vmem:[%s1 + $0x140] sm:$0xf]
  %v2951 = vld [vmem:[%s1 + $0x150] sm:$0xff]
  %v2952 = vld [vmem:[%s1 + $0x158] sm:$0xf]
  %v2953 = vld [vmem:[%s1 + $0x168] sm:$0xff]
  %v2954 = vld [vmem:[%s1 + $0x170] sm:$0xf]
  %v2955 = vld [vmem:[%s2] sm:$0x7]
  %v2957 = vlaneseq
  %v2958 = vshrl.u32 %v2957, 7
  %v2959 = vsub.s32 0, %v2958
  %v2960 = vrot.slane %v2955, %v2959
  %v2961 = vlaneseq
  %v2962 = vshrl.u32 %v2961, 7
  %v2963 = vsub.s32 1, %v2962
  %v2964 = vrot.slane %v2955, %v2963
  %v2965 = vlaneseq
  %v2966 = vshrl.u32 %v2965, 7
  %v2967 = vsub.s32 2, %v2966
  %v2968 = vrot.slane %v2955, %v2967
  %v3004 = vunpack.c.l.b16 %v2923
  %v3005 = vunpack.c.h.b16 %v2923
  %v3006 = vunpack.c.l.b16 %v2924
  %v3007 = vunpack.c.l.b16 %v2925
  %v3008 = vunpack.c.h.b16 %v2925
  %v3009 = vunpack.c.l.b16 %v2926
  %v3010 = vunpack.c.l.b16 %v2927
  %v3011 = vunpack.c.h.b16 %v2927
  %v3012 = vunpack.c.l.b16 %v2928
  %v3013 = vunpack.c.l.b16 %v2929
  %v3014 = vunpack.c.h.b16 %v2929
  %v3015 = vunpack.c.l.b16 %v2930
  %v3016 = vunpack.c.l.b16 %v2931
  %v3017 = vunpack.c.h.b16 %v2931
  %v3018 = vunpack.c.l.b16 %v2932
  %v3019 = vunpack.c.l.b16 %v2933
  %v3020 = vunpack.c.h.b16 %v2933
  %v3021 = vunpack.c.l.b16 %v2934
  %v3022 = vunpack.c.l.b16 %v2935
  %v3023 = vunpack.c.h.b16 %v2935
  %v3024 = vunpack.c.l.b16 %v2936
  %v3025 = vunpack.c.l.b16 %v2937
  %v3026 = vunpack.c.h.b16 %v2937
  %v3027 = vunpack.c.l.b16 %v2938
  %v3028 = vunpack.c.l.b16 %v2939
  %v3029 = vunpack.c.h.b16 %v2939
  %v3030 = vunpack.c.l.b16 %v2940
  %v3031 = vunpack.c.l.b16 %v2941
  %v3032 = vunpack.c.h.b16 %v2941
  %v3033 = vunpack.c.l.b16 %v2942
  %v3034 = vunpack.c.l.b16 %v2943
  %v3035 = vunpack.c.h.b16 %v2943
  %v3036 = vunpack.c.l.b16 %v2944
  %v3037 = vunpack.c.l.b16 %v2945
  %v3038 = vunpack.c.h.b16 %v2945
  %v3039 = vunpack.c.l.b16 %v2946
  %v3040 = vunpack.c.l.b16 %v2947
  %v3041 = vunpack.c.h.b16 %v2947
  %v3042 = vunpack.c.l.b16 %v2948
  %v3043 = vunpack.c.l.b16 %v2949
  %v3044 = vunpack.c.h.b16 %v2949
  %v3045 = vunpack.c.l.b16 %v2950
  %v3046 = vunpack.c.l.b16 %v2951
  %v3047 = vunpack.c.h.b16 %v2951
  %v3048 = vunpack.c.l.b16 %v2952
  %v3049 = vunpack.c.l.b16 %v2953
  %v3050 = vunpack.c.h.b16 %v2953
  %v3051 = vunpack.c.l.b16 %v2954
  %v3052 = vpack.c.b16 %v3007, %v3004
  %v3053 = vpack.c.b16 %v3008, %v3005
  %v3054 = vpack.c.b16 %v3009, %v3006
  %v3055 = vpack.c.b16 %v3013, %v3010
  %v3056 = vpack.c.b16 %v3014, %v3011
  %v3057 = vpack.c.b16 %v3015, %v3012
  %v3058 = vpack.c.b16 %v3019, %v3016
  %v3059 = vpack.c.b16 %v3020, %v3017
  %v3060 = vpack.c.b16 %v3021, %v3018
  %v3061 = vpack.c.b16 %v3025, %v3022
  %v3062 = vpack.c.b16 %v3026, %v3023
  %v3063 = vpack.c.b16 %v3027, %v3024
  %v3064 = vpack.c.b16 %v3031, %v3028
  %v3065 = vpack.c.b16 %v3032, %v3029
  %v3066 = vpack.c.b16 %v3033, %v3030
  %v3067 = vpack.c.b16 %v3037, %v3034
  %v3068 = vpack.c.b16 %v3038, %v3035
  %v3069 = vpack.c.b16 %v3039, %v3036
  %v3070 = vpack.c.b16 %v3043, %v3040
  %v3071 = vpack.c.b16 %v3044, %v3041
  %v3072 = vpack.c.b16 %v3045, %v3042
  %v3073 = vpack.c.b16 %v3049, %v3046
  %v3074 = vpack.c.b16 %v3050, %v3047
  %v3075 = vpack.c.b16 %v3051, %v3048
  %3100 = vmatprep.subr.bf16.mxu0 %v3053
  %3101 = vmatpush1.bf16.msra.mxu0 %v3052
  %3102 = vmatprep.subr.bf16.mxu0 %v3056
  %3103 = vmatpush1.bf16.msra.mxu0 %v3055
  %3104 = vmatprep.subr.bf16.mxu0 %v3059
  %3105 = vmatpush1.bf16.msra.mxu0 %v3058
  %3106 = vmatprep.subr.bf16.mxu0 %v3062
  %3107 = vmatpush1.bf16.msra.mxu0 %v3061
  %3108 = vmatprep.subr.bf16.mxu0 %v3065
  %3109 = vmatpush1.bf16.msra.mxu0 %v3064
  %3110 = vmatprep.subr.bf16.mxu0 %v3068
  %3111 = vmatpush1.bf16.msra.mxu0 %v3067
  %3112 = vmatprep.subr.bf16.mxu0 %v3071
  %3113 = vmatpush1.bf16.msra.mxu0 %v3070
  %3114 = vmatprep.subr.bf16.mxu0 %v3074
  %3115 = vmatpush1.bf16.msra.mxu0 %v3073
  %3116 = vmatprep.subr.bf16.mxu0 0
  %3117 = vmatpush1.bf16.msra.mxu0 0
  %3118 = vmatprep.subr.bf16.mxu0 0
  %3119 = vmatpush1.bf16.msra.mxu0 0
  %3120 = vmatprep.subr.bf16.mxu0 0
  %3121 = vmatpush1.bf16.msra.mxu0 0
  %3122 = vmatprep.subr.bf16.mxu0 0
  %3123 = vmatpush1.bf16.msra.mxu0 0
  %3124 = vmatprep.subr.bf16.mxu0 0
  %3125 = vmatpush1.bf16.msra.mxu0 0
  %3126 = vmatprep.subr.bf16.mxu0 0
  %3127 = vmatpush1.bf16.msra.mxu0 0
  %3128 = vmatprep.subr.bf16.mxu0 0
  %3129 = vmatpush1.bf16.msra.mxu0 0
  %3130 = vmatprep.subr.bf16.mxu0 0
  %3131 = vmatpush1.bf16.msra.mxu0 0
  %3132 = vmatprep.mubr.bf16.mxu0 0
  %3133 = vmatmul.mubr.bf16.gmra.mrb[0].mxu0 %v2922
  %v3134 = vpop.f32.mrb[0].mxu0
  %v3135 = vadd.f32 %v2960, %v3134
  %v3136 = vpop.f32.mrb[0].mxu0
  %v3137 = vadd.f32 %v2964, %v3136
  %v3138 = vpop.f32.mrb[0].mxu0
  %v3139 = vpop.f32.mrb[0].mxu0
  %3140 = vdwg.mxu0
  %3141 = vmatprep.subr.bf16.mxu0 0
  %3142 = vmatpush1.bf16.msra.mxu0 %v3054
  %3143 = vmatprep.subr.bf16.mxu0 0
  %3144 = vmatpush1.bf16.msra.mxu0 %v3057
  %3145 = vmatprep.subr.bf16.mxu0 0
  %3146 = vmatpush1.bf16.msra.mxu0 %v3060
  %3147 = vmatprep.subr.bf16.mxu0 0
  %3148 = vmatpush1.bf16.msra.mxu0 %v3063
  %3149 = vmatprep.subr.bf16.mxu0 0
  %3150 = vmatpush1.bf16.msra.mxu0 %v3066
  %3151 = vmatprep.subr.bf16.mxu0 0
  %3152 = vmatpush1.bf16.msra.mxu0 %v3069
  %3153 = vmatprep.subr.bf16.mxu0 0
  %3154 = vmatpush1.bf16.msra.mxu0 %v3072
  %3155 = vmatprep.subr.bf16.mxu0 0
  %3156 = vmatpush1.bf16.msra.mxu0 %v3075
  %3157 = vmatprep.subr.bf16.mxu0 0
  %3158 = vmatpush1.bf16.msra.mxu0 0
  %3159 = vmatprep.subr.bf16.mxu0 0
  %3160 = vmatpush1.bf16.msra.mxu0 0
  %3161 = vmatprep.subr.bf16.mxu0 0
  %3162 = vmatpush1.bf16.msra.mxu0 0
  %3163 = vmatprep.subr.bf16.mxu0 0
  %3164 = vmatpush1.bf16.msra.mxu0 0
  %3165 = vmatprep.subr.bf16.mxu0 0
  %3166 = vmatpush1.bf16.msra.mxu0 0
  %3167 = vmatprep.subr.bf16.mxu0 0
  %3168 = vmatpush1.bf16.msra.mxu0 0
  %3169 = vmatprep.subr.bf16.mxu0 0
  %3170 = vmatpush1.bf16.msra.mxu0 0
  %3171 = vmatprep.subr.bf16.mxu0 0
  %3172 = vmatpush1.bf16.msra.mxu0 0
  %3173 = vmatprep.mubr.bf16.mxu0 0
  %3174 = vmatmul.mubr.bf16.gmra.mrb[0].mxu0 %v2922
  %v3175 = vpop.f32.mrb[0].mxu0
  %v3176 = vadd.f32 %v2968, %v3175
  %v3177 = vpop.f32.mrb[0].mxu0
  %v3178 = vpop.f32.mrb[0].mxu0
  %v3179 = vpop.f32.mrb[0].mxu0
  %3180 = vdwg.mxu0
  %v3181 = vld [vmem:[%s1730] sm:$0x3f]
  %v3182 = vadd.f32 %v3181, %v3135
  %v3183 = vsub.f32 0.0, %v3182
  %v3184 = vmul.f32 %v3183, 1.442695
  %v3185 = vpow.pop %v3184
  %v3186 = vadd.f32 %v3185, 1.0
  %v3187 = vrcp.pop %v3186
  %v3188 = vmul.f32 1.0, %v3187
  %v3190 = vrot.slane %v3181, 2
  %v3192 = vadd.f32 %v3190, %v3137
  %v3193 = vsub.f32 0.0, %v3192
  %v3194 = vmul.f32 %v3193, 1.442695
  %v3195 = vpow.pop %v3194
  %v3196 = vadd.f32 %v3195, 1.0
  %v3197 = vrcp.pop %v3196
  %v3198 = vmul.f32 1.0, %v3197
  %v3199 = vmul.f32 %v3188, %v3176
  %v3200 = vrot.slane %v3181, 4
  %v3202 = vadd.f32 %v3200, %v3199
  %v3203 = vtanh.pop %v3202
  %v3204 = vsub.f32 1.0, %v3198
  %v3205 = vmul.f32 %v3204, %v3203
  %v3206 = vmul.f32 %v3198, %v2921
  %v3207 = vadd.f32 %v3205, %v3206
  %3208 = vst [vmem:[#allocation2] sm:$0x3] %v3207
  %3209 = vst [vmem:[%s1759] sm:$0x3] %v3207
  %v3210 = vld [vmem:[#allocation3] sm:$0x3]
  %v3211 = vpack.c.bf16 %v3210, %v3210
  %v3212 = vld [vmem:[%s1 + $0xc] sm:$0xff]
  %v3213 = vld [vmem:[%s1 + $0x14] sm:$0xf]
  %v3214 = vld [vmem:[%s1 + $0x24] sm:$0xff]
  %v3215 = vld [vmem:[%s1 + $0x2c] sm:$0xf]
  %v3216 = vld [vmem:[%s1 + $0x3c] sm:$0xff]
  %v3217 = vld [vmem:[%s1 + $0x44] sm:$0xf]
  %v3218 = vld [vmem:[%s1 + $0x54] sm:$0xff]
  %v3219 = vld [vmem:[%s1 + $0x5c] sm:$0xf]
  %v3220 = vld [vmem:[%s1 + $0x6c] sm:$0xff]
  %v3221 = vld [vmem:[%s1 + $0x74] sm:$0xf]
  %v3222 = vld [vmem:[%s1 + $0x84] sm:$0xff]
  %v3223 = vld [vmem:[%s1 + $0x8c] sm:$0xf]
  %v3224 = vld [vmem:[%s1 + $0x9c] sm:$0xff]
  %v3225 = vld [vmem:[%s1 + $0xa4] sm:$0xf]
  %v3226 = vld [vmem:[%s1 + $0xb4] sm:$0xff]
  %v3227 = vld [vmem:[%s1 + $0xbc] sm:$0xf]
  %v3228 = vld [vmem:[%s1 + $0xcc] sm:$0xff]
  %v3229 = vld [vmem:[%s1 + $0xd4] sm:$0xf]
  %v3230 = vld [vmem:[%s1 + $0xe4] sm:$0xff]
  %v3231 = vld [vmem:[%s1 + $0xec] sm:$0xf]
  %v3232 = vld [vmem:[%s1 + $0xfc] sm:$0xff]
  %v3233 = vld [vmem:[%s1 + $0x104] sm:$0xf]
  %v3234 = vld [vmem:[%s1 + $0x114] sm:$0xff]
  %v3235 = vld [vmem:[%s1 + $0x11c] sm:$0xf]
  %v3236 = vld [vmem:[%s1 + $0x12c] sm:$0xff]
  %v3237 = vld [vmem:[%s1 + $0x134] sm:$0xf]
  %v3238 = vld [vmem:[%s1 + $0x144] sm:$0xff]
  %v3239 = vld [vmem:[%s1 + $0x14c] sm:$0xf]
  %v3240 = vld [vmem:[%s1 + $0x15c] sm:$0xff]
  %v3241 = vld [vmem:[%s1 + $0x164] sm:$0xf]
  %v3242 = vld [vmem:[%s1 + $0x174] sm:$0xff]
  %v3243 = vld [vmem:[%s1 + $0x17c] sm:$0xf]
  %v3244 = vld [vmem:[%s2 + $0x3] sm:$0x7]
  %v3246 = vlaneseq
  %v3247 = vshrl.u32 %v3246, 7
  %v3248 = vsub.s32 0, %v3247
  %v3249 = vrot.slane %v3244, %v3248
  %v3250 = vlaneseq
  %v3251 = vshrl.u32 %v3250, 7
  %v3252 = vsub.s32 1, %v3251
  %v3253 = vrot.slane %v3244, %v3252
  %v3254 = vlaneseq
  %v3255 = vshrl.u32 %v3254, 7
  %v3256 = vsub.s32 2, %v3255
  %v3257 = vrot.slane %v3244, %v3256
  %v3293 = vunpack.c.l.b16 %v3212
  %v3294 = vunpack.c.h.b16 %v3212
  %v3295 = vunpack.c.l.b16 %v3213
  %v3296 = vunpack.c.l.b16 %v3214
  %v3297 = vunpack.c.h.b16 %v3214
  %v3298 = vunpack.c.l.b16 %v3215
  %v3299 = vunpack.c.l.b16 %v3216
  %v3300 = vunpack.c.h.b16 %v3216
  %v3301 = vunpack.c.l.b16 %v3217
  %v3302 = vunpack.c.l.b16 %v3218
  %v3303 = vunpack.c.h.b16 %v3218
  %v3304 = vunpack.c.l.b16 %v3219
  %v3305 = vunpack.c.l.b16 %v3220
  %v3306 = vunpack.c.h.b16 %v3220
  %v3307 = vunpack.c.l.b16 %v3221
  %v3308 = vunpack.c.l.b16 %v3222
  %v3309 = vunpack.c.h.b16 %v3222
  %v3310 = vunpack.c.l.b16 %v3223
  %v3311 = vunpack.c.l.b16 %v3224
  %v3312 = vunpack.c.h.b16 %v3224
  %v3313 = vunpack.c.l.b16 %v3225
  %v3314 = vunpack.c.l.b16 %v3226
  %v3315 = vunpack.c.h.b16 %v3226
  %v3316 = vunpack.c.l.b16 %v3227
  %v3317 = vunpack.c.l.b16 %v3228
  %v3318 = vunpack.c.h.b16 %v3228
  %v3319 = vunpack.c.l.b16 %v3229
  %v3320 = vunpack.c.l.b16 %v3230
  %v3321 = vunpack.c.h.b16 %v3230
  %v3322 = vunpack.c.l.b16 %v3231
  %v3323 = vunpack.c.l.b16 %v3232
  %v3324 = vunpack.c.h.b16 %v3232
  %v3325 = vunpack.c.l.b16 %v3233
  %v3326 = vunpack.c.l.b16 %v3234
  %v3327 = vunpack.c.h.b16 %v3234
  %v3328 = vunpack.c.l.b16 %v3235
  %v3329 = vunpack.c.l.b16 %v3236
  %v3330 = vunpack.c.h.b16 %v3236
  %v3331 = vunpack.c.l.b16 %v3237
  %v3332 = vunpack.c.l.b16 %v3238
  %v3333 = vunpack.c.h.b16 %v3238
  %v3334 = vunpack.c.l.b16 %v3239
  %v3335 = vunpack.c.l.b16 %v3240
  %v3336 = vunpack.c.h.b16 %v3240
  %v3337 = vunpack.c.l.b16 %v3241
  %v3338 = vunpack.c.l.b16 %v3242
  %v3339 = vunpack.c.h.b16 %v3242
  %v3340 = vunpack.c.l.b16 %v3243
  %v3341 = vpack.c.b16 %v3296, %v3293
  %v3342 = vpack.c.b16 %v3297, %v3294
  %v3343 = vpack.c.b16 %v3298, %v3295
  %v3344 = vpack.c.b16 %v3302, %v3299
  %v3345 = vpack.c.b16 %v3303, %v3300
  %v3346 = vpack.c.b16 %v3304, %v3301
  %v3347 = vpack.c.b16 %v3308, %v3305
  %v3348 = vpack.c.b16 %v3309, %v3306
  %v3349 = vpack.c.b16 %v3310, %v3307
  %v3350 = vpack.c.b16 %v3314, %v3311
  %v3351 = vpack.c.b16 %v3315, %v3312
  %v3352 = vpack.c.b16 %v3316, %v3313
  %v3353 = vpack.c.b16 %v3320, %v3317
  %v3354 = vpack.c.b16 %v3321, %v3318
  %v3355 = vpack.c.b16 %v3322, %v3319
  %v3356 = vpack.c.b16 %v3326, %v3323
  %v3357 = vpack.c.b16 %v3327, %v3324
  %v3358 = vpack.c.b16 %v3328, %v3325
  %v3359 = vpack.c.b16 %v3332, %v3329
  %v3360 = vpack.c.b16 %v3333, %v3330
  %v3361 = vpack.c.b16 %v3334, %v3331
  %v3362 = vpack.c.b16 %v3338, %v3335
  %v3363 = vpack.c.b16 %v3339, %v3336
  %v3364 = vpack.c.b16 %v3340, %v3337
  %3389 = vmatprep.subr.bf16.mxu0 %v3342
  %3390 = vmatpush1.bf16.msra.mxu0 %v3341
  %3391 = vmatprep.subr.bf16.mxu0 %v3345
  %3392 = vmatpush1.bf16.msra.mxu0 %v3344
  %3393 = vmatprep.subr.bf16.mxu0 %v3348
  %3394 = vmatpush1.bf16.msra.mxu0 %v3347
  %3395 = vmatprep.subr.bf16.mxu0 %v3351
  %3396 = vmatpush1.bf16.msra.mxu0 %v3350
  %3397 = vmatprep.subr.bf16.mxu0 %v3354
  %3398 = vmatpush1.bf16.msra.mxu0 %v3353
  %3399 = vmatprep.subr.bf16.mxu0 %v3357
  %3400 = vmatpush1.bf16.msra.mxu0 %v3356
  %3401 = vmatprep.subr.bf16.mxu0 %v3360
  %3402 = vmatpush1.bf16.msra.mxu0 %v3359
  %3403 = vmatprep.subr.bf16.mxu0 %v3363
  %3404 = vmatpush1.bf16.msra.mxu0 %v3362
  %3405 = vmatprep.subr.bf16.mxu0 0
  %3406 = vmatpush1.bf16.msra.mxu0 0
  %3407 = vmatprep.subr.bf16.mxu0 0
  %3408 = vmatpush1.bf16.msra.mxu0 0
  %3409 = vmatprep.subr.bf16.mxu0 0
  %3410 = vmatpush1.bf16.msra.mxu0 0
  %3411 = vmatprep.subr.bf16.mxu0 0
  %3412 = vmatpush1.bf16.msra.mxu0 0
  %3413 = vmatprep.subr.bf16.mxu0 0
  %3414 = vmatpush1.bf16.msra.mxu0 0
  %3415 = vmatprep.subr.bf16.mxu0 0
  %3416 = vmatpush1.bf16.msra.mxu0 0
  %3417 = vmatprep.subr.bf16.mxu0 0
  %3418 = vmatpush1.bf16.msra.mxu0 0
  %3419 = vmatprep.subr.bf16.mxu0 0
  %3420 = vmatpush1.bf16.msra.mxu0 0
  %3421 = vmatprep.mubr.bf16.mxu0 0
  %3422 = vmatmul.mubr.bf16.gmra.mrb[0].mxu0 %v3211
  %v3423 = vpop.f32.mrb[0].mxu0
  %v3424 = vadd.f32 %v3249, %v3423
  %v3425 = vpop.f32.mrb[0].mxu0
  %v3426 = vadd.f32 %v3253, %v3425
  %v3427 = vpop.f32.mrb[0].mxu0
  %v3428 = vpop.f32.mrb[0].mxu0
  %3429 = vdwg.mxu0
  %3430 = vmatprep.subr.bf16.mxu0 0
  %3431 = vmatpush1.bf16.msra.mxu0 %v3343
  %3432 = vmatprep.subr.bf16.mxu0 0
  %3433 = vmatpush1.bf16.msra.mxu0 %v3346
  %3434 = vmatprep.subr.bf16.mxu0 0
  %3435 = vmatpush1.bf16.msra.mxu0 %v3349
  %3436 = vmatprep.subr.bf16.mxu0 0
  %3437 = vmatpush1.bf16.msra.mxu0 %v3352
  %3438 = vmatprep.subr.bf16.mxu0 0
  %3439 = vmatpush1.bf16.msra.mxu0 %v3355
  %3440 = vmatprep.subr.bf16.mxu0 0
  %3441 = vmatpush1.bf16.msra.mxu0 %v3358
  %3442 = vmatprep.subr.bf16.mxu0 0
  %3443 = vmatpush1.bf16.msra.mxu0 %v3361
  %3444 = vmatprep.subr.bf16.mxu0 0
  %3445 = vmatpush1.bf16.msra.mxu0 %v3364
  %3446 = vmatprep.subr.bf16.mxu0 0
  %3447 = vmatpush1.bf16.msra.mxu0 0
  %3448 = vmatprep.subr.bf16.mxu0 0
  %3449 = vmatpush1.bf16.msra.mxu0 0
  %3450 = vmatprep.subr.bf16.mxu0 0
  %3451 = vmatpush1.bf16.msra.mxu0 0
  %3452 = vmatprep.subr.bf16.mxu0 0
  %3453 = vmatpush1.bf16.msra.mxu0 0
  %3454 = vmatprep.subr.bf16.mxu0 0
  %3455 = vmatpush1.bf16.msra.mxu0 0
  %3456 = vmatprep.subr.bf16.mxu0 0
  %3457 = vmatpush1.bf16.msra.mxu0 0
  %3458 = vmatprep.subr.bf16.mxu0 0
  %3459 = vmatpush1.bf16.msra.mxu0 0
  %3460 = vmatprep.subr.bf16.mxu0 0
  %3461 = vmatpush1.bf16.msra.mxu0 0
  %3462 = vmatprep.mubr.bf16.mxu0 0
  %3463 = vmatmul.mubr.bf16.gmra.mrb[0].mxu0 %v3211
  %v3464 = vpop.f32.mrb[0].mxu0
  %v3465 = vadd.f32 %v3257, %v3464
  %v3466 = vpop.f32.mrb[0].mxu0
  %v3467 = vpop.f32.mrb[0].mxu0
  %v3468 = vpop.f32.mrb[0].mxu0
  %3469 = vdwg.mxu0
  %v3470 = vld [vmem:[%s1439 + $0x6] sm:$0x3f]
  %v3471 = vadd.f32 %v3470, %v3424
  %v3472 = vsub.f32 0.0, %v3471
  %v3473 = vmul.f32 %v3472, 1.442695
  %v3474 = vpow.pop %v3473
  %v3475 = vadd.f32 %v3474, 1.0
  %v3476 = vrcp.pop %v3475
  %v3477 = vmul.f32 1.0, %v3476
  %v3479 = vrot.slane %v3470, 2
  %v3481 = vadd.f32 %v3479, %v3426
  %v3482 = vsub.f32 0.0, %v3481
  %v3483 = vmul.f32 %v3482, 1.442695
  %v3484 = vpow.pop %v3483
  %v3485 = vadd.f32 %v3484, 1.0
  %v3486 = vrcp.pop %v3485
  %v3487 = vmul.f32 1.0, %v3486
  %v3488 = vmul.f32 %v3477, %v3465
  %v3489 = vrot.slane %v3470, 4
  %v3491 = vadd.f32 %v3489, %v3488
  %v3492 = vtanh.pop %v3491
  %v3493 = vsub.f32 1.0, %v3487
  %v3494 = vmul.f32 %v3493, %v3492
  %v3495 = vmul.f32 %v3487, %v3210
  %v3496 = vadd.f32 %v3494, %v3495
  %3497 = vst [vmem:[#allocation3] sm:$0x3] %v3496
  %3498 = vst [vmem:[%s1468 + $0x2] sm:$0x3] %v3496
  %v3499 = vld [vmem:[#allocation2] sm:$0x3]
  %v3500 = vpack.c.bf16 %v3499, %v3499
  %v3501 = vld [vmem:[%s1] sm:$0xff]
  %v3502 = vld [vmem:[%s1 + $0x8] sm:$0xf]
  %v3503 = vld [vmem:[%s1 + $0x18] sm:$0xff]
  %v3504 = vld [vmem:[%s1 + $0x20] sm:$0xf]
  %v3505 = vld [vmem:[%s1 + $0x30] sm:$0xff]
  %v3506 = vld [vmem:[%s1 + $0x38] sm:$0xf]
  %v3507 = vld [vmem:[%s1 + $0x48] sm:$0xff]
  %v3508 = vld [vmem:[%s1 + $0x50] sm:$0xf]
  %v3509 = vld [vmem:[%s1 + $0x60] sm:$0xff]
  %v3510 = vld [vmem:[%s1 + $0x68] sm:$0xf]
  %v3511 = vld [vmem:[%s1 + $0x78] sm:$0xff]
  %v3512 = vld [vmem:[%s1 + $0x80] sm:$0xf]
  %v3513 = vld [vmem:[%s1 + $0x90] sm:$0xff]
  %v3514 = vld [vmem:[%s1 + $0x98] sm:$0xf]
  %v3515 = vld [vmem:[%s1 + $0xa8] sm:$0xff]
  %v3516 = vld [vmem:[%s1 + $0xb0] sm:$0xf]
  %v3517 = vld [vmem:[%s1 + $0xc0] sm:$0xff]
  %v3518 = vld [vmem:[%s1 + $0xc8] sm:$0xf]
  %v3519 = vld [vmem:[%s1 + $0xd8] sm:$0xff]
  %v3520 = vld [vmem:[%s1 + $0xe0] sm:$0xf]
  %v3521 = vld [vmem:[%s1 + $0xf0] sm:$0xff]
  %v3522 = vld [vmem:[%s1 + $0xf8] sm:$0xf]
  %v3523 = vld [vmem:[%s1 + $0x108] sm:$0xff]
  %v3524 = vld [vmem:[%s1 + $0x110] sm:$0xf]
  %v3525 = vld [vmem:[%s1 + $0x120] sm:$0xff]
  %v3526 = vld [vmem:[%s1 + $0x128] sm:$0xf]
  %v3527 = vld [vmem:[%s1 + $0x138] sm:$0xff]
  %v3528 = vld [vmem:[%s1 + $0x140] sm:$0xf]
  %v3529 = vld [vmem:[%s1 + $0x150] sm:$0xff]
  %v3530 = vld [vmem:[%s1 + $0x158] sm:$0xf]
  %v3531 = vld [vmem:[%s1 + $0x168] sm:$0xff]
  %v3532 = vld [vmem:[%s1 + $0x170] sm:$0xf]
  %v3533 = vld [vmem:[%s2] sm:$0x7]
  %v3535 = vlaneseq
  %v3536 = vshrl.u32 %v3535, 7
  %v3537 = vsub.s32 0, %v3536
  %v3538 = vrot.slane %v3533, %v3537
  %v3539 = vlaneseq
  %v3540 = vshrl.u32 %v3539, 7
  %v3541 = vsub.s32 1, %v3540
  %v3542 = vrot.slane %v3533, %v3541
  %v3543 = vlaneseq
  %v3544 = vshrl.u32 %v3543, 7
  %v3545 = vsub.s32 2, %v3544
  %v3546 = vrot.slane %v3533, %v3545
  %v3582 = vunpack.c.l.b16 %v3501
  %v3583 = vunpack.c.h.b16 %v3501
  %v3584 = vunpack.c.l.b16 %v3502
  %v3585 = vunpack.c.l.b16 %v3503
  %v3586 = vunpack.c.h.b16 %v3503
  %v3587 = vunpack.c.l.b16 %v3504
  %v3588 = vunpack.c.l.b16 %v3505
  %v3589 = vunpack.c.h.b16 %v3505
  %v3590 = vunpack.c.l.b16 %v3506
  %v3591 = vunpack.c.l.b16 %v3507
  %v3592 = vunpack.c.h.b16 %v3507
  %v3593 = vunpack.c.l.b16 %v3508
  %v3594 = vunpack.c.l.b16 %v3509
  %v3595 = vunpack.c.h.b16 %v3509
  %v3596 = vunpack.c.l.b16 %v3510
  %v3597 = vunpack.c.l.b16 %v3511
  %v3598 = vunpack.c.h.b16 %v3511
  %v3599 = vunpack.c.l.b16 %v3512
  %v3600 = vunpack.c.l.b16 %v3513
  %v3601 = vunpack.c.h.b16 %v3513
  %v3602 = vunpack.c.l.b16 %v3514
  %v3603 = vunpack.c.l.b16 %v3515
  %v3604 = vunpack.c.h.b16 %v3515
  %v3605 = vunpack.c.l.b16 %v3516
  %v3606 = vunpack.c.l.b16 %v3517
  %v3607 = vunpack.c.h.b16 %v3517
  %v3608 = vunpack.c.l.b16 %v3518
  %v3609 = vunpack.c.l.b16 %v3519
  %v3610 = vunpack.c.h.b16 %v3519
  %v3611 = vunpack.c.l.b16 %v3520
  %v3612 = vunpack.c.l.b16 %v3521
  %v3613 = vunpack.c.h.b16 %v3521
  %v3614 = vunpack.c.l.b16 %v3522
  %v3615 = vunpack.c.l.b16 %v3523
  %v3616 = vunpack.c.h.b16 %v3523
  %v3617 = vunpack.c.l.b16 %v3524
  %v3618 = vunpack.c.l.b16 %v3525
  %v3619 = vunpack.c.h.b16 %v3525
  %v3620 = vunpack.c.l.b16 %v3526
  %v3621 = vunpack.c.l.b16 %v3527
  %v3622 = vunpack.c.h.b16 %v3527
  %v3623 = vunpack.c.l.b16 %v3528
  %v3624 = vunpack.c.l.b16 %v3529
  %v3625 = vunpack.c.h.b16 %v3529
  %v3626 = vunpack.c.l.b16 %v3530
  %v3627 = vunpack.c.l.b16 %v3531
  %v3628 = vunpack.c.h.b16 %v3531
  %v3629 = vunpack.c.l.b16 %v3532
  %v3630 = vpack.c.b16 %v3585, %v3582
  %v3631 = vpack.c.b16 %v3586, %v3583
  %v3632 = vpack.c.b16 %v3587, %v3584
  %v3633 = vpack.c.b16 %v3591, %v3588
  %v3634 = vpack.c.b16 %v3592, %v3589
  %v3635 = vpack.c.b16 %v3593, %v3590
  %v3636 = vpack.c.b16 %v3597, %v3594
  %v3637 = vpack.c.b16 %v3598, %v3595
  %v3638 = vpack.c.b16 %v3599, %v3596
  %v3639 = vpack.c.b16 %v3603, %v3600
  %v3640 = vpack.c.b16 %v3604, %v3601
  %v3641 = vpack.c.b16 %v3605, %v3602
  %v3642 = vpack.c.b16 %v3609, %v3606
  %v3643 = vpack.c.b16 %v3610, %v3607
  %v3644 = vpack.c.b16 %v3611, %v3608
  %v3645 = vpack.c.b16 %v3615, %v3612
  %v3646 = vpack.c.b16 %v3616, %v3613
  %v3647 = vpack.c.b16 %v3617, %v3614
  %v3648 = vpack.c.b16 %v3621, %v3618
  %v3649 = vpack.c.b16 %v3622, %v3619
  %v3650 = vpack.c.b16 %v3623, %v3620
  %v3651 = vpack.c.b16 %v3627, %v3624
  %v3652 = vpack.c.b16 %v3628, %v3625
  %v3653 = vpack.c.b16 %v3629, %v3626
  %3678 = vmatprep.subr.bf16.mxu0 %v3631
  %3679 = vmatpush1.bf16.msra.mxu0 %v3630
  %3680 = vmatprep.subr.bf16.mxu0 %v3634
  %3681 = vmatpush1.bf16.msra.mxu0 %v3633
  %3682 = vmatprep.subr.bf16.mxu0 %v3637
  %3683 = vmatpush1.bf16.msra.mxu0 %v3636
  %3684 = vmatprep.subr.bf16.mxu0 %v3640
  %3685 = vmatpush1.bf16.msra.mxu0 %v3639
  %3686 = vmatprep.subr.bf16.mxu0 %v3643
  %3687 = vmatpush1.bf16.msra.mxu0 %v3642
  %3688 = vmatprep.subr.bf16.mxu0 %v3646
  %3689 = vmatpush1.bf16.msra.mxu0 %v3645
  %3690 = vmatprep.subr.bf16.mxu0 %v3649
  %3691 = vmatpush1.bf16.msra.mxu0 %v3648
  %3692 = vmatprep.subr.bf16.mxu0 %v3652
  %3693 = vmatpush1.bf16.msra.mxu0 %v3651
  %3694 = vmatprep.subr.bf16.mxu0 0
  %3695 = vmatpush1.bf16.msra.mxu0 0
  %3696 = vmatprep.subr.bf16.mxu0 0
  %3697 = vmatpush1.bf16.msra.mxu0 0
  %3698 = vmatprep.subr.bf16.mxu0 0
  %3699 = vmatpush1.bf16.msra.mxu0 0
  %3700 = vmatprep.subr.bf16.mxu0 0
  %3701 = vmatpush1.bf16.msra.mxu0 0
  %3702 = vmatprep.subr.bf16.mxu0 0
  %3703 = vmatpush1.bf16.msra.mxu0 0
  %3704 = vmatprep.subr.bf16.mxu0 0
  %3705 = vmatpush1.bf16.msra.mxu0 0
  %3706 = vmatprep.subr.bf16.mxu0 0
  %3707 = vmatpush1.bf16.msra.mxu0 0
  %3708 = vmatprep.subr.bf16.mxu0 0
  %3709 = vmatpush1.bf16.msra.mxu0 0
  %3710 = vmatprep.mubr.bf16.mxu0 0
  %3711 = vmatmul.mubr.bf16.gmra.mrb[0].mxu0 %v3500
  %v3712 = vpop.f32.mrb[0].mxu0
  %v3713 = vadd.f32 %v3538, %v3712
  %v3714 = vpop.f32.mrb[0].mxu0
  %v3715 = vadd.f32 %v3542, %v3714
  %v3716 = vpop.f32.mrb[0].mxu0
  %v3717 = vpop.f32.mrb[0].mxu0
  %3718 = vdwg.mxu0
  %3719 = vmatprep.subr.bf16.mxu0 0
  %3720 = vmatpush1.bf16.msra.mxu0 %v3632
  %3721 = vmatprep.subr.bf16.mxu0 0
  %3722 = vmatpush1.bf16.msra.mxu0 %v3635
  %3723 = vmatprep.subr.bf16.mxu0 0
  %3724 = vmatpush1.bf16.msra.mxu0 %v3638
  %3725 = vmatprep.subr.bf16.mxu0 0
  %3726 = vmatpush1.bf16.msra.mxu0 %v3641
  %3727 = vmatprep.subr.bf16.mxu0 0
  %3728 = vmatpush1.bf16.msra.mxu0 %v3644
  %3729 = vmatprep.subr.bf16.mxu0 0
  %3730 = vmatpush1.bf16.msra.mxu0 %v3647
  %3731 = vmatprep.subr.bf16.mxu0 0
  %3732 = vmatpush1.bf16.msra.mxu0 %v3650
  %3733 = vmatprep.subr.bf16.mxu0 0
  %3734 = vmatpush1.bf16.msra.mxu0 %v3653
  %3735 = vmatprep.subr.bf16.mxu0 0
  %3736 = vmatpush1.bf16.msra.mxu0 0
  %3737 = vmatprep.subr.bf16.mxu0 0
  %3738 = vmatpush1.bf16.msra.mxu0 0
  %3739 = vmatprep.subr.bf16.mxu0 0
  %3740 = vmatpush1.bf16.msra.mxu0 0
  %3741 = vmatprep.subr.bf16.mxu0 0
  %3742 = vmatpush1.bf16.msra.mxu0 0
  %3743 = vmatprep.subr.bf16.mxu0 0
  %3744 = vmatpush1.bf16.msra.mxu0 0
  %3745 = vmatprep.subr.bf16.mxu0 0
  %3746 = vmatpush1.bf16.msra.mxu0 0
  %3747 = vmatprep.subr.bf16.mxu0 0
  %3748 = vmatpush1.bf16.msra.mxu0 0
  %3749 = vmatprep.subr.bf16.mxu0 0
  %3750 = vmatpush1.bf16.msra.mxu0 0
  %3751 = vmatprep.mubr.bf16.mxu0 0
  %3752 = vmatmul.mubr.bf16.gmra.mrb[0].mxu0 %v3500
  %v3753 = vpop.f32.mrb[0].mxu0
  %v3754 = vadd.f32 %v3546, %v3753
  %v3755 = vpop.f32.mrb[0].mxu0
  %v3756 = vpop.f32.mrb[0].mxu0
  %v3757 = vpop.f32.mrb[0].mxu0
  %3758 = vdwg.mxu0
  %v3759 = vld [vmem:[%s1148] sm:$0x3f]
  %v3760 = vadd.f32 %v3759, %v3713
  %v3761 = vsub.f32 0.0, %v3760
  %v3762 = vmul.f32 %v3761, 1.442695
  %v3763 = vpow.pop %v3762
  %v3764 = vadd.f32 %v3763, 1.0
  %v3765 = vrcp.pop %v3764
  %v3766 = vmul.f32 1.0, %v3765
  %v3768 = vrot.slane %v3759, 2
  %v3770 = vadd.f32 %v3768, %v3715
  %v3771 = vsub.f32 0.0, %v3770
  %v3772 = vmul.f32 %v3771, 1.442695
  %v3773 = vpow.pop %v3772
  %v3774 = vadd.f32 %v3773, 1.0
  %v3775 = vrcp.pop %v3774
  %v3776 = vmul.f32 1.0, %v3775
  %v3777 = vmul.f32 %v3766, %v3754
  %v3778 = vrot.slane %v3759, 4
  %v3780 = vadd.f32 %v3778, %v3777
  %v3781 = vtanh.pop %v3780
  %v3782 = vsub.f32 1.0, %v3776
  %v3783 = vmul.f32 %v3782, %v3781
  %v3784 = vmul.f32 %v3776, %v3499
  %v3785 = vadd.f32 %v3783, %v3784
  %3786 = vst [vmem:[#allocation2] sm:$0x3] %v3785
  %3787 = vst [vmem:[%s1177] sm:$0x3] %v3785
  %v3788 = vld [vmem:[#allocation3] sm:$0x3]
  %v3789 = vpack.c.bf16 %v3788, %v3788
  %v3790 = vld [vmem:[%s1 + $0xc] sm:$0xff]
  %v3791 = vld [vmem:[%s1 + $0x14] sm:$0xf]
  %v3792 = vld [vmem:[%s1 + $0x24] sm:$0xff]
  %v3793 = vld [vmem:[%s1 + $0x2c] sm:$0xf]
  %v3794 = vld [vmem:[%s1 + $0x3c] sm:$0xff]
  %v3795 = vld [vmem:[%s1 + $0x44] sm:$0xf]
  %v3796 = vld [vmem:[%s1 + $0x54] sm:$0xff]
  %v3797 = vld [vmem:[%s1 + $0x5c] sm:$0xf]
  %v3798 = vld [vmem:[%s1 + $0x6c] sm:$0xff]
  %v3799 = vld [vmem:[%s1 + $0x74] sm:$0xf]
  %v3800 = vld [vmem:[%s1 + $0x84] sm:$0xff]
  %v3801 = vld [vmem:[%s1 + $0x8c] sm:$0xf]
  %v3802 = vld [vmem:[%s1 + $0x9c] sm:$0xff]
  %v3803 = vld [vmem:[%s1 + $0xa4] sm:$0xf]
  %v3804 = vld [vmem:[%s1 + $0xb4] sm:$0xff]
  %v3805 = vld [vmem:[%s1 + $0xbc] sm:$0xf]
  %v3806 = vld [vmem:[%s1 + $0xcc] sm:$0xff]
  %v3807 = vld [vmem:[%s1 + $0xd4] sm:$0xf]
  %v3808 = vld [vmem:[%s1 + $0xe4] sm:$0xff]
  %v3809 = vld [vmem:[%s1 + $0xec] sm:$0xf]
  %v3810 = vld [vmem:[%s1 + $0xfc] sm:$0xff]
  %v3811 = vld [vmem:[%s1 + $0x104] sm:$0xf]
  %v3812 = vld [vmem:[%s1 + $0x114] sm:$0xff]
  %v3813 = vld [vmem:[%s1 + $0x11c] sm:$0xf]
  %v3814 = vld [vmem:[%s1 + $0x12c] sm:$0xff]
  %v3815 = vld [vmem:[%s1 + $0x134] sm:$0xf]
  %v3816 = vld [vmem:[%s1 + $0x144] sm:$0xff]
  %v3817 = vld [vmem:[%s1 + $0x14c] sm:$0xf]
  %v3818 = vld [vmem:[%s1 + $0x15c] sm:$0xff]
  %v3819 = vld [vmem:[%s1 + $0x164] sm:$0xf]
  %v3820 = vld [vmem:[%s1 + $0x174] sm:$0xff]
  %v3821 = vld [vmem:[%s1 + $0x17c] sm:$0xf]
  %v3822 = vld [vmem:[%s2 + $0x3] sm:$0x7]
  %v3824 = vlaneseq
  %v3825 = vshrl.u32 %v3824, 7
  %v3826 = vsub.s32 0, %v3825
  %v3827 = vrot.slane %v3822, %v3826
  %v3828 = vlaneseq
  %v3829 = vshrl.u32 %v3828, 7
  %v3830 = vsub.s32 1, %v3829
  %v3831 = vrot.slane %v3822, %v3830
  %v3832 = vlaneseq
  %v3833 = vshrl.u32 %v3832, 7
  %v3834 = vsub.s32 2, %v3833
  %v3835 = vrot.slane %v3822, %v3834
  %v3871 = vunpack.c.l.b16 %v3790
  %v3872 = vunpack.c.h.b16 %v3790
  %v3873 = vunpack.c.l.b16 %v3791
  %v3874 = vunpack.c.l.b16 %v3792
  %v3875 = vunpack.c.h.b16 %v3792
  %v3876 = vunpack.c.l.b16 %v3793
  %v3877 = vunpack.c.l.b16 %v3794
  %v3878 = vunpack.c.h.b16 %v3794
  %v3879 = vunpack.c.l.b16 %v3795
  %v3880 = vunpack.c.l.b16 %v3796
  %v3881 = vunpack.c.h.b16 %v3796
  %v3882 = vunpack.c.l.b16 %v3797
  %v3883 = vunpack.c.l.b16 %v3798
  %v3884 = vunpack.c.h.b16 %v3798
  %v3885 = vunpack.c.l.b16 %v3799
  %v3886 = vunpack.c.l.b16 %v3800
  %v3887 = vunpack.c.h.b16 %v3800
  %v3888 = vunpack.c.l.b16 %v3801
  %v3889 = vunpack.c.l.b16 %v3802
  %v3890 = vunpack.c.h.b16 %v3802
  %v3891 = vunpack.c.l.b16 %v3803
  %v3892 = vunpack.c.l.b16 %v3804
  %v3893 = vunpack.c.h.b16 %v3804
  %v3894 = vunpack.c.l.b16 %v3805
  %v3895 = vunpack.c.l.b16 %v3806
  %v3896 = vunpack.c.h.b16 %v3806
  %v3897 = vunpack.c.l.b16 %v3807
  %v3898 = vunpack.c.l.b16 %v3808
  %v3899 = vunpack.c.h.b16 %v3808
  %v3900 = vunpack.c.l.b16 %v3809
  %v3901 = vunpack.c.l.b16 %v3810
  %v3902 = vunpack.c.h.b16 %v3810
  %v3903 = vunpack.c.l.b16 %v3811
  %v3904 = vunpack.c.l.b16 %v3812
  %v3905 = vunpack.c.h.b16 %v3812
  %v3906 = vunpack.c.l.b16 %v3813
  %v3907 = vunpack.c.l.b16 %v3814
  %v3908 = vunpack.c.h.b16 %v3814
  %v3909 = vunpack.c.l.b16 %v3815
  %v3910 = vunpack.c.l.b16 %v3816
  %v3911 = vunpack.c.h.b16 %v3816
  %v3912 = vunpack.c.l.b16 %v3817
  %v3913 = vunpack.c.l.b16 %v3818
  %v3914 = vunpack.c.h.b16 %v3818
  %v3915 = vunpack.c.l.b16 %v3819
  %v3916 = vunpack.c.l.b16 %v3820
  %v3917 = vunpack.c.h.b16 %v3820
  %v3918 = vunpack.c.l.b16 %v3821
  %v3919 = vpack.c.b16 %v3874, %v3871
  %v3920 = vpack.c.b16 %v3875, %v3872
  %v3921 = vpack.c.b16 %v3876, %v3873
  %v3922 = vpack.c.b16 %v3880, %v3877
  %v3923 = vpack.c.b16 %v3881, %v3878
  %v3924 = vpack.c.b16 %v3882, %v3879
  %v3925 = vpack.c.b16 %v3886, %v3883
  %v3926 = vpack.c.b16 %v3887, %v3884
  %v3927 = vpack.c.b16 %v3888, %v3885
  %v3928 = vpack.c.b16 %v3892, %v3889
  %v3929 = vpack.c.b16 %v3893, %v3890
  %v3930 = vpack.c.b16 %v3894, %v3891
  %v3931 = vpack.c.b16 %v3898, %v3895
  %v3932 = vpack.c.b16 %v3899, %v3896
  %v3933 = vpack.c.b16 %v3900, %v3897
  %v3934 = vpack.c.b16 %v3904, %v3901
  %v3935 = vpack.c.b16 %v3905, %v3902
  %v3936 = vpack.c.b16 %v3906, %v3903
  %v3937 = vpack.c.b16 %v3910, %v3907
  %v3938 = vpack.c.b16 %v3911, %v3908
  %v3939 = vpack.c.b16 %v3912, %v3909
  %v3940 = vpack.c.b16 %v3916, %v3913
  %v3941 = vpack.c.b16 %v3917, %v3914
  %v3942 = vpack.c.b16 %v3918, %v3915
  %3967 = vmatprep.subr.bf16.mxu0 %v3920
  %3968 = vmatpush1.bf16.msra.mxu0 %v3919
  %3969 = vmatprep.subr.bf16.mxu0 %v3923
  %3970 = vmatpush1.bf16.msra.mxu0 %v3922
  %3971 = vmatprep.subr.bf16.mxu0 %v3926
  %3972 = vmatpush1.bf16.msra.mxu0 %v3925
  %3973 = vmatprep.subr.bf16.mxu0 %v3929
  %3974 = vmatpush1.bf16.msra.mxu0 %v3928
  %3975 = vmatprep.subr.bf16.mxu0 %v3932
  %3976 = vmatpush1.bf16.msra.mxu0 %v3931
  %3977 = vmatprep.subr.bf16.mxu0 %v3935
  %3978 = vmatpush1.bf16.msra.mxu0 %v3934
  %3979 = vmatprep.subr.bf16.mxu0 %v3938
  %3980 = vmatpush1.bf16.msra.mxu0 %v3937
  %3981 = vmatprep.subr.bf16.mxu0 %v3941
  %3982 = vmatpush1.bf16.msra.mxu0 %v3940
  %3983 = vmatprep.subr.bf16.mxu0 0
  %3984 = vmatpush1.bf16.msra.mxu0 0
  %3985 = vmatprep.subr.bf16.mxu0 0
  %3986 = vmatpush1.bf16.msra.mxu0 0
  %3987 = vmatprep.subr.bf16.mxu0 0
  %3988 = vmatpush1.bf16.msra.mxu0 0
  %3989 = vmatprep.subr.bf16.mxu0 0
  %3990 = vmatpush1.bf16.msra.mxu0 0
  %3991 = vmatprep.subr.bf16.mxu0 0
  %3992 = vmatpush1.bf16.msra.mxu0 0
  %3993 = vmatprep.subr.bf16.mxu0 0
  %3994 = vmatpush1.bf16.msra.mxu0 0
  %3995 = vmatprep.subr.bf16.mxu0 0
  %3996 = vmatpush1.bf16.msra.mxu0 0
  %3997 = vmatprep.subr.bf16.mxu0 0
  %3998 = vmatpush1.bf16.msra.mxu0 0
  %3999 = vmatprep.mubr.bf16.mxu0 0
  %4000 = vmatmul.mubr.bf16.gmra.mrb[0].mxu0 %v3789
  %v4001 = vpop.f32.mrb[0].mxu0
  %v4002 = vadd.f32 %v3827, %v4001
  %v4003 = vpop.f32.mrb[0].mxu0
  %v4004 = vadd.f32 %v3831, %v4003
  %v4005 = vpop.f32.mrb[0].mxu0
  %v4006 = vpop.f32.mrb[0].mxu0
  %4007 = vdwg.mxu0
  %4008 = vmatprep.subr.bf16.mxu0 0
  %4009 = vmatpush1.bf16.msra.mxu0 %v3921
  %4010 = vmatprep.subr.bf16.mxu0 0
  %4011 = vmatpush1.bf16.msra.mxu0 %v3924
  %4012 = vmatprep.subr.bf16.mxu0 0
  %4013 = vmatpush1.bf16.msra.mxu0 %v3927
  %4014 = vmatprep.subr.bf16.mxu0 0
  %4015 = vmatpush1.bf16.msra.mxu0 %v3930
  %4016 = vmatprep.subr.bf16.mxu0 0
  %4017 = vmatpush1.bf16.msra.mxu0 %v3933
  %4018 = vmatprep.subr.bf16.mxu0 0
  %4019 = vmatpush1.bf16.msra.mxu0 %v3936
  %4020 = vmatprep.subr.bf16.mxu0 0
  %4021 = vmatpush1.bf16.msra.mxu0 %v3939
  %4022 = vmatprep.subr.bf16.mxu0 0
  %4023 = vmatpush1.bf16.msra.mxu0 %v3942
  %4024 = vmatprep.subr.bf16.mxu0 0
  %4025 = vmatpush1.bf16.msra.mxu0 0
  %4026 = vmatprep.subr.bf16.mxu0 0
  %4027 = vmatpush1.bf16.msra.mxu0 0
  %4028 = vmatprep.subr.bf16.mxu0 0
  %4029 = vmatpush1.bf16.msra.mxu0 0
  %4030 = vmatprep.subr.bf16.mxu0 0
  %4031 = vmatpush1.bf16.msra.mxu0 0
  %4032 = vmatprep.subr.bf16.mxu0 0
  %4033 = vmatpush1.bf16.msra.mxu0 0
  %4034 = vmatprep.subr.bf16.mxu0 0
  %4035 = vmatpush1.bf16.msra.mxu0 0
  %4036 = vmatprep.subr.bf16.mxu0 0
  %4037 = vmatpush1.bf16.msra.mxu0 0
  %4038 = vmatprep.subr.bf16.mxu0 0
  %4039 = vmatpush1.bf16.msra.mxu0 0
  %4040 = vmatprep.mubr.bf16.mxu0 0
  %4041 = vmatmul.mubr.bf16.gmra.mrb[0].mxu0 %v3789
  %v4042 = vpop.f32.mrb[0].mxu0
  %v4043 = vadd.f32 %v3835, %v4042
  %v4044 = vpop.f32.mrb[0].mxu0
  %v4045 = vpop.f32.mrb[0].mxu0
  %v4046 = vpop.f32.mrb[0].mxu0
  %4047 = vdwg.mxu0
  %v4048 = vld [vmem:[%s857 + $0x6] sm:$0x3f]
  %v4049 = vadd.f32 %v4048, %v4002
  %v4050 = vsub.f32 0.0, %v4049
  %v4051 = vmul.f32 %v4050, 1.442695
  %v4052 = vpow.pop %v4051
  %v4053 = vadd.f32 %v4052, 1.0
  %v4054 = vrcp.pop %v4053
  %v4055 = vmul.f32 1.0, %v4054
  %v4057 = vrot.slane %v4048, 2
  %v4059 = vadd.f32 %v4057, %v4004
  %v4060 = vsub.f32 0.0, %v4059
  %v4061 = vmul.f32 %v4060, 1.442695
  %v4062 = vpow.pop %v4061
  %v4063 = vadd.f32 %v4062, 1.0
  %v4064 = vrcp.pop %v4063
  %v4065 = vmul.f32 1.0, %v4064
  %v4066 = vmul.f32 %v4055, %v4043
  %v4067 = vrot.slane %v4048, 4
  %v4069 = vadd.f32 %v4067, %v4066
  %v4070 = vtanh.pop %v4069
  %v4071 = vsub.f32 1.0, %v4065
  %v4072 = vmul.f32 %v4071, %v4070
  %v4073 = vmul.f32 %v4065, %v3788
  %v4074 = vadd.f32 %v4072, %v4073
  %4075 = vst [vmem:[#allocation3] sm:$0x3] %v4074
  %4076 = vst [vmem:[%s886 + $0x2] sm:$0x3] %v4074
  %v4077 = vld [vmem:[#allocation2] sm:$0x3]
  %v4078 = vpack.c.bf16 %v4077, %v4077
  %v4079 = vld [vmem:[%s1] sm:$0xff]
  %v4080 = vld [vmem:[%s1 + $0x8] sm:$0xf]
  %v4081 = vld [vmem:[%s1 + $0x18] sm:$0xff]
  %v4082 = vld [vmem:[%s1 + $0x20] sm:$0xf]
  %v4083 = vld [vmem:[%s1 + $0x30] sm:$0xff]
  %v4084 = vld [vmem:[%s1 + $0x38] sm:$0xf]
  %v4085 = vld [vmem:[%s1 + $0x48] sm:$0xff]
  %v4086 = vld [vmem:[%s1 + $0x50] sm:$0xf]
  %v4087 = vld [vmem:[%s1 + $0x60] sm:$0xff]
  %v4088 = vld [vmem:[%s1 + $0x68] sm:$0xf]
  %v4089 = vld [vmem:[%s1 + $0x78] sm:$0xff]
  %v4090 = vld [vmem:[%s1 + $0x80] sm:$0xf]
  %v4091 = vld [vmem:[%s1 + $0x90] sm:$0xff]
  %v4092 = vld [vmem:[%s1 + $0x98] sm:$0xf]
  %v4093 = vld [vmem:[%s1 + $0xa8] sm:$0xff]
  %v4094 = vld [vmem:[%s1 + $0xb0] sm:$0xf]
  %v4095 = vld [vmem:[%s1 + $0xc0] sm:$0xff]
  %v4096 = vld [vmem:[%s1 + $0xc8] sm:$0xf]
  %v4097 = vld [vmem:[%s1 + $0xd8] sm:$0xff]
  %v4098 = vld [vmem:[%s1 + $0xe0] sm:$0xf]
  %v4099 = vld [vmem:[%s1 + $0xf0] sm:$0xff]
  %v4100 = vld [vmem:[%s1 + $0xf8] sm:$0xf]
  %v4101 = vld [vmem:[%s1 + $0x108] sm:$0xff]
  %v4102 = vld [vmem:[%s1 + $0x110] sm:$0xf]
  %v4103 = vld [vmem:[%s1 + $0x120] sm:$0xff]
  %v4104 = vld [vmem:[%s1 + $0x128] sm:$0xf]
  %v4105 = vld [vmem:[%s1 + $0x138] sm:$0xff]
  %v4106 = vld [vmem:[%s1 + $0x140] sm:$0xf]
  %v4107 = vld [vmem:[%s1 + $0x150] sm:$0xff]
  %v4108 = vld [vmem:[%s1 + $0x158] sm:$0xf]
  %v4109 = vld [vmem:[%s1 + $0x168] sm:$0xff]
  %v4110 = vld [vmem:[%s1 + $0x170] sm:$0xf]
  %v4111 = vld [vmem:[%s2] sm:$0x7]
  %v4113 = vlaneseq
  %v4114 = vshrl.u32 %v4113, 7
  %v4115 = vsub.s32 0, %v4114
  %v4116 = vrot.slane %v4111, %v4115
  %v4117 = vlaneseq
  %v4118 = vshrl.u32 %v4117, 7
  %v4119 = vsub.s32 1, %v4118
  %v4120 = vrot.slane %v4111, %v4119
  %v4121 = vlaneseq
  %v4122 = vshrl.u32 %v4121, 7
  %v4123 = vsub.s32 2, %v4122
  %v4124 = vrot.slane %v4111, %v4123
  %v4160 = vunpack.c.l.b16 %v4079
  %v4161 = vunpack.c.h.b16 %v4079
  %v4162 = vunpack.c.l.b16 %v4080
  %v4163 = vunpack.c.l.b16 %v4081
  %v4164 = vunpack.c.h.b16 %v4081
  %v4165 = vunpack.c.l.b16 %v4082
  %v4166 = vunpack.c.l.b16 %v4083
  %v4167 = vunpack.c.h.b16 %v4083
  %v4168 = vunpack.c.l.b16 %v4084
  %v4169 = vunpack.c.l.b16 %v4085
  %v4170 = vunpack.c.h.b16 %v4085
  %v4171 = vunpack.c.l.b16 %v4086
  %v4172 = vunpack.c.l.b16 %v4087
  %v4173 = vunpack.c.h.b16 %v4087
  %v4174 = vunpack.c.l.b16 %v4088
  %v4175 = vunpack.c.l.b16 %v4089
  %v4176 = vunpack.c.h.b16 %v4089
  %v4177 = vunpack.c.l.b16 %v4090
  %v4178 = vunpack.c.l.b16 %v4091
  %v4179 = vunpack.c.h.b16 %v4091
  %v4180 = vunpack.c.l.b16 %v4092
  %v4181 = vunpack.c.l.b16 %v4093
  %v4182 = vunpack.c.h.b16 %v4093
  %v4183 = vunpack.c.l.b16 %v4094
  %v4184 = vunpack.c.l.b16 %v4095
  %v4185 = vunpack.c.h.b16 %v4095
  %v4186 = vunpack.c.l.b16 %v4096
  %v4187 = vunpack.c.l.b16 %v4097
  %v4188 = vunpack.c.h.b16 %v4097
  %v4189 = vunpack.c.l.b16 %v4098
  %v4190 = vunpack.c.l.b16 %v4099
  %v4191 = vunpack.c.h.b16 %v4099
  %v4192 = vunpack.c.l.b16 %v4100
  %v4193 = vunpack.c.l.b16 %v4101
  %v4194 = vunpack.c.h.b16 %v4101
  %v4195 = vunpack.c.l.b16 %v4102
  %v4196 = vunpack.c.l.b16 %v4103
  %v4197 = vunpack.c.h.b16 %v4103
  %v4198 = vunpack.c.l.b16 %v4104
  %v4199 = vunpack.c.l.b16 %v4105
  %v4200 = vunpack.c.h.b16 %v4105
  %v4201 = vunpack.c.l.b16 %v4106
  %v4202 = vunpack.c.l.b16 %v4107
  %v4203 = vunpack.c.h.b16 %v4107
  %v4204 = vunpack.c.l.b16 %v4108
  %v4205 = vunpack.c.l.b16 %v4109
  %v4206 = vunpack.c.h.b16 %v4109
  %v4207 = vunpack.c.l.b16 %v4110
  %v4208 = vpack.c.b16 %v4163, %v4160
  %v4209 = vpack.c.b16 %v4164, %v4161
  %v4210 = vpack.c.b16 %v4165, %v4162
  %v4211 = vpack.c.b16 %v4169, %v4166
  %v4212 = vpack.c.b16 %v4170, %v4167
  %v4213 = vpack.c.b16 %v4171, %v4168
  %v4214 = vpack.c.b16 %v4175, %v4172
  %v4215 = vpack.c.b16 %v4176, %v4173
  %v4216 = vpack.c.b16 %v4177, %v4174
  %v4217 = vpack.c.b16 %v4181, %v4178
  %v4218 = vpack.c.b16 %v4182, %v4179
  %v4219 = vpack.c.b16 %v4183, %v4180
  %v4220 = vpack.c.b16 %v4187, %v4184
  %v4221 = vpack.c.b16 %v4188, %v4185
  %v4222 = vpack.c.b16 %v4189, %v4186
  %v4223 = vpack.c.b16 %v4193, %v4190
  %v4224 = vpack.c.b16 %v4194, %v4191
  %v4225 = vpack.c.b16 %v4195, %v4192
  %v4226 = vpack.c.b16 %v4199, %v4196
  %v4227 = vpack.c.b16 %v4200, %v4197
  %v4228 = vpack.c.b16 %v4201, %v4198
  %v4229 = vpack.c.b16 %v4205, %v4202
  %v4230 = vpack.c.b16 %v4206, %v4203
  %v4231 = vpack.c.b16 %v4207, %v4204
  %4256 = vmatprep.subr.bf16.mxu0 %v4209
  %4257 = vmatpush1.bf16.msra.mxu0 %v4208
  %4258 = vmatprep.subr.bf16.mxu0 %v4212
  %4259 = vmatpush1.bf16.msra.mxu0 %v4211
  %4260 = vmatprep.subr.bf16.mxu0 %v4215
  %4261 = vmatpush1.bf16.msra.mxu0 %v4214
  %4262 = vmatprep.subr.bf16.mxu0 %v4218
  %4263 = vmatpush1.bf16.msra.mxu0 %v4217
  %4264 = vmatprep.subr.bf16.mxu0 %v4221
  %4265 = vmatpush1.bf16.msra.mxu0 %v4220
  %4266 = vmatprep.subr.bf16.mxu0 %v4224
  %4267 = vmatpush1.bf16.msra.mxu0 %v4223
  %4268 = vmatprep.subr.bf16.mxu0 %v4227
  %4269 = vmatpush1.bf16.msra.mxu0 %v4226
  %4270 = vmatprep.subr.bf16.mxu0 %v4230
  %4271 = vmatpush1.bf16.msra.mxu0 %v4229
  %4272 = vmatprep.subr.bf16.mxu0 0
  %4273 = vmatpush1.bf16.msra.mxu0 0
  %4274 = vmatprep.subr.bf16.mxu0 0
  %4275 = vmatpush1.bf16.msra.mxu0 0
  %4276 = vmatprep.subr.bf16.mxu0 0
  %4277 = vmatpush1.bf16.msra.mxu0 0
  %4278 = vmatprep.subr.bf16.mxu0 0
  %4279 = vmatpush1.bf16.msra.mxu0 0
  %4280 = vmatprep.subr.bf16.mxu0 0
  %4281 = vmatpush1.bf16.msra.mxu0 0
  %4282 = vmatprep.subr.bf16.mxu0 0
  %4283 = vmatpush1.bf16.msra.mxu0 0
  %4284 = vmatprep.subr.bf16.mxu0 0
  %4285 = vmatpush1.bf16.msra.mxu0 0
  %4286 = vmatprep.subr.bf16.mxu0 0
  %4287 = vmatpush1.bf16.msra.mxu0 0
  %4288 = vmatprep.mubr.bf16.mxu0 0
  %4289 = vmatmul.mubr.bf16.gmra.mrb[0].mxu0 %v4078
  %v4290 = vpop.f32.mrb[0].mxu0
  %v4291 = vadd.f32 %v4116, %v4290
  %v4292 = vpop.f32.mrb[0].mxu0
  %v4293 = vadd.f32 %v4120, %v4292
  %v4294 = vpop.f32.mrb[0].mxu0
  %v4295 = vpop.f32.mrb[0].mxu0
  %4296 = vdwg.mxu0
  %4297 = vmatprep.subr.bf16.mxu0 0
  %4298 = vmatpush1.bf16.msra.mxu0 %v4210
  %4299 = vmatprep.subr.bf16.mxu0 0
  %4300 = vmatpush1.bf16.msra.mxu0 %v4213
  %4301 = vmatprep.subr.bf16.mxu0 0
  %4302 = vmatpush1.bf16.msra.mxu0 %v4216
  %4303 = vmatprep.subr.bf16.mxu0 0
  %4304 = vmatpush1.bf16.msra.mxu0 %v4219
  %4305 = vmatprep.subr.bf16.mxu0 0
  %4306 = vmatpush1.bf16.msra.mxu0 %v4222
  %4307 = vmatprep.subr.bf16.mxu0 0
  %4308 = vmatpush1.bf16.msra.mxu0 %v4225
  %4309 = vmatprep.subr.bf16.mxu0 0
  %4310 = vmatpush1.bf16.msra.mxu0 %v4228
  %4311 = vmatprep.subr.bf16.mxu0 0
  %4312 = vmatpush1.bf16.msra.mxu0 %v4231
  %4313 = vmatprep.subr.bf16.mxu0 0
  %4314 = vmatpush1.bf16.msra.mxu0 0
  %4315 = vmatprep.subr.bf16.mxu0 0
  %4316 = vmatpush1.bf16.msra.mxu0 0
  %4317 = vmatprep.subr.bf16.mxu0 0
  %4318 = vmatpush1.bf16.msra.mxu0 0
  %4319 = vmatprep.subr.bf16.mxu0 0
  %4320 = vmatpush1.bf16.msra.mxu0 0
  %4321 = vmatprep.subr.bf16.mxu0 0
  %4322 = vmatpush1.bf16.msra.mxu0 0
  %4323 = vmatprep.subr.bf16.mxu0 0
  %4324 = vmatpush1.bf16.msra.mxu0 0
  %4325 = vmatprep.subr.bf16.mxu0 0
  %4326 = vmatpush1.bf16.msra.mxu0 0
  %4327 = vmatprep.subr.bf16.mxu0 0
  %4328 = vmatpush1.bf16.msra.mxu0 0
  %4329 = vmatprep.mubr.bf16.mxu0 0
  %4330 = vmatmul.mubr.bf16.gmra.mrb[0].mxu0 %v4078
  %v4331 = vpop.f32.mrb[0].mxu0
  %v4332 = vadd.f32 %v4124, %v4331
  %v4333 = vpop.f32.mrb[0].mxu0
  %v4334 = vpop.f32.mrb[0].mxu0
  %v4335 = vpop.f32.mrb[0].mxu0
  %4336 = vdwg.mxu0
  %v4337 = vld [vmem:[%s566] sm:$0x3f]
  %v4338 = vadd.f32 %v4337, %v4291
  %v4339 = vsub.f32 0.0, %v4338
  %v4340 = vmul.f32 %v4339, 1.442695
  %v4341 = vpow.pop %v4340
  %v4342 = vadd.f32 %v4341, 1.0
  %v4343 = vrcp.pop %v4342
  %v4344 = vmul.f32 1.0, %v4343
  %v4346 = vrot.slane %v4337, 2
  %v4348 = vadd.f32 %v4346, %v4293
  %v4349 = vsub.f32 0.0, %v4348
  %v4350 = vmul.f32 %v4349, 1.442695
  %v4351 = vpow.pop %v4350
  %v4352 = vadd.f32 %v4351, 1.0
  %v4353 = vrcp.pop %v4352
  %v4354 = vmul.f32 1.0, %v4353
  %v4355 = vmul.f32 %v4344, %v4332
  %v4356 = vrot.slane %v4337, 4
  %v4358 = vadd.f32 %v4356, %v4355
  %v4359 = vtanh.pop %v4358
  %v4360 = vsub.f32 1.0, %v4354
  %v4361 = vmul.f32 %v4360, %v4359
  %v4362 = vmul.f32 %v4354, %v4077
  %v4363 = vadd.f32 %v4361, %v4362
  %4364 = vst [vmem:[#allocation2] sm:$0x3] %v4363
  %4365 = vst [vmem:[%s595] sm:$0x3] %v4363
  %v4366 = vld [vmem:[#allocation3] sm:$0x3]
  %v4367 = vpack.c.bf16 %v4366, %v4366
  %v4368 = vld [vmem:[%s1 + $0xc] sm:$0xff]
  %v4369 = vld [vmem:[%s1 + $0x14] sm:$0xf]
  %v4370 = vld [vmem:[%s1 + $0x24] sm:$0xff]
  %v4371 = vld [vmem:[%s1 + $0x2c] sm:$0xf]
  %v4372 = vld [vmem:[%s1 + $0x3c] sm:$0xff]
  %v4373 = vld [vmem:[%s1 + $0x44] sm:$0xf]
  %v4374 = vld [vmem:[%s1 + $0x54] sm:$0xff]
  %v4375 = vld [vmem:[%s1 + $0x5c] sm:$0xf]
  %v4376 = vld [vmem:[%s1 + $0x6c] sm:$0xff]
  %v4377 = vld [vmem:[%s1 + $0x74] sm:$0xf]
  %v4378 = vld [vmem:[%s1 + $0x84] sm:$0xff]
  %v4379 = vld [vmem:[%s1 + $0x8c] sm:$0xf]
  %v4380 = vld [vmem:[%s1 + $0x9c] sm:$0xff]
  %v4381 = vld [vmem:[%s1 + $0xa4] sm:$0xf]
  %v4382 = vld [vmem:[%s1 + $0xb4] sm:$0xff]
  %v4383 = vld [vmem:[%s1 + $0xbc] sm:$0xf]
  %v4384 = vld [vmem:[%s1 + $0xcc] sm:$0xff]
  %v4385 = vld [vmem:[%s1 + $0xd4] sm:$0xf]
  %v4386 = vld [vmem:[%s1 + $0xe4] sm:$0xff]
  %v4387 = vld [vmem:[%s1 + $0xec] sm:$0xf]
  %v4388 = vld [vmem:[%s1 + $0xfc] sm:$0xff]
  %v4389 = vld [vmem:[%s1 + $0x104] sm:$0xf]
  %v4390 = vld [vmem:[%s1 + $0x114] sm:$0xff]
  %v4391 = vld [vmem:[%s1 + $0x11c] sm:$0xf]
  %v4392 = vld [vmem:[%s1 + $0x12c] sm:$0xff]
  %v4393 = vld [vmem:[%s1 + $0x134] sm:$0xf]
  %v4394 = vld [vmem:[%s1 + $0x144] sm:$0xff]
  %v4395 = vld [vmem:[%s1 + $0x14c] sm:$0xf]
  %v4396 = vld [vmem:[%s1 + $0x15c] sm:$0xff]
  %v4397 = vld [vmem:[%s1 + $0x164] sm:$0xf]
  %v4398 = vld [vmem:[%s1 + $0x174] sm:$0xff]
  %v4399 = vld [vmem:[%s1 + $0x17c] sm:$0xf]
  %v4400 = vld [vmem:[%s2 + $0x3] sm:$0x7]
  %v4402 = vlaneseq
  %v4403 = vshrl.u32 %v4402, 7
  %v4404 = vsub.s32 0, %v4403
  %v4405 = vrot.slane %v4400, %v4404
  %v4406 = vlaneseq
  %v4407 = vshrl.u32 %v4406, 7
  %v4408 = vsub.s32 1, %v4407
  %v4409 = vrot.slane %v4400, %v4408
  %v4410 = vlaneseq
  %v4411 = vshrl.u32 %v4410, 7
  %v4412 = vsub.s32 2, %v4411
  %v4413 = vrot.slane %v4400, %v4412
  %v4449 = vunpack.c.l.b16 %v4368
  %v4450 = vunpack.c.h.b16 %v4368
  %v4451 = vunpack.c.l.b16 %v4369
  %v4452 = vunpack.c.l.b16 %v4370
  %v4453 = vunpack.c.h.b16 %v4370
  %v4454 = vunpack.c.l.b16 %v4371
  %v4455 = vunpack.c.l.b16 %v4372
  %v4456 = vunpack.c.h.b16 %v4372
  %v4457 = vunpack.c.l.b16 %v4373
  %v4458 = vunpack.c.l.b16 %v4374
  %v4459 = vunpack.c.h.b16 %v4374
  %v4460 = vunpack.c.l.b16 %v4375
  %v4461 = vunpack.c.l.b16 %v4376
  %v4462 = vunpack.c.h.b16 %v4376
  %v4463 = vunpack.c.l.b16 %v4377
  %v4464 = vunpack.c.l.b16 %v4378
  %v4465 = vunpack.c.h.b16 %v4378
  %v4466 = vunpack.c.l.b16 %v4379
  %v4467 = vunpack.c.l.b16 %v4380
  %v4468 = vunpack.c.h.b16 %v4380
  %v4469 = vunpack.c.l.b16 %v4381
  %v4470 = vunpack.c.l.b16 %v4382
  %v4471 = vunpack.c.h.b16 %v4382
  %v4472 = vunpack.c.l.b16 %v4383
  %v4473 = vunpack.c.l.b16 %v4384
  %v4474 = vunpack.c.h.b16 %v4384
  %v4475 = vunpack.c.l.b16 %v4385
  %v4476 = vunpack.c.l.b16 %v4386
  %v4477 = vunpack.c.h.b16 %v4386
  %v4478 = vunpack.c.l.b16 %v4387
  %v4479 = vunpack.c.l.b16 %v4388
  %v4480 = vunpack.c.h.b16 %v4388
  %v4481 = vunpack.c.l.b16 %v4389
  %v4482 = vunpack.c.l.b16 %v4390
  %v4483 = vunpack.c.h.b16 %v4390
  %v4484 = vunpack.c.l.b16 %v4391
  %v4485 = vunpack.c.l.b16 %v4392
  %v4486 = vunpack.c.h.b16 %v4392
  %v4487 = vunpack.c.l.b16 %v4393
  %v4488 = vunpack.c.l.b16 %v4394
  %v4489 = vunpack.c.h.b16 %v4394
  %v4490 = vunpack.c.l.b16 %v4395
  %v4491 = vunpack.c.l.b16 %v4396
  %v4492 = vunpack.c.h.b16 %v4396
  %v4493 = vunpack.c.l.b16 %v4397
  %v4494 = vunpack.c.l.b16 %v4398
  %v4495 = vunpack.c.h.b16 %v4398
  %v4496 = vunpack.c.l.b16 %v4399
  %v4497 = vpack.c.b16 %v4452, %v4449
  %v4498 = vpack.c.b16 %v4453, %v4450
  %v4499 = vpack.c.b16 %v4454, %v4451
  %v4500 = vpack.c.b16 %v4458, %v4455
  %v4501 = vpack.c.b16 %v4459, %v4456
  %v4502 = vpack.c.b16 %v4460, %v4457
  %v4503 = vpack.c.b16 %v4464, %v4461
  %v4504 = vpack.c.b16 %v4465, %v4462
  %v4505 = vpack.c.b16 %v4466, %v4463
  %v4506 = vpack.c.b16 %v4470, %v4467
  %v4507 = vpack.c.b16 %v4471, %v4468
  %v4508 = vpack.c.b16 %v4472, %v4469
  %v4509 = vpack.c.b16 %v4476, %v4473
  %v4510 = vpack.c.b16 %v4477, %v4474
  %v4511 = vpack.c.b16 %v4478, %v4475
  %v4512 = vpack.c.b16 %v4482, %v4479
  %v4513 = vpack.c.b16 %v4483, %v4480
  %v4514 = vpack.c.b16 %v4484, %v4481
  %v4515 = vpack.c.b16 %v4488, %v4485
  %v4516 = vpack.c.b16 %v4489, %v4486
  %v4517 = vpack.c.b16 %v4490, %v4487
  %v4518 = vpack.c.b16 %v4494, %v4491
  %v4519 = vpack.c.b16 %v4495, %v4492
  %v4520 = vpack.c.b16 %v4496, %v4493
  %4545 = vmatprep.subr.bf16.mxu0 %v4498
  %4546 = vmatpush1.bf16.msra.mxu0 %v4497
  %4547 = vmatprep.subr.bf16.mxu0 %v4501
  %4548 = vmatpush1.bf16.msra.mxu0 %v4500
  %4549 = vmatprep.subr.bf16.mxu0 %v4504
  %4550 = vmatpush1.bf16.msra.mxu0 %v4503
  %4551 = vmatprep.subr.bf16.mxu0 %v4507
  %4552 = vmatpush1.bf16.msra.mxu0 %v4506
  %4553 = vmatprep.subr.bf16.mxu0 %v4510
  %4554 = vmatpush1.bf16.msra.mxu0 %v4509
  %4555 = vmatprep.subr.bf16.mxu0 %v4513
  %4556 = vmatpush1.bf16.msra.mxu0 %v4512
  %4557 = vmatprep.subr.bf16.mxu0 %v4516
  %4558 = vmatpush1.bf16.msra.mxu0 %v4515
  %4559 = vmatprep.subr.bf16.mxu0 %v4519
  %4560 = vmatpush1.bf16.msra.mxu0 %v4518
  %4561 = vmatprep.subr.bf16.mxu0 0
  %4562 = vmatpush1.bf16.msra.mxu0 0
  %4563 = vmatprep.subr.bf16.mxu0 0
  %4564 = vmatpush1.bf16.msra.mxu0 0
  %4565 = vmatprep.subr.bf16.mxu0 0
  %4566 = vmatpush1.bf16.msra.mxu0 0
  %4567 = vmatprep.subr.bf16.mxu0 0
  %4568 = vmatpush1.bf16.msra.mxu0 0
  %4569 = vmatprep.subr.bf16.mxu0 0
  %4570 = vmatpush1.bf16.msra.mxu0 0
  %4571 = vmatprep.subr.bf16.mxu0 0
  %4572 = vmatpush1.bf16.msra.mxu0 0
  %4573 = vmatprep.subr.bf16.mxu0 0
  %4574 = vmatpush1.bf16.msra.mxu0 0
  %4575 = vmatprep.subr.bf16.mxu0 0
  %4576 = vmatpush1.bf16.msra.mxu0 0
  %4577 = vmatprep.mubr.bf16.mxu0 0
  %4578 = vmatmul.mubr.bf16.gmra.mrb[0].mxu0 %v4367
  %v4579 = vpop.f32.mrb[0].mxu0
  %v4580 = vadd.f32 %v4405, %v4579
  %v4581 = vpop.f32.mrb[0].mxu0
  %v4582 = vadd.f32 %v4409, %v4581
  %v4583 = vpop.f32.mrb[0].mxu0
  %v4584 = vpop.f32.mrb[0].mxu0
  %4585 = vdwg.mxu0
  %4586 = vmatprep.subr.bf16.mxu0 0
  %4587 = vmatpush1.bf16.msra.mxu0 %v4499
  %4588 = vmatprep.subr.bf16.mxu0 0
  %4589 = vmatpush1.bf16.msra.mxu0 %v4502
  %4590 = vmatprep.subr.bf16.mxu0 0
  %4591 = vmatpush1.bf16.msra.mxu0 %v4505
  %4592 = vmatprep.subr.bf16.mxu0 0
  %4593 = vmatpush1.bf16.msra.mxu0 %v4508
  %4594 = vmatprep.subr.bf16.mxu0 0
  %4595 = vmatpush1.bf16.msra.mxu0 %v4511
  %4596 = vmatprep.subr.bf16.mxu0 0
  %4597 = vmatpush1.bf16.msra.mxu0 %v4514
  %4598 = vmatprep.subr.bf16.mxu0 0
  %4599 = vmatpush1.bf16.msra.mxu0 %v4517
  %4600 = vmatprep.subr.bf16.mxu0 0
  %4601 = vmatpush1.bf16.msra.mxu0 %v4520
  %4602 = vmatprep.subr.bf16.mxu0 0
  %4603 = vmatpush1.bf16.msra.mxu0 0
  %4604 = vmatprep.subr.bf16.mxu0 0
  %4605 = vmatpush1.bf16.msra.mxu0 0
  %4606 = vmatprep.subr.bf16.mxu0 0
  %4607 = vmatpush1.bf16.msra.mxu0 0
  %4608 = vmatprep.subr.bf16.mxu0 0
  %4609 = vmatpush1.bf16.msra.mxu0 0
  %4610 = vmatprep.subr.bf16.mxu0 0
  %4611 = vmatpush1.bf16.msra.mxu0 0
  %4612 = vmatprep.subr.bf16.mxu0 0
  %4613 = vmatpush1.bf16.msra.mxu0 0
  %4614 = vmatprep.subr.bf16.mxu0 0
  %4615 = vmatpush1.bf16.msra.mxu0 0
  %4616 = vmatprep.subr.bf16.mxu0 0
  %4617 = vmatpush1.bf16.msra.mxu0 0
  %4618 = vmatprep.mubr.bf16.mxu0 0
  %4619 = vmatmul.mubr.bf16.gmra.mrb[0].mxu0 %v4367
  %v4620 = vpop.f32.mrb[0].mxu0
  %v4621 = vadd.f32 %v4413, %v4620
  %v4622 = vpop.f32.mrb[0].mxu0
  %v4623 = vpop.f32.mrb[0].mxu0
  %v4624 = vpop.f32.mrb[0].mxu0
  %4625 = vdwg.mxu0
  %v4626 = vld [vmem:[%s0 + $0x6] sm:$0x3f]
  %v4627 = vadd.f32 %v4626, %v4580
  %v4628 = vsub.f32 0.0, %v4627
  %v4629 = vmul.f32 %v4628, 1.442695
  %v4630 = vpow.pop %v4629
  %v4631 = vadd.f32 %v4630, 1.0
  %v4632 = vrcp.pop %v4631
  %v4633 = vmul.f32 1.0, %v4632
  %v4635 = vrot.slane %v4626, 2
  %v4637 = vadd.f32 %v4635, %v4582
  %v4638 = vsub.f32 0.0, %v4637
  %v4639 = vmul.f32 %v4638, 1.442695
  %v4640 = vpow.pop %v4639
  %v4641 = vadd.f32 %v4640, 1.0
  %v4642 = vrcp.pop %v4641
  %v4643 = vmul.f32 1.0, %v4642
  %v4644 = vmul.f32 %v4633, %v4621
  %v4645 = vrot.slane %v4626, 4
  %v4647 = vadd.f32 %v4645, %v4644
  %v4648 = vtanh.pop %v4647
  %v4649 = vsub.f32 1.0, %v4643
  %v4650 = vmul.f32 %v4649, %v4648
  %v4651 = vmul.f32 %v4643, %v4366
  %v4652 = vadd.f32 %v4650, %v4651
  %4653 = vst [vmem:[#allocation3] sm:$0x3] %v4652
  %4654 = vst [vmem:[%s3 + $0x2] sm:$0x3] %v4652
  // Predicated region
  $region14: #{forward.12} parent=0 // pred_check
    _
  $region15: #{forward.12} parent=0 // pred_check_branch
    %4656 = sbr.rel (0) target = $region17
  $region16: #{forward.12} parent=0 // pred_region
    _
  $region17: #{forward.12} parent=0 // pred_fallthru
    _
  // Predicated region
  $region18: #{forward.12} parent=0 // pred_check
    _
  $region19: #{forward.12} parent=0 // pred_check_branch
    %4658 = sbr.rel (0) target = $region21
  $region20: #{forward.12} parent=0 // pred_region
    _
  $region21: #{forward.12} parent=0 // pred_fallthru
    _

// kernel: forward.19
$region0: #{forward.19}
  #allocation0 [shape = 'u32[]', space=smem, size = 0x4, offset = 0x4, fixed_abs, tag = 'smem constant byte address 0x4 - core index']
  #allocation1 [shape = 'u32[144,128]{1,0:T(1,128)}', space=vmem, size = 0x12000, scoped, tag = 'internal scratch']
  %s0 = inlined_call_operand.vmem [shape: bf16[256,384], index: 0, kind: input, shape index: {}]
  %s1 = inlined_call_operand.vmem [shape: bf16[384,384], index: 1, kind: input, shape index: {}]
  %s2 = inlined_call_operand.vmem [shape: f32[1,384], index: 2, kind: input, shape index: {}]
  %s3 = inlined_call_operand.vmem [shape: f32[256,384], index: 3, kind: output, shape index: {}]
  %s4 = sld [smem:[#allocation0]]
  $region45: #{forward.19} parent=0
    _
  %s6 = ssub.s32 1, %s4
  %s7 = scalar_select 0, %s6, %s4
  loop: start=0, step=1, limit=4
  $region2: #{forward.19} parent=0 // loop_pre_header
    _
  $region3: #{forward.19} parent=0 // loop_header
    %s9 = sphi 0, %s13
    %p10 = scmp.ge.s32.totalorder %s9, 4
    %s19 = sphi 0, %s21
    %s22 = sphi 0, %s19
    %s23 = sphi 0, %s22
    %s39 = sphi 0, %s23
    %s43 = sphi 0, %s43
    %s45 = sphi 0, %s43
    %s46 = sphi 0, %s45
    %s60 = sphi 0, %s46
    %s64 = sphi 0, %s64
    %s66 = sphi 0, %s64
    %s67 = sphi 0, %s66
    %s81 = sphi 0, %s67
    %s87 = sphi 0, %s89
    %s90 = sphi 0, %s87
    %s91 = sphi 0, %s90
    %s107 = sphi 0, %s91
  $region4: #{forward.19} parent=0 // loop_header_branch
    %12 = sbr.rel (%p10) target = $region8
  $region5: #{forward.19} parent=0 // loop_body
    %s14 = ssub.s32 %s9, 1
    %s15 = ssub.s32 %s9, 2
    %s16 = sadd.s32 %s9, 1
    %s17 = ssub.s32 %s9, %s16
    %p18 = scmp.eq.s32.totalorder %s17, 0
    %s20 = sadd.s32 %s19, 1
    %s21 = scalar_select %p18, %s19, %s20
    %p24 = pneg %p18
    %p25 = scmp.eq.s32.totalorder %s9, 1
    %p26 = por %p24, %p25
    %p27 = scmp.ne.s32.totalorder %s19, %s22
    %p28 = scmp.eq.s32.totalorder %s9, 0
    %p29 = por %p27, %p28
    %p30 = scmp.ne.s32.totalorder %s19, %s22
    %p31 = scmp.eq.s32.totalorder %s14, 1
    %p32 = por %p30, %p31
    %p33 = scmp.ne.s32.totalorder %s22, %s23
    %p34 = scmp.eq.s32.totalorder %s14, 0
    %p35 = por %p33, %p34
    %p36 = scmp.ne.s32.totalorder %s22, %s23
    %p37 = scmp.eq.s32.totalorder %s15, 1
    %p38 = por %p36, %p37
    %p40 = scmp.ne.s32.totalorder %s23, %s39
    %p41 = scmp.eq.s32.totalorder %s15, 0
    %p42 = por %p40, %p41
    %s44 = sadd.s32 %s43, 1
    %p47 = scmp.eq.s32.totalorder %s9, 1
    %p48 = scmp.ne.s32.totalorder %s43, %s45
    %p49 = scmp.eq.s32.totalorder %s9, 0
    %p50 = por %p48, %p49
    %p51 = scmp.ne.s32.totalorder %s43, %s45
    %p52 = scmp.eq.s32.totalorder %s14, 1
    %p53 = por %p51, %p52
    %p54 = scmp.ne.s32.totalorder %s45, %s46
    %p55 = scmp.eq.s32.totalorder %s14, 0
    %p56 = por %p54, %p55
    %p57 = scmp.ne.s32.totalorder %s45, %s46
    %p58 = scmp.eq.s32.totalorder %s15, 1
    %p59 = por %p57, %p58
    %p61 = scmp.ne.s32.totalorder %s46, %s60
    %p62 = scmp.eq.s32.totalorder %s15, 0
    %p63 = por %p61, %p62
    %s65 = sadd.s32 %s64, 1
    %p68 = scmp.eq.s32.totalorder %s9, 1
    %p69 = scmp.ne.s32.totalorder %s64, %s66
    %p70 = scmp.eq.s32.totalorder %s9, 0
    %p71 = por %p69, %p70
    %p72 = scmp.ne.s32.totalorder %s64, %s66
    %p73 = scmp.eq.s32.totalorder %s14, 1
    %p74 = por %p72, %p73
    %p75 = scmp.ne.s32.totalorder %s66, %s67
    %p76 = scmp.eq.s32.totalorder %s14, 0
    %p77 = por %p75, %p76
    %p78 = scmp.ne.s32.totalorder %s66, %s67
    %p79 = scmp.eq.s32.totalorder %s15, 1
    %p80 = por %p78, %p79
    %p82 = scmp.ne.s32.totalorder %s67, %s81
    %p83 = scmp.eq.s32.totalorder %s15, 0
    %p84 = por %p82, %p83
    %s85 = ssub.s32 %s9, %s16
    %p86 = scmp.eq.s32.totalorder %s85, 0
    %s88 = sadd.s32 %s87, 1
    %s89 = scalar_select %p86, %s87, %s88
    %p92 = pneg %p86
    %p93 = scmp.eq.s32.totalorder %s9, 1
    %p94 = por %p92, %p93
    %p95 = scmp.ne.s32.totalorder %s87, %s90
    %p96 = scmp.eq.s32.totalorder %s9, 0
    %p97 = por %p95, %p96
    %p98 = scmp.ne.s32.totalorder %s87, %s90
    %p99 = scmp.eq.s32.totalorder %s14, 1
    %p100 = por %p98, %p99
    %p101 = scmp.ne.s32.totalorder %s90, %s91
    %p102 = scmp.eq.s32.totalorder %s14, 0
    %p103 = por %p101, %p102
    %p104 = scmp.ne.s32.totalorder %s90, %s91
    %p105 = scmp.eq.s32.totalorder %s15, 1
    %p106 = por %p104, %p105
    %p108 = scmp.ne.s32.totalorder %s91, %s107
    %p109 = scmp.eq.s32.totalorder %s15, 0
    %p110 = por %p108, %p109
    %p111 = scmp.le.s32.totalorder 1, %s9
    %p112 = scmp.lt.s32.totalorder %s9, 3
    %p113 = pnand %p111, %p112
    %p114 = pneg %p113
    // Predicated region
    $region9: #{forward.19} parent=5 // pred_check
      _
    $region10: #{forward.19} parent=5 // pred_check_branch
      %116 = sbr.rel (%p113) target = $region12
    $region11: #{forward.19} parent=5 // pred_region
      %s117 = ssub.s32 %s9, 1
      // Predicated region
      $region13: #{forward.19} parent=11 // pred_check
        %p118 = pneg %p56
      $region14: #{forward.19} parent=11 // pred_check_branch
        %120 = sbr.rel (%p118) target = $region16
      $region15: #{forward.19} parent=11 // pred_region
        _
      $region16: #{forward.19} parent=11 // pred_fallthru
        _
      // Predicated region
      $region17: #{forward.19} parent=11 // pred_check
        %p121 = pneg %p77
      $region18: #{forward.19} parent=11 // pred_check_branch
        %123 = sbr.rel (%p121) target = $region20
      $region19: #{forward.19} parent=11 // pred_region
        _
      $region20: #{forward.19} parent=11 // pred_fallthru
        _
    $region12: #{forward.19} parent=5 // pred_fallthru
      _
    %p124 = scmp.lt.s32.totalorder %s9, 2
    // Predicated region
    $region21: #{forward.19} parent=5 // pred_check
      %p125 = pneg %p124
    $region22: #{forward.19} parent=5 // pred_check_branch
      %127 = sbr.rel (%p125) target = $region24
    $region23: #{forward.19} parent=5 // pred_region
      // Predicated region
      $region25: #{forward.19} parent=23 // pred_check
        %p128 = pneg %p29
      $region26: #{forward.19} parent=23 // pred_check_branch
        %130 = sbr.rel (%p128) target = $region28
      $region27: #{forward.19} parent=23 // pred_region
        %s131 = smul.u32 16, %s9
        %p132 = scmp.lt.s32.totalorder %s131, 31
        %s133 = scalar_select %p132, %s131, 31
        %s134 = smul.addr %s133, 3
        %s135 = smul.addr %s134, 4
        %s136 = scalar_lea.vmem %s0, %s135
        %s137 = smul.u32 16, %s9
      $region28: #{forward.19} parent=23 // pred_fallthru
        _
    $region24: #{forward.19} parent=5 // pred_fallthru
      _
    %p138 = scmp.le.s32.totalorder 1, %s9
    %p139 = scmp.lt.s32.totalorder %s9, 3
    %p140 = pnand %p138, %p139
    %p141 = pneg %p140
    // Predicated region
    $region29: #{forward.19} parent=5 // pred_check
      _
    $region30: #{forward.19} parent=5 // pred_check_branch
      %143 = sbr.rel (%p140) target = $region32
    $region31: #{forward.19} parent=5 // pred_region
      %s144 = ssub.s32 %s9, 1
      %s145 = smul.u32 16, %s14
      %p146 = scmp.lt.s32.totalorder %s145, 31
      %s147 = scalar_select %p146, %s145, 31
      %s148 = smul.addr %s147, 3
      %s149 = smul.addr %s148, 4
      %s150 = scalar_lea.vmem %s0, %s149
      %p151 = pneg %p35
      %p152 = pneg %p32
      %p153 = pneg %p56
      %p154 = pneg %p53
      %p155 = pneg %p77
      %p156 = pneg %p74
      %p157 = pneg %p103
      %p158 = pneg %p100
      %s159 = smul.u32 16, %s14
      %p160 = scmp.lt.s32.totalorder %s159, 31
      %s161 = scalar_select %p160, %s159, 31
      %s162 = smul.addr %s161, 3
      %s163 = smul.addr %s162, 8
      %s164 = scalar_lea.vmem %s3, %s163
      %s165 = smul.u32 16, %s14
      %p166 = scmp.lt.s32.totalorder %s165, 31
      %s167 = scalar_select %p166, %s165, 31
      %s168 = smul.addr %s167, 3
      %s169 = smul.addr %s168, 4
      %s170 = scalar_lea.vmem %s0, %s169
      %s171 = smul.u32 16, %s14
      %s172 = smul.u32 16, %s14
      %p173 = scmp.lt.s32.totalorder %s172, 31
      %s174 = scalar_select %p173, %s172, 31
      %s175 = smul.addr %s174, 3
      %s176 = smul.addr %s175, 8
      %s177 = scalar_lea.vmem %s3, %s176
      %s178 = smul.u32 16, %s14
      %v180 = vld [vmem:[%s170] sm:$0xff]
      %v181 = vld [vmem:[%s170 + $0x8] sm:$0xf]
      %v182 = vld [vmem:[%s170 + $0xc] sm:$0xff]
      %v183 = vld [vmem:[%s170 + $0x14] sm:$0xf]
      %v184 = vld [vmem:[%s170 + $0x18] sm:$0xff]
      %v185 = vld [vmem:[%s170 + $0x20] sm:$0xf]
      %v186 = vld [vmem:[%s170 + $0x24] sm:$0xff]
      %v187 = vld [vmem:[%s170 + $0x2c] sm:$0xf]
      %v188 = vld [vmem:[%s170 + $0x30] sm:$0xff]
      %v189 = vld [vmem:[%s170 + $0x38] sm:$0xf]
      %v190 = vld [vmem:[%s170 + $0x3c] sm:$0xff]
      %v191 = vld [vmem:[%s170 + $0x44] sm:$0xf]
      %v192 = vld [vmem:[%s170 + $0x48] sm:$0xff]
      %v193 = vld [vmem:[%s170 + $0x50] sm:$0xf]
      %v194 = vld [vmem:[%s170 + $0x54] sm:$0xff]
      %v195 = vld [vmem:[%s170 + $0x5c] sm:$0xf]
      %v196 = vld [vmem:[%s170 + $0x60] sm:$0xff]
      %v197 = vld [vmem:[%s170 + $0x68] sm:$0xf]
      %v198 = vld [vmem:[%s170 + $0x6c] sm:$0xff]
      %v199 = vld [vmem:[%s170 + $0x74] sm:$0xf]
      %v200 = vld [vmem:[%s170 + $0x78] sm:$0xff]
      %v201 = vld [vmem:[%s170 + $0x80] sm:$0xf]
      %v202 = vld [vmem:[%s170 + $0x84] sm:$0xff]
      %v203 = vld [vmem:[%s170 + $0x8c] sm:$0xf]
      %v204 = vld [vmem:[%s170 + $0x90] sm:$0xff]
      %v205 = vld [vmem:[%s170 + $0x98] sm:$0xf]
      %v206 = vld [vmem:[%s170 + $0x9c] sm:$0xff]
      %v207 = vld [vmem:[%s170 + $0xa4] sm:$0xf]
      %v208 = vld [vmem:[%s170 + $0xa8] sm:$0xff]
      %v209 = vld [vmem:[%s170 + $0xb0] sm:$0xf]
      %v210 = vld [vmem:[%s170 + $0xb4] sm:$0xff]
      %v211 = vld [vmem:[%s170 + $0xbc] sm:$0xf]
      %v212 = vld [vmem:[%s1] sm:$0xff]
      %v213 = vld [vmem:[%s1 + $0x8] sm:$0xf]
      %v214 = vld [vmem:[%s1 + $0xc] sm:$0xff]
      %v215 = vld [vmem:[%s1 + $0x14] sm:$0xf]
      %v216 = vld [vmem:[%s1 + $0x18] sm:$0xff]
      %v217 = vld [vmem:[%s1 + $0x20] sm:$0xf]
      %v218 = vld [vmem:[%s1 + $0x24] sm:$0xff]
      %v219 = vld [vmem:[%s1 + $0x2c] sm:$0xf]
      %v220 = vld [vmem:[%s1 + $0x30] sm:$0xff]
      %v221 = vld [vmem:[%s1 + $0x38] sm:$0xf]
      %v222 = vld [vmem:[%s1 + $0x3c] sm:$0xff]
      %v223 = vld [vmem:[%s1 + $0x44] sm:$0xf]
      %v224 = vld [vmem:[%s1 + $0x48] sm:$0xff]
      %v225 = vld [vmem:[%s1 + $0x50] sm:$0xf]
      %v226 = vld [vmem:[%s1 + $0x54] sm:$0xff]
      %v227 = vld [vmem:[%s1 + $0x5c] sm:$0xf]
      %v228 = vld [vmem:[%s1 + $0x60] sm:$0xff]
      %v229 = vld [vmem:[%s1 + $0x68] sm:$0xf]
      %v230 = vld [vmem:[%s1 + $0x6c] sm:$0xff]
      %v231 = vld [vmem:[%s1 + $0x74] sm:$0xf]
      %v232 = vld [vmem:[%s1 + $0x78] sm:$0xff]
      %v233 = vld [vmem:[%s1 + $0x80] sm:$0xf]
      %v234 = vld [vmem:[%s1 + $0x84] sm:$0xff]
      %v235 = vld [vmem:[%s1 + $0x8c] sm:$0xf]
      %v236 = vld [vmem:[%s1 + $0x90] sm:$0xff]
      %v237 = vld [vmem:[%s1 + $0x98] sm:$0xf]
      %v238 = vld [vmem:[%s1 + $0x9c] sm:$0xff]
      %v239 = vld [vmem:[%s1 + $0xa4] sm:$0xf]
      %v240 = vld [vmem:[%s1 + $0xa8] sm:$0xff]
      %v241 = vld [vmem:[%s1 + $0xb0] sm:$0xf]
      %v242 = vld [vmem:[%s1 + $0xb4] sm:$0xff]
      %v243 = vld [vmem:[%s1 + $0xbc] sm:$0xf]
      %v244 = vld [vmem:[%s1 + $0xc0] sm:$0xff]
      %v245 = vld [vmem:[%s1 + $0xc8] sm:$0xf]
      %v246 = vld [vmem:[%s1 + $0xcc] sm:$0xff]
      %v247 = vld [vmem:[%s1 + $0xd4] sm:$0xf]
      %v248 = vld [vmem:[%s1 + $0xd8] sm:$0xff]
      %v249 = vld [vmem:[%s1 + $0xe0] sm:$0xf]
      %v250 = vld [vmem:[%s1 + $0xe4] sm:$0xff]
      %v251 = vld [vmem:[%s1 + $0xec] sm:$0xf]
      %v252 = vld [vmem:[%s1 + $0xf0] sm:$0xff]
      %v253 = vld [vmem:[%s1 + $0xf8] sm:$0xf]
      %v254 = vld [vmem:[%s1 + $0xfc] sm:$0xff]
      %v255 = vld [vmem:[%s1 + $0x104] sm:$0xf]
      %v256 = vld [vmem:[%s1 + $0x108] sm:$0xff]
      %v257 = vld [vmem:[%s1 + $0x110] sm:$0xf]
      %v258 = vld [vmem:[%s1 + $0x114] sm:$0xff]
      %v259 = vld [vmem:[%s1 + $0x11c] sm:$0xf]
      %v260 = vld [vmem:[%s1 + $0x120] sm:$0xff]
      %v261 = vld [vmem:[%s1 + $0x128] sm:$0xf]
      %v262 = vld [vmem:[%s1 + $0x12c] sm:$0xff]
      %v263 = vld [vmem:[%s1 + $0x134] sm:$0xf]
      %v264 = vld [vmem:[%s1 + $0x138] sm:$0xff]
      %v265 = vld [vmem:[%s1 + $0x140] sm:$0xf]
      %v266 = vld [vmem:[%s1 + $0x144] sm:$0xff]
      %v267 = vld [vmem:[%s1 + $0x14c] sm:$0xf]
      %v268 = vld [vmem:[%s1 + $0x150] sm:$0xff]
      %v269 = vld [vmem:[%s1 + $0x158] sm:$0xf]
      %v270 = vld [vmem:[%s1 + $0x15c] sm:$0xff]
      %v271 = vld [vmem:[%s1 + $0x164] sm:$0xf]
      %v272 = vld [vmem:[%s1 + $0x168] sm:$0xff]
      %v273 = vld [vmem:[%s1 + $0x170] sm:$0xf]
      %v274 = vld [vmem:[%s1 + $0x174] sm:$0xff]
      %v275 = vld [vmem:[%s1 + $0x17c] sm:$0xf]
      %v276 = vld [vmem:[%s1 + $0x180] sm:$0xff]
      %v277 = vld [vmem:[%s1 + $0x188] sm:$0xf]
      %v278 = vld [vmem:[%s1 + $0x18c] sm:$0xff]
      %v279 = vld [vmem:[%s1 + $0x194] sm:$0xf]
      %v280 = vld [vmem:[%s1 + $0x198] sm:$0xff]
      %v281 = vld [vmem:[%s1 + $0x1a0] sm:$0xf]
      %v282 = vld [vmem:[%s1 + $0x1a4] sm:$0xff]
      %v283 = vld [vmem:[%s1 + $0x1ac] sm:$0xf]
      %v284 = vld [vmem:[%s1 + $0x1b0] sm:$0xff]
      %v285 = vld [vmem:[%s1 + $0x1b8] sm:$0xf]
      %v286 = vld [vmem:[%s1 + $0x1bc] sm:$0xff]
      %v287 = vld [vmem:[%s1 + $0x1c4] sm:$0xf]
      %v288 = vld [vmem:[%s1 + $0x1c8] sm:$0xff]
      %v289 = vld [vmem:[%s1 + $0x1d0] sm:$0xf]
      %v290 = vld [vmem:[%s1 + $0x1d4] sm:$0xff]
      %v291 = vld [vmem:[%s1 + $0x1dc] sm:$0xf]
      %v292 = vld [vmem:[%s1 + $0x1e0] sm:$0xff]
      %v293 = vld [vmem:[%s1 + $0x1e8] sm:$0xf]
      %v294 = vld [vmem:[%s1 + $0x1ec] sm:$0xff]
      %v295 = vld [vmem:[%s1 + $0x1f4] sm:$0xf]
      %v296 = vld [vmem:[%s1 + $0x1f8] sm:$0xff]
      %v297 = vld [vmem:[%s1 + $0x200] sm:$0xf]
      %v298 = vld [vmem:[%s1 + $0x204] sm:$0xff]
      %v299 = vld [vmem:[%s1 + $0x20c] sm:$0xf]
      %v300 = vld [vmem:[%s1 + $0x210] sm:$0xff]
      %v301 = vld [vmem:[%s1 + $0x218] sm:$0xf]
      %v302 = vld [vmem:[%s1 + $0x21c] sm:$0xff]
      %v303 = vld [vmem:[%s1 + $0x224] sm:$0xf]
      %v304 = vld [vmem:[%s1 + $0x228] sm:$0xff]
      %v305 = vld [vmem:[%s1 + $0x230] sm:$0xf]
      %v306 = vld [vmem:[%s1 + $0x234] sm:$0xff]
      %v307 = vld [vmem:[%s1 + $0x23c] sm:$0xf]
      %v308 = vld [vmem:[%s2] sm:$0x7]
      %v310 = vlaneseq
      %v311 = vshrl.u32 %v310, 7
      %v312 = vsub.s32 0, %v311
      %v313 = vrot.slane %v308, %v312
      %v314 = vlaneseq
      %v315 = vshrl.u32 %v314, 7
      %v316 = vsub.s32 1, %v315
      %v317 = vrot.slane %v308, %v316
      %v318 = vlaneseq
      %v319 = vshrl.u32 %v318, 7
      %v320 = vsub.s32 2, %v319
      %v321 = vrot.slane %v308, %v320
      %v357 = vunpack.c.l.b16 %v180
      %v358 = vunpack.c.h.b16 %v180
      %v359 = vunpack.c.l.b16 %v181
      %v360 = vunpack.c.l.b16 %v182
      %v361 = vunpack.c.h.b16 %v182
      %v362 = vunpack.c.l.b16 %v183
      %v363 = vunpack.c.l.b16 %v184
      %v364 = vunpack.c.h.b16 %v184
      %v365 = vunpack.c.l.b16 %v185
      %v366 = vunpack.c.l.b16 %v186
      %v367 = vunpack.c.h.b16 %v186
      %v368 = vunpack.c.l.b16 %v187
      %v369 = vunpack.c.l.b16 %v188
      %v370 = vunpack.c.h.b16 %v188
      %v371 = vunpack.c.l.b16 %v189
      %v372 = vunpack.c.l.b16 %v190
      %v373 = vunpack.c.h.b16 %v190
      %v374 = vunpack.c.l.b16 %v191
      %v375 = vunpack.c.l.b16 %v192
      %v376 = vunpack.c.h.b16 %v192
      %v377 = vunpack.c.l.b16 %v193
      %v378 = vunpack.c.l.b16 %v194
      %v379 = vunpack.c.h.b16 %v194
      %v380 = vunpack.c.l.b16 %v195
      %v381 = vunpack.c.l.b16 %v196
      %v382 = vunpack.c.h.b16 %v196
      %v383 = vunpack.c.l.b16 %v197
      %v384 = vunpack.c.l.b16 %v198
      %v385 = vunpack.c.h.b16 %v198
      %v386 = vunpack.c.l.b16 %v199
      %v387 = vunpack.c.l.b16 %v200
      %v388 = vunpack.c.h.b16 %v200
      %v389 = vunpack.c.l.b16 %v201
      %v390 = vunpack.c.l.b16 %v202
      %v391 = vunpack.c.h.b16 %v202
      %v392 = vunpack.c.l.b16 %v203
      %v393 = vunpack.c.l.b16 %v204
      %v394 = vunpack.c.h.b16 %v204
      %v395 = vunpack.c.l.b16 %v205
      %v396 = vunpack.c.l.b16 %v206
      %v397 = vunpack.c.h.b16 %v206
      %v398 = vunpack.c.l.b16 %v207
      %v399 = vunpack.c.l.b16 %v208
      %v400 = vunpack.c.h.b16 %v208
      %v401 = vunpack.c.l.b16 %v209
      %v402 = vunpack.c.l.b16 %v210
      %v403 = vunpack.c.h.b16 %v210
      %v404 = vunpack.c.l.b16 %v211
      %v405 = vpack.c.b16 %v360, %v357
      %v406 = vpack.c.b16 %v361, %v358
      %v407 = vpack.c.b16 %v362, %v359
      %v408 = vpack.c.b16 %v366, %v363
      %v409 = vpack.c.b16 %v367, %v364
      %v410 = vpack.c.b16 %v368, %v365
      %v411 = vpack.c.b16 %v372, %v369
      %v412 = vpack.c.b16 %v373, %v370
      %v413 = vpack.c.b16 %v374, %v371
      %v414 = vpack.c.b16 %v378, %v375
      %v415 = vpack.c.b16 %v379, %v376
      %v416 = vpack.c.b16 %v380, %v377
      %v417 = vpack.c.b16 %v384, %v381
      %v418 = vpack.c.b16 %v385, %v382
      %v419 = vpack.c.b16 %v386, %v383
      %v420 = vpack.c.b16 %v390, %v387
      %v421 = vpack.c.b16 %v391, %v388
      %v422 = vpack.c.b16 %v392, %v389
      %v423 = vpack.c.b16 %v396, %v393
      %v424 = vpack.c.b16 %v397, %v394
      %v425 = vpack.c.b16 %v398, %v395
      %v426 = vpack.c.b16 %v402, %v399
      %v427 = vpack.c.b16 %v403, %v400
      %v428 = vpack.c.b16 %v404, %v401
      %v549 = vunpack.c.l.b16 %v212
      %v550 = vunpack.c.h.b16 %v212
      %v551 = vunpack.c.l.b16 %v213
      %v552 = vunpack.c.l.b16 %v214
      %v553 = vunpack.c.h.b16 %v214
      %v554 = vunpack.c.l.b16 %v215
      %v555 = vunpack.c.l.b16 %v216
      %v556 = vunpack.c.h.b16 %v216
      %v557 = vunpack.c.l.b16 %v217
      %v558 = vunpack.c.l.b16 %v218
      %v559 = vunpack.c.h.b16 %v218
      %v560 = vunpack.c.l.b16 %v219
      %v561 = vunpack.c.l.b16 %v220
      %v562 = vunpack.c.h.b16 %v220
      %v563 = vunpack.c.l.b16 %v221
      %v564 = vunpack.c.l.b16 %v222
      %v565 = vunpack.c.h.b16 %v222
      %v566 = vunpack.c.l.b16 %v223
      %v567 = vunpack.c.l.b16 %v224
      %v568 = vunpack.c.h.b16 %v224
      %v569 = vunpack.c.l.b16 %v225
      %v570 = vunpack.c.l.b16 %v226
      %v571 = vunpack.c.h.b16 %v226
      %v572 = vunpack.c.l.b16 %v227
      %v573 = vunpack.c.l.b16 %v228
      %v574 = vunpack.c.h.b16 %v228
      %v575 = vunpack.c.l.b16 %v229
      %v576 = vunpack.c.l.b16 %v230
      %v577 = vunpack.c.h.b16 %v230
      %v578 = vunpack.c.l.b16 %v231
      %v579 = vunpack.c.l.b16 %v232
      %v580 = vunpack.c.h.b16 %v232
      %v581 = vunpack.c.l.b16 %v233
      %v582 = vunpack.c.l.b16 %v234
      %v583 = vunpack.c.h.b16 %v234
      %v584 = vunpack.c.l.b16 %v235
      %v585 = vunpack.c.l.b16 %v236
      %v586 = vunpack.c.h.b16 %v236
      %v587 = vunpack.c.l.b16 %v237
      %v588 = vunpack.c.l.b16 %v238
      %v589 = vunpack.c.h.b16 %v238
      %v590 = vunpack.c.l.b16 %v239
      %v591 = vunpack.c.l.b16 %v240
      %v592 = vunpack.c.h.b16 %v240
      %v593 = vunpack.c.l.b16 %v241
      %v594 = vunpack.c.l.b16 %v242
      %v595 = vunpack.c.h.b16 %v242
      %v596 = vunpack.c.l.b16 %v243
      %v597 = vunpack.c.l.b16 %v244
      %v598 = vunpack.c.h.b16 %v244
      %v599 = vunpack.c.l.b16 %v245
      %v600 = vunpack.c.l.b16 %v246
      %v601 = vunpack.c.h.b16 %v246
      %v602 = vunpack.c.l.b16 %v247
      %v603 = vunpack.c.l.b16 %v248
      %v604 = vunpack.c.h.b16 %v248
      %v605 = vunpack.c.l.b16 %v249
      %v606 = vunpack.c.l.b16 %v250
      %v607 = vunpack.c.h.b16 %v250
      %v608 = vunpack.c.l.b16 %v251
      %v609 = vunpack.c.l.b16 %v252
      %v610 = vunpack.c.h.b16 %v252
      %v611 = vunpack.c.l.b16 %v253
      %v612 = vunpack.c.l.b16 %v254
      %v613 = vunpack.c.h.b16 %v254
      %v614 = vunpack.c.l.b16 %v255
      %v615 = vunpack.c.l.b16 %v256
      %v616 = vunpack.c.h.b16 %v256
      %v617 = vunpack.c.l.b16 %v257
      %v618 = vunpack.c.l.b16 %v258
      %v619 = vunpack.c.h.b16 %v258
      %v620 = vunpack.c.l.b16 %v259
      %v621 = vunpack.c.l.b16 %v260
      %v622 = vunpack.c.h.b16 %v260
      %v623 = vunpack.c.l.b16 %v261
      %v624 = vunpack.c.l.b16 %v262
      %v625 = vunpack.c.h.b16 %v262
      %v626 = vunpack.c.l.b16 %v263
      %v627 = vunpack.c.l.b16 %v264
      %v628 = vunpack.c.h.b16 %v264
      %v629 = vunpack.c.l.b16 %v265
      %v630 = vunpack.c.l.b16 %v266
      %v631 = vunpack.c.h.b16 %v266
      %v632 = vunpack.c.l.b16 %v267
      %v633 = vunpack.c.l.b16 %v268
      %v634 = vunpack.c.h.b16 %v268
      %v635 = vunpack.c.l.b16 %v269
      %v636 = vunpack.c.l.b16 %v270
      %v637 = vunpack.c.h.b16 %v270
      %v638 = vunpack.c.l.b16 %v271
      %v639 = vunpack.c.l.b16 %v272
      %v640 = vunpack.c.h.b16 %v272
      %v641 = vunpack.c.l.b16 %v273
      %v642 = vunpack.c.l.b16 %v274
      %v643 = vunpack.c.h.b16 %v274
      %v644 = vunpack.c.l.b16 %v275
      %v645 = vunpack.c.l.b16 %v276
      %v646 = vunpack.c.h.b16 %v276
      %v647 = vunpack.c.l.b16 %v277
      %v648 = vunpack.c.l.b16 %v278
      %v649 = vunpack.c.h.b16 %v278
      %v650 = vunpack.c.l.b16 %v279
      %v651 = vunpack.c.l.b16 %v280
      %v652 = vunpack.c.h.b16 %v280
      %v653 = vunpack.c.l.b16 %v281
      %v654 = vunpack.c.l.b16 %v282
      %v655 = vunpack.c.h.b16 %v282
      %v656 = vunpack.c.l.b16 %v283
      %v657 = vunpack.c.l.b16 %v284
      %v658 = vunpack.c.h.b16 %v284
      %v659 = vunpack.c.l.b16 %v285
      %v660 = vunpack.c.l.b16 %v286
      %v661 = vunpack.c.h.b16 %v286
      %v662 = vunpack.c.l.b16 %v287
      %v663 = vunpack.c.l.b16 %v288
      %v664 = vunpack.c.h.b16 %v288
      %v665 = vunpack.c.l.b16 %v289
      %v666 = vunpack.c.l.b16 %v290
      %v667 = vunpack.c.h.b16 %v290
      %v668 = vunpack.c.l.b16 %v291
      %v669 = vunpack.c.l.b16 %v292
      %v670 = vunpack.c.h.b16 %v292
      %v671 = vunpack.c.l.b16 %v293
      %v672 = vunpack.c.l.b16 %v294
      %v673 = vunpack.c.h.b16 %v294
      %v674 = vunpack.c.l.b16 %v295
      %v675 = vunpack.c.l.b16 %v296
      %v676 = vunpack.c.h.b16 %v296
      %v677 = vunpack.c.l.b16 %v297
      %v678 = vunpack.c.l.b16 %v298
      %v679 = vunpack.c.h.b16 %v298
      %v680 = vunpack.c.l.b16 %v299
      %v681 = vunpack.c.l.b16 %v300
      %v682 = vunpack.c.h.b16 %v300
      %v683 = vunpack.c.l.b16 %v301
      %v684 = vunpack.c.l.b16 %v302
      %v685 = vunpack.c.h.b16 %v302
      %v686 = vunpack.c.l.b16 %v303
      %v687 = vunpack.c.l.b16 %v304
      %v688 = vunpack.c.h.b16 %v304
      %v689 = vunpack.c.l.b16 %v305
      %v690 = vunpack.c.l.b16 %v306
      %v691 = vunpack.c.h.b16 %v306
      %v692 = vunpack.c.l.b16 %v307
      %v693 = vpack.c.b16 %v552, %v549
      %v694 = vpack.c.b16 %v553, %v550
      %v695 = vpack.c.b16 %v554, %v551
      %v696 = vpack.c.b16 %v558, %v555
      %v697 = vpack.c.b16 %v559, %v556
      %v698 = vpack.c.b16 %v560, %v557
      %v699 = vpack.c.b16 %v564, %v561
      %v700 = vpack.c.b16 %v565, %v562
      %v701 = vpack.c.b16 %v566, %v563
      %v702 = vpack.c.b16 %v570, %v567
      %v703 = vpack.c.b16 %v571, %v568
      %v704 = vpack.c.b16 %v572, %v569
      %v705 = vpack.c.b16 %v576, %v573
      %v706 = vpack.c.b16 %v577, %v574
      %v707 = vpack.c.b16 %v578, %v575
      %v708 = vpack.c.b16 %v582, %v579
      %v709 = vpack.c.b16 %v583, %v580
      %v710 = vpack.c.b16 %v584, %v581
      %v711 = vpack.c.b16 %v588, %v585
      %v712 = vpack.c.b16 %v589, %v586
      %v713 = vpack.c.b16 %v590, %v587
      %v714 = vpack.c.b16 %v594, %v591
      %v715 = vpack.c.b16 %v595, %v592
      %v716 = vpack.c.b16 %v596, %v593
      %v717 = vpack.c.b16 %v600, %v597
      %v718 = vpack.c.b16 %v601, %v598
      %v719 = vpack.c.b16 %v602, %v599
      %v720 = vpack.c.b16 %v606, %v603
      %v721 = vpack.c.b16 %v607, %v604
      %v722 = vpack.c.b16 %v608, %v605
      %v723 = vpack.c.b16 %v612, %v609
      %v724 = vpack.c.b16 %v613, %v610
      %v725 = vpack.c.b16 %v614, %v611
      %v726 = vpack.c.b16 %v618, %v615
      %v727 = vpack.c.b16 %v619, %v616
      %v728 = vpack.c.b16 %v620, %v617
      %v729 = vpack.c.b16 %v624, %v621
      %v730 = vpack.c.b16 %v625, %v622
      %v731 = vpack.c.b16 %v626, %v623
      %v732 = vpack.c.b16 %v630, %v627
      %v733 = vpack.c.b16 %v631, %v628
      %v734 = vpack.c.b16 %v632, %v629
      %v735 = vpack.c.b16 %v636, %v633
      %v736 = vpack.c.b16 %v637, %v634
      %v737 = vpack.c.b16 %v638, %v635
      %v738 = vpack.c.b16 %v642, %v639
      %v739 = vpack.c.b16 %v643, %v640
      %v740 = vpack.c.b16 %v644, %v641
      %v741 = vpack.c.b16 %v648, %v645
      %v742 = vpack.c.b16 %v649, %v646
      %v743 = vpack.c.b16 %v650, %v647
      %v744 = vpack.c.b16 %v654, %v651
      %v745 = vpack.c.b16 %v655, %v652
      %v746 = vpack.c.b16 %v656, %v653
      %v747 = vpack.c.b16 %v660, %v657
      %v748 = vpack.c.b16 %v661, %v658
      %v749 = vpack.c.b16 %v662, %v659
      %v750 = vpack.c.b16 %v666, %v663
      %v751 = vpack.c.b16 %v667, %v664
      %v752 = vpack.c.b16 %v668, %v665
      %v753 = vpack.c.b16 %v672, %v669
      %v754 = vpack.c.b16 %v673, %v670
      %v755 = vpack.c.b16 %v674, %v671
      %v756 = vpack.c.b16 %v678, %v675
      %v757 = vpack.c.b16 %v679, %v676
      %v758 = vpack.c.b16 %v680, %v677
      %v759 = vpack.c.b16 %v684, %v681
      %v760 = vpack.c.b16 %v685, %v682
      %v761 = vpack.c.b16 %v686, %v683
      %v762 = vpack.c.b16 %v690, %v687
      %v763 = vpack.c.b16 %v691, %v688
      %v764 = vpack.c.b16 %v692, %v689
      %837 = vmatprep.subr.bf16.mxu0 %v694
      %838 = vmatpush1.bf16.msra.mxu0 %v693
      %839 = vmatprep.subr.bf16.mxu0 %v697
      %840 = vmatpush1.bf16.msra.mxu0 %v696
      %841 = vmatprep.subr.bf16.mxu0 %v700
      %842 = vmatpush1.bf16.msra.mxu0 %v699
      %843 = vmatprep.subr.bf16.mxu0 %v703
      %844 = vmatpush1.bf16.msra.mxu0 %v702
      %845 = vmatprep.subr.bf16.mxu0 %v706
      %846 = vmatpush1.bf16.msra.mxu0 %v705
      %847 = vmatprep.subr.bf16.mxu0 %v709
      %848 = vmatpush1.bf16.msra.mxu0 %v708
      %849 = vmatprep.subr.bf16.mxu0 %v712
      %850 = vmatpush1.bf16.msra.mxu0 %v711
      %851 = vmatprep.subr.bf16.mxu0 %v715
      %852 = vmatpush1.bf16.msra.mxu0 %v714
      %853 = vmatprep.subr.bf16.mxu0 %v718
      %854 = vmatpush1.bf16.msra.mxu0 %v717
      %855 = vmatprep.subr.bf16.mxu0 %v721
      %856 = vmatpush1.bf16.msra.mxu0 %v720
      %857 = vmatprep.subr.bf16.mxu0 %v724
      %858 = vmatpush1.bf16.msra.mxu0 %v723
      %859 = vmatprep.subr.bf16.mxu0 %v727
      %860 = vmatpush1.bf16.msra.mxu0 %v726
      %861 = vmatprep.subr.bf16.mxu0 %v730
      %862 = vmatpush1.bf16.msra.mxu0 %v729
      %863 = vmatprep.subr.bf16.mxu0 %v733
      %864 = vmatpush1.bf16.msra.mxu0 %v732
      %865 = vmatprep.subr.bf16.mxu0 %v736
      %866 = vmatpush1.bf16.msra.mxu0 %v735
      %867 = vmatprep.subr.bf16.mxu0 %v739
      %868 = vmatpush1.bf16.msra.mxu0 %v738
      %869 = vmatprep.mubr.bf16.mxu0 %v406
      %870 = vmatmul.mubr.bf16.gmra.mrb[0].mxu0 %v405
      %v871 = vpop.f32.mrb[0].mxu0
      %v872 = vadd.f32 %v313, %v871
      %v873 = vpop.f32.mrb[0].mxu0
      %v874 = vadd.f32 %v317, %v873
      %v875 = vpop.f32.mrb[0].mxu0
      %v876 = vadd.f32 %v313, %v875
      %v877 = vpop.f32.mrb[0].mxu0
      %v878 = vadd.f32 %v317, %v877
      %879 = vmatprep.mubr.bf16.mxu0 %v409
      %880 = vmatmul.mubr.bf16.gmra.mrb[0].mxu0 %v408
      %v881 = vpop.f32.mrb[0].mxu0
      %v882 = vadd.f32 %v313, %v881
      %v883 = vpop.f32.mrb[0].mxu0
      %v884 = vadd.f32 %v317, %v883
      %v885 = vpop.f32.mrb[0].mxu0
      %v886 = vadd.f32 %v313, %v885
      %v887 = vpop.f32.mrb[0].mxu0
      %v888 = vadd.f32 %v317, %v887
      %889 = vmatprep.mubr.bf16.mxu0 %v412
      %890 = vmatmul.mubr.bf16.gmra.mrb[0].mxu0 %v411
      %v891 = vpop.f32.mrb[0].mxu0
      %v892 = vadd.f32 %v313, %v891
      %v893 = vpop.f32.mrb[0].mxu0
      %v894 = vadd.f32 %v317, %v893
      %v895 = vpop.f32.mrb[0].mxu0
      %v896 = vadd.f32 %v313, %v895
      %v897 = vpop.f32.mrb[0].mxu0
      %v898 = vadd.f32 %v317, %v897
      %899 = vmatprep.mubr.bf16.mxu0 %v415
      %900 = vmatmul.mubr.bf16.gmra.mrb[0].mxu0 %v414
      %v901 = vpop.f32.mrb[0].mxu0
      %v902 = vadd.f32 %v313, %v901
      %v903 = vpop.f32.mrb[0].mxu0
      %v904 = vadd.f32 %v317, %v903
      %v905 = vpop.f32.mrb[0].mxu0
      %v906 = vadd.f32 %v313, %v905
      %v907 = vpop.f32.mrb[0].mxu0
      %v908 = vadd.f32 %v317, %v907
      %909 = vmatprep.mubr.bf16.mxu0 %v418
      %910 = vmatmul.mubr.bf16.gmra.mrb[0].mxu0 %v417
      %v911 = vpop.f32.mrb[0].mxu0
      %v912 = vadd.f32 %v313, %v911
      %v913 = vpop.f32.mrb[0].mxu0
      %v914 = vadd.f32 %v317, %v913
      %v915 = vpop.f32.mrb[0].mxu0
      %v916 = vadd.f32 %v313, %v915
      %v917 = vpop.f32.mrb[0].mxu0
      %v918 = vadd.f32 %v317, %v917
      %919 = vmatprep.mubr.bf16.mxu0 %v421
      %920 = vmatmul.mubr.bf16.gmra.mrb[0].mxu0 %v420
      %v921 = vpop.f32.mrb[0].mxu0
      %v922 = vadd.f32 %v313, %v921
      %v923 = vpop.f32.mrb[0].mxu0
      %v924 = vadd.f32 %v317, %v923
      %v925 = vpop.f32.mrb[0].mxu0
      %v926 = vadd.f32 %v313, %v925
      %v927 = vpop.f32.mrb[0].mxu0
      %v928 = vadd.f32 %v317, %v927
      %929 = vmatprep.mubr.bf16.mxu0 %v424
      %930 = vmatmul.mubr.bf16.gmra.mrb[0].mxu0 %v423
      %v931 = vpop.f32.mrb[0].mxu0
      %v932 = vadd.f32 %v313, %v931
      %v933 = vpop.f32.mrb[0].mxu0
      %v934 = vadd.f32 %v317, %v933
      %v935 = vpop.f32.mrb[0].mxu0
      %v936 = vadd.f32 %v313, %v935
      %v937 = vpop.f32.mrb[0].mxu0
      %v938 = vadd.f32 %v317, %v937
      %939 = vmatprep.mubr.bf16.mxu0 %v427
      %940 = vmatmul.mubr.bf16.gmra.mrb[0].mxu0 %v426
      %v941 = vpop.f32.mrb[0].mxu0
      %v942 = vadd.f32 %v313, %v941
      %v943 = vpop.f32.mrb[0].mxu0
      %v944 = vadd.f32 %v317, %v943
      %v945 = vpop.f32.mrb[0].mxu0
      %v946 = vadd.f32 %v313, %v945
      %v947 = vpop.f32.mrb[0].mxu0
      %v948 = vadd.f32 %v317, %v947
      %949 = vdwg.mxu0
      %950 = vmatprep.subr.bf16.mxu0 %v742
      %951 = vmatpush1.bf16.msra.mxu0 %v741
      %952 = vmatprep.subr.bf16.mxu0 %v745
      %953 = vmatpush1.bf16.msra.mxu0 %v744
      %954 = vmatprep.subr.bf16.mxu0 %v748
      %955 = vmatpush1.bf16.msra.mxu0 %v747
      %956 = vmatprep.subr.bf16.mxu0 %v751
      %957 = vmatpush1.bf16.msra.mxu0 %v750
      %958 = vmatprep.subr.bf16.mxu0 %v754
      %959 = vmatpush1.bf16.msra.mxu0 %v753
      %960 = vmatprep.subr.bf16.mxu0 %v757
      %961 = vmatpush1.bf16.msra.mxu0 %v756
      %962 = vmatprep.subr.bf16.mxu0 %v760
      %963 = vmatpush1.bf16.msra.mxu0 %v759
      %964 = vmatprep.subr.bf16.mxu0 %v763
      %965 = vmatpush1.bf16.msra.mxu0 %v762
      %966 = vmatprep.subr.bf16.mxu0 0
      %967 = vmatpush1.bf16.msra.mxu0 0
      %968 = vmatprep.subr.bf16.mxu0 0
      %969 = vmatpush1.bf16.msra.mxu0 0
      %970 = vmatprep.subr.bf16.mxu0 0
      %971 = vmatpush1.bf16.msra.mxu0 0
      %972 = vmatprep.subr.bf16.mxu0 0
      %973 = vmatpush1.bf16.msra.mxu0 0
      %974 = vmatprep.subr.bf16.mxu0 0
      %975 = vmatpush1.bf16.msra.mxu0 0
      %976 = vmatprep.subr.bf16.mxu0 0
      %977 = vmatpush1.bf16.msra.mxu0 0
      %978 = vmatprep.subr.bf16.mxu0 0
      %979 = vmatpush1.bf16.msra.mxu0 0
      %980 = vmatprep.subr.bf16.mxu0 0
      %981 = vmatpush1.bf16.msra.mxu0 0
      %982 = vmatprep.mubr.bf16.mxu0 0
      %983 = vmatmul.mubr.bf16.gmra.mrb[0].mxu0 %v407
      %v984 = vpop.f32.mrb[0].mxu0
      %v985 = vadd.f32 %v872, %v984
      %v986 = vpop.f32.mrb[0].mxu0
      %v987 = vadd.f32 %v874, %v986
      %v988 = vpop.f32.mrb[0].mxu0
      %v989 = vadd.f32 %v876, %v988
      %v990 = vpop.f32.mrb[0].mxu0
      %v991 = vadd.f32 %v878, %v990
      %992 = vmatprep.mubr.bf16.mxu0 0
      %993 = vmatmul.mubr.bf16.gmra.mrb[0].mxu0 %v410
      %v994 = vpop.f32.mrb[0].mxu0
      %v995 = vadd.f32 %v882, %v994
      %v996 = vpop.f32.mrb[0].mxu0
      %v997 = vadd.f32 %v884, %v996
      %v998 = vpop.f32.mrb[0].mxu0
      %v999 = vadd.f32 %v886, %v998
      %v1000 = vpop.f32.mrb[0].mxu0
      %v1001 = vadd.f32 %v888, %v1000
      %1002 = vmatprep.mubr.bf16.mxu0 0
      %1003 = vmatmul.mubr.bf16.gmra.mrb[0].mxu0 %v413
      %v1004 = vpop.f32.mrb[0].mxu0
      %v1005 = vadd.f32 %v892, %v1004
      %v1006 = vpop.f32.mrb[0].mxu0
      %v1007 = vadd.f32 %v894, %v1006
      %v1008 = vpop.f32.mrb[0].mxu0
      %v1009 = vadd.f32 %v896, %v1008
      %v1010 = vpop.f32.mrb[0].mxu0
      %v1011 = vadd.f32 %v898, %v1010
      %1012 = vmatprep.mubr.bf16.mxu0 0
      %1013 = vmatmul.mubr.bf16.gmra.mrb[0].mxu0 %v416
      %v1014 = vpop.f32.mrb[0].mxu0
      %v1015 = vadd.f32 %v902, %v1014
      %v1016 = vpop.f32.mrb[0].mxu0
      %v1017 = vadd.f32 %v904, %v1016
      %v1018 = vpop.f32.mrb[0].mxu0
      %v1019 = vadd.f32 %v906, %v1018
      %v1020 = vpop.f32.mrb[0].mxu0
      %v1021 = vadd.f32 %v908, %v1020
      %1022 = vmatprep.mubr.bf16.mxu0 0
      %1023 = vmatmul.mubr.bf16.gmra.mrb[0].mxu0 %v419
      %v1024 = vpop.f32.mrb[0].mxu0
      %v1025 = vadd.f32 %v912, %v1024
      %v1026 = vpop.f32.mrb[0].mxu0
      %v1027 = vadd.f32 %v914, %v1026
      %v1028 = vpop.f32.mrb[0].mxu0
      %v1029 = vadd.f32 %v916, %v1028
      %v1030 = vpop.f32.mrb[0].mxu0
      %v1031 = vadd.f32 %v918, %v1030
      %1032 = vmatprep.mubr.bf16.mxu0 0
      %1033 = vmatmul.mubr.bf16.gmra.mrb[0].mxu0 %v422
      %v1034 = vpop.f32.mrb[0].mxu0
      %v1035 = vadd.f32 %v922, %v1034
      %v1036 = vpop.f32.mrb[0].mxu0
      %v1037 = vadd.f32 %v924, %v1036
      %v1038 = vpop.f32.mrb[0].mxu0
      %v1039 = vadd.f32 %v926, %v1038
      %v1040 = vpop.f32.mrb[0].mxu0
      %v1041 = vadd.f32 %v928, %v1040
      %1042 = vmatprep.mubr.bf16.mxu0 0
      %1043 = vmatmul.mubr.bf16.gmra.mrb[0].mxu0 %v425
      %v1044 = vpop.f32.mrb[0].mxu0
      %v1045 = vadd.f32 %v932, %v1044
      %v1046 = vpop.f32.mrb[0].mxu0
      %v1047 = vadd.f32 %v934, %v1046
      %v1048 = vpop.f32.mrb[0].mxu0
      %v1049 = vadd.f32 %v936, %v1048
      %v1050 = vpop.f32.mrb[0].mxu0
      %v1051 = vadd.f32 %v938, %v1050
      %1052 = vmatprep.mubr.bf16.mxu0 0
      %1053 = vmatmul.mubr.bf16.gmra.mrb[0].mxu0 %v428
      %v1054 = vpop.f32.mrb[0].mxu0
      %v1055 = vadd.f32 %v942, %v1054
      %v1056 = vpop.f32.mrb[0].mxu0
      %v1057 = vadd.f32 %v944, %v1056
      %v1058 = vpop.f32.mrb[0].mxu0
      %v1059 = vadd.f32 %v946, %v1058
      %v1060 = vpop.f32.mrb[0].mxu0
      %v1061 = vadd.f32 %v948, %v1060
      %1062 = vdwg.mxu0
      %1063 = vmatprep.subr.bf16.mxu0 0
      %1064 = vmatpush1.bf16.msra.mxu0 %v695
      %1065 = vmatprep.subr.bf16.mxu0 0
      %1066 = vmatpush1.bf16.msra.mxu0 %v698
      %1067 = vmatprep.subr.bf16.mxu0 0
      %1068 = vmatpush1.bf16.msra.mxu0 %v701
      %1069 = vmatprep.subr.bf16.mxu0 0
      %1070 = vmatpush1.bf16.msra.mxu0 %v704
      %1071 = vmatprep.subr.bf16.mxu0 0
      %1072 = vmatpush1.bf16.msra.mxu0 %v707
      %1073 = vmatprep.subr.bf16.mxu0 0
      %1074 = vmatpush1.bf16.msra.mxu0 %v710
      %1075 = vmatprep.subr.bf16.mxu0 0
      %1076 = vmatpush1.bf16.msra.mxu0 %v713
      %1077 = vmatprep.subr.bf16.mxu0 0
      %1078 = vmatpush1.bf16.msra.mxu0 %v716
      %1079 = vmatprep.subr.bf16.mxu0 0
      %1080 = vmatpush1.bf16.msra.mxu0 %v719
      %1081 = vmatprep.subr.bf16.mxu0 0
      %1082 = vmatpush1.bf16.msra.mxu0 %v722
      %1083 = vmatprep.subr.bf16.mxu0 0
      %1084 = vmatpush1.bf16.msra.mxu0 %v725
      %1085 = vmatprep.subr.bf16.mxu0 0
      %1086 = vmatpush1.bf16.msra.mxu0 %v728
      %1087 = vmatprep.subr.bf16.mxu0 0
      %1088 = vmatpush1.bf16.msra.mxu0 %v731
      %1089 = vmatprep.subr.bf16.mxu0 0
      %1090 = vmatpush1.bf16.msra.mxu0 %v734
      %1091 = vmatprep.subr.bf16.mxu0 0
      %1092 = vmatpush1.bf16.msra.mxu0 %v737
      %1093 = vmatprep.subr.bf16.mxu0 0
      %1094 = vmatpush1.bf16.msra.mxu0 %v740
      %1095 = vmatprep.mubr.bf16.mxu0 %v406
      %1096 = vmatmul.mubr.bf16.gmra.mrb[0].mxu0 %v405
      %v1097 = vpop.f32.mrb[0].mxu0
      %v1098 = vadd.f32 %v321, %v1097
      %v1099 = vpop.f32.mrb[0].mxu0
      %v1100 = vpop.f32.mrb[0].mxu0
      %v1101 = vadd.f32 %v321, %v1100
      %v1102 = vpop.f32.mrb[0].mxu0
      %1103 = vmatprep.mubr.bf16.mxu0 %v409
      %1104 = vmatmul.mubr.bf16.gmra.mrb[0].mxu0 %v408
      %v1105 = vpop.f32.mrb[0].mxu0
      %v1106 = vadd.f32 %v321, %v1105
      %v1107 = vpop.f32.mrb[0].mxu0
      %v1108 = vpop.f32.mrb[0].mxu0
      %v1109 = vadd.f32 %v321, %v1108
      %v1110 = vpop.f32.mrb[0].mxu0
      %1111 = vmatprep.mubr.bf16.mxu0 %v412
      %1112 = vmatmul.mubr.bf16.gmra.mrb[0].mxu0 %v411
      %v1113 = vpop.f32.mrb[0].mxu0
      %v1114 = vadd.f32 %v321, %v1113
      %v1115 = vpop.f32.mrb[0].mxu0
      %v1116 = vpop.f32.mrb[0].mxu0
      %v1117 = vadd.f32 %v321, %v1116
      %v1118 = vpop.f32.mrb[0].mxu0
      %1119 = vmatprep.mubr.bf16.mxu0 %v415
      %1120 = vmatmul.mubr.bf16.gmra.mrb[0].mxu0 %v414
      %v1121 = vpop.f32.mrb[0].mxu0
      %v1122 = vadd.f32 %v321, %v1121
      %v1123 = vpop.f32.mrb[0].mxu0
      %v1124 = vpop.f32.mrb[0].mxu0
      %v1125 = vadd.f32 %v321, %v1124
      %v1126 = vpop.f32.mrb[0].mxu0
      %1127 = vmatprep.mubr.bf16.mxu0 %v418
      %1128 = vmatmul.mubr.bf16.gmra.mrb[0].mxu0 %v417
      %v1129 = vpop.f32.mrb[0].mxu0
      %v1130 = vadd.f32 %v321, %v1129
      %v1131 = vpop.f32.mrb[0].mxu0
      %v1132 = vpop.f32.mrb[0].mxu0
      %v1133 = vadd.f32 %v321, %v1132
      %v1134 = vpop.f32.mrb[0].mxu0
      %1135 = vmatprep.mubr.bf16.mxu0 %v421
      %1136 = vmatmul.mubr.bf16.gmra.mrb[0].mxu0 %v420
      %v1137 = vpop.f32.mrb[0].mxu0
      %v1138 = vadd.f32 %v321, %v1137
      %v1139 = vpop.f32.mrb[0].mxu0
      %v1140 = vpop.f32.mrb[0].mxu0
      %v1141 = vadd.f32 %v321, %v1140
      %v1142 = vpop.f32.mrb[0].mxu0
      %1143 = vmatprep.mubr.bf16.mxu0 %v424
      %1144 = vmatmul.mubr.bf16.gmra.mrb[0].mxu0 %v423
      %v1145 = vpop.f32.mrb[0].mxu0
      %v1146 = vadd.f32 %v321, %v1145
      %v1147 = vpop.f32.mrb[0].mxu0
      %v1148 = vpop.f32.mrb[0].mxu0
      %v1149 = vadd.f32 %v321, %v1148
      %v1150 = vpop.f32.mrb[0].mxu0
      %1151 = vmatprep.mubr.bf16.mxu0 %v427
      %1152 = vmatmul.mubr.bf16.gmra.mrb[0].mxu0 %v426
      %v1153 = vpop.f32.mrb[0].mxu0
      %v1154 = vadd.f32 %v321, %v1153
      %v1155 = vpop.f32.mrb[0].mxu0
      %v1156 = vpop.f32.mrb[0].mxu0
      %v1157 = vadd.f32 %v321, %v1156
      %v1158 = vpop.f32.mrb[0].mxu0
      %1159 = vdwg.mxu0
      %1160 = vmatprep.subr.bf16.mxu0 0
      %1161 = vmatpush1.bf16.msra.mxu0 %v743
      %1162 = vmatprep.subr.bf16.mxu0 0
      %1163 = vmatpush1.bf16.msra.mxu0 %v746
      %1164 = vmatprep.subr.bf16.mxu0 0
      %1165 = vmatpush1.bf16.msra.mxu0 %v749
      %1166 = vmatprep.subr.bf16.mxu0 0
      %1167 = vmatpush1.bf16.msra.mxu0 %v752
      %1168 = vmatprep.subr.bf16.mxu0 0
      %1169 = vmatpush1.bf16.msra.mxu0 %v755
      %1170 = vmatprep.subr.bf16.mxu0 0
      %1171 = vmatpush1.bf16.msra.mxu0 %v758
      %1172 = vmatprep.subr.bf16.mxu0 0
      %1173 = vmatpush1.bf16.msra.mxu0 %v761
      %1174 = vmatprep.subr.bf16.mxu0 0
      %1175 = vmatpush1.bf16.msra.mxu0 %v764
      %1176 = vmatprep.subr.bf16.mxu0 0
      %1177 = vmatpush1.bf16.msra.mxu0 0
      %1178 = vmatprep.subr.bf16.mxu0 0
      %1179 = vmatpush1.bf16.msra.mxu0 0
      %1180 = vmatprep.subr.bf16.mxu0 0
      %1181 = vmatpush1.bf16.msra.mxu0 0
      %1182 = vmatprep.subr.bf16.mxu0 0
      %1183 = vmatpush1.bf16.msra.mxu0 0
      %1184 = vmatprep.subr.bf16.mxu0 0
      %1185 = vmatpush1.bf16.msra.mxu0 0
      %1186 = vmatprep.subr.bf16.mxu0 0
      %1187 = vmatpush1.bf16.msra.mxu0 0
      %1188 = vmatprep.subr.bf16.mxu0 0
      %1189 = vmatpush1.bf16.msra.mxu0 0
      %1190 = vmatprep.subr.bf16.mxu0 0
      %1191 = vmatpush1.bf16.msra.mxu0 0
      %1192 = vmatprep.mubr.bf16.mxu0 0
      %1193 = vmatmul.mubr.bf16.gmra.mrb[0].mxu0 %v407
      %v1194 = vpop.f32.mrb[0].mxu0
      %v1195 = vadd.f32 %v1098, %v1194
      %v1196 = vpop.f32.mrb[0].mxu0
      %v1197 = vpop.f32.mrb[0].mxu0
      %v1198 = vadd.f32 %v1101, %v1197
      %v1199 = vpop.f32.mrb[0].mxu0
      %1200 = vmatprep.mubr.bf16.mxu0 0
      %1201 = vmatmul.mubr.bf16.gmra.mrb[0].mxu0 %v410
      %v1202 = vpop.f32.mrb[0].mxu0
      %v1203 = vadd.f32 %v1106, %v1202
      %v1204 = vpop.f32.mrb[0].mxu0
      %v1205 = vpop.f32.mrb[0].mxu0
      %v1206 = vadd.f32 %v1109, %v1205
      %v1207 = vpop.f32.mrb[0].mxu0
      %1208 = vmatprep.mubr.bf16.mxu0 0
      %1209 = vmatmul.mubr.bf16.gmra.mrb[0].mxu0 %v413
      %v1210 = vpop.f32.mrb[0].mxu0
      %v1211 = vadd.f32 %v1114, %v1210
      %v1212 = vpop.f32.mrb[0].mxu0
      %v1213 = vpop.f32.mrb[0].mxu0
      %v1214 = vadd.f32 %v1117, %v1213
      %v1215 = vpop.f32.mrb[0].mxu0
      %1216 = vmatprep.mubr.bf16.mxu0 0
      %1217 = vmatmul.mubr.bf16.gmra.mrb[0].mxu0 %v416
      %v1218 = vpop.f32.mrb[0].mxu0
      %v1219 = vadd.f32 %v1122, %v1218
      %v1220 = vpop.f32.mrb[0].mxu0
      %v1221 = vpop.f32.mrb[0].mxu0
      %v1222 = vadd.f32 %v1125, %v1221
      %v1223 = vpop.f32.mrb[0].mxu0
      %1224 = vmatprep.mubr.bf16.mxu0 0
      %1225 = vmatmul.mubr.bf16.gmra.mrb[0].mxu0 %v419
      %v1226 = vpop.f32.mrb[0].mxu0
      %v1227 = vadd.f32 %v1130, %v1226
      %v1228 = vpop.f32.mrb[0].mxu0
      %v1229 = vpop.f32.mrb[0].mxu0
      %v1230 = vadd.f32 %v1133, %v1229
      %v1231 = vpop.f32.mrb[0].mxu0
      %1232 = vmatprep.mubr.bf16.mxu0 0
      %1233 = vmatmul.mubr.bf16.gmra.mrb[0].mxu0 %v422
      %v1234 = vpop.f32.mrb[0].mxu0
      %v1235 = vadd.f32 %v1138, %v1234
      %v1236 = vpop.f32.mrb[0].mxu0
      %v1237 = vpop.f32.mrb[0].mxu0
      %v1238 = vadd.f32 %v1141, %v1237
      %v1239 = vpop.f32.mrb[0].mxu0
      %1240 = vmatprep.mubr.bf16.mxu0 0
      %1241 = vmatmul.mubr.bf16.gmra.mrb[0].mxu0 %v425
      %v1242 = vpop.f32.mrb[0].mxu0
      %v1243 = vadd.f32 %v1146, %v1242
      %v1244 = vpop.f32.mrb[0].mxu0
      %v1245 = vpop.f32.mrb[0].mxu0
      %v1246 = vadd.f32 %v1149, %v1245
      %v1247 = vpop.f32.mrb[0].mxu0
      %1248 = vmatprep.mubr.bf16.mxu0 0
      %1249 = vmatmul.mubr.bf16.gmra.mrb[0].mxu0 %v428
      %v1250 = vpop.f32.mrb[0].mxu0
      %v1251 = vadd.f32 %v1154, %v1250
      %v1252 = vpop.f32.mrb[0].mxu0
      %v1253 = vpop.f32.mrb[0].mxu0
      %v1254 = vadd.f32 %v1157, %v1253
      %v1255 = vpop.f32.mrb[0].mxu0
      %1256 = vdwg.mxu0
      %1257 = vst [vmem:[%s177] sm:$0xff] %v985
      %1258 = vst [vmem:[%s177 + $0x8] sm:$0xff] %v987
      %1259 = vst [vmem:[%s177 + $0x10] sm:$0xff] %v1195
      %1260 = vst [vmem:[%s177 + $0x18] sm:$0xff] %v989
      %1261 = vst [vmem:[%s177 + $0x20] sm:$0xff] %v991
      %1262 = vst [vmem:[%s177 + $0x28] sm:$0xff] %v1198
      %1263 = vst [vmem:[%s177 + $0x30] sm:$0xff] %v995
      %1264 = vst [vmem:[%s177 + $0x38] sm:$0xff] %v997
      %1265 = vst [vmem:[%s177 + $0x40] sm:$0xff] %v1203
      %1266 = vst [vmem:[%s177 + $0x48] sm:$0xff] %v999
      %1267 = vst [vmem:[%s177 + $0x50] sm:$0xff] %v1001
      %1268 = vst [vmem:[%s177 + $0x58] sm:$0xff] %v1206
      %1269 = vst [vmem:[%s177 + $0x60] sm:$0xff] %v1005
      %1270 = vst [vmem:[%s177 + $0x68] sm:$0xff] %v1007
      %1271 = vst [vmem:[%s177 + $0x70] sm:$0xff] %v1211
      %1272 = vst [vmem:[%s177 + $0x78] sm:$0xff] %v1009
      %1273 = vst [vmem:[%s177 + $0x80] sm:$0xff] %v1011
      %1274 = vst [vmem:[%s177 + $0x88] sm:$0xff] %v1214
      %1275 = vst [vmem:[%s177 + $0x90] sm:$0xff] %v1015
      %1276 = vst [vmem:[%s177 + $0x98] sm:$0xff] %v1017
      %1277 = vst [vmem:[%s177 + $0xa0] sm:$0xff] %v1219
      %1278 = vst [vmem:[%s177 + $0xa8] sm:$0xff] %v1019
      %1279 = vst [vmem:[%s177 + $0xb0] sm:$0xff] %v1021
      %1280 = vst [vmem:[%s177 + $0xb8] sm:$0xff] %v1222
      %1281 = vst [vmem:[%s177 + $0xc0] sm:$0xff] %v1025
      %1282 = vst [vmem:[%s177 + $0xc8] sm:$0xff] %v1027
      %1283 = vst [vmem:[%s177 + $0xd0] sm:$0xff] %v1227
      %1284 = vst [vmem:[%s177 + $0xd8] sm:$0xff] %v1029
      %1285 = vst [vmem:[%s177 + $0xe0] sm:$0xff] %v1031
      %1286 = vst [vmem:[%s177 + $0xe8] sm:$0xff] %v1230
      %1287 = vst [vmem:[%s177 + $0xf0] sm:$0xff] %v1035
      %1288 = vst [vmem:[%s177 + $0xf8] sm:$0xff] %v1037
      %1289 = vst [vmem:[%s177 + $0x100] sm:$0xff] %v1235
      %1290 = vst [vmem:[%s177 + $0x108] sm:$0xff] %v1039
      %1291 = vst [vmem:[%s177 + $0x110] sm:$0xff] %v1041
      %1292 = vst [vmem:[%s177 + $0x118] sm:$0xff] %v1238
      %1293 = vst [vmem:[%s177 + $0x120] sm:$0xff] %v1045
      %1294 = vst [vmem:[%s177 + $0x128] sm:$0xff] %v1047
      %1295 = vst [vmem:[%s177 + $0x130] sm:$0xff] %v1243
      %1296 = vst [vmem:[%s177 + $0x138] sm:$0xff] %v1049
      %1297 = vst [vmem:[%s177 + $0x140] sm:$0xff] %v1051
      %1298 = vst [vmem:[%s177 + $0x148] sm:$0xff] %v1246
      %1299 = vst [vmem:[%s177 + $0x150] sm:$0xff] %v1055
      %1300 = vst [vmem:[%s177 + $0x158] sm:$0xff] %v1057
      %1301 = vst [vmem:[%s177 + $0x160] sm:$0xff] %v1251
      %1302 = vst [vmem:[%s177 + $0x168] sm:$0xff] %v1059
      %1303 = vst [vmem:[%s177 + $0x170] sm:$0xff] %v1061
      %1304 = vst [vmem:[%s177 + $0x178] sm:$0xff] %v1254
      %s1305 = smul.u32 16, %s14
      %p1306 = scmp.lt.s32.totalorder %s1305, 31
      %s1307 = scalar_select %p1306, %s1305, 31
      %s1308 = smul.addr %s1307, 3
      %s1309 = smul.addr %s1308, 8
      %s1310 = scalar_lea.vmem %s3, %s1309
      // Predicated region
      $region33: #{forward.19} parent=31 // pred_check
        %p1311 = pneg %p100
      $region34: #{forward.19} parent=31 // pred_check_branch
        %1313 = sbr.rel (%p1311) target = $region36
      $region35: #{forward.19} parent=31 // pred_region
        %s1314 = smul.u32 16, %s14
      $region36: #{forward.19} parent=31 // pred_fallthru
        _
    $region32: #{forward.19} parent=5 // pred_fallthru
      _
    %p1315 = scmp.le.s32.totalorder 2, %s9
    // Predicated region
    $region37: #{forward.19} parent=5 // pred_check
      %p1316 = pneg %p1315
    $region38: #{forward.19} parent=5 // pred_check_branch
      %1318 = sbr.rel (%p1316) target = $region40
    $region39: #{forward.19} parent=5 // pred_region
      %s1319 = ssub.s32 %s9, 2
      // Predicated region
      $region41: #{forward.19} parent=39 // pred_check
        %p1320 = pneg %p106
      $region42: #{forward.19} parent=39 // pred_check_branch
        %1322 = sbr.rel (%p1320) target = $region44
      $region43: #{forward.19} parent=39 // pred_region
        %s1323 = smul.u32 16, %s15
        %p1324 = scmp.lt.s32.totalorder %s1323, 31
        %s1325 = scalar_select %p1324, %s1323, 31
        %s1326 = smul.addr %s1325, 3
        %s1327 = smul.addr %s1326, 8
        %s1328 = scalar_lea.vmem %s3, %s1327
      $region44: #{forward.19} parent=39 // pred_fallthru
        _
    $region40: #{forward.19} parent=5 // pred_fallthru
      _
  $region6: #{forward.19} parent=0 // loop_footer
    %s13 = sadd.s32 1, %s9
  $region7: #{forward.19} parent=0 // loop_footer_branch
    %8 = sbr.rel target = $region3
  $region8: #{forward.19} parent=0 // loop_exit
    _

// kernel: forward.20
$region0: #{forward.20}
  #allocation0 [shape = 'u32[]', space=smem, size = 0x4, offset = 0x4, fixed_abs, tag = 'smem constant byte address 0x4 - core index']
  #allocation1 [shape = 'u32[144,128]{1,0:T(1,128)}', space=vmem, size = 0x12000, scoped, tag = 'internal scratch']
  #allocation2 [shape = 'f32[2,128]{1,0:T(2,128)}', space=vmem, size = 0x400, scoped, tag = 'scratch operand']
  %s0 = inlined_call_operand.vmem [shape: f32[128,2,384], index: 0, kind: input, shape index: {}]
  %s1 = inlined_call_operand.vmem [shape: bf16[128,384], index: 1, kind: input, shape index: {}]
  %s2 = inlined_call_operand.vmem [shape: f32[1,384], index: 2, kind: input, shape index: {}]
  %s3 = inlined_call_operand.vmem [shape: f32[128,2,128], index: 3, kind: output, shape index: {}]
  %s4 = sld [smem:[#allocation0]]
  $region29: #{forward.20} parent=0
    _
  %s6 = ssub.s32 1, %s4
  %s7 = scalar_select 0, %s6, %s4
  // Predicated region
  $region2: #{forward.20} parent=0 // pred_check
    _
  $region3: #{forward.20} parent=0 // pred_check_branch
    %9 = sbr.rel (0) target = $region5
  $region4: #{forward.20} parent=0 // pred_region
    _
  $region5: #{forward.20} parent=0 // pred_fallthru
    _
  // Predicated region
  $region6: #{forward.20} parent=0 // pred_check
    _
  $region7: #{forward.20} parent=0 // pred_check_branch
    %11 = sbr.rel (0) target = $region9
  $region8: #{forward.20} parent=0 // pred_region
    _
  $region9: #{forward.20} parent=0 // pred_fallthru
    _
  // Predicated region
  $region10: #{forward.20} parent=0 // pred_check
    _
  $region11: #{forward.20} parent=0 // pred_check_branch
    %13 = sbr.rel (0) target = $region13
  $region12: #{forward.20} parent=0 // pred_region
    _
  $region13: #{forward.20} parent=0 // pred_fallthru
    _
  %15 = vst [vmem:[#allocation2] sm:$0x3] 0.0
  loop: start=0, step=1, limit=128
  $region14: #{forward.20} parent=0 // loop_pre_header
    _
  $region15: #{forward.20} parent=0 // loop_header
    %s17 = sphi 0, %s21
    %p18 = scmp.ge.s32.totalorder %s17, 128
  $region16: #{forward.20} parent=0 // loop_header_branch
    %20 = sbr.rel (%p18) target = $region20
  $region17: #{forward.20} parent=0 // loop_body
    %v22 = vld [vmem:[#allocation2] sm:$0x3]
    %v23 = vpack.c.bf16 %v22, %v22
    %v24 = vld [vmem:[%s1] sm:$0xff]
    %v25 = vld [vmem:[%s1 + $0x8] sm:$0xf]
    %v26 = vld [vmem:[%s1 + $0xc] sm:$0xff]
    %v27 = vld [vmem:[%s1 + $0x14] sm:$0xf]
    %v28 = vld [vmem:[%s1 + $0x18] sm:$0xff]
    %v29 = vld [vmem:[%s1 + $0x20] sm:$0xf]
    %v30 = vld [vmem:[%s1 + $0x24] sm:$0xff]
    %v31 = vld [vmem:[%s1 + $0x2c] sm:$0xf]
    %v32 = vld [vmem:[%s1 + $0x30] sm:$0xff]
    %v33 = vld [vmem:[%s1 + $0x38] sm:$0xf]
    %v34 = vld [vmem:[%s1 + $0x3c] sm:$0xff]
    %v35 = vld [vmem:[%s1 + $0x44] sm:$0xf]
    %v36 = vld [vmem:[%s1 + $0x48] sm:$0xff]
    %v37 = vld [vmem:[%s1 + $0x50] sm:$0xf]
    %v38 = vld [vmem:[%s1 + $0x54] sm:$0xff]
    %v39 = vld [vmem:[%s1 + $0x5c] sm:$0xf]
    %v40 = vld [vmem:[%s1 + $0x60] sm:$0xff]
    %v41 = vld [vmem:[%s1 + $0x68] sm:$0xf]
    %v42 = vld [vmem:[%s1 + $0x6c] sm:$0xff]
    %v43 = vld [vmem:[%s1 + $0x74] sm:$0xf]
    %v44 = vld [vmem:[%s1 + $0x78] sm:$0xff]
    %v45 = vld [vmem:[%s1 + $0x80] sm:$0xf]
    %v46 = vld [vmem:[%s1 + $0x84] sm:$0xff]
    %v47 = vld [vmem:[%s1 + $0x8c] sm:$0xf]
    %v48 = vld [vmem:[%s1 + $0x90] sm:$0xff]
    %v49 = vld [vmem:[%s1 + $0x98] sm:$0xf]
    %v50 = vld [vmem:[%s1 + $0x9c] sm:$0xff]
    %v51 = vld [vmem:[%s1 + $0xa4] sm:$0xf]
    %v52 = vld [vmem:[%s1 + $0xa8] sm:$0xff]
    %v53 = vld [vmem:[%s1 + $0xb0] sm:$0xf]
    %v54 = vld [vmem:[%s1 + $0xb4] sm:$0xff]
    %v55 = vld [vmem:[%s1 + $0xbc] sm:$0xf]
    %v56 = vld [vmem:[%s2] sm:$0x7]
    %v58 = vlaneseq
    %v59 = vshrl.u32 %v58, 7
    %v60 = vsub.s32 0, %v59
    %v61 = vrot.slane %v56, %v60
    %v62 = vlaneseq
    %v63 = vshrl.u32 %v62, 7
    %v64 = vsub.s32 1, %v63
    %v65 = vrot.slane %v56, %v64
    %v66 = vlaneseq
    %v67 = vshrl.u32 %v66, 7
    %v68 = vsub.s32 2, %v67
    %v69 = vrot.slane %v56, %v68
    %v105 = vunpack.c.l.b16 %v24
    %v106 = vunpack.c.h.b16 %v24
    %v107 = vunpack.c.l.b16 %v25
    %v108 = vunpack.c.l.b16 %v26
    %v109 = vunpack.c.h.b16 %v26
    %v110 = vunpack.c.l.b16 %v27
    %v111 = vunpack.c.l.b16 %v28
    %v112 = vunpack.c.h.b16 %v28
    %v113 = vunpack.c.l.b16 %v29
    %v114 = vunpack.c.l.b16 %v30
    %v115 = vunpack.c.h.b16 %v30
    %v116 = vunpack.c.l.b16 %v31
    %v117 = vunpack.c.l.b16 %v32
    %v118 = vunpack.c.h.b16 %v32
    %v119 = vunpack.c.l.b16 %v33
    %v120 = vunpack.c.l.b16 %v34
    %v121 = vunpack.c.h.b16 %v34
    %v122 = vunpack.c.l.b16 %v35
    %v123 = vunpack.c.l.b16 %v36
    %v124 = vunpack.c.h.b16 %v36
    %v125 = vunpack.c.l.b16 %v37
    %v126 = vunpack.c.l.b16 %v38
    %v127 = vunpack.c.h.b16 %v38
    %v128 = vunpack.c.l.b16 %v39
    %v129 = vunpack.c.l.b16 %v40
    %v130 = vunpack.c.h.b16 %v40
    %v131 = vunpack.c.l.b16 %v41
    %v132 = vunpack.c.l.b16 %v42
    %v133 = vunpack.c.h.b16 %v42
    %v134 = vunpack.c.l.b16 %v43
    %v135 = vunpack.c.l.b16 %v44
    %v136 = vunpack.c.h.b16 %v44
    %v137 = vunpack.c.l.b16 %v45
    %v138 = vunpack.c.l.b16 %v46
    %v139 = vunpack.c.h.b16 %v46
    %v140 = vunpack.c.l.b16 %v47
    %v141 = vunpack.c.l.b16 %v48
    %v142 = vunpack.c.h.b16 %v48
    %v143 = vunpack.c.l.b16 %v49
    %v144 = vunpack.c.l.b16 %v50
    %v145 = vunpack.c.h.b16 %v50
    %v146 = vunpack.c.l.b16 %v51
    %v147 = vunpack.c.l.b16 %v52
    %v148 = vunpack.c.h.b16 %v52
    %v149 = vunpack.c.l.b16 %v53
    %v150 = vunpack.c.l.b16 %v54
    %v151 = vunpack.c.h.b16 %v54
    %v152 = vunpack.c.l.b16 %v55
    %v153 = vpack.c.b16 %v108, %v105
    %v154 = vpack.c.b16 %v109, %v106
    %v155 = vpack.c.b16 %v110, %v107
    %v156 = vpack.c.b16 %v114, %v111
    %v157 = vpack.c.b16 %v115, %v112
    %v158 = vpack.c.b16 %v116, %v113
    %v159 = vpack.c.b16 %v120, %v117
    %v160 = vpack.c.b16 %v121, %v118
    %v161 = vpack.c.b16 %v122, %v119
    %v162 = vpack.c.b16 %v126, %v123
    %v163 = vpack.c.b16 %v127, %v124
    %v164 = vpack.c.b16 %v128, %v125
    %v165 = vpack.c.b16 %v132, %v129
    %v166 = vpack.c.b16 %v133, %v130
    %v167 = vpack.c.b16 %v134, %v131
    %v168 = vpack.c.b16 %v138, %v135
    %v169 = vpack.c.b16 %v139, %v136
    %v170 = vpack.c.b16 %v140, %v137
    %v171 = vpack.c.b16 %v144, %v141
    %v172 = vpack.c.b16 %v145, %v142
    %v173 = vpack.c.b16 %v146, %v143
    %v174 = vpack.c.b16 %v150, %v147
    %v175 = vpack.c.b16 %v151, %v148
    %v176 = vpack.c.b16 %v152, %v149
    %201 = vmatprep.subr.bf16.mxu0 %v154
    %202 = vmatpush1.bf16.msra.mxu0 %v153
    %203 = vmatprep.subr.bf16.mxu0 %v157
    %204 = vmatpush1.bf16.msra.mxu0 %v156
    %205 = vmatprep.subr.bf16.mxu0 %v160
    %206 = vmatpush1.bf16.msra.mxu0 %v159
    %207 = vmatprep.subr.bf16.mxu0 %v163
    %208 = vmatpush1.bf16.msra.mxu0 %v162
    %209 = vmatprep.subr.bf16.mxu0 %v166
    %210 = vmatpush1.bf16.msra.mxu0 %v165
    %211 = vmatprep.subr.bf16.mxu0 %v169
    %212 = vmatpush1.bf16.msra.mxu0 %v168
    %213 = vmatprep.subr.bf16.mxu0 %v172
    %214 = vmatpush1.bf16.msra.mxu0 %v171
    %215 = vmatprep.subr.bf16.mxu0 %v175
    %216 = vmatpush1.bf16.msra.mxu0 %v174
    %217 = vmatprep.subr.bf16.mxu0 0
    %218 = vmatpush1.bf16.msra.mxu0 0
    %219 = vmatprep.subr.bf16.mxu0 0
    %220 = vmatpush1.bf16.msra.mxu0 0
    %221 = vmatprep.subr.bf16.mxu0 0
    %222 = vmatpush1.bf16.msra.mxu0 0
    %223 = vmatprep.subr.bf16.mxu0 0
    %224 = vmatpush1.bf16.msra.mxu0 0
    %225 = vmatprep.subr.bf16.mxu0 0
    %226 = vmatpush1.bf16.msra.mxu0 0
    %227 = vmatprep.subr.bf16.mxu0 0
    %228 = vmatpush1.bf16.msra.mxu0 0
    %229 = vmatprep.subr.bf16.mxu0 0
    %230 = vmatpush1.bf16.msra.mxu0 0
    %231 = vmatprep.subr.bf16.mxu0 0
    %232 = vmatpush1.bf16.msra.mxu0 0
    %233 = vmatprep.mubr.bf16.mxu0 0
    %234 = vmatmul.mubr.bf16.gmra.mrb[0].mxu0 %v23
    %v235 = vpop.f32.mrb[0].mxu0
    %v236 = vadd.f32 %v61, %v235
    %v237 = vpop.f32.mrb[0].mxu0
    %v238 = vadd.f32 %v65, %v237
    %v239 = vpop.f32.mrb[0].mxu0
    %v240 = vpop.f32.mrb[0].mxu0
    %241 = vdwg.mxu0
    %242 = vmatprep.subr.bf16.mxu0 0
    %243 = vmatpush1.bf16.msra.mxu0 %v155
    %244 = vmatprep.subr.bf16.mxu0 0
    %245 = vmatpush1.bf16.msra.mxu0 %v158
    %246 = vmatprep.subr.bf16.mxu0 0
    %247 = vmatpush1.bf16.msra.mxu0 %v161
    %248 = vmatprep.subr.bf16.mxu0 0
    %249 = vmatpush1.bf16.msra.mxu0 %v164
    %250 = vmatprep.subr.bf16.mxu0 0
    %251 = vmatpush1.bf16.msra.mxu0 %v167
    %252 = vmatprep.subr.bf16.mxu0 0
    %253 = vmatpush1.bf16.msra.mxu0 %v170
    %254 = vmatprep.subr.bf16.mxu0 0
    %255 = vmatpush1.bf16.msra.mxu0 %v173
    %256 = vmatprep.subr.bf16.mxu0 0
    %257 = vmatpush1.bf16.msra.mxu0 %v176
    %258 = vmatprep.subr.bf16.mxu0 0
    %259 = vmatpush1.bf16.msra.mxu0 0
    %260 = vmatprep.subr.bf16.mxu0 0
    %261 = vmatpush1.bf16.msra.mxu0 0
    %262 = vmatprep.subr.bf16.mxu0 0
    %263 = vmatpush1.bf16.msra.mxu0 0
    %264 = vmatprep.subr.bf16.mxu0 0
    %265 = vmatpush1.bf16.msra.mxu0 0
    %266 = vmatprep.subr.bf16.mxu0 0
    %267 = vmatpush1.bf16.msra.mxu0 0
    %268 = vmatprep.subr.bf16.mxu0 0
    %269 = vmatpush1.bf16.msra.mxu0 0
    %270 = vmatprep.subr.bf16.mxu0 0
    %271 = vmatpush1.bf16.msra.mxu0 0
    %272 = vmatprep.subr.bf16.mxu0 0
    %273 = vmatpush1.bf16.msra.mxu0 0
    %274 = vmatprep.mubr.bf16.mxu0 0
    %275 = vmatmul.mubr.bf16.gmra.mrb[0].mxu0 %v23
    %v276 = vpop.f32.mrb[0].mxu0
    %v277 = vadd.f32 %v69, %v276
    %v278 = vpop.f32.mrb[0].mxu0
    %v279 = vpop.f32.mrb[0].mxu0
    %v280 = vpop.f32.mrb[0].mxu0
    %281 = vdwg.mxu0
    %s282 = smul.u32 %s17, 3
    %s283 = smul.addr %s282, 2
    %s284 = scalar_lea.vmem %s0, %s283
    %v285 = vld [vmem:[%s284] sm:$0x3f]
    %v286 = vadd.f32 %v285, %v236
    %v287 = vsub.f32 0.0, %v286
    %v288 = vmul.f32 %v287, 1.442695
    %v289 = vpow.pop %v288
    %v290 = vadd.f32 %v289, 1.0
    %v291 = vrcp.pop %v290
    %v292 = vmul.f32 1.0, %v291
    %v294 = vrot.slane %v285, 2
    %v296 = vadd.f32 %v294, %v238
    %v297 = vsub.f32 0.0, %v296
    %v298 = vmul.f32 %v297, 1.442695
    %v299 = vpow.pop %v298
    %v300 = vadd.f32 %v299, 1.0
    %v301 = vrcp.pop %v300
    %v302 = vmul.f32 1.0, %v301
    %v303 = vmul.f32 %v292, %v277
    %v304 = vrot.slane %v285, 4
    %v306 = vadd.f32 %v304, %v303
    %v307 = vtanh.pop %v306
    %v308 = vsub.f32 1.0, %v302
    %v309 = vmul.f32 %v308, %v307
    %v310 = vmul.f32 %v302, %v22
    %v311 = vadd.f32 %v309, %v310
    %312 = vst [vmem:[#allocation2] sm:$0x3] %v311
    %s313 = smul.u32 %s17, 2
    %s314 = scalar_lea.vmem %s3, %s313
    %315 = vst [vmem:[%s314] sm:$0x3] %v311
  $region18: #{forward.20} parent=0 // loop_footer
    %s21 = sadd.s32 1, %s17
  $region19: #{forward.20} parent=0 // loop_footer_branch
    %16 = sbr.rel target = $region15
  $region20: #{forward.20} parent=0 // loop_exit
    _
  // Predicated region
  $region21: #{forward.20} parent=0 // pred_check
    _
  $region22: #{forward.20} parent=0 // pred_check_branch
    %317 = sbr.rel (0) target = $region24
  $region23: #{forward.20} parent=0 // pred_region
    _
  $region24: #{forward.20} parent=0 // pred_fallthru
    _
  // Predicated region
  $region25: #{forward.20} parent=0 // pred_check
    _
  $region26: #{forward.20} parent=0 // pred_check_branch
    %319 = sbr.rel (0) target = $region28
  $region27: #{forward.20} parent=0 // pred_region
    _
  $region28: #{forward.20} parent=0 // pred_fallthru
    _

// kernel: forward.21
$region0: #{forward.21}
  #allocation0 [shape = 'u32[]', space=smem, size = 0x4, offset = 0x4, fixed_abs, tag = 'smem constant byte address 0x4 - core index']
  #allocation1 [shape = 'u32[144,128]{1,0:T(1,128)}', space=vmem, size = 0x12000, scoped, tag = 'internal scratch']
  %s0 = inlined_call_operand.vmem [shape: bf16[256,128], index: 0, kind: input, shape index: {}]
  %s1 = inlined_call_operand.vmem [shape: bf16[128,128], index: 1, kind: input, shape index: {}]
  %s2 = inlined_call_operand.vmem [shape: f32[1,128], index: 2, kind: input, shape index: {}]
  %s3 = inlined_call_operand.vmem [shape: bf16[128,256], index: 3, kind: input, shape index: {}]
  %s4 = inlined_call_operand.vmem [shape: f32[1,256], index: 4, kind: input, shape index: {}]
  %s5 = inlined_call_operand.vmem [shape: f32[256,256], index: 5, kind: output, shape index: {}]
  %s6 = sld [smem:[#allocation0]]
  $region53: #{forward.21} parent=0
    _
  %s8 = ssub.s32 1, %s6
  %s9 = scalar_select 0, %s8, %s6
  loop: start=0, step=1, limit=4
  $region2: #{forward.21} parent=0 // loop_pre_header
    _
  $region3: #{forward.21} parent=0 // loop_header
    %s11 = sphi 0, %s15
    %p12 = scmp.ge.s32.totalorder %s11, 4
    %s21 = sphi 0, %s23
    %s24 = sphi 0, %s21
    %s25 = sphi 0, %s24
    %s41 = sphi 0, %s25
    %s45 = sphi 0, %s45
    %s47 = sphi 0, %s45
    %s48 = sphi 0, %s47
    %s62 = sphi 0, %s48
    %s66 = sphi 0, %s66
    %s68 = sphi 0, %s66
    %s69 = sphi 0, %s68
    %s83 = sphi 0, %s69
    %s87 = sphi 0, %s87
    %s89 = sphi 0, %s87
    %s90 = sphi 0, %s89
    %s104 = sphi 0, %s90
    %s108 = sphi 0, %s108
    %s110 = sphi 0, %s108
    %s111 = sphi 0, %s110
    %s125 = sphi 0, %s111
    %s131 = sphi 0, %s133
    %s134 = sphi 0, %s131
    %s135 = sphi 0, %s134
    %s151 = sphi 0, %s135
  $region4: #{forward.21} parent=0 // loop_header_branch
    %14 = sbr.rel (%p12) target = $region8
  $region5: #{forward.21} parent=0 // loop_body
    %s16 = ssub.s32 %s11, 1
    %s17 = ssub.s32 %s11, 2
    %s18 = sadd.s32 %s11, 1
    %s19 = ssub.s32 %s11, %s18
    %p20 = scmp.eq.s32.totalorder %s19, 0
    %s22 = sadd.s32 %s21, 1
    %s23 = scalar_select %p20, %s21, %s22
    %p26 = pneg %p20
    %p27 = scmp.eq.s32.totalorder %s11, 1
    %p28 = por %p26, %p27
    %p29 = scmp.ne.s32.totalorder %s21, %s24
    %p30 = scmp.eq.s32.totalorder %s11, 0
    %p31 = por %p29, %p30
    %p32 = scmp.ne.s32.totalorder %s21, %s24
    %p33 = scmp.eq.s32.totalorder %s16, 1
    %p34 = por %p32, %p33
    %p35 = scmp.ne.s32.totalorder %s24, %s25
    %p36 = scmp.eq.s32.totalorder %s16, 0
    %p37 = por %p35, %p36
    %p38 = scmp.ne.s32.totalorder %s24, %s25
    %p39 = scmp.eq.s32.totalorder %s17, 1
    %p40 = por %p38, %p39
    %p42 = scmp.ne.s32.totalorder %s25, %s41
    %p43 = scmp.eq.s32.totalorder %s17, 0
    %p44 = por %p42, %p43
    %s46 = sadd.s32 %s45, 1
    %p49 = scmp.eq.s32.totalorder %s11, 1
    %p50 = scmp.ne.s32.totalorder %s45, %s47
    %p51 = scmp.eq.s32.totalorder %s11, 0
    %p52 = por %p50, %p51
    %p53 = scmp.ne.s32.totalorder %s45, %s47
    %p54 = scmp.eq.s32.totalorder %s16, 1
    %p55 = por %p53, %p54
    %p56 = scmp.ne.s32.totalorder %s47, %s48
    %p57 = scmp.eq.s32.totalorder %s16, 0
    %p58 = por %p56, %p57
    %p59 = scmp.ne.s32.totalorder %s47, %s48
    %p60 = scmp.eq.s32.totalorder %s17, 1
    %p61 = por %p59, %p60
    %p63 = scmp.ne.s32.totalorder %s48, %s62
    %p64 = scmp.eq.s32.totalorder %s17, 0
    %p65 = por %p63, %p64
    %s67 = sadd.s32 %s66, 1
    %p70 = scmp.eq.s32.totalorder %s11, 1
    %p71 = scmp.ne.s32.totalorder %s66, %s68
    %p72 = scmp.eq.s32.totalorder %s11, 0
    %p73 = por %p71, %p72
    %p74 = scmp.ne.s32.totalorder %s66, %s68
    %p75 = scmp.eq.s32.totalorder %s16, 1
    %p76 = por %p74, %p75
    %p77 = scmp.ne.s32.totalorder %s68, %s69
    %p78 = scmp.eq.s32.totalorder %s16, 0
    %p79 = por %p77, %p78
    %p80 = scmp.ne.s32.totalorder %s68, %s69
    %p81 = scmp.eq.s32.totalorder %s17, 1
    %p82 = por %p80, %p81
    %p84 = scmp.ne.s32.totalorder %s69, %s83
    %p85 = scmp.eq.s32.totalorder %s17, 0
    %p86 = por %p84, %p85
    %s88 = sadd.s32 %s87, 1
    %p91 = scmp.eq.s32.totalorder %s11, 1
    %p92 = scmp.ne.s32.totalorder %s87, %s89
    %p93 = scmp.eq.s32.totalorder %s11, 0
    %p94 = por %p92, %p93
    %p95 = scmp.ne.s32.totalorder %s87, %s89
    %p96 = scmp.eq.s32.totalorder %s16, 1
    %p97 = por %p95, %p96
    %p98 = scmp.ne.s32.totalorder %s89, %s90
    %p99 = scmp.eq.s32.totalorder %s16, 0
    %p100 = por %p98, %p99
    %p101 = scmp.ne.s32.totalorder %s89, %s90
    %p102 = scmp.eq.s32.totalorder %s17, 1
    %p103 = por %p101, %p102
    %p105 = scmp.ne.s32.totalorder %s90, %s104
    %p106 = scmp.eq.s32.totalorder %s17, 0
    %p107 = por %p105, %p106
    %s109 = sadd.s32 %s108, 1
    %p112 = scmp.eq.s32.totalorder %s11, 1
    %p113 = scmp.ne.s32.totalorder %s108, %s110
    %p114 = scmp.eq.s32.totalorder %s11, 0
    %p115 = por %p113, %p114
    %p116 = scmp.ne.s32.totalorder %s108, %s110
    %p117 = scmp.eq.s32.totalorder %s16, 1
    %p118 = por %p116, %p117
    %p119 = scmp.ne.s32.totalorder %s110, %s111
    %p120 = scmp.eq.s32.totalorder %s16, 0
    %p121 = por %p119, %p120
    %p122 = scmp.ne.s32.totalorder %s110, %s111
    %p123 = scmp.eq.s32.totalorder %s17, 1
    %p124 = por %p122, %p123
    %p126 = scmp.ne.s32.totalorder %s111, %s125
    %p127 = scmp.eq.s32.totalorder %s17, 0
    %p128 = por %p126, %p127
    %s129 = ssub.s32 %s11, %s18
    %p130 = scmp.eq.s32.totalorder %s129, 0
    %s132 = sadd.s32 %s131, 1
    %s133 = scalar_select %p130, %s131, %s132
    %p136 = pneg %p130
    %p137 = scmp.eq.s32.totalorder %s11, 1
    %p138 = por %p136, %p137
    %p139 = scmp.ne.s32.totalorder %s131, %s134
    %p140 = scmp.eq.s32.totalorder %s11, 0
    %p141 = por %p139, %p140
    %p142 = scmp.ne.s32.totalorder %s131, %s134
    %p143 = scmp.eq.s32.totalorder %s16, 1
    %p144 = por %p142, %p143
    %p145 = scmp.ne.s32.totalorder %s134, %s135
    %p146 = scmp.eq.s32.totalorder %s16, 0
    %p147 = por %p145, %p146
    %p148 = scmp.ne.s32.totalorder %s134, %s135
    %p149 = scmp.eq.s32.totalorder %s17, 1
    %p150 = por %p148, %p149
    %p152 = scmp.ne.s32.totalorder %s135, %s151
    %p153 = scmp.eq.s32.totalorder %s17, 0
    %p154 = por %p152, %p153
    %p155 = scmp.le.s32.totalorder 1, %s11
    %p156 = scmp.lt.s32.totalorder %s11, 3
    %p157 = pnand %p155, %p156
    %p158 = pneg %p157
    // Predicated region
    $region9: #{forward.21} parent=5 // pred_check
      _
    $region10: #{forward.21} parent=5 // pred_check_branch
      %160 = sbr.rel (%p157) target = $region12
    $region11: #{forward.21} parent=5 // pred_region
      %s161 = ssub.s32 %s11, 1
      // Predicated region
      $region13: #{forward.21} parent=11 // pred_check
        %p162 = pneg %p58
      $region14: #{forward.21} parent=11 // pred_check_branch
        %164 = sbr.rel (%p162) target = $region16
      $region15: #{forward.21} parent=11 // pred_region
        _
      $region16: #{forward.21} parent=11 // pred_fallthru
        _
      // Predicated region
      $region17: #{forward.21} parent=11 // pred_check
        %p165 = pneg %p79
      $region18: #{forward.21} parent=11 // pred_check_branch
        %167 = sbr.rel (%p165) target = $region20
      $region19: #{forward.21} parent=11 // pred_region
        _
      $region20: #{forward.21} parent=11 // pred_fallthru
        _
      // Predicated region
      $region21: #{forward.21} parent=11 // pred_check
        %p168 = pneg %p100
      $region22: #{forward.21} parent=11 // pred_check_branch
        %170 = sbr.rel (%p168) target = $region24
      $region23: #{forward.21} parent=11 // pred_region
        _
      $region24: #{forward.21} parent=11 // pred_fallthru
        _
      // Predicated region
      $region25: #{forward.21} parent=11 // pred_check
        %p171 = pneg %p121
      $region26: #{forward.21} parent=11 // pred_check_branch
        %173 = sbr.rel (%p171) target = $region28
      $region27: #{forward.21} parent=11 // pred_region
        _
      $region28: #{forward.21} parent=11 // pred_fallthru
        _
    $region12: #{forward.21} parent=5 // pred_fallthru
      _
    %p174 = scmp.lt.s32.totalorder %s11, 2
    // Predicated region
    $region29: #{forward.21} parent=5 // pred_check
      %p175 = pneg %p174
    $region30: #{forward.21} parent=5 // pred_check_branch
      %177 = sbr.rel (%p175) target = $region32
    $region31: #{forward.21} parent=5 // pred_region
      // Predicated region
      $region33: #{forward.21} parent=31 // pred_check
        %p178 = pneg %p31
      $region34: #{forward.21} parent=31 // pred_check_branch
        %180 = sbr.rel (%p178) target = $region36
      $region35: #{forward.21} parent=31 // pred_region
        %s181 = smul.u32 16, %s11
        %p182 = scmp.lt.s32.totalorder %s181, 31
        %s183 = scalar_select %p182, %s181, 31
        %s184 = smul.addr %s183, 4
        %s185 = scalar_lea.vmem %s0, %s184
        %s186 = smul.u32 16, %s11
      $region36: #{forward.21} parent=31 // pred_fallthru
        _
    $region32: #{forward.21} parent=5 // pred_fallthru
      _
    %p187 = scmp.le.s32.totalorder 1, %s11
    %p188 = scmp.lt.s32.totalorder %s11, 3
    %p189 = pnand %p187, %p188
    %p190 = pneg %p189
    // Predicated region
    $region37: #{forward.21} parent=5 // pred_check
      _
    $region38: #{forward.21} parent=5 // pred_check_branch
      %192 = sbr.rel (%p189) target = $region40
    $region39: #{forward.21} parent=5 // pred_region
      %s193 = ssub.s32 %s11, 1
      %s194 = smul.u32 16, %s16
      %p195 = scmp.lt.s32.totalorder %s194, 31
      %s196 = scalar_select %p195, %s194, 31
      %s197 = smul.addr %s196, 4
      %s198 = scalar_lea.vmem %s0, %s197
      %p199 = pneg %p37
      %p200 = pneg %p34
      %p201 = pneg %p58
      %p202 = pneg %p55
      %p203 = pneg %p79
      %p204 = pneg %p76
      %p205 = pneg %p100
      %p206 = pneg %p97
      %p207 = pneg %p121
      %p208 = pneg %p118
      %p209 = pneg %p147
      %p210 = pneg %p144
      %s211 = smul.u32 16, %s16
      %p212 = scmp.lt.s32.totalorder %s211, 31
      %s213 = scalar_select %p212, %s211, 31
      %s214 = smul.addr %s213, 2
      %s215 = smul.addr %s214, 8
      %s216 = scalar_lea.vmem %s5, %s215
      %s217 = smul.u32 16, %s16
      %p218 = scmp.lt.s32.totalorder %s217, 31
      %s219 = scalar_select %p218, %s217, 31
      %s220 = smul.addr %s219, 4
      %s221 = scalar_lea.vmem %s0, %s220
      %s222 = smul.u32 16, %s16
      %s223 = smul.u32 16, %s16
      %p224 = scmp.lt.s32.totalorder %s223, 31
      %s225 = scalar_select %p224, %s223, 31
      %s226 = smul.addr %s225, 2
      %s227 = smul.addr %s226, 8
      %s228 = scalar_lea.vmem %s5, %s227
      %s229 = smul.u32 16, %s16
      %v231 = vld [vmem:[%s221] sm:$0xf]
      %v232 = vld [vmem:[%s221 + $0x4] sm:$0xf]
      %v233 = vld [vmem:[%s221 + $0x8] sm:$0xf]
      %v234 = vld [vmem:[%s221 + $0xc] sm:$0xf]
      %v235 = vld [vmem:[%s221 + $0x10] sm:$0xf]
      %v236 = vld [vmem:[%s221 + $0x14] sm:$0xf]
      %v237 = vld [vmem:[%s221 + $0x18] sm:$0xf]
      %v238 = vld [vmem:[%s221 + $0x1c] sm:$0xf]
      %v239 = vld [vmem:[%s221 + $0x20] sm:$0xf]
      %v240 = vld [vmem:[%s221 + $0x24] sm:$0xf]
      %v241 = vld [vmem:[%s221 + $0x28] sm:$0xf]
      %v242 = vld [vmem:[%s221 + $0x2c] sm:$0xf]
      %v243 = vld [vmem:[%s221 + $0x30] sm:$0xf]
      %v244 = vld [vmem:[%s221 + $0x34] sm:$0xf]
      %v245 = vld [vmem:[%s221 + $0x38] sm:$0xf]
      %v246 = vld [vmem:[%s221 + $0x3c] sm:$0xf]
      %v247 = vld [vmem:[%s1] sm:$0xf]
      %v248 = vld [vmem:[%s1 + $0x4] sm:$0xf]
      %v249 = vld [vmem:[%s1 + $0x8] sm:$0xf]
      %v250 = vld [vmem:[%s1 + $0xc] sm:$0xf]
      %v251 = vld [vmem:[%s1 + $0x10] sm:$0xf]
      %v252 = vld [vmem:[%s1 + $0x14] sm:$0xf]
      %v253 = vld [vmem:[%s1 + $0x18] sm:$0xf]
      %v254 = vld [vmem:[%s1 + $0x1c] sm:$0xf]
      %v255 = vld [vmem:[%s1 + $0x20] sm:$0xf]
      %v256 = vld [vmem:[%s1 + $0x24] sm:$0xf]
      %v257 = vld [vmem:[%s1 + $0x28] sm:$0xf]
      %v258 = vld [vmem:[%s1 + $0x2c] sm:$0xf]
      %v259 = vld [vmem:[%s1 + $0x30] sm:$0xf]
      %v260 = vld [vmem:[%s1 + $0x34] sm:$0xf]
      %v261 = vld [vmem:[%s1 + $0x38] sm:$0xf]
      %v262 = vld [vmem:[%s1 + $0x3c] sm:$0xf]
      %v263 = vld [vmem:[%s2] sm:$0x1]
      %v265 = vlaneseq
      %v266 = vshrl.u32 %v265, 7
      %v267 = vsub.s32 0, %v266
      %v268 = vrot.slane %v263, %v267
      %v286 = vunpack.c.l.b16 %v231
      %v287 = vunpack.c.l.b16 %v232
      %v288 = vunpack.c.l.b16 %v233
      %v289 = vunpack.c.l.b16 %v234
      %v290 = vunpack.c.l.b16 %v235
      %v291 = vunpack.c.l.b16 %v236
      %v292 = vunpack.c.l.b16 %v237
      %v293 = vunpack.c.l.b16 %v238
      %v294 = vunpack.c.l.b16 %v239
      %v295 = vunpack.c.l.b16 %v240
      %v296 = vunpack.c.l.b16 %v241
      %v297 = vunpack.c.l.b16 %v242
      %v298 = vunpack.c.l.b16 %v243
      %v299 = vunpack.c.l.b16 %v244
      %v300 = vunpack.c.l.b16 %v245
      %v301 = vunpack.c.l.b16 %v246
      %v302 = vpack.c.b16 %v287, %v286
      %v303 = vpack.c.b16 %v289, %v288
      %v304 = vpack.c.b16 %v291, %v290
      %v305 = vpack.c.b16 %v293, %v292
      %v306 = vpack.c.b16 %v295, %v294
      %v307 = vpack.c.b16 %v297, %v296
      %v308 = vpack.c.b16 %v299, %v298
      %v309 = vpack.c.b16 %v301, %v300
      %v334 = vunpack.c.l.b16 %v247
      %v335 = vunpack.c.l.b16 %v248
      %v336 = vunpack.c.l.b16 %v249
      %v337 = vunpack.c.l.b16 %v250
      %v338 = vunpack.c.l.b16 %v251
      %v339 = vunpack.c.l.b16 %v252
      %v340 = vunpack.c.l.b16 %v253
      %v341 = vunpack.c.l.b16 %v254
      %v342 = vunpack.c.l.b16 %v255
      %v343 = vunpack.c.l.b16 %v256
      %v344 = vunpack.c.l.b16 %v257
      %v345 = vunpack.c.l.b16 %v258
      %v346 = vunpack.c.l.b16 %v259
      %v347 = vunpack.c.l.b16 %v260
      %v348 = vunpack.c.l.b16 %v261
      %v349 = vunpack.c.l.b16 %v262
      %v350 = vpack.c.b16 %v335, %v334
      %v351 = vpack.c.b16 %v337, %v336
      %v352 = vpack.c.b16 %v339, %v338
      %v353 = vpack.c.b16 %v341, %v340
      %v354 = vpack.c.b16 %v343, %v342
      %v355 = vpack.c.b16 %v345, %v344
      %v356 = vpack.c.b16 %v347, %v346
      %v357 = vpack.c.b16 %v349, %v348
      %366 = vmatprep.subr.bf16.mxu0 0
      %367 = vmatpush1.bf16.msra.mxu0 %v350
      %368 = vmatprep.subr.bf16.mxu0 0
      %369 = vmatpush1.bf16.msra.mxu0 %v351
      %370 = vmatprep.subr.bf16.mxu0 0
      %371 = vmatpush1.bf16.msra.mxu0 %v352
      %372 = vmatprep.subr.bf16.mxu0 0
      %373 = vmatpush1.bf16.msra.mxu0 %v353
      %374 = vmatprep.subr.bf16.mxu0 0
      %375 = vmatpush1.bf16.msra.mxu0 %v354
      %376 = vmatprep.subr.bf16.mxu0 0
      %377 = vmatpush1.bf16.msra.mxu0 %v355
      %378 = vmatprep.subr.bf16.mxu0 0
      %379 = vmatpush1.bf16.msra.mxu0 %v356
      %380 = vmatprep.subr.bf16.mxu0 0
      %381 = vmatpush1.bf16.msra.mxu0 %v357
      %382 = vmatprep.subr.bf16.mxu0 0
      %383 = vmatpush1.bf16.msra.mxu0 0
      %384 = vmatprep.subr.bf16.mxu0 0
      %385 = vmatpush1.bf16.msra.mxu0 0
      %386 = vmatprep.subr.bf16.mxu0 0
      %387 = vmatpush1.bf16.msra.mxu0 0
      %388 = vmatprep.subr.bf16.mxu0 0
      %389 = vmatpush1.bf16.msra.mxu0 0
      %390 = vmatprep.subr.bf16.mxu0 0
      %391 = vmatpush1.bf16.msra.mxu0 0
      %392 = vmatprep.subr.bf16.mxu0 0
      %393 = vmatpush1.bf16.msra.mxu0 0
      %394 = vmatprep.subr.bf16.mxu0 0
      %395 = vmatpush1.bf16.msra.mxu0 0
      %396 = vmatprep.subr.bf16.mxu0 0
      %397 = vmatpush1.bf16.msra.mxu0 0
      %398 = vmatprep.mubr.bf16.mxu0 0
      %399 = vmatmul.mubr.bf16.gmra.mrb[0].mxu0 %v302
      %v400 = vpop.f32.mrb[0].mxu0
      %v401 = vadd.f32 %v268, %v400
      %v402 = vpop.f32.mrb[0].mxu0
      %v403 = vpop.f32.mrb[0].mxu0
      %v404 = vadd.f32 %v268, %v403
      %v405 = vpop.f32.mrb[0].mxu0
      %406 = vmatprep.mubr.bf16.mxu0 0
      %407 = vmatmul.mubr.bf16.gmra.mrb[0].mxu0 %v303
      %v408 = vpop.f32.mrb[0].mxu0
      %v409 = vadd.f32 %v268, %v408
      %v410 = vpop.f32.mrb[0].mxu0
      %v411 = vpop.f32.mrb[0].mxu0
      %v412 = vadd.f32 %v268, %v411
      %v413 = vpop.f32.mrb[0].mxu0
      %414 = vmatprep.mubr.bf16.mxu0 0
      %415 = vmatmul.mubr.bf16.gmra.mrb[0].mxu0 %v304
      %v416 = vpop.f32.mrb[0].mxu0
      %v417 = vadd.f32 %v268, %v416
      %v418 = vpop.f32.mrb[0].mxu0
      %v419 = vpop.f32.mrb[0].mxu0
      %v420 = vadd.f32 %v268, %v419
      %v421 = vpop.f32.mrb[0].mxu0
      %422 = vmatprep.mubr.bf16.mxu0 0
      %423 = vmatmul.mubr.bf16.gmra.mrb[0].mxu0 %v305
      %v424 = vpop.f32.mrb[0].mxu0
      %v425 = vadd.f32 %v268, %v424
      %v426 = vpop.f32.mrb[0].mxu0
      %v427 = vpop.f32.mrb[0].mxu0
      %v428 = vadd.f32 %v268, %v427
      %v429 = vpop.f32.mrb[0].mxu0
      %430 = vmatprep.mubr.bf16.mxu0 0
      %431 = vmatmul.mubr.bf16.gmra.mrb[0].mxu0 %v306
      %v432 = vpop.f32.mrb[0].mxu0
      %v433 = vadd.f32 %v268, %v432
      %v434 = vpop.f32.mrb[0].mxu0
      %v435 = vpop.f32.mrb[0].mxu0
      %v436 = vadd.f32 %v268, %v435
      %v437 = vpop.f32.mrb[0].mxu0
      %438 = vmatprep.mubr.bf16.mxu0 0
      %439 = vmatmul.mubr.bf16.gmra.mrb[0].mxu0 %v307
      %v440 = vpop.f32.mrb[0].mxu0
      %v441 = vadd.f32 %v268, %v440
      %v442 = vpop.f32.mrb[0].mxu0
      %v443 = vpop.f32.mrb[0].mxu0
      %v444 = vadd.f32 %v268, %v443
      %v445 = vpop.f32.mrb[0].mxu0
      %446 = vmatprep.mubr.bf16.mxu0 0
      %447 = vmatmul.mubr.bf16.gmra.mrb[0].mxu0 %v308
      %v448 = vpop.f32.mrb[0].mxu0
      %v449 = vadd.f32 %v268, %v448
      %v450 = vpop.f32.mrb[0].mxu0
      %v451 = vpop.f32.mrb[0].mxu0
      %v452 = vadd.f32 %v268, %v451
      %v453 = vpop.f32.mrb[0].mxu0
      %454 = vmatprep.mubr.bf16.mxu0 0
      %455 = vmatmul.mubr.bf16.gmra.mrb[0].mxu0 %v309
      %v456 = vpop.f32.mrb[0].mxu0
      %v457 = vadd.f32 %v268, %v456
      %v458 = vpop.f32.mrb[0].mxu0
      %v459 = vpop.f32.mrb[0].mxu0
      %v460 = vadd.f32 %v268, %v459
      %v461 = vpop.f32.mrb[0].mxu0
      %462 = vdwg.mxu0
      %v463 = vmax.f32 %v401, 0.0
      %v464 = vmax.f32 %v404, 0.0
      %v465 = vmax.f32 %v409, 0.0
      %v466 = vmax.f32 %v412, 0.0
      %v467 = vmax.f32 %v417, 0.0
      %v468 = vmax.f32 %v420, 0.0
      %v469 = vmax.f32 %v425, 0.0
      %v470 = vmax.f32 %v428, 0.0
      %v471 = vmax.f32 %v433, 0.0
      %v472 = vmax.f32 %v436, 0.0
      %v473 = vmax.f32 %v441, 0.0
      %v474 = vmax.f32 %v444, 0.0
      %v475 = vmax.f32 %v449, 0.0
      %v476 = vmax.f32 %v452, 0.0
      %v477 = vmax.f32 %v457, 0.0
      %v478 = vmax.f32 %v460, 0.0
      %v479 = vpack.c.bf16 %v464, %v463
      %v480 = vpack.c.bf16 %v466, %v465
      %v481 = vpack.c.bf16 %v468, %v467
      %v482 = vpack.c.bf16 %v470, %v469
      %v483 = vpack.c.bf16 %v472, %v471
      %v484 = vpack.c.bf16 %v474, %v473
      %v485 = vpack.c.bf16 %v476, %v475
      %v486 = vpack.c.bf16 %v478, %v477
      %v487 = vld [vmem:[%s3] sm:$0xff]
      %v488 = vld [vmem:[%s3 + $0x8] sm:$0xff]
      %v489 = vld [vmem:[%s3 + $0x10] sm:$0xff]
      %v490 = vld [vmem:[%s3 + $0x18] sm:$0xff]
      %v491 = vld [vmem:[%s3 + $0x20] sm:$0xff]
      %v492 = vld [vmem:[%s3 + $0x28] sm:$0xff]
      %v493 = vld [vmem:[%s3 + $0x30] sm:$0xff]
      %v494 = vld [vmem:[%s3 + $0x38] sm:$0xff]
      %v495 = vld [vmem:[%s3 + $0x40] sm:$0xff]
      %v496 = vld [vmem:[%s3 + $0x48] sm:$0xff]
      %v497 = vld [vmem:[%s3 + $0x50] sm:$0xff]
      %v498 = vld [vmem:[%s3 + $0x58] sm:$0xff]
      %v499 = vld [vmem:[%s3 + $0x60] sm:$0xff]
      %v500 = vld [vmem:[%s3 + $0x68] sm:$0xff]
      %v501 = vld [vmem:[%s3 + $0x70] sm:$0xff]
      %v502 = vld [vmem:[%s3 + $0x78] sm:$0xff]
      %v503 = vld [vmem:[%s4] sm:$0x3]
      %v505 = vlaneseq
      %v506 = vshrl.u32 %v505, 7
      %v507 = vsub.s32 0, %v506
      %v508 = vrot.slane %v503, %v507
      %v509 = vlaneseq
      %v510 = vshrl.u32 %v509, 7
      %v511 = vsub.s32 1, %v510
      %v512 = vrot.slane %v503, %v511
      %v531 = vunpack.c.l.b16 %v487
      %v532 = vunpack.c.h.b16 %v487
      %v533 = vunpack.c.l.b16 %v488
      %v534 = vunpack.c.h.b16 %v488
      %v535 = vunpack.c.l.b16 %v489
      %v536 = vunpack.c.h.b16 %v489
      %v537 = vunpack.c.l.b16 %v490
      %v538 = vunpack.c.h.b16 %v490
      %v539 = vunpack.c.l.b16 %v491
      %v540 = vunpack.c.h.b16 %v491
      %v541 = vunpack.c.l.b16 %v492
      %v542 = vunpack.c.h.b16 %v492
      %v543 = vunpack.c.l.b16 %v493
      %v544 = vunpack.c.h.b16 %v493
      %v545 = vunpack.c.l.b16 %v494
      %v546 = vunpack.c.h.b16 %v494
      %v547 = vunpack.c.l.b16 %v495
      %v548 = vunpack.c.h.b16 %v495
      %v549 = vunpack.c.l.b16 %v496
      %v550 = vunpack.c.h.b16 %v496
      %v551 = vunpack.c.l.b16 %v497
      %v552 = vunpack.c.h.b16 %v497
      %v553 = vunpack.c.l.b16 %v498
      %v554 = vunpack.c.h.b16 %v498
      %v555 = vunpack.c.l.b16 %v499
      %v556 = vunpack.c.h.b16 %v499
      %v557 = vunpack.c.l.b16 %v500
      %v558 = vunpack.c.h.b16 %v500
      %v559 = vunpack.c.l.b16 %v501
      %v560 = vunpack.c.h.b16 %v501
      %v561 = vunpack.c.l.b16 %v502
      %v562 = vunpack.c.h.b16 %v502
      %v563 = vpack.c.b16 %v533, %v531
      %v564 = vpack.c.b16 %v534, %v532
      %v565 = vpack.c.b16 %v537, %v535
      %v566 = vpack.c.b16 %v538, %v536
      %v567 = vpack.c.b16 %v541, %v539
      %v568 = vpack.c.b16 %v542, %v540
      %v569 = vpack.c.b16 %v545, %v543
      %v570 = vpack.c.b16 %v546, %v544
      %v571 = vpack.c.b16 %v549, %v547
      %v572 = vpack.c.b16 %v550, %v548
      %v573 = vpack.c.b16 %v553, %v551
      %v574 = vpack.c.b16 %v554, %v552
      %v575 = vpack.c.b16 %v557, %v555
      %v576 = vpack.c.b16 %v558, %v556
      %v577 = vpack.c.b16 %v561, %v559
      %v578 = vpack.c.b16 %v562, %v560
      %595 = vmatprep.subr.bf16.mxu0 %v564
      %596 = vmatpush1.bf16.msra.mxu0 %v563
      %597 = vmatprep.subr.bf16.mxu0 %v566
      %598 = vmatpush1.bf16.msra.mxu0 %v565
      %599 = vmatprep.subr.bf16.mxu0 %v568
      %600 = vmatpush1.bf16.msra.mxu0 %v567
      %601 = vmatprep.subr.bf16.mxu0 %v570
      %602 = vmatpush1.bf16.msra.mxu0 %v569
      %603 = vmatprep.subr.bf16.mxu0 %v572
      %604 = vmatpush1.bf16.msra.mxu0 %v571
      %605 = vmatprep.subr.bf16.mxu0 %v574
      %606 = vmatpush1.bf16.msra.mxu0 %v573
      %607 = vmatprep.subr.bf16.mxu0 %v576
      %608 = vmatpush1.bf16.msra.mxu0 %v575
      %609 = vmatprep.subr.bf16.mxu0 %v578
      %610 = vmatpush1.bf16.msra.mxu0 %v577
      %611 = vmatprep.subr.bf16.mxu0 0
      %612 = vmatpush1.bf16.msra.mxu0 0
      %613 = vmatprep.subr.bf16.mxu0 0
      %614 = vmatpush1.bf16.msra.mxu0 0
      %615 = vmatprep.subr.bf16.mxu0 0
      %616 = vmatpush1.bf16.msra.mxu0 0
      %617 = vmatprep.subr.bf16.mxu0 0
      %618 = vmatpush1.bf16.msra.mxu0 0
      %619 = vmatprep.subr.bf16.mxu0 0
      %620 = vmatpush1.bf16.msra.mxu0 0
      %621 = vmatprep.subr.bf16.mxu0 0
      %622 = vmatpush1.bf16.msra.mxu0 0
      %623 = vmatprep.subr.bf16.mxu0 0
      %624 = vmatpush1.bf16.msra.mxu0 0
      %625 = vmatprep.subr.bf16.mxu0 0
      %626 = vmatpush1.bf16.msra.mxu0 0
      %627 = vmatprep.mubr.bf16.mxu0 0
      %628 = vmatmul.mubr.bf16.gmra.mrb[0].mxu0 %v479
      %v629 = vpop.f32.mrb[0].mxu0
      %v630 = vadd.f32 %v508, %v629
      %v631 = vpop.f32.mrb[0].mxu0
      %v632 = vadd.f32 %v512, %v631
      %v633 = vpop.f32.mrb[0].mxu0
      %v634 = vadd.f32 %v508, %v633
      %v635 = vpop.f32.mrb[0].mxu0
      %v636 = vadd.f32 %v512, %v635
      %637 = vmatprep.mubr.bf16.mxu0 0
      %638 = vmatmul.mubr.bf16.gmra.mrb[0].mxu0 %v480
      %v639 = vpop.f32.mrb[0].mxu0
      %v640 = vadd.f32 %v508, %v639
      %v641 = vpop.f32.mrb[0].mxu0
      %v642 = vadd.f32 %v512, %v641
      %v643 = vpop.f32.mrb[0].mxu0
      %v644 = vadd.f32 %v508, %v643
      %v645 = vpop.f32.mrb[0].mxu0
      %v646 = vadd.f32 %v512, %v645
      %647 = vmatprep.mubr.bf16.mxu0 0
      %648 = vmatmul.mubr.bf16.gmra.mrb[0].mxu0 %v481
      %v649 = vpop.f32.mrb[0].mxu0
      %v650 = vadd.f32 %v508, %v649
      %v651 = vpop.f32.mrb[0].mxu0
      %v652 = vadd.f32 %v512, %v651
      %v653 = vpop.f32.mrb[0].mxu0
      %v654 = vadd.f32 %v508, %v653
      %v655 = vpop.f32.mrb[0].mxu0
      %v656 = vadd.f32 %v512, %v655
      %657 = vmatprep.mubr.bf16.mxu0 0
      %658 = vmatmul.mubr.bf16.gmra.mrb[0].mxu0 %v482
      %v659 = vpop.f32.mrb[0].mxu0
      %v660 = vadd.f32 %v508, %v659
      %v661 = vpop.f32.mrb[0].mxu0
      %v662 = vadd.f32 %v512, %v661
      %v663 = vpop.f32.mrb[0].mxu0
      %v664 = vadd.f32 %v508, %v663
      %v665 = vpop.f32.mrb[0].mxu0
      %v666 = vadd.f32 %v512, %v665
      %667 = vmatprep.mubr.bf16.mxu0 0
      %668 = vmatmul.mubr.bf16.gmra.mrb[0].mxu0 %v483
      %v669 = vpop.f32.mrb[0].mxu0
      %v670 = vadd.f32 %v508, %v669
      %v671 = vpop.f32.mrb[0].mxu0
      %v672 = vadd.f32 %v512, %v671
      %v673 = vpop.f32.mrb[0].mxu0
      %v674 = vadd.f32 %v508, %v673
      %v675 = vpop.f32.mrb[0].mxu0
      %v676 = vadd.f32 %v512, %v675
      %677 = vmatprep.mubr.bf16.mxu0 0
      %678 = vmatmul.mubr.bf16.gmra.mrb[0].mxu0 %v484
      %v679 = vpop.f32.mrb[0].mxu0
      %v680 = vadd.f32 %v508, %v679
      %v681 = vpop.f32.mrb[0].mxu0
      %v682 = vadd.f32 %v512, %v681
      %v683 = vpop.f32.mrb[0].mxu0
      %v684 = vadd.f32 %v508, %v683
      %v685 = vpop.f32.mrb[0].mxu0
      %v686 = vadd.f32 %v512, %v685
      %687 = vmatprep.mubr.bf16.mxu0 0
      %688 = vmatmul.mubr.bf16.gmra.mrb[0].mxu0 %v485
      %v689 = vpop.f32.mrb[0].mxu0
      %v690 = vadd.f32 %v508, %v689
      %v691 = vpop.f32.mrb[0].mxu0
      %v692 = vadd.f32 %v512, %v691
      %v693 = vpop.f32.mrb[0].mxu0
      %v694 = vadd.f32 %v508, %v693
      %v695 = vpop.f32.mrb[0].mxu0
      %v696 = vadd.f32 %v512, %v695
      %697 = vmatprep.mubr.bf16.mxu0 0
      %698 = vmatmul.mubr.bf16.gmra.mrb[0].mxu0 %v486
      %v699 = vpop.f32.mrb[0].mxu0
      %v700 = vadd.f32 %v508, %v699
      %v701 = vpop.f32.mrb[0].mxu0
      %v702 = vadd.f32 %v512, %v701
      %v703 = vpop.f32.mrb[0].mxu0
      %v704 = vadd.f32 %v508, %v703
      %v705 = vpop.f32.mrb[0].mxu0
      %v706 = vadd.f32 %v512, %v705
      %707 = vdwg.mxu0
      %708 = vst [vmem:[%s228] sm:$0xff] %v630
      %709 = vst [vmem:[%s228 + $0x8] sm:$0xff] %v632
      %710 = vst [vmem:[%s228 + $0x10] sm:$0xff] %v634
      %711 = vst [vmem:[%s228 + $0x18] sm:$0xff] %v636
      %712 = vst [vmem:[%s228 + $0x20] sm:$0xff] %v640
      %713 = vst [vmem:[%s228 + $0x28] sm:$0xff] %v642
      %714 = vst [vmem:[%s228 + $0x30] sm:$0xff] %v644
      %715 = vst [vmem:[%s228 + $0x38] sm:$0xff] %v646
      %716 = vst [vmem:[%s228 + $0x40] sm:$0xff] %v650
      %717 = vst [vmem:[%s228 + $0x48] sm:$0xff] %v652
      %718 = vst [vmem:[%s228 + $0x50] sm:$0xff] %v654
      %719 = vst [vmem:[%s228 + $0x58] sm:$0xff] %v656
      %720 = vst [vmem:[%s228 + $0x60] sm:$0xff] %v660
      %721 = vst [vmem:[%s228 + $0x68] sm:$0xff] %v662
      %722 = vst [vmem:[%s228 + $0x70] sm:$0xff] %v664
      %723 = vst [vmem:[%s228 + $0x78] sm:$0xff] %v666
      %724 = vst [vmem:[%s228 + $0x80] sm:$0xff] %v670
      %725 = vst [vmem:[%s228 + $0x88] sm:$0xff] %v672
      %726 = vst [vmem:[%s228 + $0x90] sm:$0xff] %v674
      %727 = vst [vmem:[%s228 + $0x98] sm:$0xff] %v676
      %728 = vst [vmem:[%s228 + $0xa0] sm:$0xff] %v680
      %729 = vst [vmem:[%s228 + $0xa8] sm:$0xff] %v682
      %730 = vst [vmem:[%s228 + $0xb0] sm:$0xff] %v684
      %731 = vst [vmem:[%s228 + $0xb8] sm:$0xff] %v686
      %732 = vst [vmem:[%s228 + $0xc0] sm:$0xff] %v690
      %733 = vst [vmem:[%s228 + $0xc8] sm:$0xff] %v692
      %734 = vst [vmem:[%s228 + $0xd0] sm:$0xff] %v694
      %735 = vst [vmem:[%s228 + $0xd8] sm:$0xff] %v696
      %736 = vst [vmem:[%s228 + $0xe0] sm:$0xff] %v700
      %737 = vst [vmem:[%s228 + $0xe8] sm:$0xff] %v702
      %738 = vst [vmem:[%s228 + $0xf0] sm:$0xff] %v704
      %739 = vst [vmem:[%s228 + $0xf8] sm:$0xff] %v706
      %s740 = smul.u32 16, %s16
      %p741 = scmp.lt.s32.totalorder %s740, 31
      %s742 = scalar_select %p741, %s740, 31
      %s743 = smul.addr %s742, 2
      %s744 = smul.addr %s743, 8
      %s745 = scalar_lea.vmem %s5, %s744
      // Predicated region
      $region41: #{forward.21} parent=39 // pred_check
        %p746 = pneg %p144
      $region42: #{forward.21} parent=39 // pred_check_branch
        %748 = sbr.rel (%p746) target = $region44
      $region43: #{forward.21} parent=39 // pred_region
        %s749 = smul.u32 16, %s16
      $region44: #{forward.21} parent=39 // pred_fallthru
        _
    $region40: #{forward.21} parent=5 // pred_fallthru
      _
    %p750 = scmp.le.s32.totalorder 2, %s11
    // Predicated region
    $region45: #{forward.21} parent=5 // pred_check
      %p751 = pneg %p750
    $region46: #{forward.21} parent=5 // pred_check_branch
      %753 = sbr.rel (%p751) target = $region48
    $region47: #{forward.21} parent=5 // pred_region
      %s754 = ssub.s32 %s11, 2
      // Predicated region
      $region49: #{forward.21} parent=47 // pred_check
        %p755 = pneg %p150
      $region50: #{forward.21} parent=47 // pred_check_branch
        %757 = sbr.rel (%p755) target = $region52
      $region51: #{forward.21} parent=47 // pred_region
        %s758 = smul.u32 16, %s17
        %p759 = scmp.lt.s32.totalorder %s758, 31
        %s760 = scalar_select %p759, %s758, 31
        %s761 = smul.addr %s760, 2
        %s762 = smul.addr %s761, 8
        %s763 = scalar_lea.vmem %s5, %s762
      $region52: #{forward.21} parent=47 // pred_fallthru
        _
    $region48: #{forward.21} parent=5 // pred_fallthru
      _
  $region6: #{forward.21} parent=0 // loop_footer
    %s15 = sadd.s32 1, %s11
  $region7: #{forward.21} parent=0 // loop_footer_branch
    %10 = sbr.rel target = $region3
  $region8: #{forward.21} parent=0 // loop_exit
    _

</llo_original>
